<compile_context>
chip_gen: v7x
topology: tpu7x:2x2x1
jax: 0.10.0
libtpu: 0.0.40
codegen_flags: <defaults>
</compile_context>

<pallas_src>
import math
import jax
import jax.numpy as jnp
from jax.experimental import pallas as pl
from jax.experimental.pallas import tpu as pltpu

# ---- scaled-down T5 config (same architecture as t5-large: RMSNorm, relative attn bias, ReLU FFN) ----
VOCAB = 32
D_MODEL = 64
N_HEADS = 4
D_KV = 16
INNER = N_HEADS * D_KV          # == D_MODEL, as in t5-large
D_FF = 128
N_LAYERS = 2                    # encoder layers == decoder layers
N_BUCKETS = 8
MAX_DIST = 16
EPS = 1e-6
NEG_INF = jnp.finfo(jnp.float32).min

BATCH = 2
ENC_LEN = 8
DEC_LEN = 8

assert INNER == D_MODEL  # required by the lane-axis weight packing below

# packed weight column layouts (lane axis)
ENC_SPLITS = (3 * INNER, D_MODEL, D_FF)                              # QKV | O | Wi
DEC_SPLITS = (3 * INNER, D_MODEL, INNER, 2 * INNER, D_MODEL, D_FF)   # sQKV | sO | cQ | cKV | cO | Wi
ENC_PACK = sum(ENC_SPLITS)
DEC_PACK = sum(DEC_SPLITS)


def _split_cols(w, widths):
    """Static lane-axis slices of a packed (D, sum(widths)) weight slab."""
    outs, off = [], 0
    for n in widths:
        outs.append(w[:, off:off + n])
        off += n
    return outs


# ----------------------------- the single fused Pallas kernel -----------------------------

def _rms(x, w):
    # T5LayerNorm (RMSNorm): no mean subtraction, no bias. f32 math.
    var = jnp.mean(x * x, axis=-1, keepdims=True)
    return x * jax.lax.rsqrt(var + EPS) * w


def _mm(x, w_bf16):
    # bf16 MXU matmul with f32 accumulation (w already bf16).
    return jnp.dot(x.astype(jnp.bfloat16), w_bf16, preferred_element_type=jnp.float32)


def _mha(q, k, v, wo_bf, bias):
    """q:(lq,INNER) k,v:(lk,INNER) f32; wo_bf:(INNER,D_MODEL) bf16; bias:(H,lq,lk) f32 or None.
    Returns the already output-projected (lq, D_MODEL) f32."""
    qb = q.astype(jnp.bfloat16)          # cast once per attention block (not per head)
    kb = k.astype(jnp.bfloat16)
    vb = v.astype(jnp.bfloat16)
    ctxs = []
    for h in range(N_HEADS):             # static unroll: 4 heads
        lo, hi = h * D_KV, (h + 1) * D_KV
        # T5 does NOT scale by 1/sqrt(d_kv)
        s = jnp.einsum('qd,kd->qk', qb[:, lo:hi], kb[:, lo:hi],
                       preferred_element_type=jnp.float32)
        if bias is not None:
            s = s + bias[h]
        s = s - jnp.max(s, axis=-1, keepdims=True)
        p = jnp.exp(s)
        p = p * pl.reciprocal(jnp.sum(p, axis=-1, keepdims=True), approx=True)
        ctxs.append(jnp.dot(p.astype(jnp.bfloat16), vb[:, lo:hi],
                            preferred_element_type=jnp.float32))
    # concat head contexts -> ONE Wo matmul instead of 4 per-head folds
    ctx = jnp.concatenate(ctxs, axis=-1).astype(jnp.bfloat16)          # (lq, INNER)
    return jnp.dot(ctx, wo_bf, preferred_element_type=jnp.float32)     # (lq, D_MODEL)


def _t5_fused_kernel(enc_emb_ref, dec_emb_ref, enc_bias_ref, dec_bias_ref,
                     enc_ln_ref, enc_wA_ref, enc_wo_ref,
                     dec_ln_ref, dec_wA_ref, dec_wo_ref,
                     fin_ln_ref, out_ref):
    """Whole T5 forward for ONE batch element (grid axis = batch). Weights stay resident."""

    # ------------------------------ encoder ------------------------------
    h = enc_emb_ref[...]                               # (Le, D) f32
    enc_bias = enc_bias_ref[...]                       # (H, Le, Le) f32
    for l in range(N_LAYERS):
        ln = enc_ln_ref[l]                             # (2, D)
        qkv_w, o_w, wi_w = _split_cols(enc_wA_ref[l], ENC_SPLITS)
        wo_w = enc_wo_ref[l]                           # (FF, D) bf16

        n = _rms(h, ln[0:1])
        qkv = _mm(n, qkv_w)                            # fused QKV: (Le, 3*INNER)
        h = h + _mha(qkv[:, :INNER], qkv[:, INNER:2 * INNER], qkv[:, 2 * INNER:],
                     o_w, enc_bias)
        n = _rms(h, ln[1:2])
        ff = jnp.maximum(_mm(n, wi_w), 0.0)            # DenseReluDense (non-gated, t5-large)
        h = h + _mm(ff, wo_w)
    enc_out = _rms(h, fin_ln_ref[0:1])                 # (Le, D)
    enc_out_bf = enc_out.astype(jnp.bfloat16)          # hoisted: reused by every decoder layer

    # ------------------------------ decoder ------------------------------
    d = dec_emb_ref[...]                               # (Ld, D)
    dec_bias = dec_bias_ref[...]                       # (H, Ld, Ld): rel bias + causal mask
    for l in range(N_LAYERS):
        ln = dec_ln_ref[l]                             # (3, D)
        sqkv_w, so_w, cq_w, ckv_w, co_w, wi_w = _split_cols(dec_wA_ref[l], DEC_SPLITS)
        wo_w = dec_wo_ref[l]

        n = _rms(d, ln[0:1])
        qkv = _mm(n, sqkv_w)
        d = d + _mha(qkv[:, :INNER], qkv[:, INNER:2 * INNER], qkv[:, 2 * INNER:],
                     so_w, dec_bias)
        n = _rms(d, ln[1:2])
        q = _mm(n, cq_w)                               # (Ld, INNER)
        kv = jnp.dot(enc_out_bf, ckv_w, preferred_element_type=jnp.float32)  # fused K|V
        d = d + _mha(q, kv[:, :INNER], kv[:, INNER:], co_w, None)   # all-zero cross bias dropped
        n = _rms(d, ln[2:3])
        ff = jnp.maximum(_mm(n, wi_w), 0.0)
        d = d + _mm(ff, wo_w)
    out_ref[...] = _rms(d, fin_ln_ref[1:2])            # final decoder LayerNorm


# ----------------------------- T5 glue (plain JAX, outside the kernel) -----------------------------

def _relative_position_bucket(rel_pos, bidirectional, num_buckets, max_distance):
    buckets = jnp.zeros_like(rel_pos)
    if bidirectional:
        num_buckets //= 2
        buckets = buckets + (rel_pos > 0).astype(jnp.int32) * num_buckets
        rel_pos = jnp.abs(rel_pos)
    else:
        rel_pos = -jnp.minimum(rel_pos, 0)
    max_exact = num_buckets // 2
    is_small = rel_pos < max_exact
    rel_large = max_exact + (
        jnp.log(jnp.maximum(rel_pos, 1).astype(jnp.float32) / max_exact)
        / math.log(max_distance / max_exact) * (num_buckets - max_exact)
    ).astype(jnp.int32)
    rel_large = jnp.minimum(rel_large, num_buckets - 1)
    return buckets + jnp.where(is_small, rel_pos, rel_large)


def compute_position_bias(qlen, klen, table, bidirectional):
    ctx = jnp.arange(qlen)[:, None]
    mem = jnp.arange(klen)[None, :]
    rel = mem - ctx
    buckets = _relative_position_bucket(rel, bidirectional, N_BUCKETS, MAX_DIST)
    vals = table[buckets]                          # (q, k, H)
    return jnp.transpose(vals, (2, 0, 1))          # (H, q, k)  -- no batch broadcast


def t5_forward(params, enc_ids, dec_ids):
    """Returns decoder last_hidden_state (B, Ld, D_MODEL) == T5Model(...)[0]."""
    B, Le = enc_ids.shape
    Ld = dec_ids.shape[1]
    embed = params['shared']

    # TODO(synk): embedding gather + relative-position bucketing stay in plain JAX
    #             (no clean Pallas equivalent for the integer gather / log bucketing).
    enc_emb = embed[enc_ids].astype(jnp.float32)       # (B, Le, D); no embedding scaling in T5
    dec_emb = embed[dec_ids].astype(jnp.float32)       # (B, Ld, D)

    enc_bias = compute_position_bias(Le, Le, params['enc_rel_bias'], bidirectional=True)
    causal = jnp.tril(jnp.ones((Ld, Ld), jnp.float32))
    dec_bias = (compute_position_bias(Ld, Ld, params['dec_rel_bias'], bidirectional=False)
                + (1.0 - causal)[None] * NEG_INF)      # HF extended-mask convention

    inputs = [
        enc_emb, dec_emb, enc_bias, dec_bias,
        params['enc_ln'], params['enc_wA'], params['enc_wo'],
        params['dec_ln'], params['dec_wA'], params['dec_wo'],
        params['fin_ln'],
    ]

    def resident(a):   # whole array, same block every grid step -> stays in VMEM
        return pl.BlockSpec(a.shape, lambda b, _nd=a.ndim: (0,) * _nd)

    in_specs = [
        pl.BlockSpec((None, Le, D_MODEL), lambda b: (b, 0, 0)),   # enc_emb: blocked on batch
        pl.BlockSpec((None, Ld, D_MODEL), lambda b: (b, 0, 0)),   # dec_emb: blocked on batch
    ] + [resident(a) for a in inputs[2:]]

    out = pl.pallas_call(
        _t5_fused_kernel,
        out_shape=jax.ShapeDtypeStruct((B, Ld, D_MODEL), jnp.float32),
        grid=(B,),
        in_specs=in_specs,
        out_specs=pl.BlockSpec((None, Ld, D_MODEL), lambda b: (b, 0, 0)),
        compiler_params=pltpu.CompilerParams(dimension_semantics=("parallel",)),
    )(*inputs)
    return out


# ----------------------------- deterministic parameter init (packed layout) -----------------------------

def init_params(key):
    ks = iter(jax.random.split(key, 64))

    def w(shape, scale=0.02, dtype=jnp.bfloat16):
        return (jax.random.normal(next(ks), shape, jnp.float32) * scale).astype(dtype)

    def ln(shape):
        return (jnp.ones(shape, jnp.float32)
                + 0.01 * jax.random.normal(next(ks), shape, jnp.float32))

    NL = N_LAYERS
    # encoder packed weights per layer: [QKV | O | Wi] along the lane axis (one DMA)
    enc_wA = jnp.concatenate([
        w((NL, D_MODEL, 3 * INNER)),     # fused Q|K|V
        w((NL, INNER, D_MODEL)),         # attn output projection (INNER == D_MODEL)
        w((NL, D_MODEL, D_FF)),          # FFN wi
    ], axis=-1)
    # decoder packed weights per layer: [sQKV | sO | cQ | cKV | cO | Wi]
    dec_wA = jnp.concatenate([
        w((NL, D_MODEL, 3 * INNER)),     # self-attn Q|K|V
        w((NL, INNER, D_MODEL)),         # self-attn output projection
        w((NL, D_MODEL, INNER)),         # cross-attn Q
        w((NL, D_MODEL, 2 * INNER)),     # cross-attn K|V
        w((NL, INNER, D_MODEL)),         # cross-attn output projection
        w((NL, D_MODEL, D_FF)),          # FFN wi
    ], axis=-1)
    assert enc_wA.shape == (NL, D_MODEL, ENC_PACK)
    assert dec_wA.shape == (NL, D_MODEL, DEC_PACK)

    return {
        'shared': w((VOCAB, D_MODEL), 1.0, jnp.float32),
        'enc_rel_bias': w((N_BUCKETS, N_HEADS), 0.1, jnp.float32),
        'dec_rel_bias': w((N_BUCKETS, N_HEADS), 0.1, jnp.float32),
        'enc_ln': ln((NL, 2, D_MODEL)),          # [ln1, ln2] per encoder layer
        'enc_wA': enc_wA,
        'enc_wo': w((NL, D_FF, D_MODEL)),
        'dec_ln': ln((NL, 3, D_MODEL)),          # [ln1, ln2, ln3] per decoder layer
        'dec_wA': dec_wA,
        'dec_wo': w((NL, D_FF, D_MODEL)),
        'fin_ln': ln((2, D_MODEL)),              # [encoder final LN, decoder final LN]
    }


# TODO(synk): real t5-large checkpoint weights / SentencePiece tokenization are not reproducible
#             in-script; token ids are synthetic and weights are random-but-deterministic.
# TODO(synk): at real t5-large size (D=1024, 24+24 layers) the all-weights-resident design must
#             switch to a layer grid axis with streamed weight BlockSpecs (v7x VMEM = 64 MiB).

if __name__ == "__main__":
    key = jax.random.PRNGKey(0)
    pkey, ekey, dkey = jax.random.split(key, 3)
    params = init_params(pkey)

    B, Le, Ld = BATCH, ENC_LEN, DEC_LEN
    encoder_input_ids = jax.random.randint(ekey, (B, Le), 0, VOCAB, dtype=jnp.int32)
    decoder_input_ids = jax.random.randint(dkey, (B, Ld), 0, VOCAB, dtype=jnp.int32)

    fwd = jax.jit(t5_forward)
    out = fwd(params, encoder_input_ids, decoder_input_ids)
    out = jax.block_until_ready(out)

    assert out.shape == (B, Ld, D_MODEL), out.shape
    assert bool(jnp.all(jnp.isfinite(out)))
    print("KERNEL_OK")
</pallas_src>

<mosaic_0001>
module attributes {stable_mosaic.version = 11 : i64} {
  func.func @_t5_fused_kernel(%arg0: i32, %arg1: memref<1x8x64xf32, #tpu.memory_space<vmem>>, %arg2: memref<1x8x64xf32, #tpu.memory_space<vmem>>, %arg3: memref<4x8x8xf32, #tpu.memory_space<vmem>>, %arg4: memref<4x8x8xf32, #tpu.memory_space<vmem>>, %arg5: memref<2x2x64xf32, #tpu.memory_space<vmem>>, %arg6: memref<2x64x384xbf16, #tpu.memory_space<vmem>>, %arg7: memref<2x128x64xbf16, #tpu.memory_space<vmem>>, %arg8: memref<2x3x64xf32, #tpu.memory_space<vmem>>, %arg9: memref<2x64x640xbf16, #tpu.memory_space<vmem>>, %arg10: memref<2x128x64xbf16, #tpu.memory_space<vmem>>, %arg11: memref<2x64xf32, #tpu.memory_space<vmem>>, %arg12: memref<1x8x64xf32, #tpu.memory_space<vmem>>) attributes {dimension_semantics = [#tpu.dimension_semantics<parallel>], iteration_bounds = array<i64: 2>, scalar_prefetch = 0 : i64, scratch_operands = 0 : i64, tpu.core_type = #tpu.core_type<tc>, window_params = [{transform_indices = @transform_0, window_bounds = array<i64: 1, 8, 64>}, {transform_indices = @transform_1, window_bounds = array<i64: 1, 8, 64>}, {pipeline_mode = #tpu.pipeline_mode<synchronous>, transform_indices = @transform_2, window_bounds = array<i64: 4, 8, 8>}, {pipeline_mode = #tpu.pipeline_mode<synchronous>, transform_indices = @transform_3, window_bounds = array<i64: 4, 8, 8>}, {pipeline_mode = #tpu.pipeline_mode<synchronous>, transform_indices = @transform_4, window_bounds = array<i64: 2, 2, 64>}, {pipeline_mode = #tpu.pipeline_mode<synchronous>, transform_indices = @transform_5, window_bounds = array<i64: 2, 64, 384>}, {pipeline_mode = #tpu.pipeline_mode<synchronous>, transform_indices = @transform_6, window_bounds = array<i64: 2, 128, 64>}, {pipeline_mode = #tpu.pipeline_mode<synchronous>, transform_indices = @transform_7, window_bounds = array<i64: 2, 3, 64>}, {pipeline_mode = #tpu.pipeline_mode<synchronous>, transform_indices = @transform_8, window_bounds = array<i64: 2, 64, 640>}, {pipeline_mode = #tpu.pipeline_mode<synchronous>, transform_indices = @transform_9, window_bounds = array<i64: 2, 128, 64>}, {pipeline_mode = #tpu.pipeline_mode<synchronous>, transform_indices = @transform_10, window_bounds = array<i64: 2, 64>}, {transform_indices = @transform_11, window_bounds = array<i64: 1, 8, 64>}]} {
    %c0 = arith.constant 0 : index
    %c0_0 = arith.constant 0 : index
    %c0_1 = arith.constant 0 : index
    %0 = vector.load %arg1[%c0, %c0_0, %c0_1] : memref<1x8x64xf32, #tpu.memory_space<vmem>>, vector<1x8x64xf32>
    %1 = vector.shape_cast %0 : vector<1x8x64xf32> to vector<8x64xf32>
    %c0_2 = arith.constant 0 : index
    %c0_3 = arith.constant 0 : index
    %c0_4 = arith.constant 0 : index
    %2 = vector.load %arg3[%c0_2, %c0_3, %c0_4] : memref<4x8x8xf32, #tpu.memory_space<vmem>>, vector<4x8x8xf32>
    %c0_5 = arith.constant 0 : index
    %c0_6 = arith.constant 0 : index
    %c0_7 = arith.constant 0 : index
    %3 = vector.load %arg5[%c0_5, %c0_6, %c0_7] : memref<2x2x64xf32, #tpu.memory_space<vmem>>, vector<1x2x64xf32>
    %4 = vector.shape_cast %3 : vector<1x2x64xf32> to vector<2x64xf32>
    %c0_8 = arith.constant 0 : index
    %c0_9 = arith.constant 0 : index
    %c0_10 = arith.constant 0 : index
    %5 = vector.load %arg6[%c0_8, %c0_9, %c0_10] : memref<2x64x384xbf16, #tpu.memory_space<vmem>>, vector<1x64x384xbf16>
    %6 = vector.shape_cast %5 : vector<1x64x384xbf16> to vector<64x384xbf16>
    %7 = vector.extract_strided_slice %6 {offsets = [0, 0], sizes = [64, 192], strides = [1, 1]} : vector<64x384xbf16> to vector<64x192xbf16>
    %8 = vector.extract_strided_slice %6 {offsets = [0, 192], sizes = [64, 64], strides = [1, 1]} : vector<64x384xbf16> to vector<64x64xbf16>
    %9 = vector.extract_strided_slice %6 {offsets = [0, 256], sizes = [64, 128], strides = [1, 1]} : vector<64x384xbf16> to vector<64x128xbf16>
    %c0_11 = arith.constant 0 : index
    %c0_12 = arith.constant 0 : index
    %c0_13 = arith.constant 0 : index
    %10 = vector.load %arg7[%c0_11, %c0_12, %c0_13] : memref<2x128x64xbf16, #tpu.memory_space<vmem>>, vector<1x128x64xbf16>
    %11 = vector.shape_cast %10 : vector<1x128x64xbf16> to vector<128x64xbf16>
    %12 = vector.extract_strided_slice %4 {offsets = [0, 0], sizes = [1, 64], strides = [1, 1]} : vector<2x64xf32> to vector<1x64xf32>
    %13 = arith.mulf %1, %1 : vector<8x64xf32>
    %cst = arith.constant dense<0.000000e+00> : vector<8xf32>
    %14 = vector.multi_reduction <add>, %13, %cst [1] : vector<8x64xf32> to vector<8xf32>
    %15 = vector.shape_cast %14 : vector<8xf32> to vector<8x1xf32>
    %cst_14 = arith.constant 6.400000e+01 : f32
    %16 = vector.broadcast %cst_14 : f32 to vector<8x1xf32>
    %17 = arith.divf %15, %16 : vector<8x1xf32>
    %cst_15 = arith.constant 9.99999997E-7 : f32
    %18 = vector.broadcast %cst_15 : f32 to vector<8x1xf32>
    %19 = arith.addf %17, %18 : vector<8x1xf32>
    %20 = math.rsqrt %19 : vector<8x1xf32>
    %21 = vector.broadcast %20 : vector<8x1xf32> to vector<8x64xf32>
    %22 = arith.mulf %1, %21 : vector<8x64xf32>
    %23 = vector.broadcast %12 : vector<1x64xf32> to vector<8x64xf32>
    %24 = arith.mulf %22, %23 : vector<8x64xf32>
    %25 = arith.truncf %24 : vector<8x64xf32> to vector<8x64xbf16>
    %cst_16 = arith.constant dense<0.000000e+00> : vector<8x192xf32>
    %26 = tpu.matmul %25, %7, %cst_16 {dimension_numbers = #tpu.dot_dimension_numbers<[1], [0], [0], [1], [0, 0, 1, 1], [], []>} : vector<8x64xbf16>, vector<64x192xbf16>, vector<8x192xf32> -> vector<8x192xf32>
    %27 = vector.extract_strided_slice %26 {offsets = [0, 0], sizes = [8, 64], strides = [1, 1]} : vector<8x192xf32> to vector<8x64xf32>
    %28 = vector.extract_strided_slice %26 {offsets = [0, 64], sizes = [8, 64], strides = [1, 1]} : vector<8x192xf32> to vector<8x64xf32>
    %29 = vector.extract_strided_slice %26 {offsets = [0, 128], sizes = [8, 64], strides = [1, 1]} : vector<8x192xf32> to vector<8x64xf32>
    %30 = arith.truncf %27 : vector<8x64xf32> to vector<8x64xbf16>
    %31 = arith.truncf %28 : vector<8x64xf32> to vector<8x64xbf16>
    %32 = arith.truncf %29 : vector<8x64xf32> to vector<8x64xbf16>
    %33 = vector.extract_strided_slice %30 {offsets = [0, 0], sizes = [8, 16], strides = [1, 1]} : vector<8x64xbf16> to vector<8x16xbf16>
    %34 = vector.extract_strided_slice %31 {offsets = [0, 0], sizes = [8, 16], strides = [1, 1]} : vector<8x64xbf16> to vector<8x16xbf16>
    "tpu.trace_start"() <{level = 10 : i32, message = "qd,kd->qk"}> : () -> ()
    %cst_17 = arith.constant dense<0.000000e+00> : vector<8x8xf32>
    %35 = tpu.matmul %33, %34, %cst_17 {dimension_numbers = #tpu.dot_dimension_numbers<[1], [1], [0], [0], [0, 0, 1, 0], [], []>} : vector<8x16xbf16>, vector<8x16xbf16>, vector<8x8xf32> -> vector<8x8xf32>
    "tpu.trace_stop"() : () -> ()
    %36 = vector.extract_strided_slice %2 {offsets = [0, 0, 0], sizes = [1, 8, 8], strides = [1, 1, 1]} : vector<4x8x8xf32> to vector<1x8x8xf32>
    %37 = vector.shape_cast %36 : vector<1x8x8xf32> to vector<8x8xf32>
    %38 = arith.addf %35, %37 : vector<8x8xf32>
    %cst_18 = arith.constant dense<0xFF800000> : vector<8xf32>
    %39 = vector.multi_reduction <maximumf>, %38, %cst_18 [1] : vector<8x8xf32> to vector<8xf32>
    %40 = vector.shape_cast %39 : vector<8xf32> to vector<8x1xf32>
    %41 = vector.broadcast %40 : vector<8x1xf32> to vector<8x8xf32>
    %42 = arith.subf %38, %41 : vector<8x8xf32>
    %43 = math.exp %42 : vector<8x8xf32>
    %cst_19 = arith.constant dense<0.000000e+00> : vector<8xf32>
    %44 = vector.multi_reduction <add>, %43, %cst_19 [1] : vector<8x8xf32> to vector<8xf32>
    %45 = vector.shape_cast %44 : vector<8xf32> to vector<8x1xf32>
    %46 = tpu.reciprocal %45 {approx = true} : vector<8x1xf32> -> vector<8x1xf32>
    %47 = vector.broadcast %46 : vector<8x1xf32> to vector<8x8xf32>
    %48 = arith.mulf %43, %47 : vector<8x8xf32>
    %49 = arith.truncf %48 : vector<8x8xf32> to vector<8x8xbf16>
    %50 = vector.extract_strided_slice %32 {offsets = [0, 0], sizes = [8, 16], strides = [1, 1]} : vector<8x64xbf16> to vector<8x16xbf16>
    %cst_20 = arith.constant dense<0.000000e+00> : vector<8x16xf32>
    %51 = tpu.matmul %49, %50, %cst_20 {dimension_numbers = #tpu.dot_dimension_numbers<[1], [0], [0], [1], [0, 0, 1, 1], [], []>} : vector<8x8xbf16>, vector<8x16xbf16>, vector<8x16xf32> -> vector<8x16xf32>
    %52 = vector.extract_strided_slice %30 {offsets = [0, 16], sizes = [8, 16], strides = [1, 1]} : vector<8x64xbf16> to vector<8x16xbf16>
    %53 = vector.extract_strided_slice %31 {offsets = [0, 16], sizes = [8, 16], strides = [1, 1]} : vector<8x64xbf16> to vector<8x16xbf16>
    "tpu.trace_start"() <{level = 10 : i32, message = "qd,kd->qk"}> : () -> ()
    %cst_21 = arith.constant dense<0.000000e+00> : vector<8x8xf32>
    %54 = tpu.matmul %52, %53, %cst_21 {dimension_numbers = #tpu.dot_dimension_numbers<[1], [1], [0], [0], [0, 0, 1, 0], [], []>} : vector<8x16xbf16>, vector<8x16xbf16>, vector<8x8xf32> -> vector<8x8xf32>
    "tpu.trace_stop"() : () -> ()
    %55 = vector.extract_strided_slice %2 {offsets = [1, 0, 0], sizes = [1, 8, 8], strides = [1, 1, 1]} : vector<4x8x8xf32> to vector<1x8x8xf32>
    %56 = vector.shape_cast %55 : vector<1x8x8xf32> to vector<8x8xf32>
    %57 = arith.addf %54, %56 : vector<8x8xf32>
    %cst_22 = arith.constant dense<0xFF800000> : vector<8xf32>
    %58 = vector.multi_reduction <maximumf>, %57, %cst_22 [1] : vector<8x8xf32> to vector<8xf32>
    %59 = vector.shape_cast %58 : vector<8xf32> to vector<8x1xf32>
    %60 = vector.broadcast %59 : vector<8x1xf32> to vector<8x8xf32>
    %61 = arith.subf %57, %60 : vector<8x8xf32>
    %62 = math.exp %61 : vector<8x8xf32>
    %cst_23 = arith.constant dense<0.000000e+00> : vector<8xf32>
    %63 = vector.multi_reduction <add>, %62, %cst_23 [1] : vector<8x8xf32> to vector<8xf32>
    %64 = vector.shape_cast %63 : vector<8xf32> to vector<8x1xf32>
    %65 = tpu.reciprocal %64 {approx = true} : vector<8x1xf32> -> vector<8x1xf32>
    %66 = vector.broadcast %65 : vector<8x1xf32> to vector<8x8xf32>
    %67 = arith.mulf %62, %66 : vector<8x8xf32>
    %68 = arith.truncf %67 : vector<8x8xf32> to vector<8x8xbf16>
    %69 = vector.extract_strided_slice %32 {offsets = [0, 16], sizes = [8, 16], strides = [1, 1]} : vector<8x64xbf16> to vector<8x16xbf16>
    %cst_24 = arith.constant dense<0.000000e+00> : vector<8x16xf32>
    %70 = tpu.matmul %68, %69, %cst_24 {dimension_numbers = #tpu.dot_dimension_numbers<[1], [0], [0], [1], [0, 0, 1, 1], [], []>} : vector<8x8xbf16>, vector<8x16xbf16>, vector<8x16xf32> -> vector<8x16xf32>
    %71 = vector.extract_strided_slice %30 {offsets = [0, 32], sizes = [8, 16], strides = [1, 1]} : vector<8x64xbf16> to vector<8x16xbf16>
    %72 = vector.extract_strided_slice %31 {offsets = [0, 32], sizes = [8, 16], strides = [1, 1]} : vector<8x64xbf16> to vector<8x16xbf16>
    "tpu.trace_start"() <{level = 10 : i32, message = "qd,kd->qk"}> : () -> ()
    %cst_25 = arith.constant dense<0.000000e+00> : vector<8x8xf32>
    %73 = tpu.matmul %71, %72, %cst_25 {dimension_numbers = #tpu.dot_dimension_numbers<[1], [1], [0], [0], [0, 0, 1, 0], [], []>} : vector<8x16xbf16>, vector<8x16xbf16>, vector<8x8xf32> -> vector<8x8xf32>
    "tpu.trace_stop"() : () -> ()
    %74 = vector.extract_strided_slice %2 {offsets = [2, 0, 0], sizes = [1, 8, 8], strides = [1, 1, 1]} : vector<4x8x8xf32> to vector<1x8x8xf32>
    %75 = vector.shape_cast %74 : vector<1x8x8xf32> to vector<8x8xf32>
    %76 = arith.addf %73, %75 : vector<8x8xf32>
    %cst_26 = arith.constant dense<0xFF800000> : vector<8xf32>
    %77 = vector.multi_reduction <maximumf>, %76, %cst_26 [1] : vector<8x8xf32> to vector<8xf32>
    %78 = vector.shape_cast %77 : vector<8xf32> to vector<8x1xf32>
    %79 = vector.broadcast %78 : vector<8x1xf32> to vector<8x8xf32>
    %80 = arith.subf %76, %79 : vector<8x8xf32>
    %81 = math.exp %80 : vector<8x8xf32>
    %cst_27 = arith.constant dense<0.000000e+00> : vector<8xf32>
    %82 = vector.multi_reduction <add>, %81, %cst_27 [1] : vector<8x8xf32> to vector<8xf32>
    %83 = vector.shape_cast %82 : vector<8xf32> to vector<8x1xf32>
    %84 = tpu.reciprocal %83 {approx = true} : vector<8x1xf32> -> vector<8x1xf32>
    %85 = vector.broadcast %84 : vector<8x1xf32> to vector<8x8xf32>
    %86 = arith.mulf %81, %85 : vector<8x8xf32>
    %87 = arith.truncf %86 : vector<8x8xf32> to vector<8x8xbf16>
    %88 = vector.extract_strided_slice %32 {offsets = [0, 32], sizes = [8, 16], strides = [1, 1]} : vector<8x64xbf16> to vector<8x16xbf16>
    %cst_28 = arith.constant dense<0.000000e+00> : vector<8x16xf32>
    %89 = tpu.matmul %87, %88, %cst_28 {dimension_numbers = #tpu.dot_dimension_numbers<[1], [0], [0], [1], [0, 0, 1, 1], [], []>} : vector<8x8xbf16>, vector<8x16xbf16>, vector<8x16xf32> -> vector<8x16xf32>
    %90 = vector.extract_strided_slice %30 {offsets = [0, 48], sizes = [8, 16], strides = [1, 1]} : vector<8x64xbf16> to vector<8x16xbf16>
    %91 = vector.extract_strided_slice %31 {offsets = [0, 48], sizes = [8, 16], strides = [1, 1]} : vector<8x64xbf16> to vector<8x16xbf16>
    "tpu.trace_start"() <{level = 10 : i32, message = "qd,kd->qk"}> : () -> ()
    %cst_29 = arith.constant dense<0.000000e+00> : vector<8x8xf32>
    %92 = tpu.matmul %90, %91, %cst_29 {dimension_numbers = #tpu.dot_dimension_numbers<[1], [1], [0], [0], [0, 0, 1, 0], [], []>} : vector<8x16xbf16>, vector<8x16xbf16>, vector<8x8xf32> -> vector<8x8xf32>
    "tpu.trace_stop"() : () -> ()
    %93 = vector.extract_strided_slice %2 {offsets = [3, 0, 0], sizes = [1, 8, 8], strides = [1, 1, 1]} : vector<4x8x8xf32> to vector<1x8x8xf32>
    %94 = vector.shape_cast %93 : vector<1x8x8xf32> to vector<8x8xf32>
    %95 = arith.addf %92, %94 : vector<8x8xf32>
    %cst_30 = arith.constant dense<0xFF800000> : vector<8xf32>
    %96 = vector.multi_reduction <maximumf>, %95, %cst_30 [1] : vector<8x8xf32> to vector<8xf32>
    %97 = vector.shape_cast %96 : vector<8xf32> to vector<8x1xf32>
    %98 = vector.broadcast %97 : vector<8x1xf32> to vector<8x8xf32>
    %99 = arith.subf %95, %98 : vector<8x8xf32>
    %100 = math.exp %99 : vector<8x8xf32>
    %cst_31 = arith.constant dense<0.000000e+00> : vector<8xf32>
    %101 = vector.multi_reduction <add>, %100, %cst_31 [1] : vector<8x8xf32> to vector<8xf32>
    %102 = vector.shape_cast %101 : vector<8xf32> to vector<8x1xf32>
    %103 = tpu.reciprocal %102 {approx = true} : vector<8x1xf32> -> vector<8x1xf32>
    %104 = vector.broadcast %103 : vector<8x1xf32> to vector<8x8xf32>
    %105 = arith.mulf %100, %104 : vector<8x8xf32>
    %106 = arith.truncf %105 : vector<8x8xf32> to vector<8x8xbf16>
    %107 = vector.extract_strided_slice %32 {offsets = [0, 48], sizes = [8, 16], strides = [1, 1]} : vector<8x64xbf16> to vector<8x16xbf16>
    %cst_32 = arith.constant dense<0.000000e+00> : vector<8x16xf32>
    %108 = tpu.matmul %106, %107, %cst_32 {dimension_numbers = #tpu.dot_dimension_numbers<[1], [0], [0], [1], [0, 0, 1, 1], [], []>} : vector<8x8xbf16>, vector<8x16xbf16>, vector<8x16xf32> -> vector<8x16xf32>
    %109 = tpu.concatenate %51, %70, %89, %108 in 1 : vector<8x16xf32>, vector<8x16xf32>, vector<8x16xf32>, vector<8x16xf32> -> vector<8x64xf32>
    %110 = arith.truncf %109 : vector<8x64xf32> to vector<8x64xbf16>
    %cst_33 = arith.constant dense<0.000000e+00> : vector<8x64xf32>
    %111 = tpu.matmul %110, %8, %cst_33 {dimension_numbers = #tpu.dot_dimension_numbers<[1], [0], [0], [1], [0, 0, 1, 1], [], []>} : vector<8x64xbf16>, vector<64x64xbf16>, vector<8x64xf32> -> vector<8x64xf32>
    %112 = arith.addf %1, %111 : vector<8x64xf32>
    %113 = vector.extract_strided_slice %4 {offsets = [1, 0], sizes = [1, 64], strides = [1, 1]} : vector<2x64xf32> to vector<1x64xf32>
    %114 = arith.mulf %112, %112 : vector<8x64xf32>
    %cst_34 = arith.constant dense<0.000000e+00> : vector<8xf32>
    %115 = vector.multi_reduction <add>, %114, %cst_34 [1] : vector<8x64xf32> to vector<8xf32>
    %116 = vector.shape_cast %115 : vector<8xf32> to vector<8x1xf32>
    %cst_35 = arith.constant 6.400000e+01 : f32
    %117 = vector.broadcast %cst_35 : f32 to vector<8x1xf32>
    %118 = arith.divf %116, %117 : vector<8x1xf32>
    %cst_36 = arith.constant 9.99999997E-7 : f32
    %119 = vector.broadcast %cst_36 : f32 to vector<8x1xf32>
    %120 = arith.addf %118, %119 : vector<8x1xf32>
    %121 = math.rsqrt %120 : vector<8x1xf32>
    %122 = vector.broadcast %121 : vector<8x1xf32> to vector<8x64xf32>
    %123 = arith.mulf %112, %122 : vector<8x64xf32>
    %124 = vector.broadcast %113 : vector<1x64xf32> to vector<8x64xf32>
    %125 = arith.mulf %123, %124 : vector<8x64xf32>
    %126 = arith.truncf %125 : vector<8x64xf32> to vector<8x64xbf16>
    %cst_37 = arith.constant dense<0.000000e+00> : vector<8x128xf32>
    %127 = tpu.matmul %126, %9, %cst_37 {dimension_numbers = #tpu.dot_dimension_numbers<[1], [0], [0], [1], [0, 0, 1, 1], [], []>} : vector<8x64xbf16>, vector<64x128xbf16>, vector<8x128xf32> -> vector<8x128xf32>
    %cst_38 = arith.constant 0.000000e+00 : f32
    %128 = vector.broadcast %cst_38 : f32 to vector<8x128xf32>
    %129 = arith.maximumf %127, %128 : vector<8x128xf32>
    %130 = arith.truncf %129 : vector<8x128xf32> to vector<8x128xbf16>
    %cst_39 = arith.constant dense<0.000000e+00> : vector<8x64xf32>
    %131 = tpu.matmul %130, %11, %cst_39 {dimension_numbers = #tpu.dot_dimension_numbers<[1], [0], [0], [1], [0, 0, 1, 1], [], []>} : vector<8x128xbf16>, vector<128x64xbf16>, vector<8x64xf32> -> vector<8x64xf32>
    %132 = arith.addf %112, %131 : vector<8x64xf32>
    %c1 = arith.constant 1 : index
    %c0_40 = arith.constant 0 : index
    %c0_41 = arith.constant 0 : index
    %133 = vector.load %arg5[%c1, %c0_40, %c0_41] : memref<2x2x64xf32, #tpu.memory_space<vmem>>, vector<1x2x64xf32>
    %134 = vector.shape_cast %133 : vector<1x2x64xf32> to vector<2x64xf32>
    %c1_42 = arith.constant 1 : index
    %c0_43 = arith.constant 0 : index
    %c0_44 = arith.constant 0 : index
    %135 = vector.load %arg6[%c1_42, %c0_43, %c0_44] : memref<2x64x384xbf16, #tpu.memory_space<vmem>>, vector<1x64x384xbf16>
    %136 = vector.shape_cast %135 : vector<1x64x384xbf16> to vector<64x384xbf16>
    %137 = vector.extract_strided_slice %136 {offsets = [0, 0], sizes = [64, 192], strides = [1, 1]} : vector<64x384xbf16> to vector<64x192xbf16>
    %138 = vector.extract_strided_slice %136 {offsets = [0, 192], sizes = [64, 64], strides = [1, 1]} : vector<64x384xbf16> to vector<64x64xbf16>
    %139 = vector.extract_strided_slice %136 {offsets = [0, 256], sizes = [64, 128], strides = [1, 1]} : vector<64x384xbf16> to vector<64x128xbf16>
    %c1_45 = arith.constant 1 : index
    %c0_46 = arith.constant 0 : index
    %c0_47 = arith.constant 0 : index
    %140 = vector.load %arg7[%c1_45, %c0_46, %c0_47] : memref<2x128x64xbf16, #tpu.memory_space<vmem>>, vector<1x128x64xbf16>
    %141 = vector.shape_cast %140 : vector<1x128x64xbf16> to vector<128x64xbf16>
    %142 = vector.extract_strided_slice %134 {offsets = [0, 0], sizes = [1, 64], strides = [1, 1]} : vector<2x64xf32> to vector<1x64xf32>
    %143 = arith.mulf %132, %132 : vector<8x64xf32>
    %cst_48 = arith.constant dense<0.000000e+00> : vector<8xf32>
    %144 = vector.multi_reduction <add>, %143, %cst_48 [1] : vector<8x64xf32> to vector<8xf32>
    %145 = vector.shape_cast %144 : vector<8xf32> to vector<8x1xf32>
    %cst_49 = arith.constant 6.400000e+01 : f32
    %146 = vector.broadcast %cst_49 : f32 to vector<8x1xf32>
    %147 = arith.divf %145, %146 : vector<8x1xf32>
    %cst_50 = arith.constant 9.99999997E-7 : f32
    %148 = vector.broadcast %cst_50 : f32 to vector<8x1xf32>
    %149 = arith.addf %147, %148 : vector<8x1xf32>
    %150 = math.rsqrt %149 : vector<8x1xf32>
    %151 = vector.broadcast %150 : vector<8x1xf32> to vector<8x64xf32>
    %152 = arith.mulf %132, %151 : vector<8x64xf32>
    %153 = vector.broadcast %142 : vector<1x64xf32> to vector<8x64xf32>
    %154 = arith.mulf %152, %153 : vector<8x64xf32>
    %155 = arith.truncf %154 : vector<8x64xf32> to vector<8x64xbf16>
    %cst_51 = arith.constant dense<0.000000e+00> : vector<8x192xf32>
    %156 = tpu.matmul %155, %137, %cst_51 {dimension_numbers = #tpu.dot_dimension_numbers<[1], [0], [0], [1], [0, 0, 1, 1], [], []>} : vector<8x64xbf16>, vector<64x192xbf16>, vector<8x192xf32> -> vector<8x192xf32>
    %157 = vector.extract_strided_slice %156 {offsets = [0, 0], sizes = [8, 64], strides = [1, 1]} : vector<8x192xf32> to vector<8x64xf32>
    %158 = vector.extract_strided_slice %156 {offsets = [0, 64], sizes = [8, 64], strides = [1, 1]} : vector<8x192xf32> to vector<8x64xf32>
    %159 = vector.extract_strided_slice %156 {offsets = [0, 128], sizes = [8, 64], strides = [1, 1]} : vector<8x192xf32> to vector<8x64xf32>
    %160 = arith.truncf %157 : vector<8x64xf32> to vector<8x64xbf16>
    %161 = arith.truncf %158 : vector<8x64xf32> to vector<8x64xbf16>
    %162 = arith.truncf %159 : vector<8x64xf32> to vector<8x64xbf16>
    %163 = vector.extract_strided_slice %160 {offsets = [0, 0], sizes = [8, 16], strides = [1, 1]} : vector<8x64xbf16> to vector<8x16xbf16>
    %164 = vector.extract_strided_slice %161 {offsets = [0, 0], sizes = [8, 16], strides = [1, 1]} : vector<8x64xbf16> to vector<8x16xbf16>
    "tpu.trace_start"() <{level = 10 : i32, message = "qd,kd->qk"}> : () -> ()
    %cst_52 = arith.constant dense<0.000000e+00> : vector<8x8xf32>
    %165 = tpu.matmul %163, %164, %cst_52 {dimension_numbers = #tpu.dot_dimension_numbers<[1], [1], [0], [0], [0, 0, 1, 0], [], []>} : vector<8x16xbf16>, vector<8x16xbf16>, vector<8x8xf32> -> vector<8x8xf32>
    "tpu.trace_stop"() : () -> ()
    %166 = vector.extract_strided_slice %2 {offsets = [0, 0, 0], sizes = [1, 8, 8], strides = [1, 1, 1]} : vector<4x8x8xf32> to vector<1x8x8xf32>
    %167 = vector.shape_cast %166 : vector<1x8x8xf32> to vector<8x8xf32>
    %168 = arith.addf %165, %167 : vector<8x8xf32>
    %cst_53 = arith.constant dense<0xFF800000> : vector<8xf32>
    %169 = vector.multi_reduction <maximumf>, %168, %cst_53 [1] : vector<8x8xf32> to vector<8xf32>
    %170 = vector.shape_cast %169 : vector<8xf32> to vector<8x1xf32>
    %171 = vector.broadcast %170 : vector<8x1xf32> to vector<8x8xf32>
    %172 = arith.subf %168, %171 : vector<8x8xf32>
    %173 = math.exp %172 : vector<8x8xf32>
    %cst_54 = arith.constant dense<0.000000e+00> : vector<8xf32>
    %174 = vector.multi_reduction <add>, %173, %cst_54 [1] : vector<8x8xf32> to vector<8xf32>
    %175 = vector.shape_cast %174 : vector<8xf32> to vector<8x1xf32>
    %176 = tpu.reciprocal %175 {approx = true} : vector<8x1xf32> -> vector<8x1xf32>
    %177 = vector.broadcast %176 : vector<8x1xf32> to vector<8x8xf32>
    %178 = arith.mulf %173, %177 : vector<8x8xf32>
    %179 = arith.truncf %178 : vector<8x8xf32> to vector<8x8xbf16>
    %180 = vector.extract_strided_slice %162 {offsets = [0, 0], sizes = [8, 16], strides = [1, 1]} : vector<8x64xbf16> to vector<8x16xbf16>
    %cst_55 = arith.constant dense<0.000000e+00> : vector<8x16xf32>
    %181 = tpu.matmul %179, %180, %cst_55 {dimension_numbers = #tpu.dot_dimension_numbers<[1], [0], [0], [1], [0, 0, 1, 1], [], []>} : vector<8x8xbf16>, vector<8x16xbf16>, vector<8x16xf32> -> vector<8x16xf32>
    %182 = vector.extract_strided_slice %160 {offsets = [0, 16], sizes = [8, 16], strides = [1, 1]} : vector<8x64xbf16> to vector<8x16xbf16>
    %183 = vector.extract_strided_slice %161 {offsets = [0, 16], sizes = [8, 16], strides = [1, 1]} : vector<8x64xbf16> to vector<8x16xbf16>
    "tpu.trace_start"() <{level = 10 : i32, message = "qd,kd->qk"}> : () -> ()
    %cst_56 = arith.constant dense<0.000000e+00> : vector<8x8xf32>
    %184 = tpu.matmul %182, %183, %cst_56 {dimension_numbers = #tpu.dot_dimension_numbers<[1], [1], [0], [0], [0, 0, 1, 0], [], []>} : vector<8x16xbf16>, vector<8x16xbf16>, vector<8x8xf32> -> vector<8x8xf32>
    "tpu.trace_stop"() : () -> ()
    %185 = vector.extract_strided_slice %2 {offsets = [1, 0, 0], sizes = [1, 8, 8], strides = [1, 1, 1]} : vector<4x8x8xf32> to vector<1x8x8xf32>
    %186 = vector.shape_cast %185 : vector<1x8x8xf32> to vector<8x8xf32>
    %187 = arith.addf %184, %186 : vector<8x8xf32>
    %cst_57 = arith.constant dense<0xFF800000> : vector<8xf32>
    %188 = vector.multi_reduction <maximumf>, %187, %cst_57 [1] : vector<8x8xf32> to vector<8xf32>
    %189 = vector.shape_cast %188 : vector<8xf32> to vector<8x1xf32>
    %190 = vector.broadcast %189 : vector<8x1xf32> to vector<8x8xf32>
    %191 = arith.subf %187, %190 : vector<8x8xf32>
    %192 = math.exp %191 : vector<8x8xf32>
    %cst_58 = arith.constant dense<0.000000e+00> : vector<8xf32>
    %193 = vector.multi_reduction <add>, %192, %cst_58 [1] : vector<8x8xf32> to vector<8xf32>
    %194 = vector.shape_cast %193 : vector<8xf32> to vector<8x1xf32>
    %195 = tpu.reciprocal %194 {approx = true} : vector<8x1xf32> -> vector<8x1xf32>
    %196 = vector.broadcast %195 : vector<8x1xf32> to vector<8x8xf32>
    %197 = arith.mulf %192, %196 : vector<8x8xf32>
    %198 = arith.truncf %197 : vector<8x8xf32> to vector<8x8xbf16>
    %199 = vector.extract_strided_slice %162 {offsets = [0, 16], sizes = [8, 16], strides = [1, 1]} : vector<8x64xbf16> to vector<8x16xbf16>
    %cst_59 = arith.constant dense<0.000000e+00> : vector<8x16xf32>
    %200 = tpu.matmul %198, %199, %cst_59 {dimension_numbers = #tpu.dot_dimension_numbers<[1], [0], [0], [1], [0, 0, 1, 1], [], []>} : vector<8x8xbf16>, vector<8x16xbf16>, vector<8x16xf32> -> vector<8x16xf32>
    %201 = vector.extract_strided_slice %160 {offsets = [0, 32], sizes = [8, 16], strides = [1, 1]} : vector<8x64xbf16> to vector<8x16xbf16>
    %202 = vector.extract_strided_slice %161 {offsets = [0, 32], sizes = [8, 16], strides = [1, 1]} : vector<8x64xbf16> to vector<8x16xbf16>
    "tpu.trace_start"() <{level = 10 : i32, message = "qd,kd->qk"}> : () -> ()
    %cst_60 = arith.constant dense<0.000000e+00> : vector<8x8xf32>
    %203 = tpu.matmul %201, %202, %cst_60 {dimension_numbers = #tpu.dot_dimension_numbers<[1], [1], [0], [0], [0, 0, 1, 0], [], []>} : vector<8x16xbf16>, vector<8x16xbf16>, vector<8x8xf32> -> vector<8x8xf32>
    "tpu.trace_stop"() : () -> ()
    %204 = vector.extract_strided_slice %2 {offsets = [2, 0, 0], sizes = [1, 8, 8], strides = [1, 1, 1]} : vector<4x8x8xf32> to vector<1x8x8xf32>
    %205 = vector.shape_cast %204 : vector<1x8x8xf32> to vector<8x8xf32>
    %206 = arith.addf %203, %205 : vector<8x8xf32>
    %cst_61 = arith.constant dense<0xFF800000> : vector<8xf32>
    %207 = vector.multi_reduction <maximumf>, %206, %cst_61 [1] : vector<8x8xf32> to vector<8xf32>
    %208 = vector.shape_cast %207 : vector<8xf32> to vector<8x1xf32>
    %209 = vector.broadcast %208 : vector<8x1xf32> to vector<8x8xf32>
    %210 = arith.subf %206, %209 : vector<8x8xf32>
    %211 = math.exp %210 : vector<8x8xf32>
    %cst_62 = arith.constant dense<0.000000e+00> : vector<8xf32>
    %212 = vector.multi_reduction <add>, %211, %cst_62 [1] : vector<8x8xf32> to vector<8xf32>
    %213 = vector.shape_cast %212 : vector<8xf32> to vector<8x1xf32>
    %214 = tpu.reciprocal %213 {approx = true} : vector<8x1xf32> -> vector<8x1xf32>
    %215 = vector.broadcast %214 : vector<8x1xf32> to vector<8x8xf32>
    %216 = arith.mulf %211, %215 : vector<8x8xf32>
    %217 = arith.truncf %216 : vector<8x8xf32> to vector<8x8xbf16>
    %218 = vector.extract_strided_slice %162 {offsets = [0, 32], sizes = [8, 16], strides = [1, 1]} : vector<8x64xbf16> to vector<8x16xbf16>
    %cst_63 = arith.constant dense<0.000000e+00> : vector<8x16xf32>
    %219 = tpu.matmul %217, %218, %cst_63 {dimension_numbers = #tpu.dot_dimension_numbers<[1], [0], [0], [1], [0, 0, 1, 1], [], []>} : vector<8x8xbf16>, vector<8x16xbf16>, vector<8x16xf32> -> vector<8x16xf32>
    %220 = vector.extract_strided_slice %160 {offsets = [0, 48], sizes = [8, 16], strides = [1, 1]} : vector<8x64xbf16> to vector<8x16xbf16>
    %221 = vector.extract_strided_slice %161 {offsets = [0, 48], sizes = [8, 16], strides = [1, 1]} : vector<8x64xbf16> to vector<8x16xbf16>
    "tpu.trace_start"() <{level = 10 : i32, message = "qd,kd->qk"}> : () -> ()
    %cst_64 = arith.constant dense<0.000000e+00> : vector<8x8xf32>
    %222 = tpu.matmul %220, %221, %cst_64 {dimension_numbers = #tpu.dot_dimension_numbers<[1], [1], [0], [0], [0, 0, 1, 0], [], []>} : vector<8x16xbf16>, vector<8x16xbf16>, vector<8x8xf32> -> vector<8x8xf32>
    "tpu.trace_stop"() : () -> ()
    %223 = vector.extract_strided_slice %2 {offsets = [3, 0, 0], sizes = [1, 8, 8], strides = [1, 1, 1]} : vector<4x8x8xf32> to vector<1x8x8xf32>
    %224 = vector.shape_cast %223 : vector<1x8x8xf32> to vector<8x8xf32>
    %225 = arith.addf %222, %224 : vector<8x8xf32>
    %cst_65 = arith.constant dense<0xFF800000> : vector<8xf32>
    %226 = vector.multi_reduction <maximumf>, %225, %cst_65 [1] : vector<8x8xf32> to vector<8xf32>
    %227 = vector.shape_cast %226 : vector<8xf32> to vector<8x1xf32>
    %228 = vector.broadcast %227 : vector<8x1xf32> to vector<8x8xf32>
    %229 = arith.subf %225, %228 : vector<8x8xf32>
    %230 = math.exp %229 : vector<8x8xf32>
    %cst_66 = arith.constant dense<0.000000e+00> : vector<8xf32>
    %231 = vector.multi_reduction <add>, %230, %cst_66 [1] : vector<8x8xf32> to vector<8xf32>
    %232 = vector.shape_cast %231 : vector<8xf32> to vector<8x1xf32>
    %233 = tpu.reciprocal %232 {approx = true} : vector<8x1xf32> -> vector<8x1xf32>
    %234 = vector.broadcast %233 : vector<8x1xf32> to vector<8x8xf32>
    %235 = arith.mulf %230, %234 : vector<8x8xf32>
    %236 = arith.truncf %235 : vector<8x8xf32> to vector<8x8xbf16>
    %237 = vector.extract_strided_slice %162 {offsets = [0, 48], sizes = [8, 16], strides = [1, 1]} : vector<8x64xbf16> to vector<8x16xbf16>
    %cst_67 = arith.constant dense<0.000000e+00> : vector<8x16xf32>
    %238 = tpu.matmul %236, %237, %cst_67 {dimension_numbers = #tpu.dot_dimension_numbers<[1], [0], [0], [1], [0, 0, 1, 1], [], []>} : vector<8x8xbf16>, vector<8x16xbf16>, vector<8x16xf32> -> vector<8x16xf32>
    %239 = tpu.concatenate %181, %200, %219, %238 in 1 : vector<8x16xf32>, vector<8x16xf32>, vector<8x16xf32>, vector<8x16xf32> -> vector<8x64xf32>
    %240 = arith.truncf %239 : vector<8x64xf32> to vector<8x64xbf16>
    %cst_68 = arith.constant dense<0.000000e+00> : vector<8x64xf32>
    %241 = tpu.matmul %240, %138, %cst_68 {dimension_numbers = #tpu.dot_dimension_numbers<[1], [0], [0], [1], [0, 0, 1, 1], [], []>} : vector<8x64xbf16>, vector<64x64xbf16>, vector<8x64xf32> -> vector<8x64xf32>
    %242 = arith.addf %132, %241 : vector<8x64xf32>
    %243 = vector.extract_strided_slice %134 {offsets = [1, 0], sizes = [1, 64], strides = [1, 1]} : vector<2x64xf32> to vector<1x64xf32>
    %244 = arith.mulf %242, %242 : vector<8x64xf32>
    %cst_69 = arith.constant dense<0.000000e+00> : vector<8xf32>
    %245 = vector.multi_reduction <add>, %244, %cst_69 [1] : vector<8x64xf32> to vector<8xf32>
    %246 = vector.shape_cast %245 : vector<8xf32> to vector<8x1xf32>
    %cst_70 = arith.constant 6.400000e+01 : f32
    %247 = vector.broadcast %cst_70 : f32 to vector<8x1xf32>
    %248 = arith.divf %246, %247 : vector<8x1xf32>
    %cst_71 = arith.constant 9.99999997E-7 : f32
    %249 = vector.broadcast %cst_71 : f32 to vector<8x1xf32>
    %250 = arith.addf %248, %249 : vector<8x1xf32>
    %251 = math.rsqrt %250 : vector<8x1xf32>
    %252 = vector.broadcast %251 : vector<8x1xf32> to vector<8x64xf32>
    %253 = arith.mulf %242, %252 : vector<8x64xf32>
    %254 = vector.broadcast %243 : vector<1x64xf32> to vector<8x64xf32>
    %255 = arith.mulf %253, %254 : vector<8x64xf32>
    %256 = arith.truncf %255 : vector<8x64xf32> to vector<8x64xbf16>
    %cst_72 = arith.constant dense<0.000000e+00> : vector<8x128xf32>
    %257 = tpu.matmul %256, %139, %cst_72 {dimension_numbers = #tpu.dot_dimension_numbers<[1], [0], [0], [1], [0, 0, 1, 1], [], []>} : vector<8x64xbf16>, vector<64x128xbf16>, vector<8x128xf32> -> vector<8x128xf32>
    %cst_73 = arith.constant 0.000000e+00 : f32
    %258 = vector.broadcast %cst_73 : f32 to vector<8x128xf32>
    %259 = arith.maximumf %257, %258 : vector<8x128xf32>
    %260 = arith.truncf %259 : vector<8x128xf32> to vector<8x128xbf16>
    %cst_74 = arith.constant dense<0.000000e+00> : vector<8x64xf32>
    %261 = tpu.matmul %260, %141, %cst_74 {dimension_numbers = #tpu.dot_dimension_numbers<[1], [0], [0], [1], [0, 0, 1, 1], [], []>} : vector<8x128xbf16>, vector<128x64xbf16>, vector<8x64xf32> -> vector<8x64xf32>
    %262 = arith.addf %242, %261 : vector<8x64xf32>
    %c0_75 = arith.constant 0 : index
    %c0_76 = arith.constant 0 : index
    %263 = vector.load %arg11[%c0_75, %c0_76] : memref<2x64xf32, #tpu.memory_space<vmem>>, vector<1x64xf32>
    %264 = arith.mulf %262, %262 : vector<8x64xf32>
    %cst_77 = arith.constant dense<0.000000e+00> : vector<8xf32>
    %265 = vector.multi_reduction <add>, %264, %cst_77 [1] : vector<8x64xf32> to vector<8xf32>
    %266 = vector.shape_cast %265 : vector<8xf32> to vector<8x1xf32>
    %cst_78 = arith.constant 6.400000e+01 : f32
    %267 = vector.broadcast %cst_78 : f32 to vector<8x1xf32>
    %268 = arith.divf %266, %267 : vector<8x1xf32>
    %cst_79 = arith.constant 9.99999997E-7 : f32
    %269 = vector.broadcast %cst_79 : f32 to vector<8x1xf32>
    %270 = arith.addf %268, %269 : vector<8x1xf32>
    %271 = math.rsqrt %270 : vector<8x1xf32>
    %272 = vector.broadcast %271 : vector<8x1xf32> to vector<8x64xf32>
    %273 = arith.mulf %262, %272 : vector<8x64xf32>
    %274 = vector.broadcast %263 : vector<1x64xf32> to vector<8x64xf32>
    %275 = arith.mulf %273, %274 : vector<8x64xf32>
    %276 = arith.truncf %275 : vector<8x64xf32> to vector<8x64xbf16>
    %c0_80 = arith.constant 0 : index
    %c0_81 = arith.constant 0 : index
    %c0_82 = arith.constant 0 : index
    %277 = vector.load %arg2[%c0_80, %c0_81, %c0_82] : memref<1x8x64xf32, #tpu.memory_space<vmem>>, vector<1x8x64xf32>
    %278 = vector.shape_cast %277 : vector<1x8x64xf32> to vector<8x64xf32>
    %c0_83 = arith.constant 0 : index
    %c0_84 = arith.constant 0 : index
    %c0_85 = arith.constant 0 : index
    %279 = vector.load %arg4[%c0_83, %c0_84, %c0_85] : memref<4x8x8xf32, #tpu.memory_space<vmem>>, vector<4x8x8xf32>
    %c0_86 = arith.constant 0 : index
    %c0_87 = arith.constant 0 : index
    %c0_88 = arith.constant 0 : index
    %280 = vector.load %arg8[%c0_86, %c0_87, %c0_88] : memref<2x3x64xf32, #tpu.memory_space<vmem>>, vector<1x3x64xf32>
    %281 = vector.shape_cast %280 : vector<1x3x64xf32> to vector<3x64xf32>
    %c0_89 = arith.constant 0 : index
    %c0_90 = arith.constant 0 : index
    %c0_91 = arith.constant 0 : index
    %282 = vector.load %arg9[%c0_89, %c0_90, %c0_91] : memref<2x64x640xbf16, #tpu.memory_space<vmem>>, vector<1x64x640xbf16>
    %283 = vector.shape_cast %282 : vector<1x64x640xbf16> to vector<64x640xbf16>
    %284 = vector.extract_strided_slice %283 {offsets = [0, 0], sizes = [64, 192], strides = [1, 1]} : vector<64x640xbf16> to vector<64x192xbf16>
    %285 = vector.extract_strided_slice %283 {offsets = [0, 192], sizes = [64, 64], strides = [1, 1]} : vector<64x640xbf16> to vector<64x64xbf16>
    %286 = vector.extract_strided_slice %283 {offsets = [0, 256], sizes = [64, 64], strides = [1, 1]} : vector<64x640xbf16> to vector<64x64xbf16>
    %287 = vector.extract_strided_slice %283 {offsets = [0, 320], sizes = [64, 128], strides = [1, 1]} : vector<64x640xbf16> to vector<64x128xbf16>
    %288 = vector.extract_strided_slice %283 {offsets = [0, 448], sizes = [64, 64], strides = [1, 1]} : vector<64x640xbf16> to vector<64x64xbf16>
    %289 = vector.extract_strided_slice %283 {offsets = [0, 512], sizes = [64, 128], strides = [1, 1]} : vector<64x640xbf16> to vector<64x128xbf16>
    %c0_92 = arith.constant 0 : index
    %c0_93 = arith.constant 0 : index
    %c0_94 = arith.constant 0 : index
    %290 = vector.load %arg10[%c0_92, %c0_93, %c0_94] : memref<2x128x64xbf16, #tpu.memory_space<vmem>>, vector<1x128x64xbf16>
    %291 = vector.shape_cast %290 : vector<1x128x64xbf16> to vector<128x64xbf16>
    %292 = vector.extract_strided_slice %281 {offsets = [0, 0], sizes = [1, 64], strides = [1, 1]} : vector<3x64xf32> to vector<1x64xf32>
    %293 = arith.mulf %278, %278 : vector<8x64xf32>
    %cst_95 = arith.constant dense<0.000000e+00> : vector<8xf32>
    %294 = vector.multi_reduction <add>, %293, %cst_95 [1] : vector<8x64xf32> to vector<8xf32>
    %295 = vector.shape_cast %294 : vector<8xf32> to vector<8x1xf32>
    %cst_96 = arith.constant 6.400000e+01 : f32
    %296 = vector.broadcast %cst_96 : f32 to vector<8x1xf32>
    %297 = arith.divf %295, %296 : vector<8x1xf32>
    %cst_97 = arith.constant 9.99999997E-7 : f32
    %298 = vector.broadcast %cst_97 : f32 to vector<8x1xf32>
    %299 = arith.addf %297, %298 : vector<8x1xf32>
    %300 = math.rsqrt %299 : vector<8x1xf32>
    %301 = vector.broadcast %300 : vector<8x1xf32> to vector<8x64xf32>
    %302 = arith.mulf %278, %301 : vector<8x64xf32>
    %303 = vector.broadcast %292 : vector<1x64xf32> to vector<8x64xf32>
    %304 = arith.mulf %302, %303 : vector<8x64xf32>
    %305 = arith.truncf %304 : vector<8x64xf32> to vector<8x64xbf16>
    %cst_98 = arith.constant dense<0.000000e+00> : vector<8x192xf32>
    %306 = tpu.matmul %305, %284, %cst_98 {dimension_numbers = #tpu.dot_dimension_numbers<[1], [0], [0], [1], [0, 0, 1, 1], [], []>} : vector<8x64xbf16>, vector<64x192xbf16>, vector<8x192xf32> -> vector<8x192xf32>
    %307 = vector.extract_strided_slice %306 {offsets = [0, 0], sizes = [8, 64], strides = [1, 1]} : vector<8x192xf32> to vector<8x64xf32>
    %308 = vector.extract_strided_slice %306 {offsets = [0, 64], sizes = [8, 64], strides = [1, 1]} : vector<8x192xf32> to vector<8x64xf32>
    %309 = vector.extract_strided_slice %306 {offsets = [0, 128], sizes = [8, 64], strides = [1, 1]} : vector<8x192xf32> to vector<8x64xf32>
    %310 = arith.truncf %307 : vector<8x64xf32> to vector<8x64xbf16>
    %311 = arith.truncf %308 : vector<8x64xf32> to vector<8x64xbf16>
    %312 = arith.truncf %309 : vector<8x64xf32> to vector<8x64xbf16>
    %313 = vector.extract_strided_slice %310 {offsets = [0, 0], sizes = [8, 16], strides = [1, 1]} : vector<8x64xbf16> to vector<8x16xbf16>
    %314 = vector.extract_strided_slice %311 {offsets = [0, 0], sizes = [8, 16], strides = [1, 1]} : vector<8x64xbf16> to vector<8x16xbf16>
    "tpu.trace_start"() <{level = 10 : i32, message = "qd,kd->qk"}> : () -> ()
    %cst_99 = arith.constant dense<0.000000e+00> : vector<8x8xf32>
    %315 = tpu.matmul %313, %314, %cst_99 {dimension_numbers = #tpu.dot_dimension_numbers<[1], [1], [0], [0], [0, 0, 1, 0], [], []>} : vector<8x16xbf16>, vector<8x16xbf16>, vector<8x8xf32> -> vector<8x8xf32>
    "tpu.trace_stop"() : () -> ()
    %316 = vector.extract_strided_slice %279 {offsets = [0, 0, 0], sizes = [1, 8, 8], strides = [1, 1, 1]} : vector<4x8x8xf32> to vector<1x8x8xf32>
    %317 = vector.shape_cast %316 : vector<1x8x8xf32> to vector<8x8xf32>
    %318 = arith.addf %315, %317 : vector<8x8xf32>
    %cst_100 = arith.constant dense<0xFF800000> : vector<8xf32>
    %319 = vector.multi_reduction <maximumf>, %318, %cst_100 [1] : vector<8x8xf32> to vector<8xf32>
    %320 = vector.shape_cast %319 : vector<8xf32> to vector<8x1xf32>
    %321 = vector.broadcast %320 : vector<8x1xf32> to vector<8x8xf32>
    %322 = arith.subf %318, %321 : vector<8x8xf32>
    %323 = math.exp %322 : vector<8x8xf32>
    %cst_101 = arith.constant dense<0.000000e+00> : vector<8xf32>
    %324 = vector.multi_reduction <add>, %323, %cst_101 [1] : vector<8x8xf32> to vector<8xf32>
    %325 = vector.shape_cast %324 : vector<8xf32> to vector<8x1xf32>
    %326 = tpu.reciprocal %325 {approx = true} : vector<8x1xf32> -> vector<8x1xf32>
    %327 = vector.broadcast %326 : vector<8x1xf32> to vector<8x8xf32>
    %328 = arith.mulf %323, %327 : vector<8x8xf32>
    %329 = arith.truncf %328 : vector<8x8xf32> to vector<8x8xbf16>
    %330 = vector.extract_strided_slice %312 {offsets = [0, 0], sizes = [8, 16], strides = [1, 1]} : vector<8x64xbf16> to vector<8x16xbf16>
    %cst_102 = arith.constant dense<0.000000e+00> : vector<8x16xf32>
    %331 = tpu.matmul %329, %330, %cst_102 {dimension_numbers = #tpu.dot_dimension_numbers<[1], [0], [0], [1], [0, 0, 1, 1], [], []>} : vector<8x8xbf16>, vector<8x16xbf16>, vector<8x16xf32> -> vector<8x16xf32>
    %332 = vector.extract_strided_slice %310 {offsets = [0, 16], sizes = [8, 16], strides = [1, 1]} : vector<8x64xbf16> to vector<8x16xbf16>
    %333 = vector.extract_strided_slice %311 {offsets = [0, 16], sizes = [8, 16], strides = [1, 1]} : vector<8x64xbf16> to vector<8x16xbf16>
    "tpu.trace_start"() <{level = 10 : i32, message = "qd,kd->qk"}> : () -> ()
    %cst_103 = arith.constant dense<0.000000e+00> : vector<8x8xf32>
    %334 = tpu.matmul %332, %333, %cst_103 {dimension_numbers = #tpu.dot_dimension_numbers<[1], [1], [0], [0], [0, 0, 1, 0], [], []>} : vector<8x16xbf16>, vector<8x16xbf16>, vector<8x8xf32> -> vector<8x8xf32>
    "tpu.trace_stop"() : () -> ()
    %335 = vector.extract_strided_slice %279 {offsets = [1, 0, 0], sizes = [1, 8, 8], strides = [1, 1, 1]} : vector<4x8x8xf32> to vector<1x8x8xf32>
    %336 = vector.shape_cast %335 : vector<1x8x8xf32> to vector<8x8xf32>
    %337 = arith.addf %334, %336 : vector<8x8xf32>
    %cst_104 = arith.constant dense<0xFF800000> : vector<8xf32>
    %338 = vector.multi_reduction <maximumf>, %337, %cst_104 [1] : vector<8x8xf32> to vector<8xf32>
    %339 = vector.shape_cast %338 : vector<8xf32> to vector<8x1xf32>
    %340 = vector.broadcast %339 : vector<8x1xf32> to vector<8x8xf32>
    %341 = arith.subf %337, %340 : vector<8x8xf32>
    %342 = math.exp %341 : vector<8x8xf32>
    %cst_105 = arith.constant dense<0.000000e+00> : vector<8xf32>
    %343 = vector.multi_reduction <add>, %342, %cst_105 [1] : vector<8x8xf32> to vector<8xf32>
    %344 = vector.shape_cast %343 : vector<8xf32> to vector<8x1xf32>
    %345 = tpu.reciprocal %344 {approx = true} : vector<8x1xf32> -> vector<8x1xf32>
    %346 = vector.broadcast %345 : vector<8x1xf32> to vector<8x8xf32>
    %347 = arith.mulf %342, %346 : vector<8x8xf32>
    %348 = arith.truncf %347 : vector<8x8xf32> to vector<8x8xbf16>
    %349 = vector.extract_strided_slice %312 {offsets = [0, 16], sizes = [8, 16], strides = [1, 1]} : vector<8x64xbf16> to vector<8x16xbf16>
    %cst_106 = arith.constant dense<0.000000e+00> : vector<8x16xf32>
    %350 = tpu.matmul %348, %349, %cst_106 {dimension_numbers = #tpu.dot_dimension_numbers<[1], [0], [0], [1], [0, 0, 1, 1], [], []>} : vector<8x8xbf16>, vector<8x16xbf16>, vector<8x16xf32> -> vector<8x16xf32>
    %351 = vector.extract_strided_slice %310 {offsets = [0, 32], sizes = [8, 16], strides = [1, 1]} : vector<8x64xbf16> to vector<8x16xbf16>
    %352 = vector.extract_strided_slice %311 {offsets = [0, 32], sizes = [8, 16], strides = [1, 1]} : vector<8x64xbf16> to vector<8x16xbf16>
    "tpu.trace_start"() <{level = 10 : i32, message = "qd,kd->qk"}> : () -> ()
    %cst_107 = arith.constant dense<0.000000e+00> : vector<8x8xf32>
    %353 = tpu.matmul %351, %352, %cst_107 {dimension_numbers = #tpu.dot_dimension_numbers<[1], [1], [0], [0], [0, 0, 1, 0], [], []>} : vector<8x16xbf16>, vector<8x16xbf16>, vector<8x8xf32> -> vector<8x8xf32>
    "tpu.trace_stop"() : () -> ()
    %354 = vector.extract_strided_slice %279 {offsets = [2, 0, 0], sizes = [1, 8, 8], strides = [1, 1, 1]} : vector<4x8x8xf32> to vector<1x8x8xf32>
    %355 = vector.shape_cast %354 : vector<1x8x8xf32> to vector<8x8xf32>
    %356 = arith.addf %353, %355 : vector<8x8xf32>
    %cst_108 = arith.constant dense<0xFF800000> : vector<8xf32>
    %357 = vector.multi_reduction <maximumf>, %356, %cst_108 [1] : vector<8x8xf32> to vector<8xf32>
    %358 = vector.shape_cast %357 : vector<8xf32> to vector<8x1xf32>
    %359 = vector.broadcast %358 : vector<8x1xf32> to vector<8x8xf32>
    %360 = arith.subf %356, %359 : vector<8x8xf32>
    %361 = math.exp %360 : vector<8x8xf32>
    %cst_109 = arith.constant dense<0.000000e+00> : vector<8xf32>
    %362 = vector.multi_reduction <add>, %361, %cst_109 [1] : vector<8x8xf32> to vector<8xf32>
    %363 = vector.shape_cast %362 : vector<8xf32> to vector<8x1xf32>
    %364 = tpu.reciprocal %363 {approx = true} : vector<8x1xf32> -> vector<8x1xf32>
    %365 = vector.broadcast %364 : vector<8x1xf32> to vector<8x8xf32>
    %366 = arith.mulf %361, %365 : vector<8x8xf32>
    %367 = arith.truncf %366 : vector<8x8xf32> to vector<8x8xbf16>
    %368 = vector.extract_strided_slice %312 {offsets = [0, 32], sizes = [8, 16], strides = [1, 1]} : vector<8x64xbf16> to vector<8x16xbf16>
    %cst_110 = arith.constant dense<0.000000e+00> : vector<8x16xf32>
    %369 = tpu.matmul %367, %368, %cst_110 {dimension_numbers = #tpu.dot_dimension_numbers<[1], [0], [0], [1], [0, 0, 1, 1], [], []>} : vector<8x8xbf16>, vector<8x16xbf16>, vector<8x16xf32> -> vector<8x16xf32>
    %370 = vector.extract_strided_slice %310 {offsets = [0, 48], sizes = [8, 16], strides = [1, 1]} : vector<8x64xbf16> to vector<8x16xbf16>
    %371 = vector.extract_strided_slice %311 {offsets = [0, 48], sizes = [8, 16], strides = [1, 1]} : vector<8x64xbf16> to vector<8x16xbf16>
    "tpu.trace_start"() <{level = 10 : i32, message = "qd,kd->qk"}> : () -> ()
    %cst_111 = arith.constant dense<0.000000e+00> : vector<8x8xf32>
    %372 = tpu.matmul %370, %371, %cst_111 {dimension_numbers = #tpu.dot_dimension_numbers<[1], [1], [0], [0], [0, 0, 1, 0], [], []>} : vector<8x16xbf16>, vector<8x16xbf16>, vector<8x8xf32> -> vector<8x8xf32>
    "tpu.trace_stop"() : () -> ()
    %373 = vector.extract_strided_slice %279 {offsets = [3, 0, 0], sizes = [1, 8, 8], strides = [1, 1, 1]} : vector<4x8x8xf32> to vector<1x8x8xf32>
    %374 = vector.shape_cast %373 : vector<1x8x8xf32> to vector<8x8xf32>
    %375 = arith.addf %372, %374 : vector<8x8xf32>
    %cst_112 = arith.constant dense<0xFF800000> : vector<8xf32>
    %376 = vector.multi_reduction <maximumf>, %375, %cst_112 [1] : vector<8x8xf32> to vector<8xf32>
    %377 = vector.shape_cast %376 : vector<8xf32> to vector<8x1xf32>
    %378 = vector.broadcast %377 : vector<8x1xf32> to vector<8x8xf32>
    %379 = arith.subf %375, %378 : vector<8x8xf32>
    %380 = math.exp %379 : vector<8x8xf32>
    %cst_113 = arith.constant dense<0.000000e+00> : vector<8xf32>
    %381 = vector.multi_reduction <add>, %380, %cst_113 [1] : vector<8x8xf32> to vector<8xf32>
    %382 = vector.shape_cast %381 : vector<8xf32> to vector<8x1xf32>
    %383 = tpu.reciprocal %382 {approx = true} : vector<8x1xf32> -> vector<8x1xf32>
    %384 = vector.broadcast %383 : vector<8x1xf32> to vector<8x8xf32>
    %385 = arith.mulf %380, %384 : vector<8x8xf32>
    %386 = arith.truncf %385 : vector<8x8xf32> to vector<8x8xbf16>
    %387 = vector.extract_strided_slice %312 {offsets = [0, 48], sizes = [8, 16], strides = [1, 1]} : vector<8x64xbf16> to vector<8x16xbf16>
    %cst_114 = arith.constant dense<0.000000e+00> : vector<8x16xf32>
    %388 = tpu.matmul %386, %387, %cst_114 {dimension_numbers = #tpu.dot_dimension_numbers<[1], [0], [0], [1], [0, 0, 1, 1], [], []>} : vector<8x8xbf16>, vector<8x16xbf16>, vector<8x16xf32> -> vector<8x16xf32>
    %389 = tpu.concatenate %331, %350, %369, %388 in 1 : vector<8x16xf32>, vector<8x16xf32>, vector<8x16xf32>, vector<8x16xf32> -> vector<8x64xf32>
    %390 = arith.truncf %389 : vector<8x64xf32> to vector<8x64xbf16>
    %cst_115 = arith.constant dense<0.000000e+00> : vector<8x64xf32>
    %391 = tpu.matmul %390, %285, %cst_115 {dimension_numbers = #tpu.dot_dimension_numbers<[1], [0], [0], [1], [0, 0, 1, 1], [], []>} : vector<8x64xbf16>, vector<64x64xbf16>, vector<8x64xf32> -> vector<8x64xf32>
    %392 = arith.addf %278, %391 : vector<8x64xf32>
    %393 = vector.extract_strided_slice %281 {offsets = [1, 0], sizes = [1, 64], strides = [1, 1]} : vector<3x64xf32> to vector<1x64xf32>
    %394 = arith.mulf %392, %392 : vector<8x64xf32>
    %cst_116 = arith.constant dense<0.000000e+00> : vector<8xf32>
    %395 = vector.multi_reduction <add>, %394, %cst_116 [1] : vector<8x64xf32> to vector<8xf32>
    %396 = vector.shape_cast %395 : vector<8xf32> to vector<8x1xf32>
    %cst_117 = arith.constant 6.400000e+01 : f32
    %397 = vector.broadcast %cst_117 : f32 to vector<8x1xf32>
    %398 = arith.divf %396, %397 : vector<8x1xf32>
    %cst_118 = arith.constant 9.99999997E-7 : f32
    %399 = vector.broadcast %cst_118 : f32 to vector<8x1xf32>
    %400 = arith.addf %398, %399 : vector<8x1xf32>
    %401 = math.rsqrt %400 : vector<8x1xf32>
    %402 = vector.broadcast %401 : vector<8x1xf32> to vector<8x64xf32>
    %403 = arith.mulf %392, %402 : vector<8x64xf32>
    %404 = vector.broadcast %393 : vector<1x64xf32> to vector<8x64xf32>
    %405 = arith.mulf %403, %404 : vector<8x64xf32>
    %406 = arith.truncf %405 : vector<8x64xf32> to vector<8x64xbf16>
    %cst_119 = arith.constant dense<0.000000e+00> : vector<8x64xf32>
    %407 = tpu.matmul %406, %286, %cst_119 {dimension_numbers = #tpu.dot_dimension_numbers<[1], [0], [0], [1], [0, 0, 1, 1], [], []>} : vector<8x64xbf16>, vector<64x64xbf16>, vector<8x64xf32> -> vector<8x64xf32>
    %cst_120 = arith.constant dense<0.000000e+00> : vector<8x128xf32>
    %408 = tpu.matmul %276, %287, %cst_120 {dimension_numbers = #tpu.dot_dimension_numbers<[1], [0], [0], [1], [0, 0, 1, 1], [], []>} : vector<8x64xbf16>, vector<64x128xbf16>, vector<8x128xf32> -> vector<8x128xf32>
    %409 = vector.extract_strided_slice %408 {offsets = [0, 0], sizes = [8, 64], strides = [1, 1]} : vector<8x128xf32> to vector<8x64xf32>
    %410 = vector.extract_strided_slice %408 {offsets = [0, 64], sizes = [8, 64], strides = [1, 1]} : vector<8x128xf32> to vector<8x64xf32>
    %411 = arith.truncf %407 : vector<8x64xf32> to vector<8x64xbf16>
    %412 = arith.truncf %409 : vector<8x64xf32> to vector<8x64xbf16>
    %413 = arith.truncf %410 : vector<8x64xf32> to vector<8x64xbf16>
    %414 = vector.extract_strided_slice %411 {offsets = [0, 0], sizes = [8, 16], strides = [1, 1]} : vector<8x64xbf16> to vector<8x16xbf16>
    %415 = vector.extract_strided_slice %412 {offsets = [0, 0], sizes = [8, 16], strides = [1, 1]} : vector<8x64xbf16> to vector<8x16xbf16>
    "tpu.trace_start"() <{level = 10 : i32, message = "qd,kd->qk"}> : () -> ()
    %cst_121 = arith.constant dense<0.000000e+00> : vector<8x8xf32>
    %416 = tpu.matmul %414, %415, %cst_121 {dimension_numbers = #tpu.dot_dimension_numbers<[1], [1], [0], [0], [0, 0, 1, 0], [], []>} : vector<8x16xbf16>, vector<8x16xbf16>, vector<8x8xf32> -> vector<8x8xf32>
    "tpu.trace_stop"() : () -> ()
    %cst_122 = arith.constant dense<0xFF800000> : vector<8xf32>
    %417 = vector.multi_reduction <maximumf>, %416, %cst_122 [1] : vector<8x8xf32> to vector<8xf32>
    %418 = vector.shape_cast %417 : vector<8xf32> to vector<8x1xf32>
    %419 = vector.broadcast %418 : vector<8x1xf32> to vector<8x8xf32>
    %420 = arith.subf %416, %419 : vector<8x8xf32>
    %421 = math.exp %420 : vector<8x8xf32>
    %cst_123 = arith.constant dense<0.000000e+00> : vector<8xf32>
    %422 = vector.multi_reduction <add>, %421, %cst_123 [1] : vector<8x8xf32> to vector<8xf32>
    %423 = vector.shape_cast %422 : vector<8xf32> to vector<8x1xf32>
    %424 = tpu.reciprocal %423 {approx = true} : vector<8x1xf32> -> vector<8x1xf32>
    %425 = vector.broadcast %424 : vector<8x1xf32> to vector<8x8xf32>
    %426 = arith.mulf %421, %425 : vector<8x8xf32>
    %427 = arith.truncf %426 : vector<8x8xf32> to vector<8x8xbf16>
    %428 = vector.extract_strided_slice %413 {offsets = [0, 0], sizes = [8, 16], strides = [1, 1]} : vector<8x64xbf16> to vector<8x16xbf16>
    %cst_124 = arith.constant dense<0.000000e+00> : vector<8x16xf32>
    %429 = tpu.matmul %427, %428, %cst_124 {dimension_numbers = #tpu.dot_dimension_numbers<[1], [0], [0], [1], [0, 0, 1, 1], [], []>} : vector<8x8xbf16>, vector<8x16xbf16>, vector<8x16xf32> -> vector<8x16xf32>
    %430 = vector.extract_strided_slice %411 {offsets = [0, 16], sizes = [8, 16], strides = [1, 1]} : vector<8x64xbf16> to vector<8x16xbf16>
    %431 = vector.extract_strided_slice %412 {offsets = [0, 16], sizes = [8, 16], strides = [1, 1]} : vector<8x64xbf16> to vector<8x16xbf16>
    "tpu.trace_start"() <{level = 10 : i32, message = "qd,kd->qk"}> : () -> ()
    %cst_125 = arith.constant dense<0.000000e+00> : vector<8x8xf32>
    %432 = tpu.matmul %430, %431, %cst_125 {dimension_numbers = #tpu.dot_dimension_numbers<[1], [1], [0], [0], [0, 0, 1, 0], [], []>} : vector<8x16xbf16>, vector<8x16xbf16>, vector<8x8xf32> -> vector<8x8xf32>
    "tpu.trace_stop"() : () -> ()
    %cst_126 = arith.constant dense<0xFF800000> : vector<8xf32>
    %433 = vector.multi_reduction <maximumf>, %432, %cst_126 [1] : vector<8x8xf32> to vector<8xf32>
    %434 = vector.shape_cast %433 : vector<8xf32> to vector<8x1xf32>
    %435 = vector.broadcast %434 : vector<8x1xf32> to vector<8x8xf32>
    %436 = arith.subf %432, %435 : vector<8x8xf32>
    %437 = math.exp %436 : vector<8x8xf32>
    %cst_127 = arith.constant dense<0.000000e+00> : vector<8xf32>
    %438 = vector.multi_reduction <add>, %437, %cst_127 [1] : vector<8x8xf32> to vector<8xf32>
    %439 = vector.shape_cast %438 : vector<8xf32> to vector<8x1xf32>
    %440 = tpu.reciprocal %439 {approx = true} : vector<8x1xf32> -> vector<8x1xf32>
    %441 = vector.broadcast %440 : vector<8x1xf32> to vector<8x8xf32>
    %442 = arith.mulf %437, %441 : vector<8x8xf32>
    %443 = arith.truncf %442 : vector<8x8xf32> to vector<8x8xbf16>
    %444 = vector.extract_strided_slice %413 {offsets = [0, 16], sizes = [8, 16], strides = [1, 1]} : vector<8x64xbf16> to vector<8x16xbf16>
    %cst_128 = arith.constant dense<0.000000e+00> : vector<8x16xf32>
    %445 = tpu.matmul %443, %444, %cst_128 {dimension_numbers = #tpu.dot_dimension_numbers<[1], [0], [0], [1], [0, 0, 1, 1], [], []>} : vector<8x8xbf16>, vector<8x16xbf16>, vector<8x16xf32> -> vector<8x16xf32>
    %446 = vector.extract_strided_slice %411 {offsets = [0, 32], sizes = [8, 16], strides = [1, 1]} : vector<8x64xbf16> to vector<8x16xbf16>
    %447 = vector.extract_strided_slice %412 {offsets = [0, 32], sizes = [8, 16], strides = [1, 1]} : vector<8x64xbf16> to vector<8x16xbf16>
    "tpu.trace_start"() <{level = 10 : i32, message = "qd,kd->qk"}> : () -> ()
    %cst_129 = arith.constant dense<0.000000e+00> : vector<8x8xf32>
    %448 = tpu.matmul %446, %447, %cst_129 {dimension_numbers = #tpu.dot_dimension_numbers<[1], [1], [0], [0], [0, 0, 1, 0], [], []>} : vector<8x16xbf16>, vector<8x16xbf16>, vector<8x8xf32> -> vector<8x8xf32>
    "tpu.trace_stop"() : () -> ()
    %cst_130 = arith.constant dense<0xFF800000> : vector<8xf32>
    %449 = vector.multi_reduction <maximumf>, %448, %cst_130 [1] : vector<8x8xf32> to vector<8xf32>
    %450 = vector.shape_cast %449 : vector<8xf32> to vector<8x1xf32>
    %451 = vector.broadcast %450 : vector<8x1xf32> to vector<8x8xf32>
    %452 = arith.subf %448, %451 : vector<8x8xf32>
    %453 = math.exp %452 : vector<8x8xf32>
    %cst_131 = arith.constant dense<0.000000e+00> : vector<8xf32>
    %454 = vector.multi_reduction <add>, %453, %cst_131 [1] : vector<8x8xf32> to vector<8xf32>
    %455 = vector.shape_cast %454 : vector<8xf32> to vector<8x1xf32>
    %456 = tpu.reciprocal %455 {approx = true} : vector<8x1xf32> -> vector<8x1xf32>
    %457 = vector.broadcast %456 : vector<8x1xf32> to vector<8x8xf32>
    %458 = arith.mulf %453, %457 : vector<8x8xf32>
    %459 = arith.truncf %458 : vector<8x8xf32> to vector<8x8xbf16>
    %460 = vector.extract_strided_slice %413 {offsets = [0, 32], sizes = [8, 16], strides = [1, 1]} : vector<8x64xbf16> to vector<8x16xbf16>
    %cst_132 = arith.constant dense<0.000000e+00> : vector<8x16xf32>
    %461 = tpu.matmul %459, %460, %cst_132 {dimension_numbers = #tpu.dot_dimension_numbers<[1], [0], [0], [1], [0, 0, 1, 1], [], []>} : vector<8x8xbf16>, vector<8x16xbf16>, vector<8x16xf32> -> vector<8x16xf32>
    %462 = vector.extract_strided_slice %411 {offsets = [0, 48], sizes = [8, 16], strides = [1, 1]} : vector<8x64xbf16> to vector<8x16xbf16>
    %463 = vector.extract_strided_slice %412 {offsets = [0, 48], sizes = [8, 16], strides = [1, 1]} : vector<8x64xbf16> to vector<8x16xbf16>
    "tpu.trace_start"() <{level = 10 : i32, message = "qd,kd->qk"}> : () -> ()
    %cst_133 = arith.constant dense<0.000000e+00> : vector<8x8xf32>
    %464 = tpu.matmul %462, %463, %cst_133 {dimension_numbers = #tpu.dot_dimension_numbers<[1], [1], [0], [0], [0, 0, 1, 0], [], []>} : vector<8x16xbf16>, vector<8x16xbf16>, vector<8x8xf32> -> vector<8x8xf32>
    "tpu.trace_stop"() : () -> ()
    %cst_134 = arith.constant dense<0xFF800000> : vector<8xf32>
    %465 = vector.multi_reduction <maximumf>, %464, %cst_134 [1] : vector<8x8xf32> to vector<8xf32>
    %466 = vector.shape_cast %465 : vector<8xf32> to vector<8x1xf32>
    %467 = vector.broadcast %466 : vector<8x1xf32> to vector<8x8xf32>
    %468 = arith.subf %464, %467 : vector<8x8xf32>
    %469 = math.exp %468 : vector<8x8xf32>
    %cst_135 = arith.constant dense<0.000000e+00> : vector<8xf32>
    %470 = vector.multi_reduction <add>, %469, %cst_135 [1] : vector<8x8xf32> to vector<8xf32>
    %471 = vector.shape_cast %470 : vector<8xf32> to vector<8x1xf32>
    %472 = tpu.reciprocal %471 {approx = true} : vector<8x1xf32> -> vector<8x1xf32>
    %473 = vector.broadcast %472 : vector<8x1xf32> to vector<8x8xf32>
    %474 = arith.mulf %469, %473 : vector<8x8xf32>
    %475 = arith.truncf %474 : vector<8x8xf32> to vector<8x8xbf16>
    %476 = vector.extract_strided_slice %413 {offsets = [0, 48], sizes = [8, 16], strides = [1, 1]} : vector<8x64xbf16> to vector<8x16xbf16>
    %cst_136 = arith.constant dense<0.000000e+00> : vector<8x16xf32>
    %477 = tpu.matmul %475, %476, %cst_136 {dimension_numbers = #tpu.dot_dimension_numbers<[1], [0], [0], [1], [0, 0, 1, 1], [], []>} : vector<8x8xbf16>, vector<8x16xbf16>, vector<8x16xf32> -> vector<8x16xf32>
    %478 = tpu.concatenate %429, %445, %461, %477 in 1 : vector<8x16xf32>, vector<8x16xf32>, vector<8x16xf32>, vector<8x16xf32> -> vector<8x64xf32>
    %479 = arith.truncf %478 : vector<8x64xf32> to vector<8x64xbf16>
    %cst_137 = arith.constant dense<0.000000e+00> : vector<8x64xf32>
    %480 = tpu.matmul %479, %288, %cst_137 {dimension_numbers = #tpu.dot_dimension_numbers<[1], [0], [0], [1], [0, 0, 1, 1], [], []>} : vector<8x64xbf16>, vector<64x64xbf16>, vector<8x64xf32> -> vector<8x64xf32>
    %481 = arith.addf %392, %480 : vector<8x64xf32>
    %482 = vector.extract_strided_slice %281 {offsets = [2, 0], sizes = [1, 64], strides = [1, 1]} : vector<3x64xf32> to vector<1x64xf32>
    %483 = arith.mulf %481, %481 : vector<8x64xf32>
    %cst_138 = arith.constant dense<0.000000e+00> : vector<8xf32>
    %484 = vector.multi_reduction <add>, %483, %cst_138 [1] : vector<8x64xf32> to vector<8xf32>
    %485 = vector.shape_cast %484 : vector<8xf32> to vector<8x1xf32>
    %cst_139 = arith.constant 6.400000e+01 : f32
    %486 = vector.broadcast %cst_139 : f32 to vector<8x1xf32>
    %487 = arith.divf %485, %486 : vector<8x1xf32>
    %cst_140 = arith.constant 9.99999997E-7 : f32
    %488 = vector.broadcast %cst_140 : f32 to vector<8x1xf32>
    %489 = arith.addf %487, %488 : vector<8x1xf32>
    %490 = math.rsqrt %489 : vector<8x1xf32>
    %491 = vector.broadcast %490 : vector<8x1xf32> to vector<8x64xf32>
    %492 = arith.mulf %481, %491 : vector<8x64xf32>
    %493 = vector.broadcast %482 : vector<1x64xf32> to vector<8x64xf32>
    %494 = arith.mulf %492, %493 : vector<8x64xf32>
    %495 = arith.truncf %494 : vector<8x64xf32> to vector<8x64xbf16>
    %cst_141 = arith.constant dense<0.000000e+00> : vector<8x128xf32>
    %496 = tpu.matmul %495, %289, %cst_141 {dimension_numbers = #tpu.dot_dimension_numbers<[1], [0], [0], [1], [0, 0, 1, 1], [], []>} : vector<8x64xbf16>, vector<64x128xbf16>, vector<8x128xf32> -> vector<8x128xf32>
    %cst_142 = arith.constant 0.000000e+00 : f32
    %497 = vector.broadcast %cst_142 : f32 to vector<8x128xf32>
    %498 = arith.maximumf %496, %497 : vector<8x128xf32>
    %499 = arith.truncf %498 : vector<8x128xf32> to vector<8x128xbf16>
    %cst_143 = arith.constant dense<0.000000e+00> : vector<8x64xf32>
    %500 = tpu.matmul %499, %291, %cst_143 {dimension_numbers = #tpu.dot_dimension_numbers<[1], [0], [0], [1], [0, 0, 1, 1], [], []>} : vector<8x128xbf16>, vector<128x64xbf16>, vector<8x64xf32> -> vector<8x64xf32>
    %501 = arith.addf %481, %500 : vector<8x64xf32>
    %c1_144 = arith.constant 1 : index
    %c0_145 = arith.constant 0 : index
    %c0_146 = arith.constant 0 : index
    %502 = vector.load %arg8[%c1_144, %c0_145, %c0_146] : memref<2x3x64xf32, #tpu.memory_space<vmem>>, vector<1x3x64xf32>
    %503 = vector.shape_cast %502 : vector<1x3x64xf32> to vector<3x64xf32>
    %c1_147 = arith.constant 1 : index
    %c0_148 = arith.constant 0 : index
    %c0_149 = arith.constant 0 : index
    %504 = vector.load %arg9[%c1_147, %c0_148, %c0_149] : memref<2x64x640xbf16, #tpu.memory_space<vmem>>, vector<1x64x640xbf16>
    %505 = vector.shape_cast %504 : vector<1x64x640xbf16> to vector<64x640xbf16>
    %506 = vector.extract_strided_slice %505 {offsets = [0, 0], sizes = [64, 192], strides = [1, 1]} : vector<64x640xbf16> to vector<64x192xbf16>
    %507 = vector.extract_strided_slice %505 {offsets = [0, 192], sizes = [64, 64], strides = [1, 1]} : vector<64x640xbf16> to vector<64x64xbf16>
    %508 = vector.extract_strided_slice %505 {offsets = [0, 256], sizes = [64, 64], strides = [1, 1]} : vector<64x640xbf16> to vector<64x64xbf16>
    %509 = vector.extract_strided_slice %505 {offsets = [0, 320], sizes = [64, 128], strides = [1, 1]} : vector<64x640xbf16> to vector<64x128xbf16>
    %510 = vector.extract_strided_slice %505 {offsets = [0, 448], sizes = [64, 64], strides = [1, 1]} : vector<64x640xbf16> to vector<64x64xbf16>
    %511 = vector.extract_strided_slice %505 {offsets = [0, 512], sizes = [64, 128], strides = [1, 1]} : vector<64x640xbf16> to vector<64x128xbf16>
    %c1_150 = arith.constant 1 : index
    %c0_151 = arith.constant 0 : index
    %c0_152 = arith.constant 0 : index
    %512 = vector.load %arg10[%c1_150, %c0_151, %c0_152] : memref<2x128x64xbf16, #tpu.memory_space<vmem>>, vector<1x128x64xbf16>
    %513 = vector.shape_cast %512 : vector<1x128x64xbf16> to vector<128x64xbf16>
    %514 = vector.extract_strided_slice %503 {offsets = [0, 0], sizes = [1, 64], strides = [1, 1]} : vector<3x64xf32> to vector<1x64xf32>
    %515 = arith.mulf %501, %501 : vector<8x64xf32>
    %cst_153 = arith.constant dense<0.000000e+00> : vector<8xf32>
    %516 = vector.multi_reduction <add>, %515, %cst_153 [1] : vector<8x64xf32> to vector<8xf32>
    %517 = vector.shape_cast %516 : vector<8xf32> to vector<8x1xf32>
    %cst_154 = arith.constant 6.400000e+01 : f32
    %518 = vector.broadcast %cst_154 : f32 to vector<8x1xf32>
    %519 = arith.divf %517, %518 : vector<8x1xf32>
    %cst_155 = arith.constant 9.99999997E-7 : f32
    %520 = vector.broadcast %cst_155 : f32 to vector<8x1xf32>
    %521 = arith.addf %519, %520 : vector<8x1xf32>
    %522 = math.rsqrt %521 : vector<8x1xf32>
    %523 = vector.broadcast %522 : vector<8x1xf32> to vector<8x64xf32>
    %524 = arith.mulf %501, %523 : vector<8x64xf32>
    %525 = vector.broadcast %514 : vector<1x64xf32> to vector<8x64xf32>
    %526 = arith.mulf %524, %525 : vector<8x64xf32>
    %527 = arith.truncf %526 : vector<8x64xf32> to vector<8x64xbf16>
    %cst_156 = arith.constant dense<0.000000e+00> : vector<8x192xf32>
    %528 = tpu.matmul %527, %506, %cst_156 {dimension_numbers = #tpu.dot_dimension_numbers<[1], [0], [0], [1], [0, 0, 1, 1], [], []>} : vector<8x64xbf16>, vector<64x192xbf16>, vector<8x192xf32> -> vector<8x192xf32>
    %529 = vector.extract_strided_slice %528 {offsets = [0, 0], sizes = [8, 64], strides = [1, 1]} : vector<8x192xf32> to vector<8x64xf32>
    %530 = vector.extract_strided_slice %528 {offsets = [0, 64], sizes = [8, 64], strides = [1, 1]} : vector<8x192xf32> to vector<8x64xf32>
    %531 = vector.extract_strided_slice %528 {offsets = [0, 128], sizes = [8, 64], strides = [1, 1]} : vector<8x192xf32> to vector<8x64xf32>
    %532 = arith.truncf %529 : vector<8x64xf32> to vector<8x64xbf16>
    %533 = arith.truncf %530 : vector<8x64xf32> to vector<8x64xbf16>
    %534 = arith.truncf %531 : vector<8x64xf32> to vector<8x64xbf16>
    %535 = vector.extract_strided_slice %532 {offsets = [0, 0], sizes = [8, 16], strides = [1, 1]} : vector<8x64xbf16> to vector<8x16xbf16>
    %536 = vector.extract_strided_slice %533 {offsets = [0, 0], sizes = [8, 16], strides = [1, 1]} : vector<8x64xbf16> to vector<8x16xbf16>
    "tpu.trace_start"() <{level = 10 : i32, message = "qd,kd->qk"}> : () -> ()
    %cst_157 = arith.constant dense<0.000000e+00> : vector<8x8xf32>
    %537 = tpu.matmul %535, %536, %cst_157 {dimension_numbers = #tpu.dot_dimension_numbers<[1], [1], [0], [0], [0, 0, 1, 0], [], []>} : vector<8x16xbf16>, vector<8x16xbf16>, vector<8x8xf32> -> vector<8x8xf32>
    "tpu.trace_stop"() : () -> ()
    %538 = vector.extract_strided_slice %279 {offsets = [0, 0, 0], sizes = [1, 8, 8], strides = [1, 1, 1]} : vector<4x8x8xf32> to vector<1x8x8xf32>
    %539 = vector.shape_cast %538 : vector<1x8x8xf32> to vector<8x8xf32>
    %540 = arith.addf %537, %539 : vector<8x8xf32>
    %cst_158 = arith.constant dense<0xFF800000> : vector<8xf32>
    %541 = vector.multi_reduction <maximumf>, %540, %cst_158 [1] : vector<8x8xf32> to vector<8xf32>
    %542 = vector.shape_cast %541 : vector<8xf32> to vector<8x1xf32>
    %543 = vector.broadcast %542 : vector<8x1xf32> to vector<8x8xf32>
    %544 = arith.subf %540, %543 : vector<8x8xf32>
    %545 = math.exp %544 : vector<8x8xf32>
    %cst_159 = arith.constant dense<0.000000e+00> : vector<8xf32>
    %546 = vector.multi_reduction <add>, %545, %cst_159 [1] : vector<8x8xf32> to vector<8xf32>
    %547 = vector.shape_cast %546 : vector<8xf32> to vector<8x1xf32>
    %548 = tpu.reciprocal %547 {approx = true} : vector<8x1xf32> -> vector<8x1xf32>
    %549 = vector.broadcast %548 : vector<8x1xf32> to vector<8x8xf32>
    %550 = arith.mulf %545, %549 : vector<8x8xf32>
    %551 = arith.truncf %550 : vector<8x8xf32> to vector<8x8xbf16>
    %552 = vector.extract_strided_slice %534 {offsets = [0, 0], sizes = [8, 16], strides = [1, 1]} : vector<8x64xbf16> to vector<8x16xbf16>
    %cst_160 = arith.constant dense<0.000000e+00> : vector<8x16xf32>
    %553 = tpu.matmul %551, %552, %cst_160 {dimension_numbers = #tpu.dot_dimension_numbers<[1], [0], [0], [1], [0, 0, 1, 1], [], []>} : vector<8x8xbf16>, vector<8x16xbf16>, vector<8x16xf32> -> vector<8x16xf32>
    %554 = vector.extract_strided_slice %532 {offsets = [0, 16], sizes = [8, 16], strides = [1, 1]} : vector<8x64xbf16> to vector<8x16xbf16>
    %555 = vector.extract_strided_slice %533 {offsets = [0, 16], sizes = [8, 16], strides = [1, 1]} : vector<8x64xbf16> to vector<8x16xbf16>
    "tpu.trace_start"() <{level = 10 : i32, message = "qd,kd->qk"}> : () -> ()
    %cst_161 = arith.constant dense<0.000000e+00> : vector<8x8xf32>
    %556 = tpu.matmul %554, %555, %cst_161 {dimension_numbers = #tpu.dot_dimension_numbers<[1], [1], [0], [0], [0, 0, 1, 0], [], []>} : vector<8x16xbf16>, vector<8x16xbf16>, vector<8x8xf32> -> vector<8x8xf32>
    "tpu.trace_stop"() : () -> ()
    %557 = vector.extract_strided_slice %279 {offsets = [1, 0, 0], sizes = [1, 8, 8], strides = [1, 1, 1]} : vector<4x8x8xf32> to vector<1x8x8xf32>
    %558 = vector.shape_cast %557 : vector<1x8x8xf32> to vector<8x8xf32>
    %559 = arith.addf %556, %558 : vector<8x8xf32>
    %cst_162 = arith.constant dense<0xFF800000> : vector<8xf32>
    %560 = vector.multi_reduction <maximumf>, %559, %cst_162 [1] : vector<8x8xf32> to vector<8xf32>
    %561 = vector.shape_cast %560 : vector<8xf32> to vector<8x1xf32>
    %562 = vector.broadcast %561 : vector<8x1xf32> to vector<8x8xf32>
    %563 = arith.subf %559, %562 : vector<8x8xf32>
    %564 = math.exp %563 : vector<8x8xf32>
    %cst_163 = arith.constant dense<0.000000e+00> : vector<8xf32>
    %565 = vector.multi_reduction <add>, %564, %cst_163 [1] : vector<8x8xf32> to vector<8xf32>
    %566 = vector.shape_cast %565 : vector<8xf32> to vector<8x1xf32>
    %567 = tpu.reciprocal %566 {approx = true} : vector<8x1xf32> -> vector<8x1xf32>
    %568 = vector.broadcast %567 : vector<8x1xf32> to vector<8x8xf32>
    %569 = arith.mulf %564, %568 : vector<8x8xf32>
    %570 = arith.truncf %569 : vector<8x8xf32> to vector<8x8xbf16>
    %571 = vector.extract_strided_slice %534 {offsets = [0, 16], sizes = [8, 16], strides = [1, 1]} : vector<8x64xbf16> to vector<8x16xbf16>
    %cst_164 = arith.constant dense<0.000000e+00> : vector<8x16xf32>
    %572 = tpu.matmul %570, %571, %cst_164 {dimension_numbers = #tpu.dot_dimension_numbers<[1], [0], [0], [1], [0, 0, 1, 1], [], []>} : vector<8x8xbf16>, vector<8x16xbf16>, vector<8x16xf32> -> vector<8x16xf32>
    %573 = vector.extract_strided_slice %532 {offsets = [0, 32], sizes = [8, 16], strides = [1, 1]} : vector<8x64xbf16> to vector<8x16xbf16>
    %574 = vector.extract_strided_slice %533 {offsets = [0, 32], sizes = [8, 16], strides = [1, 1]} : vector<8x64xbf16> to vector<8x16xbf16>
    "tpu.trace_start"() <{level = 10 : i32, message = "qd,kd->qk"}> : () -> ()
    %cst_165 = arith.constant dense<0.000000e+00> : vector<8x8xf32>
    %575 = tpu.matmul %573, %574, %cst_165 {dimension_numbers = #tpu.dot_dimension_numbers<[1], [1], [0], [0], [0, 0, 1, 0], [], []>} : vector<8x16xbf16>, vector<8x16xbf16>, vector<8x8xf32> -> vector<8x8xf32>
    "tpu.trace_stop"() : () -> ()
    %576 = vector.extract_strided_slice %279 {offsets = [2, 0, 0], sizes = [1, 8, 8], strides = [1, 1, 1]} : vector<4x8x8xf32> to vector<1x8x8xf32>
    %577 = vector.shape_cast %576 : vector<1x8x8xf32> to vector<8x8xf32>
    %578 = arith.addf %575, %577 : vector<8x8xf32>
    %cst_166 = arith.constant dense<0xFF800000> : vector<8xf32>
    %579 = vector.multi_reduction <maximumf>, %578, %cst_166 [1] : vector<8x8xf32> to vector<8xf32>
    %580 = vector.shape_cast %579 : vector<8xf32> to vector<8x1xf32>
    %581 = vector.broadcast %580 : vector<8x1xf32> to vector<8x8xf32>
    %582 = arith.subf %578, %581 : vector<8x8xf32>
    %583 = math.exp %582 : vector<8x8xf32>
    %cst_167 = arith.constant dense<0.000000e+00> : vector<8xf32>
    %584 = vector.multi_reduction <add>, %583, %cst_167 [1] : vector<8x8xf32> to vector<8xf32>
    %585 = vector.shape_cast %584 : vector<8xf32> to vector<8x1xf32>
    %586 = tpu.reciprocal %585 {approx = true} : vector<8x1xf32> -> vector<8x1xf32>
    %587 = vector.broadcast %586 : vector<8x1xf32> to vector<8x8xf32>
    %588 = arith.mulf %583, %587 : vector<8x8xf32>
    %589 = arith.truncf %588 : vector<8x8xf32> to vector<8x8xbf16>
    %590 = vector.extract_strided_slice %534 {offsets = [0, 32], sizes = [8, 16], strides = [1, 1]} : vector<8x64xbf16> to vector<8x16xbf16>
    %cst_168 = arith.constant dense<0.000000e+00> : vector<8x16xf32>
    %591 = tpu.matmul %589, %590, %cst_168 {dimension_numbers = #tpu.dot_dimension_numbers<[1], [0], [0], [1], [0, 0, 1, 1], [], []>} : vector<8x8xbf16>, vector<8x16xbf16>, vector<8x16xf32> -> vector<8x16xf32>
    %592 = vector.extract_strided_slice %532 {offsets = [0, 48], sizes = [8, 16], strides = [1, 1]} : vector<8x64xbf16> to vector<8x16xbf16>
    %593 = vector.extract_strided_slice %533 {offsets = [0, 48], sizes = [8, 16], strides = [1, 1]} : vector<8x64xbf16> to vector<8x16xbf16>
    "tpu.trace_start"() <{level = 10 : i32, message = "qd,kd->qk"}> : () -> ()
    %cst_169 = arith.constant dense<0.000000e+00> : vector<8x8xf32>
    %594 = tpu.matmul %592, %593, %cst_169 {dimension_numbers = #tpu.dot_dimension_numbers<[1], [1], [0], [0], [0, 0, 1, 0], [], []>} : vector<8x16xbf16>, vector<8x16xbf16>, vector<8x8xf32> -> vector<8x8xf32>
    "tpu.trace_stop"() : () -> ()
    %595 = vector.extract_strided_slice %279 {offsets = [3, 0, 0], sizes = [1, 8, 8], strides = [1, 1, 1]} : vector<4x8x8xf32> to vector<1x8x8xf32>
    %596 = vector.shape_cast %595 : vector<1x8x8xf32> to vector<8x8xf32>
    %597 = arith.addf %594, %596 : vector<8x8xf32>
    %cst_170 = arith.constant dense<0xFF800000> : vector<8xf32>
    %598 = vector.multi_reduction <maximumf>, %597, %cst_170 [1] : vector<8x8xf32> to vector<8xf32>
    %599 = vector.shape_cast %598 : vector<8xf32> to vector<8x1xf32>
    %600 = vector.broadcast %599 : vector<8x1xf32> to vector<8x8xf32>
    %601 = arith.subf %597, %600 : vector<8x8xf32>
    %602 = math.exp %601 : vector<8x8xf32>
    %cst_171 = arith.constant dense<0.000000e+00> : vector<8xf32>
    %603 = vector.multi_reduction <add>, %602, %cst_171 [1] : vector<8x8xf32> to vector<8xf32>
    %604 = vector.shape_cast %603 : vector<8xf32> to vector<8x1xf32>
    %605 = tpu.reciprocal %604 {approx = true} : vector<8x1xf32> -> vector<8x1xf32>
    %606 = vector.broadcast %605 : vector<8x1xf32> to vector<8x8xf32>
    %607 = arith.mulf %602, %606 : vector<8x8xf32>
    %608 = arith.truncf %607 : vector<8x8xf32> to vector<8x8xbf16>
    %609 = vector.extract_strided_slice %534 {offsets = [0, 48], sizes = [8, 16], strides = [1, 1]} : vector<8x64xbf16> to vector<8x16xbf16>
    %cst_172 = arith.constant dense<0.000000e+00> : vector<8x16xf32>
    %610 = tpu.matmul %608, %609, %cst_172 {dimension_numbers = #tpu.dot_dimension_numbers<[1], [0], [0], [1], [0, 0, 1, 1], [], []>} : vector<8x8xbf16>, vector<8x16xbf16>, vector<8x16xf32> -> vector<8x16xf32>
    %611 = tpu.concatenate %553, %572, %591, %610 in 1 : vector<8x16xf32>, vector<8x16xf32>, vector<8x16xf32>, vector<8x16xf32> -> vector<8x64xf32>
    %612 = arith.truncf %611 : vector<8x64xf32> to vector<8x64xbf16>
    %cst_173 = arith.constant dense<0.000000e+00> : vector<8x64xf32>
    %613 = tpu.matmul %612, %507, %cst_173 {dimension_numbers = #tpu.dot_dimension_numbers<[1], [0], [0], [1], [0, 0, 1, 1], [], []>} : vector<8x64xbf16>, vector<64x64xbf16>, vector<8x64xf32> -> vector<8x64xf32>
    %614 = arith.addf %501, %613 : vector<8x64xf32>
    %615 = vector.extract_strided_slice %503 {offsets = [1, 0], sizes = [1, 64], strides = [1, 1]} : vector<3x64xf32> to vector<1x64xf32>
    %616 = arith.mulf %614, %614 : vector<8x64xf32>
    %cst_174 = arith.constant dense<0.000000e+00> : vector<8xf32>
    %617 = vector.multi_reduction <add>, %616, %cst_174 [1] : vector<8x64xf32> to vector<8xf32>
    %618 = vector.shape_cast %617 : vector<8xf32> to vector<8x1xf32>
    %cst_175 = arith.constant 6.400000e+01 : f32
    %619 = vector.broadcast %cst_175 : f32 to vector<8x1xf32>
    %620 = arith.divf %618, %619 : vector<8x1xf32>
    %cst_176 = arith.constant 9.99999997E-7 : f32
    %621 = vector.broadcast %cst_176 : f32 to vector<8x1xf32>
    %622 = arith.addf %620, %621 : vector<8x1xf32>
    %623 = math.rsqrt %622 : vector<8x1xf32>
    %624 = vector.broadcast %623 : vector<8x1xf32> to vector<8x64xf32>
    %625 = arith.mulf %614, %624 : vector<8x64xf32>
    %626 = vector.broadcast %615 : vector<1x64xf32> to vector<8x64xf32>
    %627 = arith.mulf %625, %626 : vector<8x64xf32>
    %628 = arith.truncf %627 : vector<8x64xf32> to vector<8x64xbf16>
    %cst_177 = arith.constant dense<0.000000e+00> : vector<8x64xf32>
    %629 = tpu.matmul %628, %508, %cst_177 {dimension_numbers = #tpu.dot_dimension_numbers<[1], [0], [0], [1], [0, 0, 1, 1], [], []>} : vector<8x64xbf16>, vector<64x64xbf16>, vector<8x64xf32> -> vector<8x64xf32>
    %cst_178 = arith.constant dense<0.000000e+00> : vector<8x128xf32>
    %630 = tpu.matmul %276, %509, %cst_178 {dimension_numbers = #tpu.dot_dimension_numbers<[1], [0], [0], [1], [0, 0, 1, 1], [], []>} : vector<8x64xbf16>, vector<64x128xbf16>, vector<8x128xf32> -> vector<8x128xf32>
    %631 = vector.extract_strided_slice %630 {offsets = [0, 0], sizes = [8, 64], strides = [1, 1]} : vector<8x128xf32> to vector<8x64xf32>
    %632 = vector.extract_strided_slice %630 {offsets = [0, 64], sizes = [8, 64], strides = [1, 1]} : vector<8x128xf32> to vector<8x64xf32>
    %633 = arith.truncf %629 : vector<8x64xf32> to vector<8x64xbf16>
    %634 = arith.truncf %631 : vector<8x64xf32> to vector<8x64xbf16>
    %635 = arith.truncf %632 : vector<8x64xf32> to vector<8x64xbf16>
    %636 = vector.extract_strided_slice %633 {offsets = [0, 0], sizes = [8, 16], strides = [1, 1]} : vector<8x64xbf16> to vector<8x16xbf16>
    %637 = vector.extract_strided_slice %634 {offsets = [0, 0], sizes = [8, 16], strides = [1, 1]} : vector<8x64xbf16> to vector<8x16xbf16>
    "tpu.trace_start"() <{level = 10 : i32, message = "qd,kd->qk"}> : () -> ()
    %cst_179 = arith.constant dense<0.000000e+00> : vector<8x8xf32>
    %638 = tpu.matmul %636, %637, %cst_179 {dimension_numbers = #tpu.dot_dimension_numbers<[1], [1], [0], [0], [0, 0, 1, 0], [], []>} : vector<8x16xbf16>, vector<8x16xbf16>, vector<8x8xf32> -> vector<8x8xf32>
    "tpu.trace_stop"() : () -> ()
    %cst_180 = arith.constant dense<0xFF800000> : vector<8xf32>
    %639 = vector.multi_reduction <maximumf>, %638, %cst_180 [1] : vector<8x8xf32> to vector<8xf32>
    %640 = vector.shape_cast %639 : vector<8xf32> to vector<8x1xf32>
    %641 = vector.broadcast %640 : vector<8x1xf32> to vector<8x8xf32>
    %642 = arith.subf %638, %641 : vector<8x8xf32>
    %643 = math.exp %642 : vector<8x8xf32>
    %cst_181 = arith.constant dense<0.000000e+00> : vector<8xf32>
    %644 = vector.multi_reduction <add>, %643, %cst_181 [1] : vector<8x8xf32> to vector<8xf32>
    %645 = vector.shape_cast %644 : vector<8xf32> to vector<8x1xf32>
    %646 = tpu.reciprocal %645 {approx = true} : vector<8x1xf32> -> vector<8x1xf32>
    %647 = vector.broadcast %646 : vector<8x1xf32> to vector<8x8xf32>
    %648 = arith.mulf %643, %647 : vector<8x8xf32>
    %649 = arith.truncf %648 : vector<8x8xf32> to vector<8x8xbf16>
    %650 = vector.extract_strided_slice %635 {offsets = [0, 0], sizes = [8, 16], strides = [1, 1]} : vector<8x64xbf16> to vector<8x16xbf16>
    %cst_182 = arith.constant dense<0.000000e+00> : vector<8x16xf32>
    %651 = tpu.matmul %649, %650, %cst_182 {dimension_numbers = #tpu.dot_dimension_numbers<[1], [0], [0], [1], [0, 0, 1, 1], [], []>} : vector<8x8xbf16>, vector<8x16xbf16>, vector<8x16xf32> -> vector<8x16xf32>
    %652 = vector.extract_strided_slice %633 {offsets = [0, 16], sizes = [8, 16], strides = [1, 1]} : vector<8x64xbf16> to vector<8x16xbf16>
    %653 = vector.extract_strided_slice %634 {offsets = [0, 16], sizes = [8, 16], strides = [1, 1]} : vector<8x64xbf16> to vector<8x16xbf16>
    "tpu.trace_start"() <{level = 10 : i32, message = "qd,kd->qk"}> : () -> ()
    %cst_183 = arith.constant dense<0.000000e+00> : vector<8x8xf32>
    %654 = tpu.matmul %652, %653, %cst_183 {dimension_numbers = #tpu.dot_dimension_numbers<[1], [1], [0], [0], [0, 0, 1, 0], [], []>} : vector<8x16xbf16>, vector<8x16xbf16>, vector<8x8xf32> -> vector<8x8xf32>
    "tpu.trace_stop"() : () -> ()
    %cst_184 = arith.constant dense<0xFF800000> : vector<8xf32>
    %655 = vector.multi_reduction <maximumf>, %654, %cst_184 [1] : vector<8x8xf32> to vector<8xf32>
    %656 = vector.shape_cast %655 : vector<8xf32> to vector<8x1xf32>
    %657 = vector.broadcast %656 : vector<8x1xf32> to vector<8x8xf32>
    %658 = arith.subf %654, %657 : vector<8x8xf32>
    %659 = math.exp %658 : vector<8x8xf32>
    %cst_185 = arith.constant dense<0.000000e+00> : vector<8xf32>
    %660 = vector.multi_reduction <add>, %659, %cst_185 [1] : vector<8x8xf32> to vector<8xf32>
    %661 = vector.shape_cast %660 : vector<8xf32> to vector<8x1xf32>
    %662 = tpu.reciprocal %661 {approx = true} : vector<8x1xf32> -> vector<8x1xf32>
    %663 = vector.broadcast %662 : vector<8x1xf32> to vector<8x8xf32>
    %664 = arith.mulf %659, %663 : vector<8x8xf32>
    %665 = arith.truncf %664 : vector<8x8xf32> to vector<8x8xbf16>
    %666 = vector.extract_strided_slice %635 {offsets = [0, 16], sizes = [8, 16], strides = [1, 1]} : vector<8x64xbf16> to vector<8x16xbf16>
    %cst_186 = arith.constant dense<0.000000e+00> : vector<8x16xf32>
    %667 = tpu.matmul %665, %666, %cst_186 {dimension_numbers = #tpu.dot_dimension_numbers<[1], [0], [0], [1], [0, 0, 1, 1], [], []>} : vector<8x8xbf16>, vector<8x16xbf16>, vector<8x16xf32> -> vector<8x16xf32>
    %668 = vector.extract_strided_slice %633 {offsets = [0, 32], sizes = [8, 16], strides = [1, 1]} : vector<8x64xbf16> to vector<8x16xbf16>
    %669 = vector.extract_strided_slice %634 {offsets = [0, 32], sizes = [8, 16], strides = [1, 1]} : vector<8x64xbf16> to vector<8x16xbf16>
    "tpu.trace_start"() <{level = 10 : i32, message = "qd,kd->qk"}> : () -> ()
    %cst_187 = arith.constant dense<0.000000e+00> : vector<8x8xf32>
    %670 = tpu.matmul %668, %669, %cst_187 {dimension_numbers = #tpu.dot_dimension_numbers<[1], [1], [0], [0], [0, 0, 1, 0], [], []>} : vector<8x16xbf16>, vector<8x16xbf16>, vector<8x8xf32> -> vector<8x8xf32>
    "tpu.trace_stop"() : () -> ()
    %cst_188 = arith.constant dense<0xFF800000> : vector<8xf32>
    %671 = vector.multi_reduction <maximumf>, %670, %cst_188 [1] : vector<8x8xf32> to vector<8xf32>
    %672 = vector.shape_cast %671 : vector<8xf32> to vector<8x1xf32>
    %673 = vector.broadcast %672 : vector<8x1xf32> to vector<8x8xf32>
    %674 = arith.subf %670, %673 : vector<8x8xf32>
    %675 = math.exp %674 : vector<8x8xf32>
    %cst_189 = arith.constant dense<0.000000e+00> : vector<8xf32>
    %676 = vector.multi_reduction <add>, %675, %cst_189 [1] : vector<8x8xf32> to vector<8xf32>
    %677 = vector.shape_cast %676 : vector<8xf32> to vector<8x1xf32>
    %678 = tpu.reciprocal %677 {approx = true} : vector<8x1xf32> -> vector<8x1xf32>
    %679 = vector.broadcast %678 : vector<8x1xf32> to vector<8x8xf32>
    %680 = arith.mulf %675, %679 : vector<8x8xf32>
    %681 = arith.truncf %680 : vector<8x8xf32> to vector<8x8xbf16>
    %682 = vector.extract_strided_slice %635 {offsets = [0, 32], sizes = [8, 16], strides = [1, 1]} : vector<8x64xbf16> to vector<8x16xbf16>
    %cst_190 = arith.constant dense<0.000000e+00> : vector<8x16xf32>
    %683 = tpu.matmul %681, %682, %cst_190 {dimension_numbers = #tpu.dot_dimension_numbers<[1], [0], [0], [1], [0, 0, 1, 1], [], []>} : vector<8x8xbf16>, vector<8x16xbf16>, vector<8x16xf32> -> vector<8x16xf32>
    %684 = vector.extract_strided_slice %633 {offsets = [0, 48], sizes = [8, 16], strides = [1, 1]} : vector<8x64xbf16> to vector<8x16xbf16>
    %685 = vector.extract_strided_slice %634 {offsets = [0, 48], sizes = [8, 16], strides = [1, 1]} : vector<8x64xbf16> to vector<8x16xbf16>
    "tpu.trace_start"() <{level = 10 : i32, message = "qd,kd->qk"}> : () -> ()
    %cst_191 = arith.constant dense<0.000000e+00> : vector<8x8xf32>
    %686 = tpu.matmul %684, %685, %cst_191 {dimension_numbers = #tpu.dot_dimension_numbers<[1], [1], [0], [0], [0, 0, 1, 0], [], []>} : vector<8x16xbf16>, vector<8x16xbf16>, vector<8x8xf32> -> vector<8x8xf32>
    "tpu.trace_stop"() : () -> ()
    %cst_192 = arith.constant dense<0xFF800000> : vector<8xf32>
    %687 = vector.multi_reduction <maximumf>, %686, %cst_192 [1] : vector<8x8xf32> to vector<8xf32>
    %688 = vector.shape_cast %687 : vector<8xf32> to vector<8x1xf32>
    %689 = vector.broadcast %688 : vector<8x1xf32> to vector<8x8xf32>
    %690 = arith.subf %686, %689 : vector<8x8xf32>
    %691 = math.exp %690 : vector<8x8xf32>
    %cst_193 = arith.constant dense<0.000000e+00> : vector<8xf32>
    %692 = vector.multi_reduction <add>, %691, %cst_193 [1] : vector<8x8xf32> to vector<8xf32>
    %693 = vector.shape_cast %692 : vector<8xf32> to vector<8x1xf32>
    %694 = tpu.reciprocal %693 {approx = true} : vector<8x1xf32> -> vector<8x1xf32>
    %695 = vector.broadcast %694 : vector<8x1xf32> to vector<8x8xf32>
    %696 = arith.mulf %691, %695 : vector<8x8xf32>
    %697 = arith.truncf %696 : vector<8x8xf32> to vector<8x8xbf16>
    %698 = vector.extract_strided_slice %635 {offsets = [0, 48], sizes = [8, 16], strides = [1, 1]} : vector<8x64xbf16> to vector<8x16xbf16>
    %cst_194 = arith.constant dense<0.000000e+00> : vector<8x16xf32>
    %699 = tpu.matmul %697, %698, %cst_194 {dimension_numbers = #tpu.dot_dimension_numbers<[1], [0], [0], [1], [0, 0, 1, 1], [], []>} : vector<8x8xbf16>, vector<8x16xbf16>, vector<8x16xf32> -> vector<8x16xf32>
    %700 = tpu.concatenate %651, %667, %683, %699 in 1 : vector<8x16xf32>, vector<8x16xf32>, vector<8x16xf32>, vector<8x16xf32> -> vector<8x64xf32>
    %701 = arith.truncf %700 : vector<8x64xf32> to vector<8x64xbf16>
    %cst_195 = arith.constant dense<0.000000e+00> : vector<8x64xf32>
    %702 = tpu.matmul %701, %510, %cst_195 {dimension_numbers = #tpu.dot_dimension_numbers<[1], [0], [0], [1], [0, 0, 1, 1], [], []>} : vector<8x64xbf16>, vector<64x64xbf16>, vector<8x64xf32> -> vector<8x64xf32>
    %703 = arith.addf %614, %702 : vector<8x64xf32>
    %704 = vector.extract_strided_slice %503 {offsets = [2, 0], sizes = [1, 64], strides = [1, 1]} : vector<3x64xf32> to vector<1x64xf32>
    %705 = arith.mulf %703, %703 : vector<8x64xf32>
    %cst_196 = arith.constant dense<0.000000e+00> : vector<8xf32>
    %706 = vector.multi_reduction <add>, %705, %cst_196 [1] : vector<8x64xf32> to vector<8xf32>
    %707 = vector.shape_cast %706 : vector<8xf32> to vector<8x1xf32>
    %cst_197 = arith.constant 6.400000e+01 : f32
    %708 = vector.broadcast %cst_197 : f32 to vector<8x1xf32>
    %709 = arith.divf %707, %708 : vector<8x1xf32>
    %cst_198 = arith.constant 9.99999997E-7 : f32
    %710 = vector.broadcast %cst_198 : f32 to vector<8x1xf32>
    %711 = arith.addf %709, %710 : vector<8x1xf32>
    %712 = math.rsqrt %711 : vector<8x1xf32>
    %713 = vector.broadcast %712 : vector<8x1xf32> to vector<8x64xf32>
    %714 = arith.mulf %703, %713 : vector<8x64xf32>
    %715 = vector.broadcast %704 : vector<1x64xf32> to vector<8x64xf32>
    %716 = arith.mulf %714, %715 : vector<8x64xf32>
    %717 = arith.truncf %716 : vector<8x64xf32> to vector<8x64xbf16>
    %cst_199 = arith.constant dense<0.000000e+00> : vector<8x128xf32>
    %718 = tpu.matmul %717, %511, %cst_199 {dimension_numbers = #tpu.dot_dimension_numbers<[1], [0], [0], [1], [0, 0, 1, 1], [], []>} : vector<8x64xbf16>, vector<64x128xbf16>, vector<8x128xf32> -> vector<8x128xf32>
    %cst_200 = arith.constant 0.000000e+00 : f32
    %719 = vector.broadcast %cst_200 : f32 to vector<8x128xf32>
    %720 = arith.maximumf %718, %719 : vector<8x128xf32>
    %721 = arith.truncf %720 : vector<8x128xf32> to vector<8x128xbf16>
    %cst_201 = arith.constant dense<0.000000e+00> : vector<8x64xf32>
    %722 = tpu.matmul %721, %513, %cst_201 {dimension_numbers = #tpu.dot_dimension_numbers<[1], [0], [0], [1], [0, 0, 1, 1], [], []>} : vector<8x128xbf16>, vector<128x64xbf16>, vector<8x64xf32> -> vector<8x64xf32>
    %723 = arith.addf %703, %722 : vector<8x64xf32>
    %c1_202 = arith.constant 1 : index
    %c0_203 = arith.constant 0 : index
    %724 = vector.load %arg11[%c1_202, %c0_203] : memref<2x64xf32, #tpu.memory_space<vmem>>, vector<1x64xf32>
    %725 = arith.mulf %723, %723 : vector<8x64xf32>
    %cst_204 = arith.constant dense<0.000000e+00> : vector<8xf32>
    %726 = vector.multi_reduction <add>, %725, %cst_204 [1] : vector<8x64xf32> to vector<8xf32>
    %727 = vector.shape_cast %726 : vector<8xf32> to vector<8x1xf32>
    %cst_205 = arith.constant 6.400000e+01 : f32
    %728 = vector.broadcast %cst_205 : f32 to vector<8x1xf32>
    %729 = arith.divf %727, %728 : vector<8x1xf32>
    %cst_206 = arith.constant 9.99999997E-7 : f32
    %730 = vector.broadcast %cst_206 : f32 to vector<8x1xf32>
    %731 = arith.addf %729, %730 : vector<8x1xf32>
    %732 = math.rsqrt %731 : vector<8x1xf32>
    %733 = vector.broadcast %732 : vector<8x1xf32> to vector<8x64xf32>
    %734 = arith.mulf %723, %733 : vector<8x64xf32>
    %735 = vector.broadcast %724 : vector<1x64xf32> to vector<8x64xf32>
    %736 = arith.mulf %734, %735 : vector<8x64xf32>
    %c0_207 = arith.constant 0 : index
    %c0_208 = arith.constant 0 : index
    %c0_209 = arith.constant 0 : index
    %737 = vector.load %arg12[%c0_207, %c0_208, %c0_209] : memref<1x8x64xf32, #tpu.memory_space<vmem>>, vector<1x8x64xf32>
    %738 = vector.shape_cast %737 : vector<1x8x64xf32> to vector<8x64xf32>
    %739 = vector.shape_cast %736 : vector<8x64xf32> to vector<1x8x64xf32>
    tpu.vector_store %arg12[%c0_207, %c0_208, %c0_209], %739 {strides = array<i32>} : memref<1x8x64xf32, #tpu.memory_space<vmem>>, vector<1x8x64xf32>,
    return
  }
  func.func @transform_0(%arg0: i32) -> (i32, i32, i32) {
    %c0_i32 = arith.constant 0 : i32
    %c0_i32_0 = arith.constant 0 : i32
    %c0_i32_1 = arith.constant 0 : i32
    return %arg0, %c0_i32, %c0_i32_0 : i32, i32, i32
  }
  func.func @transform_1(%arg0: i32) -> (i32, i32, i32) {
    %c0_i32 = arith.constant 0 : i32
    %c0_i32_0 = arith.constant 0 : i32
    %c0_i32_1 = arith.constant 0 : i32
    return %arg0, %c0_i32, %c0_i32_0 : i32, i32, i32
  }
  func.func @transform_2(%arg0: i32) -> (i32, i32, i32) {
    %c0_i32 = arith.constant 0 : i32
    %c0_i32_0 = arith.constant 0 : i32
    %c0_i32_1 = arith.constant 0 : i32
    %c0_i32_2 = arith.constant 0 : i32
    return %c0_i32, %c0_i32_0, %c0_i32_1 : i32, i32, i32
  }
  func.func @transform_3(%arg0: i32) -> (i32, i32, i32) {
    %c0_i32 = arith.constant 0 : i32
    %c0_i32_0 = arith.constant 0 : i32
    %c0_i32_1 = arith.constant 0 : i32
    %c0_i32_2 = arith.constant 0 : i32
    return %c0_i32, %c0_i32_0, %c0_i32_1 : i32, i32, i32
  }
  func.func @transform_4(%arg0: i32) -> (i32, i32, i32) {
    %c0_i32 = arith.constant 0 : i32
    %c0_i32_0 = arith.constant 0 : i32
    %c0_i32_1 = arith.constant 0 : i32
    %c0_i32_2 = arith.constant 0 : i32
    return %c0_i32, %c0_i32_0, %c0_i32_1 : i32, i32, i32
  }
  func.func @transform_5(%arg0: i32) -> (i32, i32, i32) {
    %c0_i32 = arith.constant 0 : i32
    %c0_i32_0 = arith.constant 0 : i32
    %c0_i32_1 = arith.constant 0 : i32
    %c0_i32_2 = arith.constant 0 : i32
    return %c0_i32, %c0_i32_0, %c0_i32_1 : i32, i32, i32
  }
  func.func @transform_6(%arg0: i32) -> (i32, i32, i32) {
    %c0_i32 = arith.constant 0 : i32
    %c0_i32_0 = arith.constant 0 : i32
    %c0_i32_1 = arith.constant 0 : i32
    %c0_i32_2 = arith.constant 0 : i32
    return %c0_i32, %c0_i32_0, %c0_i32_1 : i32, i32, i32
  }
  func.func @transform_7(%arg0: i32) -> (i32, i32, i32) {
    %c0_i32 = arith.constant 0 : i32
    %c0_i32_0 = arith.constant 0 : i32
    %c0_i32_1 = arith.constant 0 : i32
    %c0_i32_2 = arith.constant 0 : i32
    return %c0_i32, %c0_i32_0, %c0_i32_1 : i32, i32, i32
  }
  func.func @transform_8(%arg0: i32) -> (i32, i32, i32) {
    %c0_i32 = arith.constant 0 : i32
    %c0_i32_0 = arith.constant 0 : i32
    %c0_i32_1 = arith.constant 0 : i32
    %c0_i32_2 = arith.constant 0 : i32
    return %c0_i32, %c0_i32_0, %c0_i32_1 : i32, i32, i32
  }
  func.func @transform_9(%arg0: i32) -> (i32, i32, i32) {
    %c0_i32 = arith.constant 0 : i32
    %c0_i32_0 = arith.constant 0 : i32
    %c0_i32_1 = arith.constant 0 : i32
    %c0_i32_2 = arith.constant 0 : i32
    return %c0_i32, %c0_i32_0, %c0_i32_1 : i32, i32, i32
  }
  func.func @transform_10(%arg0: i32) -> (i32, i32) {
    %c0_i32 = arith.constant 0 : i32
    %c0_i32_0 = arith.constant 0 : i32
    %c0_i32_1 = arith.constant 0 : i32
    return %c0_i32, %c0_i32_0 : i32, i32
  }
  func.func @transform_11(%arg0: i32) -> (i32, i32, i32) {
    %c0_i32 = arith.constant 0 : i32
    %c0_i32_0 = arith.constant 0 : i32
    %c0_i32_1 = arith.constant 0 : i32
    return %arg0, %c0_i32, %c0_i32_0 : i32, i32, i32
  }
}

</mosaic_0001>

<llo_original>
// kernel: t5_forward.1
$region0: #{t5_forward.1}
  #allocation0 [shape = 'u32[]', space=smem, size = 0x4, offset = 0x4, fixed_abs, tag = 'smem constant byte address 0x4 - core index']
  #allocation1 [shape = 'u32[144,128]{1,0:T(1,128)}', space=vmem, size = 0x12000, scoped, tag = 'internal scratch']
  %s0 = inlined_call_operand.vmem [shape: f32[2,8,64], index: 0, kind: input, shape index: {}]
  %s1 = inlined_call_operand.vmem [shape: f32[2,8,64], index: 1, kind: input, shape index: {}]
  %s2 = inlined_call_operand.vmem [shape: f32[4,8,8], index: 2, kind: input, shape index: {}]
  %s3 = inlined_call_operand.vmem [shape: f32[4,8,8], index: 3, kind: input, shape index: {}]
  %s4 = inlined_call_operand.vmem [shape: f32[2,2,64], index: 4, kind: input, shape index: {}]
  %s5 = inlined_call_operand.vmem [shape: bf16[2,64,384], index: 5, kind: input, shape index: {}]
  %s6 = inlined_call_operand.vmem [shape: bf16[2,128,64], index: 6, kind: input, shape index: {}]
  %s7 = inlined_call_operand.vmem [shape: f32[2,3,64], index: 7, kind: input, shape index: {}]
  %s8 = inlined_call_operand.vmem [shape: bf16[2,64,640], index: 8, kind: input, shape index: {}]
  %s9 = inlined_call_operand.vmem [shape: bf16[2,128,64], index: 9, kind: input, shape index: {}]
  %s10 = inlined_call_operand.vmem [shape: f32[2,64], index: 10, kind: input, shape index: {}]
  %s11 = inlined_call_operand.hbm [shape: f32[2,8,64], index: 11, kind: output, shape index: {}]
  %s12 = sld [smem:[#allocation0]]
  $region77: #{t5_forward.1} parent=0
    _
  %s14 = ssub.s32 1, %s12
  %s15 = scalar_select 0, %s14, %s12
  $region1: #{t5_forward.1} parent=0
    #allocation2 [shape = 'u8[8192]{0}', space=vmem, size = 0x2000, scoped, tag = 'output window, operand 0']
    #allocation3 [shape = 's32[2]{0}', space=sflag, size = 0x8, scoped, tag = 'scoped memory for t5_forward.1']
    %16 = vsyncpa [#allocation3], 0
    %s17 = scalar_lea.sflag [#allocation3], 1
    %18 = vsyncpa %s17, 0
    loop: start=0, step=1, limit=4
    $region2: #{t5_forward.1} parent=1 // loop_pre_header
      _
    $region3: #{t5_forward.1} parent=1 // loop_header
      %s20 = sphi 0, %s24
      %p21 = scmp.ge.s32.totalorder %s20, 4
      %s30 = sphi 0, %s32
      %s33 = sphi 0, %s30
      %s34 = sphi 0, %s33
      %s50 = sphi 0, %s34
      %s56 = sphi 0, %s58
      %s59 = sphi 0, %s56
      %s60 = sphi 0, %s59
      %s76 = sphi 0, %s60
      %s80 = sphi 0, %s80
      %s82 = sphi 0, %s80
      %s83 = sphi 0, %s82
      %s97 = sphi 0, %s83
      %s101 = sphi 0, %s101
      %s103 = sphi 0, %s101
      %s104 = sphi 0, %s103
      %s118 = sphi 0, %s104
      %s122 = sphi 0, %s122
      %s124 = sphi 0, %s122
      %s125 = sphi 0, %s124
      %s139 = sphi 0, %s125
      %s143 = sphi 0, %s143
      %s145 = sphi 0, %s143
      %s146 = sphi 0, %s145
      %s160 = sphi 0, %s146
      %s164 = sphi 0, %s164
      %s166 = sphi 0, %s164
      %s167 = sphi 0, %s166
      %s181 = sphi 0, %s167
      %s185 = sphi 0, %s185
      %s187 = sphi 0, %s185
      %s188 = sphi 0, %s187
      %s202 = sphi 0, %s188
      %s206 = sphi 0, %s206
      %s208 = sphi 0, %s206
      %s209 = sphi 0, %s208
      %s223 = sphi 0, %s209
      %s227 = sphi 0, %s227
      %s229 = sphi 0, %s227
      %s230 = sphi 0, %s229
      %s244 = sphi 0, %s230
      %s248 = sphi 0, %s248
      %s250 = sphi 0, %s248
      %s251 = sphi 0, %s250
      %s265 = sphi 0, %s251
      %s271 = sphi 0, %s273
      %s274 = sphi 0, %s271
      %s275 = sphi 0, %s274
      %s291 = sphi 0, %s275
    $region4: #{t5_forward.1} parent=1 // loop_header_branch
      %23 = sbr.rel (%p21) target = $region8
    $region5: #{t5_forward.1} parent=1 // loop_body
      %s25 = ssub.s32 %s20, 1
      %s26 = ssub.s32 %s20, 2
      %s27 = sadd.s32 %s20, 1
      %s28 = ssub.s32 %s20, %s27
      %p29 = scmp.eq.s32.totalorder %s28, 0
      %s31 = sadd.s32 %s30, 1
      %s32 = scalar_select %p29, %s30, %s31
      %p35 = pneg %p29
      %p36 = scmp.eq.s32.totalorder %s20, 1
      %p37 = por %p35, %p36
      %p38 = scmp.ne.s32.totalorder %s30, %s33
      %p39 = scmp.eq.s32.totalorder %s20, 0
      %p40 = por %p38, %p39
      %p41 = scmp.ne.s32.totalorder %s30, %s33
      %p42 = scmp.eq.s32.totalorder %s25, 1
      %p43 = por %p41, %p42
      %p44 = scmp.ne.s32.totalorder %s33, %s34
      %p45 = scmp.eq.s32.totalorder %s25, 0
      %p46 = por %p44, %p45
      %p47 = scmp.ne.s32.totalorder %s33, %s34
      %p48 = scmp.eq.s32.totalorder %s26, 1
      %p49 = por %p47, %p48
      %p51 = scmp.ne.s32.totalorder %s34, %s50
      %p52 = scmp.eq.s32.totalorder %s26, 0
      %p53 = por %p51, %p52
      %s54 = ssub.s32 %s20, %s27
      %p55 = scmp.eq.s32.totalorder %s54, 0
      %s57 = sadd.s32 %s56, 1
      %s58 = scalar_select %p55, %s56, %s57
      %p61 = pneg %p55
      %p62 = scmp.eq.s32.totalorder %s20, 1
      %p63 = por %p61, %p62
      %p64 = scmp.ne.s32.totalorder %s56, %s59
      %p65 = scmp.eq.s32.totalorder %s20, 0
      %p66 = por %p64, %p65
      %p67 = scmp.ne.s32.totalorder %s56, %s59
      %p68 = scmp.eq.s32.totalorder %s25, 1
      %p69 = por %p67, %p68
      %p70 = scmp.ne.s32.totalorder %s59, %s60
      %p71 = scmp.eq.s32.totalorder %s25, 0
      %p72 = por %p70, %p71
      %p73 = scmp.ne.s32.totalorder %s59, %s60
      %p74 = scmp.eq.s32.totalorder %s26, 1
      %p75 = por %p73, %p74
      %p77 = scmp.ne.s32.totalorder %s60, %s76
      %p78 = scmp.eq.s32.totalorder %s26, 0
      %p79 = por %p77, %p78
      %s81 = sadd.s32 %s80, 1
      %p84 = scmp.eq.s32.totalorder %s20, 1
      %p85 = scmp.ne.s32.totalorder %s80, %s82
      %p86 = scmp.eq.s32.totalorder %s20, 0
      %p87 = por %p85, %p86
      %p88 = scmp.ne.s32.totalorder %s80, %s82
      %p89 = scmp.eq.s32.totalorder %s25, 1
      %p90 = por %p88, %p89
      %p91 = scmp.ne.s32.totalorder %s82, %s83
      %p92 = scmp.eq.s32.totalorder %s25, 0
      %p93 = por %p91, %p92
      %p94 = scmp.ne.s32.totalorder %s82, %s83
      %p95 = scmp.eq.s32.totalorder %s26, 1
      %p96 = por %p94, %p95
      %p98 = scmp.ne.s32.totalorder %s83, %s97
      %p99 = scmp.eq.s32.totalorder %s26, 0
      %p100 = por %p98, %p99
      %s102 = sadd.s32 %s101, 1
      %p105 = scmp.eq.s32.totalorder %s20, 1
      %p106 = scmp.ne.s32.totalorder %s101, %s103
      %p107 = scmp.eq.s32.totalorder %s20, 0
      %p108 = por %p106, %p107
      %p109 = scmp.ne.s32.totalorder %s101, %s103
      %p110 = scmp.eq.s32.totalorder %s25, 1
      %p111 = por %p109, %p110
      %p112 = scmp.ne.s32.totalorder %s103, %s104
      %p113 = scmp.eq.s32.totalorder %s25, 0
      %p114 = por %p112, %p113
      %p115 = scmp.ne.s32.totalorder %s103, %s104
      %p116 = scmp.eq.s32.totalorder %s26, 1
      %p117 = por %p115, %p116
      %p119 = scmp.ne.s32.totalorder %s104, %s118
      %p120 = scmp.eq.s32.totalorder %s26, 0
      %p121 = por %p119, %p120
      %s123 = sadd.s32 %s122, 1
      %p126 = scmp.eq.s32.totalorder %s20, 1
      %p127 = scmp.ne.s32.totalorder %s122, %s124
      %p128 = scmp.eq.s32.totalorder %s20, 0
      %p129 = por %p127, %p128
      %p130 = scmp.ne.s32.totalorder %s122, %s124
      %p131 = scmp.eq.s32.totalorder %s25, 1
      %p132 = por %p130, %p131
      %p133 = scmp.ne.s32.totalorder %s124, %s125
      %p134 = scmp.eq.s32.totalorder %s25, 0
      %p135 = por %p133, %p134
      %p136 = scmp.ne.s32.totalorder %s124, %s125
      %p137 = scmp.eq.s32.totalorder %s26, 1
      %p138 = por %p136, %p137
      %p140 = scmp.ne.s32.totalorder %s125, %s139
      %p141 = scmp.eq.s32.totalorder %s26, 0
      %p142 = por %p140, %p141
      %s144 = sadd.s32 %s143, 1
      %p147 = scmp.eq.s32.totalorder %s20, 1
      %p148 = scmp.ne.s32.totalorder %s143, %s145
      %p149 = scmp.eq.s32.totalorder %s20, 0
      %p150 = por %p148, %p149
      %p151 = scmp.ne.s32.totalorder %s143, %s145
      %p152 = scmp.eq.s32.totalorder %s25, 1
      %p153 = por %p151, %p152
      %p154 = scmp.ne.s32.totalorder %s145, %s146
      %p155 = scmp.eq.s32.totalorder %s25, 0
      %p156 = por %p154, %p155
      %p157 = scmp.ne.s32.totalorder %s145, %s146
      %p158 = scmp.eq.s32.totalorder %s26, 1
      %p159 = por %p157, %p158
      %p161 = scmp.ne.s32.totalorder %s146, %s160
      %p162 = scmp.eq.s32.totalorder %s26, 0
      %p163 = por %p161, %p162
      %s165 = sadd.s32 %s164, 1
      %p168 = scmp.eq.s32.totalorder %s20, 1
      %p169 = scmp.ne.s32.totalorder %s164, %s166
      %p170 = scmp.eq.s32.totalorder %s20, 0
      %p171 = por %p169, %p170
      %p172 = scmp.ne.s32.totalorder %s164, %s166
      %p173 = scmp.eq.s32.totalorder %s25, 1
      %p174 = por %p172, %p173
      %p175 = scmp.ne.s32.totalorder %s166, %s167
      %p176 = scmp.eq.s32.totalorder %s25, 0
      %p177 = por %p175, %p176
      %p178 = scmp.ne.s32.totalorder %s166, %s167
      %p179 = scmp.eq.s32.totalorder %s26, 1
      %p180 = por %p178, %p179
      %p182 = scmp.ne.s32.totalorder %s167, %s181
      %p183 = scmp.eq.s32.totalorder %s26, 0
      %p184 = por %p182, %p183
      %s186 = sadd.s32 %s185, 1
      %p189 = scmp.eq.s32.totalorder %s20, 1
      %p190 = scmp.ne.s32.totalorder %s185, %s187
      %p191 = scmp.eq.s32.totalorder %s20, 0
      %p192 = por %p190, %p191
      %p193 = scmp.ne.s32.totalorder %s185, %s187
      %p194 = scmp.eq.s32.totalorder %s25, 1
      %p195 = por %p193, %p194
      %p196 = scmp.ne.s32.totalorder %s187, %s188
      %p197 = scmp.eq.s32.totalorder %s25, 0
      %p198 = por %p196, %p197
      %p199 = scmp.ne.s32.totalorder %s187, %s188
      %p200 = scmp.eq.s32.totalorder %s26, 1
      %p201 = por %p199, %p200
      %p203 = scmp.ne.s32.totalorder %s188, %s202
      %p204 = scmp.eq.s32.totalorder %s26, 0
      %p205 = por %p203, %p204
      %s207 = sadd.s32 %s206, 1
      %p210 = scmp.eq.s32.totalorder %s20, 1
      %p211 = scmp.ne.s32.totalorder %s206, %s208
      %p212 = scmp.eq.s32.totalorder %s20, 0
      %p213 = por %p211, %p212
      %p214 = scmp.ne.s32.totalorder %s206, %s208
      %p215 = scmp.eq.s32.totalorder %s25, 1
      %p216 = por %p214, %p215
      %p217 = scmp.ne.s32.totalorder %s208, %s209
      %p218 = scmp.eq.s32.totalorder %s25, 0
      %p219 = por %p217, %p218
      %p220 = scmp.ne.s32.totalorder %s208, %s209
      %p221 = scmp.eq.s32.totalorder %s26, 1
      %p222 = por %p220, %p221
      %p224 = scmp.ne.s32.totalorder %s209, %s223
      %p225 = scmp.eq.s32.totalorder %s26, 0
      %p226 = por %p224, %p225
      %s228 = sadd.s32 %s227, 1
      %p231 = scmp.eq.s32.totalorder %s20, 1
      %p232 = scmp.ne.s32.totalorder %s227, %s229
      %p233 = scmp.eq.s32.totalorder %s20, 0
      %p234 = por %p232, %p233
      %p235 = scmp.ne.s32.totalorder %s227, %s229
      %p236 = scmp.eq.s32.totalorder %s25, 1
      %p237 = por %p235, %p236
      %p238 = scmp.ne.s32.totalorder %s229, %s230
      %p239 = scmp.eq.s32.totalorder %s25, 0
      %p240 = por %p238, %p239
      %p241 = scmp.ne.s32.totalorder %s229, %s230
      %p242 = scmp.eq.s32.totalorder %s26, 1
      %p243 = por %p241, %p242
      %p245 = scmp.ne.s32.totalorder %s230, %s244
      %p246 = scmp.eq.s32.totalorder %s26, 0
      %p247 = por %p245, %p246
      %s249 = sadd.s32 %s248, 1
      %p252 = scmp.eq.s32.totalorder %s20, 1
      %p253 = scmp.ne.s32.totalorder %s248, %s250
      %p254 = scmp.eq.s32.totalorder %s20, 0
      %p255 = por %p253, %p254
      %p256 = scmp.ne.s32.totalorder %s248, %s250
      %p257 = scmp.eq.s32.totalorder %s25, 1
      %p258 = por %p256, %p257
      %p259 = scmp.ne.s32.totalorder %s250, %s251
      %p260 = scmp.eq.s32.totalorder %s25, 0
      %p261 = por %p259, %p260
      %p262 = scmp.ne.s32.totalorder %s250, %s251
      %p263 = scmp.eq.s32.totalorder %s26, 1
      %p264 = por %p262, %p263
      %p266 = scmp.ne.s32.totalorder %s251, %s265
      %p267 = scmp.eq.s32.totalorder %s26, 0
      %p268 = por %p266, %p267
      %s269 = ssub.s32 %s20, %s27
      %p270 = scmp.eq.s32.totalorder %s269, 0
      %s272 = sadd.s32 %s271, 1
      %s273 = scalar_select %p270, %s271, %s272
      %p276 = pneg %p270
      %p277 = scmp.eq.s32.totalorder %s20, 1
      %p278 = por %p276, %p277
      %p279 = scmp.ne.s32.totalorder %s271, %s274
      %p280 = scmp.eq.s32.totalorder %s20, 0
      %p281 = por %p279, %p280
      %p282 = scmp.ne.s32.totalorder %s271, %s274
      %p283 = scmp.eq.s32.totalorder %s25, 1
      %p284 = por %p282, %p283
      %p285 = scmp.ne.s32.totalorder %s274, %s275
      %p286 = scmp.eq.s32.totalorder %s25, 0
      %p287 = por %p285, %p286
      %p288 = scmp.ne.s32.totalorder %s274, %s275
      %p289 = scmp.eq.s32.totalorder %s26, 1
      %p290 = por %p288, %p289
      %p292 = scmp.ne.s32.totalorder %s275, %s291
      %p293 = scmp.eq.s32.totalorder %s26, 0
      %p294 = por %p292, %p293
      %p295 = scmp.le.s32.totalorder 1, %s20
      %p296 = scmp.lt.s32.totalorder %s20, 3
      %p297 = pnand %p295, %p296
      %p298 = pneg %p297
      // Predicated region
      $region9: #{t5_forward.1} parent=5 // pred_check
        _
      $region10: #{t5_forward.1} parent=5 // pred_check_branch
        %300 = sbr.rel (%p297) target = $region12
      $region11: #{t5_forward.1} parent=5 // pred_region
        %s301 = ssub.s32 %s20, 1
        // Predicated region
        $region13: #{t5_forward.1} parent=11 // pred_check
          %p302 = pneg %p93
        $region14: #{t5_forward.1} parent=11 // pred_check_branch
          %304 = sbr.rel (%p302) target = $region16
        $region15: #{t5_forward.1} parent=11 // pred_region
          _
        $region16: #{t5_forward.1} parent=11 // pred_fallthru
          _
        // Predicated region
        $region17: #{t5_forward.1} parent=11 // pred_check
          %p305 = pneg %p114
        $region18: #{t5_forward.1} parent=11 // pred_check_branch
          %307 = sbr.rel (%p305) target = $region20
        $region19: #{t5_forward.1} parent=11 // pred_region
          _
        $region20: #{t5_forward.1} parent=11 // pred_fallthru
          _
        // Predicated region
        $region21: #{t5_forward.1} parent=11 // pred_check
          %p308 = pneg %p135
        $region22: #{t5_forward.1} parent=11 // pred_check_branch
          %310 = sbr.rel (%p308) target = $region24
        $region23: #{t5_forward.1} parent=11 // pred_region
          _
        $region24: #{t5_forward.1} parent=11 // pred_fallthru
          _
        // Predicated region
        $region25: #{t5_forward.1} parent=11 // pred_check
          %p311 = pneg %p156
        $region26: #{t5_forward.1} parent=11 // pred_check_branch
          %313 = sbr.rel (%p311) target = $region28
        $region27: #{t5_forward.1} parent=11 // pred_region
          _
        $region28: #{t5_forward.1} parent=11 // pred_fallthru
          _
        // Predicated region
        $region29: #{t5_forward.1} parent=11 // pred_check
          %p314 = pneg %p177
        $region30: #{t5_forward.1} parent=11 // pred_check_branch
          %316 = sbr.rel (%p314) target = $region32
        $region31: #{t5_forward.1} parent=11 // pred_region
          _
        $region32: #{t5_forward.1} parent=11 // pred_fallthru
          _
        // Predicated region
        $region33: #{t5_forward.1} parent=11 // pred_check
          %p317 = pneg %p198
        $region34: #{t5_forward.1} parent=11 // pred_check_branch
          %319 = sbr.rel (%p317) target = $region36
        $region35: #{t5_forward.1} parent=11 // pred_region
          _
        $region36: #{t5_forward.1} parent=11 // pred_fallthru
          _
        // Predicated region
        $region37: #{t5_forward.1} parent=11 // pred_check
          %p320 = pneg %p219
        $region38: #{t5_forward.1} parent=11 // pred_check_branch
          %322 = sbr.rel (%p320) target = $region40
        $region39: #{t5_forward.1} parent=11 // pred_region
          _
        $region40: #{t5_forward.1} parent=11 // pred_fallthru
          _
        // Predicated region
        $region41: #{t5_forward.1} parent=11 // pred_check
          %p323 = pneg %p240
        $region42: #{t5_forward.1} parent=11 // pred_check_branch
          %325 = sbr.rel (%p323) target = $region44
        $region43: #{t5_forward.1} parent=11 // pred_region
          _
        $region44: #{t5_forward.1} parent=11 // pred_fallthru
          _
        // Predicated region
        $region45: #{t5_forward.1} parent=11 // pred_check
          %p326 = pneg %p261
        $region46: #{t5_forward.1} parent=11 // pred_check_branch
          %328 = sbr.rel (%p326) target = $region48
        $region47: #{t5_forward.1} parent=11 // pred_region
          _
        $region48: #{t5_forward.1} parent=11 // pred_fallthru
          _
      $region12: #{t5_forward.1} parent=5 // pred_fallthru
        _
      %p329 = scmp.lt.s32.totalorder %s20, 2
      // Predicated region
      $region49: #{t5_forward.1} parent=5 // pred_check
        %p330 = pneg %p329
      $region50: #{t5_forward.1} parent=5 // pred_check_branch
        %332 = sbr.rel (%p330) target = $region52
      $region51: #{t5_forward.1} parent=5 // pred_region
        // Predicated region
        $region53: #{t5_forward.1} parent=51 // pred_check
          %p333 = pneg %p40
        $region54: #{t5_forward.1} parent=51 // pred_check_branch
          %335 = sbr.rel (%p333) target = $region56
        $region55: #{t5_forward.1} parent=51 // pred_region
          %p336 = scmp.lt.s32.totalorder %s20, 1
          %s337 = scalar_select %p336, %s20, 1
          %s338 = smul.addr %s337, 8
          %s339 = scalar_lea.vmem %s0, %s338
        $region56: #{t5_forward.1} parent=51 // pred_fallthru
          _
        // Predicated region
        $region57: #{t5_forward.1} parent=51 // pred_check
          %p340 = pneg %p66
        $region58: #{t5_forward.1} parent=51 // pred_check_branch
          %342 = sbr.rel (%p340) target = $region60
        $region59: #{t5_forward.1} parent=51 // pred_region
          %p343 = scmp.lt.s32.totalorder %s20, 1
          %s344 = scalar_select %p343, %s20, 1
          %s345 = smul.addr %s344, 8
          %s346 = scalar_lea.vmem %s1, %s345
        $region60: #{t5_forward.1} parent=51 // pred_fallthru
          _
      $region52: #{t5_forward.1} parent=5 // pred_fallthru
        _
      %p347 = scmp.le.s32.totalorder 1, %s20
      %p348 = scmp.lt.s32.totalorder %s20, 3
      %p349 = pnand %p347, %p348
      %p350 = pneg %p349
      // Predicated region
      $region61: #{t5_forward.1} parent=5 // pred_check
        _
      $region62: #{t5_forward.1} parent=5 // pred_check_branch
        %352 = sbr.rel (%p349) target = $region64
      $region63: #{t5_forward.1} parent=5 // pred_region
        %s353 = ssub.s32 %s20, 1
        %p354 = scmp.lt.s32.totalorder %s25, 1
        %s355 = scalar_select %p354, %s25, 1
        %s356 = smul.addr %s355, 8
        %s357 = scalar_lea.vmem %s0, %s356
        %p358 = pneg %p46
        %p359 = pneg %p43
        %p360 = scmp.lt.s32.totalorder %s25, 1
        %s361 = scalar_select %p360, %s25, 1
        %s362 = smul.addr %s361, 8
        %s363 = scalar_lea.vmem %s1, %s362
        %p364 = pneg %p72
        %p365 = pneg %p69
        %p366 = pneg %p93
        %p367 = pneg %p90
        %p368 = pneg %p114
        %p369 = pneg %p111
        %p370 = pneg %p135
        %p371 = pneg %p132
        %p372 = pneg %p156
        %p373 = pneg %p153
        %p374 = pneg %p177
        %p375 = pneg %p174
        %p376 = pneg %p198
        %p377 = pneg %p195
        %p378 = pneg %p219
        %p379 = pneg %p216
        %p380 = pneg %p240
        %p381 = pneg %p237
        %p382 = pneg %p261
        %p383 = pneg %p258
        %p384 = pneg %p287
        %p385 = pneg %p284
        %s386 = sand.u32 %s274, 1
        %s387 = scalar_lea.sflag [#allocation3], %s386
        %s388 = sand.u32 %s274, 1
        %s389 = smul.addr %s388, 8
        %s390 = scalar_lea.vmem [#allocation2], %s389
        %p391 = scmp.lt.s32.totalorder %s25, 1
        %s392 = scalar_select %p391, %s25, 1
        %s393 = smul.addr %s392, 8
        %s394 = scalar_lea.vmem %s0, %s393
        %p395 = scmp.lt.s32.totalorder %s25, 1
        %s396 = scalar_select %p395, %s25, 1
        %s397 = smul.addr %s396, 8
        %s398 = scalar_lea.vmem %s1, %s397
        %v400 = vld [vmem:[%s394] sm:$0xff]
        %v401 = vld [vmem:[%s2] sm:$0xff]
        %v402 = vld [vmem:[%s2 + $0x8] sm:$0xff]
        %v403 = vld [vmem:[%s2 + $0x10] sm:$0xff]
        %v404 = vld [vmem:[%s2 + $0x18] sm:$0xff]
        %v405 = vld [vmem:[%s4] sm:$0x3]
        %v406 = vld [vmem:[%s5] sm:$0xff]
        %v407 = vld [vmem:[%s5 + $0x8] sm:$0xf]
        %v408 = vld [vmem:[%s5 + $0xc] sm:$0xff]
        %v409 = vld [vmem:[%s5 + $0x14] sm:$0xf]
        %v410 = vld [vmem:[%s5 + $0x18] sm:$0xff]
        %v411 = vld [vmem:[%s5 + $0x20] sm:$0xf]
        %v412 = vld [vmem:[%s5 + $0x24] sm:$0xff]
        %v413 = vld [vmem:[%s5 + $0x2c] sm:$0xf]
        %v414 = vld [vmem:[%s5 + $0x30] sm:$0xff]
        %v415 = vld [vmem:[%s5 + $0x38] sm:$0xf]
        %v416 = vld [vmem:[%s5 + $0x3c] sm:$0xff]
        %v417 = vld [vmem:[%s5 + $0x44] sm:$0xf]
        %v418 = vld [vmem:[%s5 + $0x48] sm:$0xff]
        %v419 = vld [vmem:[%s5 + $0x50] sm:$0xf]
        %v420 = vld [vmem:[%s5 + $0x54] sm:$0xff]
        %v421 = vld [vmem:[%s5 + $0x5c] sm:$0xf]
        %v422 = vld [vmem:[%s6] sm:$0xf]
        %v423 = vld [vmem:[%s6 + $0x4] sm:$0xf]
        %v424 = vld [vmem:[%s6 + $0x8] sm:$0xf]
        %v425 = vld [vmem:[%s6 + $0xc] sm:$0xf]
        %v426 = vld [vmem:[%s6 + $0x10] sm:$0xf]
        %v427 = vld [vmem:[%s6 + $0x14] sm:$0xf]
        %v428 = vld [vmem:[%s6 + $0x18] sm:$0xf]
        %v429 = vld [vmem:[%s6 + $0x1c] sm:$0xf]
        %v430 = vld [vmem:[%s6 + $0x20] sm:$0xf]
        %v431 = vld [vmem:[%s6 + $0x24] sm:$0xf]
        %v432 = vld [vmem:[%s6 + $0x28] sm:$0xf]
        %v433 = vld [vmem:[%s6 + $0x2c] sm:$0xf]
        %v434 = vld [vmem:[%s6 + $0x30] sm:$0xf]
        %v435 = vld [vmem:[%s6 + $0x34] sm:$0xf]
        %v436 = vld [vmem:[%s6 + $0x38] sm:$0xf]
        %v437 = vld [vmem:[%s6 + $0x3c] sm:$0xf]
        %v438 = vmul.f32 %v400, %v400
        %vm439 = vcmask 523264
        %v440 = vsel %vm439, %v438, 0.0
        %441 = vadd.xlane.f32.xlu0 %v440
        %v442 = vpop.xlane.xlu0 %441
        %v443 = vrcp.pop 64.0
        %v444 = vmul.f32 %v442, %v443
        %v445 = vadd.f32 %v444, 1e-06
        %v446 = vrsqrt.pop %v445
        %v447 = vmul.f32 %v400, %v446
        %v448 = vlaneseq
        %v449 = vshrl.u32 %v448, 7
        %v450 = vsub.s32 0, %v449
        %v451 = vrot.slane %v405, %v450
        %v452 = vmul.f32 %v447, %v451
        %v453 = vpack.c.bf16 %v452, %v452
        %v462 = vunpack.c.l.b16 %v406
        %v463 = vunpack.c.h.b16 %v406
        %v464 = vunpack.c.l.b16 %v408
        %v465 = vunpack.c.h.b16 %v408
        %v466 = vunpack.c.l.b16 %v410
        %v467 = vunpack.c.h.b16 %v410
        %v468 = vunpack.c.l.b16 %v412
        %v469 = vunpack.c.h.b16 %v412
        %v470 = vunpack.c.l.b16 %v414
        %v471 = vunpack.c.h.b16 %v414
        %v472 = vunpack.c.l.b16 %v416
        %v473 = vunpack.c.h.b16 %v416
        %v474 = vunpack.c.l.b16 %v418
        %v475 = vunpack.c.h.b16 %v418
        %v476 = vunpack.c.l.b16 %v420
        %v477 = vunpack.c.h.b16 %v420
        %v478 = vpack.c.b16 %v464, %v462
        %v479 = vpack.c.b16 %v465, %v463
        %v480 = vpack.c.b16 %v468, %v466
        %v481 = vpack.c.b16 %v469, %v467
        %v482 = vpack.c.b16 %v472, %v470
        %v483 = vpack.c.b16 %v473, %v471
        %v484 = vpack.c.b16 %v476, %v474
        %v485 = vpack.c.b16 %v477, %v475
        %v495 = vsel %vm439, %v453, 0
        %497 = vmatprep.subr.bf16.mxu0 %v479
        %498 = vmatpush1.bf16.msra.mxu0 %v478
        %499 = vmatprep.subr.bf16.mxu0 %v481
        %500 = vmatpush1.bf16.msra.mxu0 %v480
        %501 = vmatprep.subr.bf16.mxu0 %v483
        %502 = vmatpush1.bf16.msra.mxu0 %v482
        %503 = vmatprep.subr.bf16.mxu0 %v485
        %504 = vmatpush1.bf16.msra.mxu0 %v484
        %505 = vmatprep.subr.bf16.mxu0 0
        %506 = vmatpush1.bf16.msra.mxu0 0
        %507 = vmatprep.subr.bf16.mxu0 0
        %508 = vmatpush1.bf16.msra.mxu0 0
        %509 = vmatprep.subr.bf16.mxu0 0
        %510 = vmatpush1.bf16.msra.mxu0 0
        %511 = vmatprep.subr.bf16.mxu0 0
        %512 = vmatpush1.bf16.msra.mxu0 0
        %513 = vmatprep.subr.bf16.mxu0 0
        %514 = vmatpush1.bf16.msra.mxu0 0
        %515 = vmatprep.subr.bf16.mxu0 0
        %516 = vmatpush1.bf16.msra.mxu0 0
        %517 = vmatprep.subr.bf16.mxu0 0
        %518 = vmatpush1.bf16.msra.mxu0 0
        %519 = vmatprep.subr.bf16.mxu0 0
        %520 = vmatpush1.bf16.msra.mxu0 0
        %521 = vmatprep.subr.bf16.mxu0 0
        %522 = vmatpush1.bf16.msra.mxu0 0
        %523 = vmatprep.subr.bf16.mxu0 0
        %524 = vmatpush1.bf16.msra.mxu0 0
        %525 = vmatprep.subr.bf16.mxu0 0
        %526 = vmatpush1.bf16.msra.mxu0 0
        %527 = vmatprep.subr.bf16.mxu0 0
        %528 = vmatpush1.bf16.msra.mxu0 0
        %529 = vmatprep.mubr.bf16.mxu0 0
        %530 = vmatmul.mubr.bf16.gmra.mrb[0].mxu0 %v495
        %v531 = vpop.f32.mrb[0].mxu0
        %v532 = vadd.f32 0.0, %v531
        %v533 = vpop.f32.mrb[0].mxu0
        %v534 = vadd.f32 0.0, %v533
        %v535 = vpop.f32.mrb[0].mxu0
        %v536 = vpop.f32.mrb[0].mxu0
        %537 = vdwg.mxu0
        %v538 = vpack.c.bf16 %v532, %v532
        %v539 = vpack.c.bf16 %v534, %v534
        %541 = vrot.lane.b32.xlu0 %v538, 64
        %v542 = vpop.permute.xlu0 %541
        %vm543 = vcmask 130048
        %v545 = vsel %vm543, %v538, 0
        %v548 = vsel %vm543, %v542, 0
        %550 = vmatprep.subr.bf16.mxu0 0
        %551 = vmatpush1.bf16.xpose.msra.mxu0 %v548
        %552 = vmatprep.subr.bf16.mxu0 0
        %553 = vmatpush1.bf16.xpose.msra.mxu0 0
        %554 = vmatprep.subr.bf16.mxu0 0
        %555 = vmatpush1.bf16.xpose.msra.mxu0 0
        %556 = vmatprep.subr.bf16.mxu0 0
        %557 = vmatpush1.bf16.xpose.msra.mxu0 0
        %558 = vmatprep.subr.bf16.mxu0 0
        %559 = vmatpush1.bf16.xpose.msra.mxu0 0
        %560 = vmatprep.subr.bf16.mxu0 0
        %561 = vmatpush1.bf16.xpose.msra.mxu0 0
        %562 = vmatprep.subr.bf16.mxu0 0
        %563 = vmatpush1.bf16.xpose.msra.mxu0 0
        %564 = vmatprep.subr.bf16.mxu0 0
        %565 = vmatpush1.bf16.xpose.msra.mxu0 0
        %566 = vmatprep.subr.bf16.mxu0 0
        %567 = vmatpush1.bf16.xpose.msra.mxu0 0
        %568 = vmatprep.subr.bf16.mxu0 0
        %569 = vmatpush1.bf16.xpose.msra.mxu0 0
        %570 = vmatprep.subr.bf16.mxu0 0
        %571 = vmatpush1.bf16.xpose.msra.mxu0 0
        %572 = vmatprep.subr.bf16.mxu0 0
        %573 = vmatpush1.bf16.xpose.msra.mxu0 0
        %574 = vmatprep.subr.bf16.mxu0 0
        %575 = vmatpush1.bf16.xpose.msra.mxu0 0
        %576 = vmatprep.subr.bf16.mxu0 0
        %577 = vmatpush1.bf16.xpose.msra.mxu0 0
        %578 = vmatprep.subr.bf16.mxu0 0
        %579 = vmatpush1.bf16.xpose.msra.mxu0 0
        %580 = vmatprep.subr.bf16.mxu0 0
        %581 = vmatpush1.bf16.xpose.msra.mxu0 0
        %582 = vmatprep.mubr.bf16.mxu0 0
        %583 = vmatmul.mubr.bf16.gmra.mrb[0].mxu0 %v545
        %v584 = vpop.f32.mrb[0].mxu0
        %v585 = vadd.f32 %v401, %v584
        %v586 = vpop.f32.mrb[0].mxu0
        %v587 = vpop.f32.mrb[0].mxu0
        %v588 = vpop.f32.mrb[0].mxu0
        %589 = vdwg.mxu0
        %vm590 = vcmask 64512
        %v591 = vsel %vm590, %v585, -inf
        %592 = vmax.xlane.f32.xlu0 %v591
        %v593 = vpop.xlane.xlu0 %592
        %v594 = vsub.f32 %v585, %v593
        %v595 = vmul.f32 %v594, 1.442695
        %v596 = vpow.pop %v595
        %v597 = vsel %vm590, %v596, 0.0
        %598 = vadd.xlane.f32.xlu0 %v597
        %v599 = vpop.xlane.xlu0 %598
        %v600 = vrcp.pop %v599
        %v601 = vmul.f32 %v596, %v600
        %v602 = vpack.c.bf16 %v601, %v601
        %v604 = vsel %vm590, %v602, 0
        %vm606 = vcmask 1043456
        %v608 = vsel %vm606, %v539, 0
        %610 = vmatprep.subr.bf16.mxu0 0
        %611 = vmatpush1.bf16.msra.mxu0 %v608
        %612 = vmatprep.subr.bf16.mxu0 0
        %613 = vmatpush1.bf16.msra.mxu0 0
        %614 = vmatprep.subr.bf16.mxu0 0
        %615 = vmatpush1.bf16.msra.mxu0 0
        %616 = vmatprep.subr.bf16.mxu0 0
        %617 = vmatpush1.bf16.msra.mxu0 0
        %618 = vmatprep.subr.bf16.mxu0 0
        %619 = vmatpush1.bf16.msra.mxu0 0
        %620 = vmatprep.subr.bf16.mxu0 0
        %621 = vmatpush1.bf16.msra.mxu0 0
        %622 = vmatprep.subr.bf16.mxu0 0
        %623 = vmatpush1.bf16.msra.mxu0 0
        %624 = vmatprep.subr.bf16.mxu0 0
        %625 = vmatpush1.bf16.msra.mxu0 0
        %626 = vmatprep.subr.bf16.mxu0 0
        %627 = vmatpush1.bf16.msra.mxu0 0
        %628 = vmatprep.subr.bf16.mxu0 0
        %629 = vmatpush1.bf16.msra.mxu0 0
        %630 = vmatprep.subr.bf16.mxu0 0
        %631 = vmatpush1.bf16.msra.mxu0 0
        %632 = vmatprep.subr.bf16.mxu0 0
        %633 = vmatpush1.bf16.msra.mxu0 0
        %634 = vmatprep.subr.bf16.mxu0 0
        %635 = vmatpush1.bf16.msra.mxu0 0
        %636 = vmatprep.subr.bf16.mxu0 0
        %637 = vmatpush1.bf16.msra.mxu0 0
        %638 = vmatprep.subr.bf16.mxu0 0
        %639 = vmatpush1.bf16.msra.mxu0 0
        %640 = vmatprep.subr.bf16.mxu0 0
        %641 = vmatpush1.bf16.msra.mxu0 0
        %642 = vmatprep.mubr.bf16.mxu0 0
        %643 = vmatmul.mubr.bf16.gmra.mrb[0].mxu0 %v604
        %v644 = vpop.f32.mrb[0].mxu0
        %v645 = vadd.f32 0.0, %v644
        %v646 = vpop.f32.mrb[0].mxu0
        %v647 = vpop.f32.mrb[0].mxu0
        %v648 = vpop.f32.mrb[0].mxu0
        %649 = vdwg.mxu0
        %650 = vrot.lane.b32.xlu0 %v538, 112
        %v651 = vpop.permute.xlu0 %650
        %652 = vrot.lane.b32.xlu0 %v538, 48
        %v653 = vpop.permute.xlu0 %652
        %v655 = vsel %vm543, %v651, 0
        %v658 = vsel %vm543, %v653, 0
        %660 = vmatprep.subr.bf16.mxu0 0
        %661 = vmatpush1.bf16.xpose.msra.mxu0 %v658
        %662 = vmatprep.subr.bf16.mxu0 0
        %663 = vmatpush1.bf16.xpose.msra.mxu0 0
        %664 = vmatprep.subr.bf16.mxu0 0
        %665 = vmatpush1.bf16.xpose.msra.mxu0 0
        %666 = vmatprep.subr.bf16.mxu0 0
        %667 = vmatpush1.bf16.xpose.msra.mxu0 0
        %668 = vmatprep.subr.bf16.mxu0 0
        %669 = vmatpush1.bf16.xpose.msra.mxu0 0
        %670 = vmatprep.subr.bf16.mxu0 0
        %671 = vmatpush1.bf16.xpose.msra.mxu0 0
        %672 = vmatprep.subr.bf16.mxu0 0
        %673 = vmatpush1.bf16.xpose.msra.mxu0 0
        %674 = vmatprep.subr.bf16.mxu0 0
        %675 = vmatpush1.bf16.xpose.msra.mxu0 0
        %676 = vmatprep.subr.bf16.mxu0 0
        %677 = vmatpush1.bf16.xpose.msra.mxu0 0
        %678 = vmatprep.subr.bf16.mxu0 0
        %679 = vmatpush1.bf16.xpose.msra.mxu0 0
        %680 = vmatprep.subr.bf16.mxu0 0
        %681 = vmatpush1.bf16.xpose.msra.mxu0 0
        %682 = vmatprep.subr.bf16.mxu0 0
        %683 = vmatpush1.bf16.xpose.msra.mxu0 0
        %684 = vmatprep.subr.bf16.mxu0 0
        %685 = vmatpush1.bf16.xpose.msra.mxu0 0
        %686 = vmatprep.subr.bf16.mxu0 0
        %687 = vmatpush1.bf16.xpose.msra.mxu0 0
        %688 = vmatprep.subr.bf16.mxu0 0
        %689 = vmatpush1.bf16.xpose.msra.mxu0 0
        %690 = vmatprep.subr.bf16.mxu0 0
        %691 = vmatpush1.bf16.xpose.msra.mxu0 0
        %692 = vmatprep.mubr.bf16.mxu0 0
        %693 = vmatmul.mubr.bf16.gmra.mrb[0].mxu0 %v655
        %v694 = vpop.f32.mrb[0].mxu0
        %v695 = vadd.f32 %v402, %v694
        %v696 = vpop.f32.mrb[0].mxu0
        %v697 = vpop.f32.mrb[0].mxu0
        %v698 = vpop.f32.mrb[0].mxu0
        %699 = vdwg.mxu0
        %v700 = vsel %vm590, %v695, -inf
        %701 = vmax.xlane.f32.xlu0 %v700
        %v702 = vpop.xlane.xlu0 %701
        %v703 = vsub.f32 %v695, %v702
        %v704 = vmul.f32 %v703, 1.442695
        %v705 = vpow.pop %v704
        %v706 = vsel %vm590, %v705, 0.0
        %707 = vadd.xlane.f32.xlu0 %v706
        %v708 = vpop.xlane.xlu0 %707
        %v709 = vrcp.pop %v708
        %v710 = vmul.f32 %v705, %v709
        %v711 = vpack.c.bf16 %v710, %v710
        %713 = vrot.lane.b32.xlu0 %v539, 112
        %v714 = vpop.permute.xlu0 %713
        %v716 = vsel %vm590, %v711, 0
        %v719 = vsel %vm606, %v714, 0
        %721 = vmatprep.subr.bf16.mxu0 0
        %722 = vmatpush1.bf16.msra.mxu0 %v719
        %723 = vmatprep.subr.bf16.mxu0 0
        %724 = vmatpush1.bf16.msra.mxu0 0
        %725 = vmatprep.subr.bf16.mxu0 0
        %726 = vmatpush1.bf16.msra.mxu0 0
        %727 = vmatprep.subr.bf16.mxu0 0
        %728 = vmatpush1.bf16.msra.mxu0 0
        %729 = vmatprep.subr.bf16.mxu0 0
        %730 = vmatpush1.bf16.msra.mxu0 0
        %731 = vmatprep.subr.bf16.mxu0 0
        %732 = vmatpush1.bf16.msra.mxu0 0
        %733 = vmatprep.subr.bf16.mxu0 0
        %734 = vmatpush1.bf16.msra.mxu0 0
        %735 = vmatprep.subr.bf16.mxu0 0
        %736 = vmatpush1.bf16.msra.mxu0 0
        %737 = vmatprep.subr.bf16.mxu0 0
        %738 = vmatpush1.bf16.msra.mxu0 0
        %739 = vmatprep.subr.bf16.mxu0 0
        %740 = vmatpush1.bf16.msra.mxu0 0
        %741 = vmatprep.subr.bf16.mxu0 0
        %742 = vmatpush1.bf16.msra.mxu0 0
        %743 = vmatprep.subr.bf16.mxu0 0
        %744 = vmatpush1.bf16.msra.mxu0 0
        %745 = vmatprep.subr.bf16.mxu0 0
        %746 = vmatpush1.bf16.msra.mxu0 0
        %747 = vmatprep.subr.bf16.mxu0 0
        %748 = vmatpush1.bf16.msra.mxu0 0
        %749 = vmatprep.subr.bf16.mxu0 0
        %750 = vmatpush1.bf16.msra.mxu0 0
        %751 = vmatprep.subr.bf16.mxu0 0
        %752 = vmatpush1.bf16.msra.mxu0 0
        %753 = vmatprep.mubr.bf16.mxu0 0
        %754 = vmatmul.mubr.bf16.gmra.mrb[0].mxu0 %v716
        %v755 = vpop.f32.mrb[0].mxu0
        %v756 = vadd.f32 0.0, %v755
        %v757 = vpop.f32.mrb[0].mxu0
        %v758 = vpop.f32.mrb[0].mxu0
        %v759 = vpop.f32.mrb[0].mxu0
        %760 = vdwg.mxu0
        %761 = vrot.lane.b32.xlu0 %v538, 96
        %v762 = vpop.permute.xlu0 %761
        %763 = vrot.lane.b32.xlu0 %v538, 32
        %v764 = vpop.permute.xlu0 %763
        %v766 = vsel %vm543, %v762, 0
        %v769 = vsel %vm543, %v764, 0
        %771 = vmatprep.subr.bf16.mxu0 0
        %772 = vmatpush1.bf16.xpose.msra.mxu0 %v769
        %773 = vmatprep.subr.bf16.mxu0 0
        %774 = vmatpush1.bf16.xpose.msra.mxu0 0
        %775 = vmatprep.subr.bf16.mxu0 0
        %776 = vmatpush1.bf16.xpose.msra.mxu0 0
        %777 = vmatprep.subr.bf16.mxu0 0
        %778 = vmatpush1.bf16.xpose.msra.mxu0 0
        %779 = vmatprep.subr.bf16.mxu0 0
        %780 = vmatpush1.bf16.xpose.msra.mxu0 0
        %781 = vmatprep.subr.bf16.mxu0 0
        %782 = vmatpush1.bf16.xpose.msra.mxu0 0
        %783 = vmatprep.subr.bf16.mxu0 0
        %784 = vmatpush1.bf16.xpose.msra.mxu0 0
        %785 = vmatprep.subr.bf16.mxu0 0
        %786 = vmatpush1.bf16.xpose.msra.mxu0 0
        %787 = vmatprep.subr.bf16.mxu0 0
        %788 = vmatpush1.bf16.xpose.msra.mxu0 0
        %789 = vmatprep.subr.bf16.mxu0 0
        %790 = vmatpush1.bf16.xpose.msra.mxu0 0
        %791 = vmatprep.subr.bf16.mxu0 0
        %792 = vmatpush1.bf16.xpose.msra.mxu0 0
        %793 = vmatprep.subr.bf16.mxu0 0
        %794 = vmatpush1.bf16.xpose.msra.mxu0 0
        %795 = vmatprep.subr.bf16.mxu0 0
        %796 = vmatpush1.bf16.xpose.msra.mxu0 0
        %797 = vmatprep.subr.bf16.mxu0 0
        %798 = vmatpush1.bf16.xpose.msra.mxu0 0
        %799 = vmatprep.subr.bf16.mxu0 0
        %800 = vmatpush1.bf16.xpose.msra.mxu0 0
        %801 = vmatprep.subr.bf16.mxu0 0
        %802 = vmatpush1.bf16.xpose.msra.mxu0 0
        %803 = vmatprep.mubr.bf16.mxu0 0
        %804 = vmatmul.mubr.bf16.gmra.mrb[0].mxu0 %v766
        %v805 = vpop.f32.mrb[0].mxu0
        %v806 = vadd.f32 %v403, %v805
        %v807 = vpop.f32.mrb[0].mxu0
        %v808 = vpop.f32.mrb[0].mxu0
        %v809 = vpop.f32.mrb[0].mxu0
        %810 = vdwg.mxu0
        %v811 = vsel %vm590, %v806, -inf
        %812 = vmax.xlane.f32.xlu0 %v811
        %v813 = vpop.xlane.xlu0 %812
        %v814 = vsub.f32 %v806, %v813
        %v815 = vmul.f32 %v814, 1.442695
        %v816 = vpow.pop %v815
        %v817 = vsel %vm590, %v816, 0.0
        %818 = vadd.xlane.f32.xlu0 %v817
        %v819 = vpop.xlane.xlu0 %818
        %v820 = vrcp.pop %v819
        %v821 = vmul.f32 %v816, %v820
        %v822 = vpack.c.bf16 %v821, %v821
        %823 = vrot.lane.b32.xlu0 %v539, 96
        %v824 = vpop.permute.xlu0 %823
        %v826 = vsel %vm590, %v822, 0
        %v829 = vsel %vm606, %v824, 0
        %831 = vmatprep.subr.bf16.mxu0 0
        %832 = vmatpush1.bf16.msra.mxu0 %v829
        %833 = vmatprep.subr.bf16.mxu0 0
        %834 = vmatpush1.bf16.msra.mxu0 0
        %835 = vmatprep.subr.bf16.mxu0 0
        %836 = vmatpush1.bf16.msra.mxu0 0
        %837 = vmatprep.subr.bf16.mxu0 0
        %838 = vmatpush1.bf16.msra.mxu0 0
        %839 = vmatprep.subr.bf16.mxu0 0
        %840 = vmatpush1.bf16.msra.mxu0 0
        %841 = vmatprep.subr.bf16.mxu0 0
        %842 = vmatpush1.bf16.msra.mxu0 0
        %843 = vmatprep.subr.bf16.mxu0 0
        %844 = vmatpush1.bf16.msra.mxu0 0
        %845 = vmatprep.subr.bf16.mxu0 0
        %846 = vmatpush1.bf16.msra.mxu0 0
        %847 = vmatprep.subr.bf16.mxu0 0
        %848 = vmatpush1.bf16.msra.mxu0 0
        %849 = vmatprep.subr.bf16.mxu0 0
        %850 = vmatpush1.bf16.msra.mxu0 0
        %851 = vmatprep.subr.bf16.mxu0 0
        %852 = vmatpush1.bf16.msra.mxu0 0
        %853 = vmatprep.subr.bf16.mxu0 0
        %854 = vmatpush1.bf16.msra.mxu0 0
        %855 = vmatprep.subr.bf16.mxu0 0
        %856 = vmatpush1.bf16.msra.mxu0 0
        %857 = vmatprep.subr.bf16.mxu0 0
        %858 = vmatpush1.bf16.msra.mxu0 0
        %859 = vmatprep.subr.bf16.mxu0 0
        %860 = vmatpush1.bf16.msra.mxu0 0
        %861 = vmatprep.subr.bf16.mxu0 0
        %862 = vmatpush1.bf16.msra.mxu0 0
        %863 = vmatprep.mubr.bf16.mxu0 0
        %864 = vmatmul.mubr.bf16.gmra.mrb[0].mxu0 %v826
        %v865 = vpop.f32.mrb[0].mxu0
        %v866 = vadd.f32 0.0, %v865
        %v867 = vpop.f32.mrb[0].mxu0
        %v868 = vpop.f32.mrb[0].mxu0
        %v869 = vpop.f32.mrb[0].mxu0
        %870 = vdwg.mxu0
        %871 = vrot.lane.b32.xlu0 %v538, 80
        %v872 = vpop.permute.xlu0 %871
        %873 = vrot.lane.b32.xlu0 %v538, 16
        %v874 = vpop.permute.xlu0 %873
        %v876 = vsel %vm543, %v872, 0
        %v879 = vsel %vm543, %v874, 0
        %881 = vmatprep.subr.bf16.mxu0 0
        %882 = vmatpush1.bf16.xpose.msra.mxu0 %v879
        %883 = vmatprep.subr.bf16.mxu0 0
        %884 = vmatpush1.bf16.xpose.msra.mxu0 0
        %885 = vmatprep.subr.bf16.mxu0 0
        %886 = vmatpush1.bf16.xpose.msra.mxu0 0
        %887 = vmatprep.subr.bf16.mxu0 0
        %888 = vmatpush1.bf16.xpose.msra.mxu0 0
        %889 = vmatprep.subr.bf16.mxu0 0
        %890 = vmatpush1.bf16.xpose.msra.mxu0 0
        %891 = vmatprep.subr.bf16.mxu0 0
        %892 = vmatpush1.bf16.xpose.msra.mxu0 0
        %893 = vmatprep.subr.bf16.mxu0 0
        %894 = vmatpush1.bf16.xpose.msra.mxu0 0
        %895 = vmatprep.subr.bf16.mxu0 0
        %896 = vmatpush1.bf16.xpose.msra.mxu0 0
        %897 = vmatprep.subr.bf16.mxu0 0
        %898 = vmatpush1.bf16.xpose.msra.mxu0 0
        %899 = vmatprep.subr.bf16.mxu0 0
        %900 = vmatpush1.bf16.xpose.msra.mxu0 0
        %901 = vmatprep.subr.bf16.mxu0 0
        %902 = vmatpush1.bf16.xpose.msra.mxu0 0
        %903 = vmatprep.subr.bf16.mxu0 0
        %904 = vmatpush1.bf16.xpose.msra.mxu0 0
        %905 = vmatprep.subr.bf16.mxu0 0
        %906 = vmatpush1.bf16.xpose.msra.mxu0 0
        %907 = vmatprep.subr.bf16.mxu0 0
        %908 = vmatpush1.bf16.xpose.msra.mxu0 0
        %909 = vmatprep.subr.bf16.mxu0 0
        %910 = vmatpush1.bf16.xpose.msra.mxu0 0
        %911 = vmatprep.subr.bf16.mxu0 0
        %912 = vmatpush1.bf16.xpose.msra.mxu0 0
        %913 = vmatprep.mubr.bf16.mxu0 0
        %914 = vmatmul.mubr.bf16.gmra.mrb[0].mxu0 %v876
        %v915 = vpop.f32.mrb[0].mxu0
        %v916 = vadd.f32 %v404, %v915
        %v917 = vpop.f32.mrb[0].mxu0
        %v918 = vpop.f32.mrb[0].mxu0
        %v919 = vpop.f32.mrb[0].mxu0
        %920 = vdwg.mxu0
        %v921 = vsel %vm590, %v916, -inf
        %922 = vmax.xlane.f32.xlu0 %v921
        %v923 = vpop.xlane.xlu0 %922
        %v924 = vsub.f32 %v916, %v923
        %v925 = vmul.f32 %v924, 1.442695
        %v926 = vpow.pop %v925
        %v927 = vsel %vm590, %v926, 0.0
        %928 = vadd.xlane.f32.xlu0 %v927
        %v929 = vpop.xlane.xlu0 %928
        %v930 = vrcp.pop %v929
        %v931 = vmul.f32 %v926, %v930
        %v932 = vpack.c.bf16 %v931, %v931
        %933 = vrot.lane.b32.xlu0 %v539, 80
        %v934 = vpop.permute.xlu0 %933
        %v936 = vsel %vm590, %v932, 0
        %v939 = vsel %vm606, %v934, 0
        %941 = vmatprep.subr.bf16.mxu0 0
        %942 = vmatpush1.bf16.msra.mxu0 %v939
        %943 = vmatprep.subr.bf16.mxu0 0
        %944 = vmatpush1.bf16.msra.mxu0 0
        %945 = vmatprep.subr.bf16.mxu0 0
        %946 = vmatpush1.bf16.msra.mxu0 0
        %947 = vmatprep.subr.bf16.mxu0 0
        %948 = vmatpush1.bf16.msra.mxu0 0
        %949 = vmatprep.subr.bf16.mxu0 0
        %950 = vmatpush1.bf16.msra.mxu0 0
        %951 = vmatprep.subr.bf16.mxu0 0
        %952 = vmatpush1.bf16.msra.mxu0 0
        %953 = vmatprep.subr.bf16.mxu0 0
        %954 = vmatpush1.bf16.msra.mxu0 0
        %955 = vmatprep.subr.bf16.mxu0 0
        %956 = vmatpush1.bf16.msra.mxu0 0
        %957 = vmatprep.subr.bf16.mxu0 0
        %958 = vmatpush1.bf16.msra.mxu0 0
        %959 = vmatprep.subr.bf16.mxu0 0
        %960 = vmatpush1.bf16.msra.mxu0 0
        %961 = vmatprep.subr.bf16.mxu0 0
        %962 = vmatpush1.bf16.msra.mxu0 0
        %963 = vmatprep.subr.bf16.mxu0 0
        %964 = vmatpush1.bf16.msra.mxu0 0
        %965 = vmatprep.subr.bf16.mxu0 0
        %966 = vmatpush1.bf16.msra.mxu0 0
        %967 = vmatprep.subr.bf16.mxu0 0
        %968 = vmatpush1.bf16.msra.mxu0 0
        %969 = vmatprep.subr.bf16.mxu0 0
        %970 = vmatpush1.bf16.msra.mxu0 0
        %971 = vmatprep.subr.bf16.mxu0 0
        %972 = vmatpush1.bf16.msra.mxu0 0
        %973 = vmatprep.mubr.bf16.mxu0 0
        %974 = vmatmul.mubr.bf16.gmra.mrb[0].mxu0 %v936
        %v975 = vpop.f32.mrb[0].mxu0
        %v976 = vadd.f32 0.0, %v975
        %v977 = vpop.f32.mrb[0].mxu0
        %v978 = vpop.f32.mrb[0].mxu0
        %v979 = vpop.f32.mrb[0].mxu0
        %980 = vdwg.mxu0
        %982 = vrot.lane.b32.xlu0 %v756, 16
        %v983 = vpop.permute.xlu0 %982
        %986 = vrot.lane.b32.xlu0 %v866, 32
        %v987 = vpop.permute.xlu0 %986
        %990 = vrot.lane.b32.xlu0 %v976, 48
        %v991 = vpop.permute.xlu0 %990
        %v993 = vsel %vm543, %v645, %v983
        %vm994 = vcmask 261120
        %v995 = vsel %vm994, %v993, %v987
        %vm996 = vcmask 392192
        %v997 = vsel %vm996, %v995, %v991
        %v998 = vpack.c.bf16 %v997, %v997
        %999 = vrot.lane.b32.xlu0 %v479, 64
        %v1000 = vpop.permute.xlu0 %999
        %1001 = vrot.lane.b32.xlu0 %v481, 64
        %v1002 = vpop.permute.xlu0 %1001
        %1003 = vrot.lane.b32.xlu0 %v483, 64
        %v1004 = vpop.permute.xlu0 %1003
        %1005 = vrot.lane.b32.xlu0 %v485, 64
        %v1006 = vpop.permute.xlu0 %1005
        %v1012 = vsel %vm439, %v998, 0
        %1014 = vmatprep.subr.bf16.mxu0 0
        %1015 = vmatpush1.bf16.msra.mxu0 %v1000
        %1016 = vmatprep.subr.bf16.mxu0 0
        %1017 = vmatpush1.bf16.msra.mxu0 %v1002
        %1018 = vmatprep.subr.bf16.mxu0 0
        %1019 = vmatpush1.bf16.msra.mxu0 %v1004
        %1020 = vmatprep.subr.bf16.mxu0 0
        %1021 = vmatpush1.bf16.msra.mxu0 %v1006
        %1022 = vmatprep.subr.bf16.mxu0 0
        %1023 = vmatpush1.bf16.msra.mxu0 0
        %1024 = vmatprep.subr.bf16.mxu0 0
        %1025 = vmatpush1.bf16.msra.mxu0 0
        %1026 = vmatprep.subr.bf16.mxu0 0
        %1027 = vmatpush1.bf16.msra.mxu0 0
        %1028 = vmatprep.subr.bf16.mxu0 0
        %1029 = vmatpush1.bf16.msra.mxu0 0
        %1030 = vmatprep.subr.bf16.mxu0 0
        %1031 = vmatpush1.bf16.msra.mxu0 0
        %1032 = vmatprep.subr.bf16.mxu0 0
        %1033 = vmatpush1.bf16.msra.mxu0 0
        %1034 = vmatprep.subr.bf16.mxu0 0
        %1035 = vmatpush1.bf16.msra.mxu0 0
        %1036 = vmatprep.subr.bf16.mxu0 0
        %1037 = vmatpush1.bf16.msra.mxu0 0
        %1038 = vmatprep.subr.bf16.mxu0 0
        %1039 = vmatpush1.bf16.msra.mxu0 0
        %1040 = vmatprep.subr.bf16.mxu0 0
        %1041 = vmatpush1.bf16.msra.mxu0 0
        %1042 = vmatprep.subr.bf16.mxu0 0
        %1043 = vmatpush1.bf16.msra.mxu0 0
        %1044 = vmatprep.subr.bf16.mxu0 0
        %1045 = vmatpush1.bf16.msra.mxu0 0
        %1046 = vmatprep.mubr.bf16.mxu0 0
        %1047 = vmatmul.mubr.bf16.gmra.mrb[0].mxu0 %v1012
        %v1048 = vpop.f32.mrb[0].mxu0
        %v1049 = vadd.f32 0.0, %v1048
        %v1050 = vpop.f32.mrb[0].mxu0
        %v1051 = vpop.f32.mrb[0].mxu0
        %v1052 = vpop.f32.mrb[0].mxu0
        %1053 = vdwg.mxu0
        %v1054 = vadd.f32 %v400, %v1049
        %v1055 = vmul.f32 %v1054, %v1054
        %v1056 = vsel %vm439, %v1055, 0.0
        %1057 = vadd.xlane.f32.xlu0 %v1056
        %v1058 = vpop.xlane.xlu0 %1057
        %v1059 = vmul.f32 %v1058, %v443
        %v1060 = vadd.f32 %v1059, 1e-06
        %v1061 = vrsqrt.pop %v1060
        %v1062 = vmul.f32 %v1054, %v1061
        %v1063 = vlaneseq
        %v1064 = vshrl.u32 %v1063, 7
        %v1065 = vsub.s32 1, %v1064
        %v1066 = vrot.slane %v405, %v1065
        %v1067 = vmul.f32 %v1062, %v1066
        %v1068 = vpack.c.bf16 %v1067, %v1067
        %v1077 = vunpack.c.l.b16 %v407
        %v1078 = vunpack.c.l.b16 %v409
        %v1079 = vunpack.c.l.b16 %v411
        %v1080 = vunpack.c.l.b16 %v413
        %v1081 = vunpack.c.l.b16 %v415
        %v1082 = vunpack.c.l.b16 %v417
        %v1083 = vunpack.c.l.b16 %v419
        %v1084 = vunpack.c.l.b16 %v421
        %v1085 = vpack.c.b16 %v1078, %v1077
        %v1086 = vpack.c.b16 %v1080, %v1079
        %v1087 = vpack.c.b16 %v1082, %v1081
        %v1088 = vpack.c.b16 %v1084, %v1083
        %v1094 = vsel %vm439, %v1068, 0
        %1096 = vmatprep.subr.bf16.mxu0 0
        %1097 = vmatpush1.bf16.msra.mxu0 %v1085
        %1098 = vmatprep.subr.bf16.mxu0 0
        %1099 = vmatpush1.bf16.msra.mxu0 %v1086
        %1100 = vmatprep.subr.bf16.mxu0 0
        %1101 = vmatpush1.bf16.msra.mxu0 %v1087
        %1102 = vmatprep.subr.bf16.mxu0 0
        %1103 = vmatpush1.bf16.msra.mxu0 %v1088
        %1104 = vmatprep.subr.bf16.mxu0 0
        %1105 = vmatpush1.bf16.msra.mxu0 0
        %1106 = vmatprep.subr.bf16.mxu0 0
        %1107 = vmatpush1.bf16.msra.mxu0 0
        %1108 = vmatprep.subr.bf16.mxu0 0
        %1109 = vmatpush1.bf16.msra.mxu0 0
        %1110 = vmatprep.subr.bf16.mxu0 0
        %1111 = vmatpush1.bf16.msra.mxu0 0
        %1112 = vmatprep.subr.bf16.mxu0 0
        %1113 = vmatpush1.bf16.msra.mxu0 0
        %1114 = vmatprep.subr.bf16.mxu0 0
        %1115 = vmatpush1.bf16.msra.mxu0 0
        %1116 = vmatprep.subr.bf16.mxu0 0
        %1117 = vmatpush1.bf16.msra.mxu0 0
        %1118 = vmatprep.subr.bf16.mxu0 0
        %1119 = vmatpush1.bf16.msra.mxu0 0
        %1120 = vmatprep.subr.bf16.mxu0 0
        %1121 = vmatpush1.bf16.msra.mxu0 0
        %1122 = vmatprep.subr.bf16.mxu0 0
        %1123 = vmatpush1.bf16.msra.mxu0 0
        %1124 = vmatprep.subr.bf16.mxu0 0
        %1125 = vmatpush1.bf16.msra.mxu0 0
        %1126 = vmatprep.subr.bf16.mxu0 0
        %1127 = vmatpush1.bf16.msra.mxu0 0
        %1128 = vmatprep.mubr.bf16.mxu0 0
        %1129 = vmatmul.mubr.bf16.gmra.mrb[0].mxu0 %v1094
        %v1130 = vpop.f32.mrb[0].mxu0
        %v1131 = vadd.f32 0.0, %v1130
        %v1132 = vpop.f32.mrb[0].mxu0
        %v1133 = vpop.f32.mrb[0].mxu0
        %v1134 = vpop.f32.mrb[0].mxu0
        %1135 = vdwg.mxu0
        %v1136 = vmax.f32 %v1131, 0.0
        %v1137 = vpack.c.bf16 %v1136, %v1136
        %v1154 = vunpack.c.l.b16 %v422
        %v1155 = vunpack.c.l.b16 %v423
        %v1156 = vunpack.c.l.b16 %v424
        %v1157 = vunpack.c.l.b16 %v425
        %v1158 = vunpack.c.l.b16 %v426
        %v1159 = vunpack.c.l.b16 %v427
        %v1160 = vunpack.c.l.b16 %v428
        %v1161 = vunpack.c.l.b16 %v429
        %v1162 = vunpack.c.l.b16 %v430
        %v1163 = vunpack.c.l.b16 %v431
        %v1164 = vunpack.c.l.b16 %v432
        %v1165 = vunpack.c.l.b16 %v433
        %v1166 = vunpack.c.l.b16 %v434
        %v1167 = vunpack.c.l.b16 %v435
        %v1168 = vunpack.c.l.b16 %v436
        %v1169 = vunpack.c.l.b16 %v437
        %v1170 = vpack.c.b16 %v1155, %v1154
        %v1171 = vpack.c.b16 %v1157, %v1156
        %v1172 = vpack.c.b16 %v1159, %v1158
        %v1173 = vpack.c.b16 %v1161, %v1160
        %v1174 = vpack.c.b16 %v1163, %v1162
        %v1175 = vpack.c.b16 %v1165, %v1164
        %v1176 = vpack.c.b16 %v1167, %v1166
        %v1177 = vpack.c.b16 %v1169, %v1168
        %1186 = vmatprep.subr.bf16.mxu0 0
        %1187 = vmatpush1.bf16.msra.mxu0 %v1170
        %1188 = vmatprep.subr.bf16.mxu0 0
        %1189 = vmatpush1.bf16.msra.mxu0 %v1171
        %1190 = vmatprep.subr.bf16.mxu0 0
        %1191 = vmatpush1.bf16.msra.mxu0 %v1172
        %1192 = vmatprep.subr.bf16.mxu0 0
        %1193 = vmatpush1.bf16.msra.mxu0 %v1173
        %1194 = vmatprep.subr.bf16.mxu0 0
        %1195 = vmatpush1.bf16.msra.mxu0 %v1174
        %1196 = vmatprep.subr.bf16.mxu0 0
        %1197 = vmatpush1.bf16.msra.mxu0 %v1175
        %1198 = vmatprep.subr.bf16.mxu0 0
        %1199 = vmatpush1.bf16.msra.mxu0 %v1176
        %1200 = vmatprep.subr.bf16.mxu0 0
        %1201 = vmatpush1.bf16.msra.mxu0 %v1177
        %1202 = vmatprep.subr.bf16.mxu0 0
        %1203 = vmatpush1.bf16.msra.mxu0 0
        %1204 = vmatprep.subr.bf16.mxu0 0
        %1205 = vmatpush1.bf16.msra.mxu0 0
        %1206 = vmatprep.subr.bf16.mxu0 0
        %1207 = vmatpush1.bf16.msra.mxu0 0
        %1208 = vmatprep.subr.bf16.mxu0 0
        %1209 = vmatpush1.bf16.msra.mxu0 0
        %1210 = vmatprep.subr.bf16.mxu0 0
        %1211 = vmatpush1.bf16.msra.mxu0 0
        %1212 = vmatprep.subr.bf16.mxu0 0
        %1213 = vmatpush1.bf16.msra.mxu0 0
        %1214 = vmatprep.subr.bf16.mxu0 0
        %1215 = vmatpush1.bf16.msra.mxu0 0
        %1216 = vmatprep.subr.bf16.mxu0 0
        %1217 = vmatpush1.bf16.msra.mxu0 0
        %1218 = vmatprep.mubr.bf16.mxu0 0
        %1219 = vmatmul.mubr.bf16.gmra.mrb[0].mxu0 %v1137
        %v1220 = vpop.f32.mrb[0].mxu0
        %v1221 = vadd.f32 0.0, %v1220
        %v1222 = vpop.f32.mrb[0].mxu0
        %v1223 = vpop.f32.mrb[0].mxu0
        %v1224 = vpop.f32.mrb[0].mxu0
        %1225 = vdwg.mxu0
        %v1226 = vadd.f32 %v1054, %v1221
        %s1227 = scalar_lea.vmem %s4, 2
        %v1228 = vld [vmem:[%s1227] sm:$0x3]
        %s1229 = scalar_lea.vmem %s5, 96
        %v1230 = vld [vmem:[%s1229] sm:$0xff]
        %v1231 = vld [vmem:[%s1229 + $0x8] sm:$0xf]
        %v1232 = vld [vmem:[%s1229 + $0xc] sm:$0xff]
        %v1233 = vld [vmem:[%s1229 + $0x14] sm:$0xf]
        %v1234 = vld [vmem:[%s1229 + $0x18] sm:$0xff]
        %v1235 = vld [vmem:[%s1229 + $0x20] sm:$0xf]
        %v1236 = vld [vmem:[%s1229 + $0x24] sm:$0xff]
        %v1237 = vld [vmem:[%s1229 + $0x2c] sm:$0xf]
        %v1238 = vld [vmem:[%s1229 + $0x30] sm:$0xff]
        %v1239 = vld [vmem:[%s1229 + $0x38] sm:$0xf]
        %v1240 = vld [vmem:[%s1229 + $0x3c] sm:$0xff]
        %v1241 = vld [vmem:[%s1229 + $0x44] sm:$0xf]
        %v1242 = vld [vmem:[%s1229 + $0x48] sm:$0xff]
        %v1243 = vld [vmem:[%s1229 + $0x50] sm:$0xf]
        %v1244 = vld [vmem:[%s1229 + $0x54] sm:$0xff]
        %v1245 = vld [vmem:[%s1229 + $0x5c] sm:$0xf]
        %s1246 = scalar_lea.vmem %s6, 64
        %v1247 = vld [vmem:[%s1246] sm:$0xf]
        %v1248 = vld [vmem:[%s1246 + $0x4] sm:$0xf]
        %v1249 = vld [vmem:[%s1246 + $0x8] sm:$0xf]
        %v1250 = vld [vmem:[%s1246 + $0xc] sm:$0xf]
        %v1251 = vld [vmem:[%s1246 + $0x10] sm:$0xf]
        %v1252 = vld [vmem:[%s1246 + $0x14] sm:$0xf]
        %v1253 = vld [vmem:[%s1246 + $0x18] sm:$0xf]
        %v1254 = vld [vmem:[%s1246 + $0x1c] sm:$0xf]
        %v1255 = vld [vmem:[%s1246 + $0x20] sm:$0xf]
        %v1256 = vld [vmem:[%s1246 + $0x24] sm:$0xf]
        %v1257 = vld [vmem:[%s1246 + $0x28] sm:$0xf]
        %v1258 = vld [vmem:[%s1246 + $0x2c] sm:$0xf]
        %v1259 = vld [vmem:[%s1246 + $0x30] sm:$0xf]
        %v1260 = vld [vmem:[%s1246 + $0x34] sm:$0xf]
        %v1261 = vld [vmem:[%s1246 + $0x38] sm:$0xf]
        %v1262 = vld [vmem:[%s1246 + $0x3c] sm:$0xf]
        %v1263 = vmul.f32 %v1226, %v1226
        %v1264 = vsel %vm439, %v1263, 0.0
        %1265 = vadd.xlane.f32.xlu0 %v1264
        %v1266 = vpop.xlane.xlu0 %1265
        %v1267 = vmul.f32 %v1266, %v443
        %v1268 = vadd.f32 %v1267, 1e-06
        %v1269 = vrsqrt.pop %v1268
        %v1270 = vmul.f32 %v1226, %v1269
        %v1271 = vlaneseq
        %v1272 = vshrl.u32 %v1271, 7
        %v1273 = vsub.s32 0, %v1272
        %v1274 = vrot.slane %v1228, %v1273
        %v1275 = vmul.f32 %v1270, %v1274
        %v1276 = vpack.c.bf16 %v1275, %v1275
        %v1285 = vunpack.c.l.b16 %v1230
        %v1286 = vunpack.c.h.b16 %v1230
        %v1287 = vunpack.c.l.b16 %v1232
        %v1288 = vunpack.c.h.b16 %v1232
        %v1289 = vunpack.c.l.b16 %v1234
        %v1290 = vunpack.c.h.b16 %v1234
        %v1291 = vunpack.c.l.b16 %v1236
        %v1292 = vunpack.c.h.b16 %v1236
        %v1293 = vunpack.c.l.b16 %v1238
        %v1294 = vunpack.c.h.b16 %v1238
        %v1295 = vunpack.c.l.b16 %v1240
        %v1296 = vunpack.c.h.b16 %v1240
        %v1297 = vunpack.c.l.b16 %v1242
        %v1298 = vunpack.c.h.b16 %v1242
        %v1299 = vunpack.c.l.b16 %v1244
        %v1300 = vunpack.c.h.b16 %v1244
        %v1301 = vpack.c.b16 %v1287, %v1285
        %v1302 = vpack.c.b16 %v1288, %v1286
        %v1303 = vpack.c.b16 %v1291, %v1289
        %v1304 = vpack.c.b16 %v1292, %v1290
        %v1305 = vpack.c.b16 %v1295, %v1293
        %v1306 = vpack.c.b16 %v1296, %v1294
        %v1307 = vpack.c.b16 %v1299, %v1297
        %v1308 = vpack.c.b16 %v1300, %v1298
        %v1318 = vsel %vm439, %v1276, 0
        %1320 = vmatprep.subr.bf16.mxu0 %v1302
        %1321 = vmatpush1.bf16.msra.mxu0 %v1301
        %1322 = vmatprep.subr.bf16.mxu0 %v1304
        %1323 = vmatpush1.bf16.msra.mxu0 %v1303
        %1324 = vmatprep.subr.bf16.mxu0 %v1306
        %1325 = vmatpush1.bf16.msra.mxu0 %v1305
        %1326 = vmatprep.subr.bf16.mxu0 %v1308
        %1327 = vmatpush1.bf16.msra.mxu0 %v1307
        %1328 = vmatprep.subr.bf16.mxu0 0
        %1329 = vmatpush1.bf16.msra.mxu0 0
        %1330 = vmatprep.subr.bf16.mxu0 0
        %1331 = vmatpush1.bf16.msra.mxu0 0
        %1332 = vmatprep.subr.bf16.mxu0 0
        %1333 = vmatpush1.bf16.msra.mxu0 0
        %1334 = vmatprep.subr.bf16.mxu0 0
        %1335 = vmatpush1.bf16.msra.mxu0 0
        %1336 = vmatprep.subr.bf16.mxu0 0
        %1337 = vmatpush1.bf16.msra.mxu0 0
        %1338 = vmatprep.subr.bf16.mxu0 0
        %1339 = vmatpush1.bf16.msra.mxu0 0
        %1340 = vmatprep.subr.bf16.mxu0 0
        %1341 = vmatpush1.bf16.msra.mxu0 0
        %1342 = vmatprep.subr.bf16.mxu0 0
        %1343 = vmatpush1.bf16.msra.mxu0 0
        %1344 = vmatprep.subr.bf16.mxu0 0
        %1345 = vmatpush1.bf16.msra.mxu0 0
        %1346 = vmatprep.subr.bf16.mxu0 0
        %1347 = vmatpush1.bf16.msra.mxu0 0
        %1348 = vmatprep.subr.bf16.mxu0 0
        %1349 = vmatpush1.bf16.msra.mxu0 0
        %1350 = vmatprep.subr.bf16.mxu0 0
        %1351 = vmatpush1.bf16.msra.mxu0 0
        %1352 = vmatprep.mubr.bf16.mxu0 0
        %1353 = vmatmul.mubr.bf16.gmra.mrb[0].mxu0 %v1318
        %v1354 = vpop.f32.mrb[0].mxu0
        %v1355 = vadd.f32 0.0, %v1354
        %v1356 = vpop.f32.mrb[0].mxu0
        %v1357 = vadd.f32 0.0, %v1356
        %v1358 = vpop.f32.mrb[0].mxu0
        %v1359 = vpop.f32.mrb[0].mxu0
        %1360 = vdwg.mxu0
        %v1361 = vpack.c.bf16 %v1355, %v1355
        %v1362 = vpack.c.bf16 %v1357, %v1357
        %1364 = vrot.lane.b32.xlu0 %v1361, 64
        %v1365 = vpop.permute.xlu0 %1364
        %v1367 = vsel %vm543, %v1361, 0
        %v1370 = vsel %vm543, %v1365, 0
        %1372 = vmatprep.subr.bf16.mxu0 0
        %1373 = vmatpush1.bf16.xpose.msra.mxu0 %v1370
        %1374 = vmatprep.subr.bf16.mxu0 0
        %1375 = vmatpush1.bf16.xpose.msra.mxu0 0
        %1376 = vmatprep.subr.bf16.mxu0 0
        %1377 = vmatpush1.bf16.xpose.msra.mxu0 0
        %1378 = vmatprep.subr.bf16.mxu0 0
        %1379 = vmatpush1.bf16.xpose.msra.mxu0 0
        %1380 = vmatprep.subr.bf16.mxu0 0
        %1381 = vmatpush1.bf16.xpose.msra.mxu0 0
        %1382 = vmatprep.subr.bf16.mxu0 0
        %1383 = vmatpush1.bf16.xpose.msra.mxu0 0
        %1384 = vmatprep.subr.bf16.mxu0 0
        %1385 = vmatpush1.bf16.xpose.msra.mxu0 0
        %1386 = vmatprep.subr.bf16.mxu0 0
        %1387 = vmatpush1.bf16.xpose.msra.mxu0 0
        %1388 = vmatprep.subr.bf16.mxu0 0
        %1389 = vmatpush1.bf16.xpose.msra.mxu0 0
        %1390 = vmatprep.subr.bf16.mxu0 0
        %1391 = vmatpush1.bf16.xpose.msra.mxu0 0
        %1392 = vmatprep.subr.bf16.mxu0 0
        %1393 = vmatpush1.bf16.xpose.msra.mxu0 0
        %1394 = vmatprep.subr.bf16.mxu0 0
        %1395 = vmatpush1.bf16.xpose.msra.mxu0 0
        %1396 = vmatprep.subr.bf16.mxu0 0
        %1397 = vmatpush1.bf16.xpose.msra.mxu0 0
        %1398 = vmatprep.subr.bf16.mxu0 0
        %1399 = vmatpush1.bf16.xpose.msra.mxu0 0
        %1400 = vmatprep.subr.bf16.mxu0 0
        %1401 = vmatpush1.bf16.xpose.msra.mxu0 0
        %1402 = vmatprep.subr.bf16.mxu0 0
        %1403 = vmatpush1.bf16.xpose.msra.mxu0 0
        %1404 = vmatprep.mubr.bf16.mxu0 0
        %1405 = vmatmul.mubr.bf16.gmra.mrb[0].mxu0 %v1367
        %v1406 = vpop.f32.mrb[0].mxu0
        %v1407 = vadd.f32 %v401, %v1406
        %v1408 = vpop.f32.mrb[0].mxu0
        %v1409 = vpop.f32.mrb[0].mxu0
        %v1410 = vpop.f32.mrb[0].mxu0
        %1411 = vdwg.mxu0
        %v1412 = vsel %vm590, %v1407, -inf
        %1413 = vmax.xlane.f32.xlu0 %v1412
        %v1414 = vpop.xlane.xlu0 %1413
        %v1415 = vsub.f32 %v1407, %v1414
        %v1416 = vmul.f32 %v1415, 1.442695
        %v1417 = vpow.pop %v1416
        %v1418 = vsel %vm590, %v1417, 0.0
        %1419 = vadd.xlane.f32.xlu0 %v1418
        %v1420 = vpop.xlane.xlu0 %1419
        %v1421 = vrcp.pop %v1420
        %v1422 = vmul.f32 %v1417, %v1421
        %v1423 = vpack.c.bf16 %v1422, %v1422
        %v1425 = vsel %vm590, %v1423, 0
        %v1428 = vsel %vm606, %v1362, 0
        %1430 = vmatprep.subr.bf16.mxu0 0
        %1431 = vmatpush1.bf16.msra.mxu0 %v1428
        %1432 = vmatprep.subr.bf16.mxu0 0
        %1433 = vmatpush1.bf16.msra.mxu0 0
        %1434 = vmatprep.subr.bf16.mxu0 0
        %1435 = vmatpush1.bf16.msra.mxu0 0
        %1436 = vmatprep.subr.bf16.mxu0 0
        %1437 = vmatpush1.bf16.msra.mxu0 0
        %1438 = vmatprep.subr.bf16.mxu0 0
        %1439 = vmatpush1.bf16.msra.mxu0 0
        %1440 = vmatprep.subr.bf16.mxu0 0
        %1441 = vmatpush1.bf16.msra.mxu0 0
        %1442 = vmatprep.subr.bf16.mxu0 0
        %1443 = vmatpush1.bf16.msra.mxu0 0
        %1444 = vmatprep.subr.bf16.mxu0 0
        %1445 = vmatpush1.bf16.msra.mxu0 0
        %1446 = vmatprep.subr.bf16.mxu0 0
        %1447 = vmatpush1.bf16.msra.mxu0 0
        %1448 = vmatprep.subr.bf16.mxu0 0
        %1449 = vmatpush1.bf16.msra.mxu0 0
        %1450 = vmatprep.subr.bf16.mxu0 0
        %1451 = vmatpush1.bf16.msra.mxu0 0
        %1452 = vmatprep.subr.bf16.mxu0 0
        %1453 = vmatpush1.bf16.msra.mxu0 0
        %1454 = vmatprep.subr.bf16.mxu0 0
        %1455 = vmatpush1.bf16.msra.mxu0 0
        %1456 = vmatprep.subr.bf16.mxu0 0
        %1457 = vmatpush1.bf16.msra.mxu0 0
        %1458 = vmatprep.subr.bf16.mxu0 0
        %1459 = vmatpush1.bf16.msra.mxu0 0
        %1460 = vmatprep.subr.bf16.mxu0 0
        %1461 = vmatpush1.bf16.msra.mxu0 0
        %1462 = vmatprep.mubr.bf16.mxu0 0
        %1463 = vmatmul.mubr.bf16.gmra.mrb[0].mxu0 %v1425
        %v1464 = vpop.f32.mrb[0].mxu0
        %v1465 = vadd.f32 0.0, %v1464
        %v1466 = vpop.f32.mrb[0].mxu0
        %v1467 = vpop.f32.mrb[0].mxu0
        %v1468 = vpop.f32.mrb[0].mxu0
        %1469 = vdwg.mxu0
        %1470 = vrot.lane.b32.xlu0 %v1361, 112
        %v1471 = vpop.permute.xlu0 %1470
        %1472 = vrot.lane.b32.xlu0 %v1361, 48
        %v1473 = vpop.permute.xlu0 %1472
        %v1475 = vsel %vm543, %v1471, 0
        %v1478 = vsel %vm543, %v1473, 0
        %1480 = vmatprep.subr.bf16.mxu0 0
        %1481 = vmatpush1.bf16.xpose.msra.mxu0 %v1478
        %1482 = vmatprep.subr.bf16.mxu0 0
        %1483 = vmatpush1.bf16.xpose.msra.mxu0 0
        %1484 = vmatprep.subr.bf16.mxu0 0
        %1485 = vmatpush1.bf16.xpose.msra.mxu0 0
        %1486 = vmatprep.subr.bf16.mxu0 0
        %1487 = vmatpush1.bf16.xpose.msra.mxu0 0
        %1488 = vmatprep.subr.bf16.mxu0 0
        %1489 = vmatpush1.bf16.xpose.msra.mxu0 0
        %1490 = vmatprep.subr.bf16.mxu0 0
        %1491 = vmatpush1.bf16.xpose.msra.mxu0 0
        %1492 = vmatprep.subr.bf16.mxu0 0
        %1493 = vmatpush1.bf16.xpose.msra.mxu0 0
        %1494 = vmatprep.subr.bf16.mxu0 0
        %1495 = vmatpush1.bf16.xpose.msra.mxu0 0
        %1496 = vmatprep.subr.bf16.mxu0 0
        %1497 = vmatpush1.bf16.xpose.msra.mxu0 0
        %1498 = vmatprep.subr.bf16.mxu0 0
        %1499 = vmatpush1.bf16.xpose.msra.mxu0 0
        %1500 = vmatprep.subr.bf16.mxu0 0
        %1501 = vmatpush1.bf16.xpose.msra.mxu0 0
        %1502 = vmatprep.subr.bf16.mxu0 0
        %1503 = vmatpush1.bf16.xpose.msra.mxu0 0
        %1504 = vmatprep.subr.bf16.mxu0 0
        %1505 = vmatpush1.bf16.xpose.msra.mxu0 0
        %1506 = vmatprep.subr.bf16.mxu0 0
        %1507 = vmatpush1.bf16.xpose.msra.mxu0 0
        %1508 = vmatprep.subr.bf16.mxu0 0
        %1509 = vmatpush1.bf16.xpose.msra.mxu0 0
        %1510 = vmatprep.subr.bf16.mxu0 0
        %1511 = vmatpush1.bf16.xpose.msra.mxu0 0
        %1512 = vmatprep.mubr.bf16.mxu0 0
        %1513 = vmatmul.mubr.bf16.gmra.mrb[0].mxu0 %v1475
        %v1514 = vpop.f32.mrb[0].mxu0
        %v1515 = vadd.f32 %v402, %v1514
        %v1516 = vpop.f32.mrb[0].mxu0
        %v1517 = vpop.f32.mrb[0].mxu0
        %v1518 = vpop.f32.mrb[0].mxu0
        %1519 = vdwg.mxu0
        %v1520 = vsel %vm590, %v1515, -inf
        %1521 = vmax.xlane.f32.xlu0 %v1520
        %v1522 = vpop.xlane.xlu0 %1521
        %v1523 = vsub.f32 %v1515, %v1522
        %v1524 = vmul.f32 %v1523, 1.442695
        %v1525 = vpow.pop %v1524
        %v1526 = vsel %vm590, %v1525, 0.0
        %1527 = vadd.xlane.f32.xlu0 %v1526
        %v1528 = vpop.xlane.xlu0 %1527
        %v1529 = vrcp.pop %v1528
        %v1530 = vmul.f32 %v1525, %v1529
        %v1531 = vpack.c.bf16 %v1530, %v1530
        %1533 = vrot.lane.b32.xlu0 %v1362, 112
        %v1534 = vpop.permute.xlu0 %1533
        %v1536 = vsel %vm590, %v1531, 0
        %v1539 = vsel %vm606, %v1534, 0
        %1541 = vmatprep.subr.bf16.mxu0 0
        %1542 = vmatpush1.bf16.msra.mxu0 %v1539
        %1543 = vmatprep.subr.bf16.mxu0 0
        %1544 = vmatpush1.bf16.msra.mxu0 0
        %1545 = vmatprep.subr.bf16.mxu0 0
        %1546 = vmatpush1.bf16.msra.mxu0 0
        %1547 = vmatprep.subr.bf16.mxu0 0
        %1548 = vmatpush1.bf16.msra.mxu0 0
        %1549 = vmatprep.subr.bf16.mxu0 0
        %1550 = vmatpush1.bf16.msra.mxu0 0
        %1551 = vmatprep.subr.bf16.mxu0 0
        %1552 = vmatpush1.bf16.msra.mxu0 0
        %1553 = vmatprep.subr.bf16.mxu0 0
        %1554 = vmatpush1.bf16.msra.mxu0 0
        %1555 = vmatprep.subr.bf16.mxu0 0
        %1556 = vmatpush1.bf16.msra.mxu0 0
        %1557 = vmatprep.subr.bf16.mxu0 0
        %1558 = vmatpush1.bf16.msra.mxu0 0
        %1559 = vmatprep.subr.bf16.mxu0 0
        %1560 = vmatpush1.bf16.msra.mxu0 0
        %1561 = vmatprep.subr.bf16.mxu0 0
        %1562 = vmatpush1.bf16.msra.mxu0 0
        %1563 = vmatprep.subr.bf16.mxu0 0
        %1564 = vmatpush1.bf16.msra.mxu0 0
        %1565 = vmatprep.subr.bf16.mxu0 0
        %1566 = vmatpush1.bf16.msra.mxu0 0
        %1567 = vmatprep.subr.bf16.mxu0 0
        %1568 = vmatpush1.bf16.msra.mxu0 0
        %1569 = vmatprep.subr.bf16.mxu0 0
        %1570 = vmatpush1.bf16.msra.mxu0 0
        %1571 = vmatprep.subr.bf16.mxu0 0
        %1572 = vmatpush1.bf16.msra.mxu0 0
        %1573 = vmatprep.mubr.bf16.mxu0 0
        %1574 = vmatmul.mubr.bf16.gmra.mrb[0].mxu0 %v1536
        %v1575 = vpop.f32.mrb[0].mxu0
        %v1576 = vadd.f32 0.0, %v1575
        %v1577 = vpop.f32.mrb[0].mxu0
        %v1578 = vpop.f32.mrb[0].mxu0
        %v1579 = vpop.f32.mrb[0].mxu0
        %1580 = vdwg.mxu0
        %1581 = vrot.lane.b32.xlu0 %v1361, 96
        %v1582 = vpop.permute.xlu0 %1581
        %1583 = vrot.lane.b32.xlu0 %v1361, 32
        %v1584 = vpop.permute.xlu0 %1583
        %v1586 = vsel %vm543, %v1582, 0
        %v1589 = vsel %vm543, %v1584, 0
        %1591 = vmatprep.subr.bf16.mxu0 0
        %1592 = vmatpush1.bf16.xpose.msra.mxu0 %v1589
        %1593 = vmatprep.subr.bf16.mxu0 0
        %1594 = vmatpush1.bf16.xpose.msra.mxu0 0
        %1595 = vmatprep.subr.bf16.mxu0 0
        %1596 = vmatpush1.bf16.xpose.msra.mxu0 0
        %1597 = vmatprep.subr.bf16.mxu0 0
        %1598 = vmatpush1.bf16.xpose.msra.mxu0 0
        %1599 = vmatprep.subr.bf16.mxu0 0
        %1600 = vmatpush1.bf16.xpose.msra.mxu0 0
        %1601 = vmatprep.subr.bf16.mxu0 0
        %1602 = vmatpush1.bf16.xpose.msra.mxu0 0
        %1603 = vmatprep.subr.bf16.mxu0 0
        %1604 = vmatpush1.bf16.xpose.msra.mxu0 0
        %1605 = vmatprep.subr.bf16.mxu0 0
        %1606 = vmatpush1.bf16.xpose.msra.mxu0 0
        %1607 = vmatprep.subr.bf16.mxu0 0
        %1608 = vmatpush1.bf16.xpose.msra.mxu0 0
        %1609 = vmatprep.subr.bf16.mxu0 0
        %1610 = vmatpush1.bf16.xpose.msra.mxu0 0
        %1611 = vmatprep.subr.bf16.mxu0 0
        %1612 = vmatpush1.bf16.xpose.msra.mxu0 0
        %1613 = vmatprep.subr.bf16.mxu0 0
        %1614 = vmatpush1.bf16.xpose.msra.mxu0 0
        %1615 = vmatprep.subr.bf16.mxu0 0
        %1616 = vmatpush1.bf16.xpose.msra.mxu0 0
        %1617 = vmatprep.subr.bf16.mxu0 0
        %1618 = vmatpush1.bf16.xpose.msra.mxu0 0
        %1619 = vmatprep.subr.bf16.mxu0 0
        %1620 = vmatpush1.bf16.xpose.msra.mxu0 0
        %1621 = vmatprep.subr.bf16.mxu0 0
        %1622 = vmatpush1.bf16.xpose.msra.mxu0 0
        %1623 = vmatprep.mubr.bf16.mxu0 0
        %1624 = vmatmul.mubr.bf16.gmra.mrb[0].mxu0 %v1586
        %v1625 = vpop.f32.mrb[0].mxu0
        %v1626 = vadd.f32 %v403, %v1625
        %v1627 = vpop.f32.mrb[0].mxu0
        %v1628 = vpop.f32.mrb[0].mxu0
        %v1629 = vpop.f32.mrb[0].mxu0
        %1630 = vdwg.mxu0
        %v1631 = vsel %vm590, %v1626, -inf
        %1632 = vmax.xlane.f32.xlu0 %v1631
        %v1633 = vpop.xlane.xlu0 %1632
        %v1634 = vsub.f32 %v1626, %v1633
        %v1635 = vmul.f32 %v1634, 1.442695
        %v1636 = vpow.pop %v1635
        %v1637 = vsel %vm590, %v1636, 0.0
        %1638 = vadd.xlane.f32.xlu0 %v1637
        %v1639 = vpop.xlane.xlu0 %1638
        %v1640 = vrcp.pop %v1639
        %v1641 = vmul.f32 %v1636, %v1640
        %v1642 = vpack.c.bf16 %v1641, %v1641
        %1643 = vrot.lane.b32.xlu0 %v1362, 96
        %v1644 = vpop.permute.xlu0 %1643
        %v1646 = vsel %vm590, %v1642, 0
        %v1649 = vsel %vm606, %v1644, 0
        %1651 = vmatprep.subr.bf16.mxu0 0
        %1652 = vmatpush1.bf16.msra.mxu0 %v1649
        %1653 = vmatprep.subr.bf16.mxu0 0
        %1654 = vmatpush1.bf16.msra.mxu0 0
        %1655 = vmatprep.subr.bf16.mxu0 0
        %1656 = vmatpush1.bf16.msra.mxu0 0
        %1657 = vmatprep.subr.bf16.mxu0 0
        %1658 = vmatpush1.bf16.msra.mxu0 0
        %1659 = vmatprep.subr.bf16.mxu0 0
        %1660 = vmatpush1.bf16.msra.mxu0 0
        %1661 = vmatprep.subr.bf16.mxu0 0
        %1662 = vmatpush1.bf16.msra.mxu0 0
        %1663 = vmatprep.subr.bf16.mxu0 0
        %1664 = vmatpush1.bf16.msra.mxu0 0
        %1665 = vmatprep.subr.bf16.mxu0 0
        %1666 = vmatpush1.bf16.msra.mxu0 0
        %1667 = vmatprep.subr.bf16.mxu0 0
        %1668 = vmatpush1.bf16.msra.mxu0 0
        %1669 = vmatprep.subr.bf16.mxu0 0
        %1670 = vmatpush1.bf16.msra.mxu0 0
        %1671 = vmatprep.subr.bf16.mxu0 0
        %1672 = vmatpush1.bf16.msra.mxu0 0
        %1673 = vmatprep.subr.bf16.mxu0 0
        %1674 = vmatpush1.bf16.msra.mxu0 0
        %1675 = vmatprep.subr.bf16.mxu0 0
        %1676 = vmatpush1.bf16.msra.mxu0 0
        %1677 = vmatprep.subr.bf16.mxu0 0
        %1678 = vmatpush1.bf16.msra.mxu0 0
        %1679 = vmatprep.subr.bf16.mxu0 0
        %1680 = vmatpush1.bf16.msra.mxu0 0
        %1681 = vmatprep.subr.bf16.mxu0 0
        %1682 = vmatpush1.bf16.msra.mxu0 0
        %1683 = vmatprep.mubr.bf16.mxu0 0
        %1684 = vmatmul.mubr.bf16.gmra.mrb[0].mxu0 %v1646
        %v1685 = vpop.f32.mrb[0].mxu0
        %v1686 = vadd.f32 0.0, %v1685
        %v1687 = vpop.f32.mrb[0].mxu0
        %v1688 = vpop.f32.mrb[0].mxu0
        %v1689 = vpop.f32.mrb[0].mxu0
        %1690 = vdwg.mxu0
        %1691 = vrot.lane.b32.xlu0 %v1361, 80
        %v1692 = vpop.permute.xlu0 %1691
        %1693 = vrot.lane.b32.xlu0 %v1361, 16
        %v1694 = vpop.permute.xlu0 %1693
        %v1696 = vsel %vm543, %v1692, 0
        %v1699 = vsel %vm543, %v1694, 0
        %1701 = vmatprep.subr.bf16.mxu0 0
        %1702 = vmatpush1.bf16.xpose.msra.mxu0 %v1699
        %1703 = vmatprep.subr.bf16.mxu0 0
        %1704 = vmatpush1.bf16.xpose.msra.mxu0 0
        %1705 = vmatprep.subr.bf16.mxu0 0
        %1706 = vmatpush1.bf16.xpose.msra.mxu0 0
        %1707 = vmatprep.subr.bf16.mxu0 0
        %1708 = vmatpush1.bf16.xpose.msra.mxu0 0
        %1709 = vmatprep.subr.bf16.mxu0 0
        %1710 = vmatpush1.bf16.xpose.msra.mxu0 0
        %1711 = vmatprep.subr.bf16.mxu0 0
        %1712 = vmatpush1.bf16.xpose.msra.mxu0 0
        %1713 = vmatprep.subr.bf16.mxu0 0
        %1714 = vmatpush1.bf16.xpose.msra.mxu0 0
        %1715 = vmatprep.subr.bf16.mxu0 0
        %1716 = vmatpush1.bf16.xpose.msra.mxu0 0
        %1717 = vmatprep.subr.bf16.mxu0 0
        %1718 = vmatpush1.bf16.xpose.msra.mxu0 0
        %1719 = vmatprep.subr.bf16.mxu0 0
        %1720 = vmatpush1.bf16.xpose.msra.mxu0 0
        %1721 = vmatprep.subr.bf16.mxu0 0
        %1722 = vmatpush1.bf16.xpose.msra.mxu0 0
        %1723 = vmatprep.subr.bf16.mxu0 0
        %1724 = vmatpush1.bf16.xpose.msra.mxu0 0
        %1725 = vmatprep.subr.bf16.mxu0 0
        %1726 = vmatpush1.bf16.xpose.msra.mxu0 0
        %1727 = vmatprep.subr.bf16.mxu0 0
        %1728 = vmatpush1.bf16.xpose.msra.mxu0 0
        %1729 = vmatprep.subr.bf16.mxu0 0
        %1730 = vmatpush1.bf16.xpose.msra.mxu0 0
        %1731 = vmatprep.subr.bf16.mxu0 0
        %1732 = vmatpush1.bf16.xpose.msra.mxu0 0
        %1733 = vmatprep.mubr.bf16.mxu0 0
        %1734 = vmatmul.mubr.bf16.gmra.mrb[0].mxu0 %v1696
        %v1735 = vpop.f32.mrb[0].mxu0
        %v1736 = vadd.f32 %v404, %v1735
        %v1737 = vpop.f32.mrb[0].mxu0
        %v1738 = vpop.f32.mrb[0].mxu0
        %v1739 = vpop.f32.mrb[0].mxu0
        %1740 = vdwg.mxu0
        %v1741 = vsel %vm590, %v1736, -inf
        %1742 = vmax.xlane.f32.xlu0 %v1741
        %v1743 = vpop.xlane.xlu0 %1742
        %v1744 = vsub.f32 %v1736, %v1743
        %v1745 = vmul.f32 %v1744, 1.442695
        %v1746 = vpow.pop %v1745
        %v1747 = vsel %vm590, %v1746, 0.0
        %1748 = vadd.xlane.f32.xlu0 %v1747
        %v1749 = vpop.xlane.xlu0 %1748
        %v1750 = vrcp.pop %v1749
        %v1751 = vmul.f32 %v1746, %v1750
        %v1752 = vpack.c.bf16 %v1751, %v1751
        %1753 = vrot.lane.b32.xlu0 %v1362, 80
        %v1754 = vpop.permute.xlu0 %1753
        %v1756 = vsel %vm590, %v1752, 0
        %v1759 = vsel %vm606, %v1754, 0
        %1761 = vmatprep.subr.bf16.mxu0 0
        %1762 = vmatpush1.bf16.msra.mxu0 %v1759
        %1763 = vmatprep.subr.bf16.mxu0 0
        %1764 = vmatpush1.bf16.msra.mxu0 0
        %1765 = vmatprep.subr.bf16.mxu0 0
        %1766 = vmatpush1.bf16.msra.mxu0 0
        %1767 = vmatprep.subr.bf16.mxu0 0
        %1768 = vmatpush1.bf16.msra.mxu0 0
        %1769 = vmatprep.subr.bf16.mxu0 0
        %1770 = vmatpush1.bf16.msra.mxu0 0
        %1771 = vmatprep.subr.bf16.mxu0 0
        %1772 = vmatpush1.bf16.msra.mxu0 0
        %1773 = vmatprep.subr.bf16.mxu0 0
        %1774 = vmatpush1.bf16.msra.mxu0 0
        %1775 = vmatprep.subr.bf16.mxu0 0
        %1776 = vmatpush1.bf16.msra.mxu0 0
        %1777 = vmatprep.subr.bf16.mxu0 0
        %1778 = vmatpush1.bf16.msra.mxu0 0
        %1779 = vmatprep.subr.bf16.mxu0 0
        %1780 = vmatpush1.bf16.msra.mxu0 0
        %1781 = vmatprep.subr.bf16.mxu0 0
        %1782 = vmatpush1.bf16.msra.mxu0 0
        %1783 = vmatprep.subr.bf16.mxu0 0
        %1784 = vmatpush1.bf16.msra.mxu0 0
        %1785 = vmatprep.subr.bf16.mxu0 0
        %1786 = vmatpush1.bf16.msra.mxu0 0
        %1787 = vmatprep.subr.bf16.mxu0 0
        %1788 = vmatpush1.bf16.msra.mxu0 0
        %1789 = vmatprep.subr.bf16.mxu0 0
        %1790 = vmatpush1.bf16.msra.mxu0 0
        %1791 = vmatprep.subr.bf16.mxu0 0
        %1792 = vmatpush1.bf16.msra.mxu0 0
        %1793 = vmatprep.mubr.bf16.mxu0 0
        %1794 = vmatmul.mubr.bf16.gmra.mrb[0].mxu0 %v1756
        %v1795 = vpop.f32.mrb[0].mxu0
        %v1796 = vadd.f32 0.0, %v1795
        %v1797 = vpop.f32.mrb[0].mxu0
        %v1798 = vpop.f32.mrb[0].mxu0
        %v1799 = vpop.f32.mrb[0].mxu0
        %1800 = vdwg.mxu0
        %1802 = vrot.lane.b32.xlu0 %v1576, 16
        %v1803 = vpop.permute.xlu0 %1802
        %1806 = vrot.lane.b32.xlu0 %v1686, 32
        %v1807 = vpop.permute.xlu0 %1806
        %1810 = vrot.lane.b32.xlu0 %v1796, 48
        %v1811 = vpop.permute.xlu0 %1810
        %v1813 = vsel %vm543, %v1465, %v1803
        %v1814 = vsel %vm994, %v1813, %v1807
        %v1815 = vsel %vm996, %v1814, %v1811
        %v1816 = vpack.c.bf16 %v1815, %v1815
        %1817 = vrot.lane.b32.xlu0 %v1302, 64
        %v1818 = vpop.permute.xlu0 %1817
        %1819 = vrot.lane.b32.xlu0 %v1304, 64
        %v1820 = vpop.permute.xlu0 %1819
        %1821 = vrot.lane.b32.xlu0 %v1306, 64
        %v1822 = vpop.permute.xlu0 %1821
        %1823 = vrot.lane.b32.xlu0 %v1308, 64
        %v1824 = vpop.permute.xlu0 %1823
        %v1830 = vsel %vm439, %v1816, 0
        %1832 = vmatprep.subr.bf16.mxu0 0
        %1833 = vmatpush1.bf16.msra.mxu0 %v1818
        %1834 = vmatprep.subr.bf16.mxu0 0
        %1835 = vmatpush1.bf16.msra.mxu0 %v1820
        %1836 = vmatprep.subr.bf16.mxu0 0
        %1837 = vmatpush1.bf16.msra.mxu0 %v1822
        %1838 = vmatprep.subr.bf16.mxu0 0
        %1839 = vmatpush1.bf16.msra.mxu0 %v1824
        %1840 = vmatprep.subr.bf16.mxu0 0
        %1841 = vmatpush1.bf16.msra.mxu0 0
        %1842 = vmatprep.subr.bf16.mxu0 0
        %1843 = vmatpush1.bf16.msra.mxu0 0
        %1844 = vmatprep.subr.bf16.mxu0 0
        %1845 = vmatpush1.bf16.msra.mxu0 0
        %1846 = vmatprep.subr.bf16.mxu0 0
        %1847 = vmatpush1.bf16.msra.mxu0 0
        %1848 = vmatprep.subr.bf16.mxu0 0
        %1849 = vmatpush1.bf16.msra.mxu0 0
        %1850 = vmatprep.subr.bf16.mxu0 0
        %1851 = vmatpush1.bf16.msra.mxu0 0
        %1852 = vmatprep.subr.bf16.mxu0 0
        %1853 = vmatpush1.bf16.msra.mxu0 0
        %1854 = vmatprep.subr.bf16.mxu0 0
        %1855 = vmatpush1.bf16.msra.mxu0 0
        %1856 = vmatprep.subr.bf16.mxu0 0
        %1857 = vmatpush1.bf16.msra.mxu0 0
        %1858 = vmatprep.subr.bf16.mxu0 0
        %1859 = vmatpush1.bf16.msra.mxu0 0
        %1860 = vmatprep.subr.bf16.mxu0 0
        %1861 = vmatpush1.bf16.msra.mxu0 0
        %1862 = vmatprep.subr.bf16.mxu0 0
        %1863 = vmatpush1.bf16.msra.mxu0 0
        %1864 = vmatprep.mubr.bf16.mxu0 0
        %1865 = vmatmul.mubr.bf16.gmra.mrb[0].mxu0 %v1830
        %v1866 = vpop.f32.mrb[0].mxu0
        %v1867 = vadd.f32 0.0, %v1866
        %v1868 = vpop.f32.mrb[0].mxu0
        %v1869 = vpop.f32.mrb[0].mxu0
        %v1870 = vpop.f32.mrb[0].mxu0
        %1871 = vdwg.mxu0
        %v1872 = vadd.f32 %v1226, %v1867
        %v1873 = vmul.f32 %v1872, %v1872
        %v1874 = vsel %vm439, %v1873, 0.0
        %1875 = vadd.xlane.f32.xlu0 %v1874
        %v1876 = vpop.xlane.xlu0 %1875
        %v1877 = vmul.f32 %v1876, %v443
        %v1878 = vadd.f32 %v1877, 1e-06
        %v1879 = vrsqrt.pop %v1878
        %v1880 = vmul.f32 %v1872, %v1879
        %v1881 = vlaneseq
        %v1882 = vshrl.u32 %v1881, 7
        %v1883 = vsub.s32 1, %v1882
        %v1884 = vrot.slane %v1228, %v1883
        %v1885 = vmul.f32 %v1880, %v1884
        %v1886 = vpack.c.bf16 %v1885, %v1885
        %v1895 = vunpack.c.l.b16 %v1231
        %v1896 = vunpack.c.l.b16 %v1233
        %v1897 = vunpack.c.l.b16 %v1235
        %v1898 = vunpack.c.l.b16 %v1237
        %v1899 = vunpack.c.l.b16 %v1239
        %v1900 = vunpack.c.l.b16 %v1241
        %v1901 = vunpack.c.l.b16 %v1243
        %v1902 = vunpack.c.l.b16 %v1245
        %v1903 = vpack.c.b16 %v1896, %v1895
        %v1904 = vpack.c.b16 %v1898, %v1897
        %v1905 = vpack.c.b16 %v1900, %v1899
        %v1906 = vpack.c.b16 %v1902, %v1901
        %v1912 = vsel %vm439, %v1886, 0
        %1914 = vmatprep.subr.bf16.mxu0 0
        %1915 = vmatpush1.bf16.msra.mxu0 %v1903
        %1916 = vmatprep.subr.bf16.mxu0 0
        %1917 = vmatpush1.bf16.msra.mxu0 %v1904
        %1918 = vmatprep.subr.bf16.mxu0 0
        %1919 = vmatpush1.bf16.msra.mxu0 %v1905
        %1920 = vmatprep.subr.bf16.mxu0 0
        %1921 = vmatpush1.bf16.msra.mxu0 %v1906
        %1922 = vmatprep.subr.bf16.mxu0 0
        %1923 = vmatpush1.bf16.msra.mxu0 0
        %1924 = vmatprep.subr.bf16.mxu0 0
        %1925 = vmatpush1.bf16.msra.mxu0 0
        %1926 = vmatprep.subr.bf16.mxu0 0
        %1927 = vmatpush1.bf16.msra.mxu0 0
        %1928 = vmatprep.subr.bf16.mxu0 0
        %1929 = vmatpush1.bf16.msra.mxu0 0
        %1930 = vmatprep.subr.bf16.mxu0 0
        %1931 = vmatpush1.bf16.msra.mxu0 0
        %1932 = vmatprep.subr.bf16.mxu0 0
        %1933 = vmatpush1.bf16.msra.mxu0 0
        %1934 = vmatprep.subr.bf16.mxu0 0
        %1935 = vmatpush1.bf16.msra.mxu0 0
        %1936 = vmatprep.subr.bf16.mxu0 0
        %1937 = vmatpush1.bf16.msra.mxu0 0
        %1938 = vmatprep.subr.bf16.mxu0 0
        %1939 = vmatpush1.bf16.msra.mxu0 0
        %1940 = vmatprep.subr.bf16.mxu0 0
        %1941 = vmatpush1.bf16.msra.mxu0 0
        %1942 = vmatprep.subr.bf16.mxu0 0
        %1943 = vmatpush1.bf16.msra.mxu0 0
        %1944 = vmatprep.subr.bf16.mxu0 0
        %1945 = vmatpush1.bf16.msra.mxu0 0
        %1946 = vmatprep.mubr.bf16.mxu0 0
        %1947 = vmatmul.mubr.bf16.gmra.mrb[0].mxu0 %v1912
        %v1948 = vpop.f32.mrb[0].mxu0
        %v1949 = vadd.f32 0.0, %v1948
        %v1950 = vpop.f32.mrb[0].mxu0
        %v1951 = vpop.f32.mrb[0].mxu0
        %v1952 = vpop.f32.mrb[0].mxu0
        %1953 = vdwg.mxu0
        %v1954 = vmax.f32 %v1949, 0.0
        %v1955 = vpack.c.bf16 %v1954, %v1954
        %v1972 = vunpack.c.l.b16 %v1247
        %v1973 = vunpack.c.l.b16 %v1248
        %v1974 = vunpack.c.l.b16 %v1249
        %v1975 = vunpack.c.l.b16 %v1250
        %v1976 = vunpack.c.l.b16 %v1251
        %v1977 = vunpack.c.l.b16 %v1252
        %v1978 = vunpack.c.l.b16 %v1253
        %v1979 = vunpack.c.l.b16 %v1254
        %v1980 = vunpack.c.l.b16 %v1255
        %v1981 = vunpack.c.l.b16 %v1256
        %v1982 = vunpack.c.l.b16 %v1257
        %v1983 = vunpack.c.l.b16 %v1258
        %v1984 = vunpack.c.l.b16 %v1259
        %v1985 = vunpack.c.l.b16 %v1260
        %v1986 = vunpack.c.l.b16 %v1261
        %v1987 = vunpack.c.l.b16 %v1262
        %v1988 = vpack.c.b16 %v1973, %v1972
        %v1989 = vpack.c.b16 %v1975, %v1974
        %v1990 = vpack.c.b16 %v1977, %v1976
        %v1991 = vpack.c.b16 %v1979, %v1978
        %v1992 = vpack.c.b16 %v1981, %v1980
        %v1993 = vpack.c.b16 %v1983, %v1982
        %v1994 = vpack.c.b16 %v1985, %v1984
        %v1995 = vpack.c.b16 %v1987, %v1986
        %2004 = vmatprep.subr.bf16.mxu0 0
        %2005 = vmatpush1.bf16.msra.mxu0 %v1988
        %2006 = vmatprep.subr.bf16.mxu0 0
        %2007 = vmatpush1.bf16.msra.mxu0 %v1989
        %2008 = vmatprep.subr.bf16.mxu0 0
        %2009 = vmatpush1.bf16.msra.mxu0 %v1990
        %2010 = vmatprep.subr.bf16.mxu0 0
        %2011 = vmatpush1.bf16.msra.mxu0 %v1991
        %2012 = vmatprep.subr.bf16.mxu0 0
        %2013 = vmatpush1.bf16.msra.mxu0 %v1992
        %2014 = vmatprep.subr.bf16.mxu0 0
        %2015 = vmatpush1.bf16.msra.mxu0 %v1993
        %2016 = vmatprep.subr.bf16.mxu0 0
        %2017 = vmatpush1.bf16.msra.mxu0 %v1994
        %2018 = vmatprep.subr.bf16.mxu0 0
        %2019 = vmatpush1.bf16.msra.mxu0 %v1995
        %2020 = vmatprep.subr.bf16.mxu0 0
        %2021 = vmatpush1.bf16.msra.mxu0 0
        %2022 = vmatprep.subr.bf16.mxu0 0
        %2023 = vmatpush1.bf16.msra.mxu0 0
        %2024 = vmatprep.subr.bf16.mxu0 0
        %2025 = vmatpush1.bf16.msra.mxu0 0
        %2026 = vmatprep.subr.bf16.mxu0 0
        %2027 = vmatpush1.bf16.msra.mxu0 0
        %2028 = vmatprep.subr.bf16.mxu0 0
        %2029 = vmatpush1.bf16.msra.mxu0 0
        %2030 = vmatprep.subr.bf16.mxu0 0
        %2031 = vmatpush1.bf16.msra.mxu0 0
        %2032 = vmatprep.subr.bf16.mxu0 0
        %2033 = vmatpush1.bf16.msra.mxu0 0
        %2034 = vmatprep.subr.bf16.mxu0 0
        %2035 = vmatpush1.bf16.msra.mxu0 0
        %2036 = vmatprep.mubr.bf16.mxu0 0
        %2037 = vmatmul.mubr.bf16.gmra.mrb[0].mxu0 %v1955
        %v2038 = vpop.f32.mrb[0].mxu0
        %v2039 = vadd.f32 0.0, %v2038
        %v2040 = vpop.f32.mrb[0].mxu0
        %v2041 = vpop.f32.mrb[0].mxu0
        %v2042 = vpop.f32.mrb[0].mxu0
        %2043 = vdwg.mxu0
        %v2044 = vadd.f32 %v1872, %v2039
        %v2045 = vld [vmem:[%s10] sm:$0x1]
        %v2046 = vmul.f32 %v2044, %v2044
        %v2047 = vsel %vm439, %v2046, 0.0
        %2048 = vadd.xlane.f32.xlu0 %v2047
        %v2049 = vpop.xlane.xlu0 %2048
        %v2050 = vmul.f32 %v2049, %v443
        %v2051 = vadd.f32 %v2050, 1e-06
        %v2052 = vrsqrt.pop %v2051
        %v2053 = vmul.f32 %v2044, %v2052
        %v2054 = vlaneseq
        %v2055 = vshrl.u32 %v2054, 7
        %v2056 = vsub.s32 0, %v2055
        %v2057 = vrot.slane %v2045, %v2056
        %v2058 = vmul.f32 %v2053, %v2057
        %v2059 = vpack.c.bf16 %v2058, %v2058
        %v2060 = vld [vmem:[%s398] sm:$0xff]
        %v2061 = vld [vmem:[%s3] sm:$0xff]
        %v2062 = vld [vmem:[%s3 + $0x8] sm:$0xff]
        %v2063 = vld [vmem:[%s3 + $0x10] sm:$0xff]
        %v2064 = vld [vmem:[%s3 + $0x18] sm:$0xff]
        %v2065 = vld [vmem:[%s7] sm:$0x7]
        %v2066 = vld [vmem:[%s8] sm:$0xff]
        %v2067 = vld [vmem:[%s8 + $0x8] sm:$0xff]
        %v2068 = vld [vmem:[%s8 + $0x10] sm:$0xf]
        %v2069 = vld [vmem:[%s8 + $0x14] sm:$0xff]
        %v2070 = vld [vmem:[%s8 + $0x1c] sm:$0xff]
        %v2071 = vld [vmem:[%s8 + $0x24] sm:$0xf]
        %v2072 = vld [vmem:[%s8 + $0x28] sm:$0xff]
        %v2073 = vld [vmem:[%s8 + $0x30] sm:$0xff]
        %v2074 = vld [vmem:[%s8 + $0x38] sm:$0xf]
        %v2075 = vld [vmem:[%s8 + $0x3c] sm:$0xff]
        %v2076 = vld [vmem:[%s8 + $0x44] sm:$0xff]
        %v2077 = vld [vmem:[%s8 + $0x4c] sm:$0xf]
        %v2078 = vld [vmem:[%s8 + $0x50] sm:$0xff]
        %v2079 = vld [vmem:[%s8 + $0x58] sm:$0xff]
        %v2080 = vld [vmem:[%s8 + $0x60] sm:$0xf]
        %v2081 = vld [vmem:[%s8 + $0x64] sm:$0xff]
        %v2082 = vld [vmem:[%s8 + $0x6c] sm:$0xff]
        %v2083 = vld [vmem:[%s8 + $0x74] sm:$0xf]
        %v2084 = vld [vmem:[%s8 + $0x78] sm:$0xff]
        %v2085 = vld [vmem:[%s8 + $0x80] sm:$0xff]
        %v2086 = vld [vmem:[%s8 + $0x88] sm:$0xf]
        %v2087 = vld [vmem:[%s8 + $0x8c] sm:$0xff]
        %v2088 = vld [vmem:[%s8 + $0x94] sm:$0xff]
        %v2089 = vld [vmem:[%s8 + $0x9c] sm:$0xf]
        %v2090 = vld [vmem:[%s9] sm:$0xf]
        %v2091 = vld [vmem:[%s9 + $0x4] sm:$0xf]
        %v2092 = vld [vmem:[%s9 + $0x8] sm:$0xf]
        %v2093 = vld [vmem:[%s9 + $0xc] sm:$0xf]
        %v2094 = vld [vmem:[%s9 + $0x10] sm:$0xf]
        %v2095 = vld [vmem:[%s9 + $0x14] sm:$0xf]
        %v2096 = vld [vmem:[%s9 + $0x18] sm:$0xf]
        %v2097 = vld [vmem:[%s9 + $0x1c] sm:$0xf]
        %v2098 = vld [vmem:[%s9 + $0x20] sm:$0xf]
        %v2099 = vld [vmem:[%s9 + $0x24] sm:$0xf]
        %v2100 = vld [vmem:[%s9 + $0x28] sm:$0xf]
        %v2101 = vld [vmem:[%s9 + $0x2c] sm:$0xf]
        %v2102 = vld [vmem:[%s9 + $0x30] sm:$0xf]
        %v2103 = vld [vmem:[%s9 + $0x34] sm:$0xf]
        %v2104 = vld [vmem:[%s9 + $0x38] sm:$0xf]
        %v2105 = vld [vmem:[%s9 + $0x3c] sm:$0xf]
        %v2106 = vmul.f32 %v2060, %v2060
        %v2107 = vsel %vm439, %v2106, 0.0
        %2108 = vadd.xlane.f32.xlu0 %v2107
        %v2109 = vpop.xlane.xlu0 %2108
        %v2110 = vmul.f32 %v2109, %v443
        %v2111 = vadd.f32 %v2110, 1e-06
        %v2112 = vrsqrt.pop %v2111
        %v2113 = vmul.f32 %v2060, %v2112
        %v2114 = vlaneseq
        %v2115 = vshrl.u32 %v2114, 7
        %v2116 = vsub.s32 0, %v2115
        %v2117 = vrot.slane %v2065, %v2116
        %v2118 = vmul.f32 %v2113, %v2117
        %v2119 = vpack.c.bf16 %v2118, %v2118
        %v2128 = vunpack.c.l.b16 %v2066
        %v2129 = vunpack.c.h.b16 %v2066
        %v2130 = vunpack.c.l.b16 %v2069
        %v2131 = vunpack.c.h.b16 %v2069
        %v2132 = vunpack.c.l.b16 %v2072
        %v2133 = vunpack.c.h.b16 %v2072
        %v2134 = vunpack.c.l.b16 %v2075
        %v2135 = vunpack.c.h.b16 %v2075
        %v2136 = vunpack.c.l.b16 %v2078
        %v2137 = vunpack.c.h.b16 %v2078
        %v2138 = vunpack.c.l.b16 %v2081
        %v2139 = vunpack.c.h.b16 %v2081
        %v2140 = vunpack.c.l.b16 %v2084
        %v2141 = vunpack.c.h.b16 %v2084
        %v2142 = vunpack.c.l.b16 %v2087
        %v2143 = vunpack.c.h.b16 %v2087
        %v2144 = vpack.c.b16 %v2130, %v2128
        %v2145 = vpack.c.b16 %v2131, %v2129
        %v2146 = vpack.c.b16 %v2134, %v2132
        %v2147 = vpack.c.b16 %v2135, %v2133
        %v2148 = vpack.c.b16 %v2138, %v2136
        %v2149 = vpack.c.b16 %v2139, %v2137
        %v2150 = vpack.c.b16 %v2142, %v2140
        %v2151 = vpack.c.b16 %v2143, %v2141
        %v2161 = vsel %vm439, %v2119, 0
        %2163 = vmatprep.subr.bf16.mxu0 %v2145
        %2164 = vmatpush1.bf16.msra.mxu0 %v2144
        %2165 = vmatprep.subr.bf16.mxu0 %v2147
        %2166 = vmatpush1.bf16.msra.mxu0 %v2146
        %2167 = vmatprep.subr.bf16.mxu0 %v2149
        %2168 = vmatpush1.bf16.msra.mxu0 %v2148
        %2169 = vmatprep.subr.bf16.mxu0 %v2151
        %2170 = vmatpush1.bf16.msra.mxu0 %v2150
        %2171 = vmatprep.subr.bf16.mxu0 0
        %2172 = vmatpush1.bf16.msra.mxu0 0
        %2173 = vmatprep.subr.bf16.mxu0 0
        %2174 = vmatpush1.bf16.msra.mxu0 0
        %2175 = vmatprep.subr.bf16.mxu0 0
        %2176 = vmatpush1.bf16.msra.mxu0 0
        %2177 = vmatprep.subr.bf16.mxu0 0
        %2178 = vmatpush1.bf16.msra.mxu0 0
        %2179 = vmatprep.subr.bf16.mxu0 0
        %2180 = vmatpush1.bf16.msra.mxu0 0
        %2181 = vmatprep.subr.bf16.mxu0 0
        %2182 = vmatpush1.bf16.msra.mxu0 0
        %2183 = vmatprep.subr.bf16.mxu0 0
        %2184 = vmatpush1.bf16.msra.mxu0 0
        %2185 = vmatprep.subr.bf16.mxu0 0
        %2186 = vmatpush1.bf16.msra.mxu0 0
        %2187 = vmatprep.subr.bf16.mxu0 0
        %2188 = vmatpush1.bf16.msra.mxu0 0
        %2189 = vmatprep.subr.bf16.mxu0 0
        %2190 = vmatpush1.bf16.msra.mxu0 0
        %2191 = vmatprep.subr.bf16.mxu0 0
        %2192 = vmatpush1.bf16.msra.mxu0 0
        %2193 = vmatprep.subr.bf16.mxu0 0
        %2194 = vmatpush1.bf16.msra.mxu0 0
        %2195 = vmatprep.mubr.bf16.mxu0 0
        %2196 = vmatmul.mubr.bf16.gmra.mrb[0].mxu0 %v2161
        %v2197 = vpop.f32.mrb[0].mxu0
        %v2198 = vadd.f32 0.0, %v2197
        %v2199 = vpop.f32.mrb[0].mxu0
        %v2200 = vadd.f32 0.0, %v2199
        %v2201 = vpop.f32.mrb[0].mxu0
        %v2202 = vpop.f32.mrb[0].mxu0
        %2203 = vdwg.mxu0
        %v2204 = vpack.c.bf16 %v2198, %v2198
        %v2205 = vpack.c.bf16 %v2200, %v2200
        %2207 = vrot.lane.b32.xlu0 %v2204, 64
        %v2208 = vpop.permute.xlu0 %2207
        %v2210 = vsel %vm543, %v2204, 0
        %v2213 = vsel %vm543, %v2208, 0
        %2215 = vmatprep.subr.bf16.mxu0 0
        %2216 = vmatpush1.bf16.xpose.msra.mxu0 %v2213
        %2217 = vmatprep.subr.bf16.mxu0 0
        %2218 = vmatpush1.bf16.xpose.msra.mxu0 0
        %2219 = vmatprep.subr.bf16.mxu0 0
        %2220 = vmatpush1.bf16.xpose.msra.mxu0 0
        %2221 = vmatprep.subr.bf16.mxu0 0
        %2222 = vmatpush1.bf16.xpose.msra.mxu0 0
        %2223 = vmatprep.subr.bf16.mxu0 0
        %2224 = vmatpush1.bf16.xpose.msra.mxu0 0
        %2225 = vmatprep.subr.bf16.mxu0 0
        %2226 = vmatpush1.bf16.xpose.msra.mxu0 0
        %2227 = vmatprep.subr.bf16.mxu0 0
        %2228 = vmatpush1.bf16.xpose.msra.mxu0 0
        %2229 = vmatprep.subr.bf16.mxu0 0
        %2230 = vmatpush1.bf16.xpose.msra.mxu0 0
        %2231 = vmatprep.subr.bf16.mxu0 0
        %2232 = vmatpush1.bf16.xpose.msra.mxu0 0
        %2233 = vmatprep.subr.bf16.mxu0 0
        %2234 = vmatpush1.bf16.xpose.msra.mxu0 0
        %2235 = vmatprep.subr.bf16.mxu0 0
        %2236 = vmatpush1.bf16.xpose.msra.mxu0 0
        %2237 = vmatprep.subr.bf16.mxu0 0
        %2238 = vmatpush1.bf16.xpose.msra.mxu0 0
        %2239 = vmatprep.subr.bf16.mxu0 0
        %2240 = vmatpush1.bf16.xpose.msra.mxu0 0
        %2241 = vmatprep.subr.bf16.mxu0 0
        %2242 = vmatpush1.bf16.xpose.msra.mxu0 0
        %2243 = vmatprep.subr.bf16.mxu0 0
        %2244 = vmatpush1.bf16.xpose.msra.mxu0 0
        %2245 = vmatprep.subr.bf16.mxu0 0
        %2246 = vmatpush1.bf16.xpose.msra.mxu0 0
        %2247 = vmatprep.mubr.bf16.mxu0 0
        %2248 = vmatmul.mubr.bf16.gmra.mrb[0].mxu0 %v2210
        %v2249 = vpop.f32.mrb[0].mxu0
        %v2250 = vadd.f32 %v2061, %v2249
        %v2251 = vpop.f32.mrb[0].mxu0
        %v2252 = vpop.f32.mrb[0].mxu0
        %v2253 = vpop.f32.mrb[0].mxu0
        %2254 = vdwg.mxu0
        %v2255 = vsel %vm590, %v2250, -inf
        %2256 = vmax.xlane.f32.xlu0 %v2255
        %v2257 = vpop.xlane.xlu0 %2256
        %v2258 = vsub.f32 %v2250, %v2257
        %v2259 = vmul.f32 %v2258, 1.442695
        %v2260 = vpow.pop %v2259
        %v2261 = vsel %vm590, %v2260, 0.0
        %2262 = vadd.xlane.f32.xlu0 %v2261
        %v2263 = vpop.xlane.xlu0 %2262
        %v2264 = vrcp.pop %v2263
        %v2265 = vmul.f32 %v2260, %v2264
        %v2266 = vpack.c.bf16 %v2265, %v2265
        %v2268 = vsel %vm590, %v2266, 0
        %v2271 = vsel %vm606, %v2205, 0
        %2273 = vmatprep.subr.bf16.mxu0 0
        %2274 = vmatpush1.bf16.msra.mxu0 %v2271
        %2275 = vmatprep.subr.bf16.mxu0 0
        %2276 = vmatpush1.bf16.msra.mxu0 0
        %2277 = vmatprep.subr.bf16.mxu0 0
        %2278 = vmatpush1.bf16.msra.mxu0 0
        %2279 = vmatprep.subr.bf16.mxu0 0
        %2280 = vmatpush1.bf16.msra.mxu0 0
        %2281 = vmatprep.subr.bf16.mxu0 0
        %2282 = vmatpush1.bf16.msra.mxu0 0
        %2283 = vmatprep.subr.bf16.mxu0 0
        %2284 = vmatpush1.bf16.msra.mxu0 0
        %2285 = vmatprep.subr.bf16.mxu0 0
        %2286 = vmatpush1.bf16.msra.mxu0 0
        %2287 = vmatprep.subr.bf16.mxu0 0
        %2288 = vmatpush1.bf16.msra.mxu0 0
        %2289 = vmatprep.subr.bf16.mxu0 0
        %2290 = vmatpush1.bf16.msra.mxu0 0
        %2291 = vmatprep.subr.bf16.mxu0 0
        %2292 = vmatpush1.bf16.msra.mxu0 0
        %2293 = vmatprep.subr.bf16.mxu0 0
        %2294 = vmatpush1.bf16.msra.mxu0 0
        %2295 = vmatprep.subr.bf16.mxu0 0
        %2296 = vmatpush1.bf16.msra.mxu0 0
        %2297 = vmatprep.subr.bf16.mxu0 0
        %2298 = vmatpush1.bf16.msra.mxu0 0
        %2299 = vmatprep.subr.bf16.mxu0 0
        %2300 = vmatpush1.bf16.msra.mxu0 0
        %2301 = vmatprep.subr.bf16.mxu0 0
        %2302 = vmatpush1.bf16.msra.mxu0 0
        %2303 = vmatprep.subr.bf16.mxu0 0
        %2304 = vmatpush1.bf16.msra.mxu0 0
        %2305 = vmatprep.mubr.bf16.mxu0 0
        %2306 = vmatmul.mubr.bf16.gmra.mrb[0].mxu0 %v2268
        %v2307 = vpop.f32.mrb[0].mxu0
        %v2308 = vadd.f32 0.0, %v2307
        %v2309 = vpop.f32.mrb[0].mxu0
        %v2310 = vpop.f32.mrb[0].mxu0
        %v2311 = vpop.f32.mrb[0].mxu0
        %2312 = vdwg.mxu0
        %2313 = vrot.lane.b32.xlu0 %v2204, 112
        %v2314 = vpop.permute.xlu0 %2313
        %2315 = vrot.lane.b32.xlu0 %v2204, 48
        %v2316 = vpop.permute.xlu0 %2315
        %v2318 = vsel %vm543, %v2314, 0
        %v2321 = vsel %vm543, %v2316, 0
        %2323 = vmatprep.subr.bf16.mxu0 0
        %2324 = vmatpush1.bf16.xpose.msra.mxu0 %v2321
        %2325 = vmatprep.subr.bf16.mxu0 0
        %2326 = vmatpush1.bf16.xpose.msra.mxu0 0
        %2327 = vmatprep.subr.bf16.mxu0 0
        %2328 = vmatpush1.bf16.xpose.msra.mxu0 0
        %2329 = vmatprep.subr.bf16.mxu0 0
        %2330 = vmatpush1.bf16.xpose.msra.mxu0 0
        %2331 = vmatprep.subr.bf16.mxu0 0
        %2332 = vmatpush1.bf16.xpose.msra.mxu0 0
        %2333 = vmatprep.subr.bf16.mxu0 0
        %2334 = vmatpush1.bf16.xpose.msra.mxu0 0
        %2335 = vmatprep.subr.bf16.mxu0 0
        %2336 = vmatpush1.bf16.xpose.msra.mxu0 0
        %2337 = vmatprep.subr.bf16.mxu0 0
        %2338 = vmatpush1.bf16.xpose.msra.mxu0 0
        %2339 = vmatprep.subr.bf16.mxu0 0
        %2340 = vmatpush1.bf16.xpose.msra.mxu0 0
        %2341 = vmatprep.subr.bf16.mxu0 0
        %2342 = vmatpush1.bf16.xpose.msra.mxu0 0
        %2343 = vmatprep.subr.bf16.mxu0 0
        %2344 = vmatpush1.bf16.xpose.msra.mxu0 0
        %2345 = vmatprep.subr.bf16.mxu0 0
        %2346 = vmatpush1.bf16.xpose.msra.mxu0 0
        %2347 = vmatprep.subr.bf16.mxu0 0
        %2348 = vmatpush1.bf16.xpose.msra.mxu0 0
        %2349 = vmatprep.subr.bf16.mxu0 0
        %2350 = vmatpush1.bf16.xpose.msra.mxu0 0
        %2351 = vmatprep.subr.bf16.mxu0 0
        %2352 = vmatpush1.bf16.xpose.msra.mxu0 0
        %2353 = vmatprep.subr.bf16.mxu0 0
        %2354 = vmatpush1.bf16.xpose.msra.mxu0 0
        %2355 = vmatprep.mubr.bf16.mxu0 0
        %2356 = vmatmul.mubr.bf16.gmra.mrb[0].mxu0 %v2318
        %v2357 = vpop.f32.mrb[0].mxu0
        %v2358 = vadd.f32 %v2062, %v2357
        %v2359 = vpop.f32.mrb[0].mxu0
        %v2360 = vpop.f32.mrb[0].mxu0
        %v2361 = vpop.f32.mrb[0].mxu0
        %2362 = vdwg.mxu0
        %v2363 = vsel %vm590, %v2358, -inf
        %2364 = vmax.xlane.f32.xlu0 %v2363
        %v2365 = vpop.xlane.xlu0 %2364
        %v2366 = vsub.f32 %v2358, %v2365
        %v2367 = vmul.f32 %v2366, 1.442695
        %v2368 = vpow.pop %v2367
        %v2369 = vsel %vm590, %v2368, 0.0
        %2370 = vadd.xlane.f32.xlu0 %v2369
        %v2371 = vpop.xlane.xlu0 %2370
        %v2372 = vrcp.pop %v2371
        %v2373 = vmul.f32 %v2368, %v2372
        %v2374 = vpack.c.bf16 %v2373, %v2373
        %2376 = vrot.lane.b32.xlu0 %v2205, 112
        %v2377 = vpop.permute.xlu0 %2376
        %v2379 = vsel %vm590, %v2374, 0
        %v2382 = vsel %vm606, %v2377, 0
        %2384 = vmatprep.subr.bf16.mxu0 0
        %2385 = vmatpush1.bf16.msra.mxu0 %v2382
        %2386 = vmatprep.subr.bf16.mxu0 0
        %2387 = vmatpush1.bf16.msra.mxu0 0
        %2388 = vmatprep.subr.bf16.mxu0 0
        %2389 = vmatpush1.bf16.msra.mxu0 0
        %2390 = vmatprep.subr.bf16.mxu0 0
        %2391 = vmatpush1.bf16.msra.mxu0 0
        %2392 = vmatprep.subr.bf16.mxu0 0
        %2393 = vmatpush1.bf16.msra.mxu0 0
        %2394 = vmatprep.subr.bf16.mxu0 0
        %2395 = vmatpush1.bf16.msra.mxu0 0
        %2396 = vmatprep.subr.bf16.mxu0 0
        %2397 = vmatpush1.bf16.msra.mxu0 0
        %2398 = vmatprep.subr.bf16.mxu0 0
        %2399 = vmatpush1.bf16.msra.mxu0 0
        %2400 = vmatprep.subr.bf16.mxu0 0
        %2401 = vmatpush1.bf16.msra.mxu0 0
        %2402 = vmatprep.subr.bf16.mxu0 0
        %2403 = vmatpush1.bf16.msra.mxu0 0
        %2404 = vmatprep.subr.bf16.mxu0 0
        %2405 = vmatpush1.bf16.msra.mxu0 0
        %2406 = vmatprep.subr.bf16.mxu0 0
        %2407 = vmatpush1.bf16.msra.mxu0 0
        %2408 = vmatprep.subr.bf16.mxu0 0
        %2409 = vmatpush1.bf16.msra.mxu0 0
        %2410 = vmatprep.subr.bf16.mxu0 0
        %2411 = vmatpush1.bf16.msra.mxu0 0
        %2412 = vmatprep.subr.bf16.mxu0 0
        %2413 = vmatpush1.bf16.msra.mxu0 0
        %2414 = vmatprep.subr.bf16.mxu0 0
        %2415 = vmatpush1.bf16.msra.mxu0 0
        %2416 = vmatprep.mubr.bf16.mxu0 0
        %2417 = vmatmul.mubr.bf16.gmra.mrb[0].mxu0 %v2379
        %v2418 = vpop.f32.mrb[0].mxu0
        %v2419 = vadd.f32 0.0, %v2418
        %v2420 = vpop.f32.mrb[0].mxu0
        %v2421 = vpop.f32.mrb[0].mxu0
        %v2422 = vpop.f32.mrb[0].mxu0
        %2423 = vdwg.mxu0
        %2424 = vrot.lane.b32.xlu0 %v2204, 96
        %v2425 = vpop.permute.xlu0 %2424
        %2426 = vrot.lane.b32.xlu0 %v2204, 32
        %v2427 = vpop.permute.xlu0 %2426
        %v2429 = vsel %vm543, %v2425, 0
        %v2432 = vsel %vm543, %v2427, 0
        %2434 = vmatprep.subr.bf16.mxu0 0
        %2435 = vmatpush1.bf16.xpose.msra.mxu0 %v2432
        %2436 = vmatprep.subr.bf16.mxu0 0
        %2437 = vmatpush1.bf16.xpose.msra.mxu0 0
        %2438 = vmatprep.subr.bf16.mxu0 0
        %2439 = vmatpush1.bf16.xpose.msra.mxu0 0
        %2440 = vmatprep.subr.bf16.mxu0 0
        %2441 = vmatpush1.bf16.xpose.msra.mxu0 0
        %2442 = vmatprep.subr.bf16.mxu0 0
        %2443 = vmatpush1.bf16.xpose.msra.mxu0 0
        %2444 = vmatprep.subr.bf16.mxu0 0
        %2445 = vmatpush1.bf16.xpose.msra.mxu0 0
        %2446 = vmatprep.subr.bf16.mxu0 0
        %2447 = vmatpush1.bf16.xpose.msra.mxu0 0
        %2448 = vmatprep.subr.bf16.mxu0 0
        %2449 = vmatpush1.bf16.xpose.msra.mxu0 0
        %2450 = vmatprep.subr.bf16.mxu0 0
        %2451 = vmatpush1.bf16.xpose.msra.mxu0 0
        %2452 = vmatprep.subr.bf16.mxu0 0
        %2453 = vmatpush1.bf16.xpose.msra.mxu0 0
        %2454 = vmatprep.subr.bf16.mxu0 0
        %2455 = vmatpush1.bf16.xpose.msra.mxu0 0
        %2456 = vmatprep.subr.bf16.mxu0 0
        %2457 = vmatpush1.bf16.xpose.msra.mxu0 0
        %2458 = vmatprep.subr.bf16.mxu0 0
        %2459 = vmatpush1.bf16.xpose.msra.mxu0 0
        %2460 = vmatprep.subr.bf16.mxu0 0
        %2461 = vmatpush1.bf16.xpose.msra.mxu0 0
        %2462 = vmatprep.subr.bf16.mxu0 0
        %2463 = vmatpush1.bf16.xpose.msra.mxu0 0
        %2464 = vmatprep.subr.bf16.mxu0 0
        %2465 = vmatpush1.bf16.xpose.msra.mxu0 0
        %2466 = vmatprep.mubr.bf16.mxu0 0
        %2467 = vmatmul.mubr.bf16.gmra.mrb[0].mxu0 %v2429
        %v2468 = vpop.f32.mrb[0].mxu0
        %v2469 = vadd.f32 %v2063, %v2468
        %v2470 = vpop.f32.mrb[0].mxu0
        %v2471 = vpop.f32.mrb[0].mxu0
        %v2472 = vpop.f32.mrb[0].mxu0
        %2473 = vdwg.mxu0
        %v2474 = vsel %vm590, %v2469, -inf
        %2475 = vmax.xlane.f32.xlu0 %v2474
        %v2476 = vpop.xlane.xlu0 %2475
        %v2477 = vsub.f32 %v2469, %v2476
        %v2478 = vmul.f32 %v2477, 1.442695
        %v2479 = vpow.pop %v2478
        %v2480 = vsel %vm590, %v2479, 0.0
        %2481 = vadd.xlane.f32.xlu0 %v2480
        %v2482 = vpop.xlane.xlu0 %2481
        %v2483 = vrcp.pop %v2482
        %v2484 = vmul.f32 %v2479, %v2483
        %v2485 = vpack.c.bf16 %v2484, %v2484
        %2486 = vrot.lane.b32.xlu0 %v2205, 96
        %v2487 = vpop.permute.xlu0 %2486
        %v2489 = vsel %vm590, %v2485, 0
        %v2492 = vsel %vm606, %v2487, 0
        %2494 = vmatprep.subr.bf16.mxu0 0
        %2495 = vmatpush1.bf16.msra.mxu0 %v2492
        %2496 = vmatprep.subr.bf16.mxu0 0
        %2497 = vmatpush1.bf16.msra.mxu0 0
        %2498 = vmatprep.subr.bf16.mxu0 0
        %2499 = vmatpush1.bf16.msra.mxu0 0
        %2500 = vmatprep.subr.bf16.mxu0 0
        %2501 = vmatpush1.bf16.msra.mxu0 0
        %2502 = vmatprep.subr.bf16.mxu0 0
        %2503 = vmatpush1.bf16.msra.mxu0 0
        %2504 = vmatprep.subr.bf16.mxu0 0
        %2505 = vmatpush1.bf16.msra.mxu0 0
        %2506 = vmatprep.subr.bf16.mxu0 0
        %2507 = vmatpush1.bf16.msra.mxu0 0
        %2508 = vmatprep.subr.bf16.mxu0 0
        %2509 = vmatpush1.bf16.msra.mxu0 0
        %2510 = vmatprep.subr.bf16.mxu0 0
        %2511 = vmatpush1.bf16.msra.mxu0 0
        %2512 = vmatprep.subr.bf16.mxu0 0
        %2513 = vmatpush1.bf16.msra.mxu0 0
        %2514 = vmatprep.subr.bf16.mxu0 0
        %2515 = vmatpush1.bf16.msra.mxu0 0
        %2516 = vmatprep.subr.bf16.mxu0 0
        %2517 = vmatpush1.bf16.msra.mxu0 0
        %2518 = vmatprep.subr.bf16.mxu0 0
        %2519 = vmatpush1.bf16.msra.mxu0 0
        %2520 = vmatprep.subr.bf16.mxu0 0
        %2521 = vmatpush1.bf16.msra.mxu0 0
        %2522 = vmatprep.subr.bf16.mxu0 0
        %2523 = vmatpush1.bf16.msra.mxu0 0
        %2524 = vmatprep.subr.bf16.mxu0 0
        %2525 = vmatpush1.bf16.msra.mxu0 0
        %2526 = vmatprep.mubr.bf16.mxu0 0
        %2527 = vmatmul.mubr.bf16.gmra.mrb[0].mxu0 %v2489
        %v2528 = vpop.f32.mrb[0].mxu0
        %v2529 = vadd.f32 0.0, %v2528
        %v2530 = vpop.f32.mrb[0].mxu0
        %v2531 = vpop.f32.mrb[0].mxu0
        %v2532 = vpop.f32.mrb[0].mxu0
        %2533 = vdwg.mxu0
        %2534 = vrot.lane.b32.xlu0 %v2204, 80
        %v2535 = vpop.permute.xlu0 %2534
        %2536 = vrot.lane.b32.xlu0 %v2204, 16
        %v2537 = vpop.permute.xlu0 %2536
        %v2539 = vsel %vm543, %v2535, 0
        %v2542 = vsel %vm543, %v2537, 0
        %2544 = vmatprep.subr.bf16.mxu0 0
        %2545 = vmatpush1.bf16.xpose.msra.mxu0 %v2542
        %2546 = vmatprep.subr.bf16.mxu0 0
        %2547 = vmatpush1.bf16.xpose.msra.mxu0 0
        %2548 = vmatprep.subr.bf16.mxu0 0
        %2549 = vmatpush1.bf16.xpose.msra.mxu0 0
        %2550 = vmatprep.subr.bf16.mxu0 0
        %2551 = vmatpush1.bf16.xpose.msra.mxu0 0
        %2552 = vmatprep.subr.bf16.mxu0 0
        %2553 = vmatpush1.bf16.xpose.msra.mxu0 0
        %2554 = vmatprep.subr.bf16.mxu0 0
        %2555 = vmatpush1.bf16.xpose.msra.mxu0 0
        %2556 = vmatprep.subr.bf16.mxu0 0
        %2557 = vmatpush1.bf16.xpose.msra.mxu0 0
        %2558 = vmatprep.subr.bf16.mxu0 0
        %2559 = vmatpush1.bf16.xpose.msra.mxu0 0
        %2560 = vmatprep.subr.bf16.mxu0 0
        %2561 = vmatpush1.bf16.xpose.msra.mxu0 0
        %2562 = vmatprep.subr.bf16.mxu0 0
        %2563 = vmatpush1.bf16.xpose.msra.mxu0 0
        %2564 = vmatprep.subr.bf16.mxu0 0
        %2565 = vmatpush1.bf16.xpose.msra.mxu0 0
        %2566 = vmatprep.subr.bf16.mxu0 0
        %2567 = vmatpush1.bf16.xpose.msra.mxu0 0
        %2568 = vmatprep.subr.bf16.mxu0 0
        %2569 = vmatpush1.bf16.xpose.msra.mxu0 0
        %2570 = vmatprep.subr.bf16.mxu0 0
        %2571 = vmatpush1.bf16.xpose.msra.mxu0 0
        %2572 = vmatprep.subr.bf16.mxu0 0
        %2573 = vmatpush1.bf16.xpose.msra.mxu0 0
        %2574 = vmatprep.subr.bf16.mxu0 0
        %2575 = vmatpush1.bf16.xpose.msra.mxu0 0
        %2576 = vmatprep.mubr.bf16.mxu0 0
        %2577 = vmatmul.mubr.bf16.gmra.mrb[0].mxu0 %v2539
        %v2578 = vpop.f32.mrb[0].mxu0
        %v2579 = vadd.f32 %v2064, %v2578
        %v2580 = vpop.f32.mrb[0].mxu0
        %v2581 = vpop.f32.mrb[0].mxu0
        %v2582 = vpop.f32.mrb[0].mxu0
        %2583 = vdwg.mxu0
        %v2584 = vsel %vm590, %v2579, -inf
        %2585 = vmax.xlane.f32.xlu0 %v2584
        %v2586 = vpop.xlane.xlu0 %2585
        %v2587 = vsub.f32 %v2579, %v2586
        %v2588 = vmul.f32 %v2587, 1.442695
        %v2589 = vpow.pop %v2588
        %v2590 = vsel %vm590, %v2589, 0.0
        %2591 = vadd.xlane.f32.xlu0 %v2590
        %v2592 = vpop.xlane.xlu0 %2591
        %v2593 = vrcp.pop %v2592
        %v2594 = vmul.f32 %v2589, %v2593
        %v2595 = vpack.c.bf16 %v2594, %v2594
        %2596 = vrot.lane.b32.xlu0 %v2205, 80
        %v2597 = vpop.permute.xlu0 %2596
        %v2599 = vsel %vm590, %v2595, 0
        %v2602 = vsel %vm606, %v2597, 0
        %2604 = vmatprep.subr.bf16.mxu0 0
        %2605 = vmatpush1.bf16.msra.mxu0 %v2602
        %2606 = vmatprep.subr.bf16.mxu0 0
        %2607 = vmatpush1.bf16.msra.mxu0 0
        %2608 = vmatprep.subr.bf16.mxu0 0
        %2609 = vmatpush1.bf16.msra.mxu0 0
        %2610 = vmatprep.subr.bf16.mxu0 0
        %2611 = vmatpush1.bf16.msra.mxu0 0
        %2612 = vmatprep.subr.bf16.mxu0 0
        %2613 = vmatpush1.bf16.msra.mxu0 0
        %2614 = vmatprep.subr.bf16.mxu0 0
        %2615 = vmatpush1.bf16.msra.mxu0 0
        %2616 = vmatprep.subr.bf16.mxu0 0
        %2617 = vmatpush1.bf16.msra.mxu0 0
        %2618 = vmatprep.subr.bf16.mxu0 0
        %2619 = vmatpush1.bf16.msra.mxu0 0
        %2620 = vmatprep.subr.bf16.mxu0 0
        %2621 = vmatpush1.bf16.msra.mxu0 0
        %2622 = vmatprep.subr.bf16.mxu0 0
        %2623 = vmatpush1.bf16.msra.mxu0 0
        %2624 = vmatprep.subr.bf16.mxu0 0
        %2625 = vmatpush1.bf16.msra.mxu0 0
        %2626 = vmatprep.subr.bf16.mxu0 0
        %2627 = vmatpush1.bf16.msra.mxu0 0
        %2628 = vmatprep.subr.bf16.mxu0 0
        %2629 = vmatpush1.bf16.msra.mxu0 0
        %2630 = vmatprep.subr.bf16.mxu0 0
        %2631 = vmatpush1.bf16.msra.mxu0 0
        %2632 = vmatprep.subr.bf16.mxu0 0
        %2633 = vmatpush1.bf16.msra.mxu0 0
        %2634 = vmatprep.subr.bf16.mxu0 0
        %2635 = vmatpush1.bf16.msra.mxu0 0
        %2636 = vmatprep.mubr.bf16.mxu0 0
        %2637 = vmatmul.mubr.bf16.gmra.mrb[0].mxu0 %v2599
        %v2638 = vpop.f32.mrb[0].mxu0
        %v2639 = vadd.f32 0.0, %v2638
        %v2640 = vpop.f32.mrb[0].mxu0
        %v2641 = vpop.f32.mrb[0].mxu0
        %v2642 = vpop.f32.mrb[0].mxu0
        %2643 = vdwg.mxu0
        %2645 = vrot.lane.b32.xlu0 %v2419, 16
        %v2646 = vpop.permute.xlu0 %2645
        %2649 = vrot.lane.b32.xlu0 %v2529, 32
        %v2650 = vpop.permute.xlu0 %2649
        %2653 = vrot.lane.b32.xlu0 %v2639, 48
        %v2654 = vpop.permute.xlu0 %2653
        %v2656 = vsel %vm543, %v2308, %v2646
        %v2657 = vsel %vm994, %v2656, %v2650
        %v2658 = vsel %vm996, %v2657, %v2654
        %v2659 = vpack.c.bf16 %v2658, %v2658
        %2660 = vrot.lane.b32.xlu0 %v2145, 64
        %v2661 = vpop.permute.xlu0 %2660
        %2662 = vrot.lane.b32.xlu0 %v2147, 64
        %v2663 = vpop.permute.xlu0 %2662
        %2664 = vrot.lane.b32.xlu0 %v2149, 64
        %v2665 = vpop.permute.xlu0 %2664
        %2666 = vrot.lane.b32.xlu0 %v2151, 64
        %v2667 = vpop.permute.xlu0 %2666
        %v2673 = vsel %vm439, %v2659, 0
        %2675 = vmatprep.subr.bf16.mxu0 0
        %2676 = vmatpush1.bf16.msra.mxu0 %v2661
        %2677 = vmatprep.subr.bf16.mxu0 0
        %2678 = vmatpush1.bf16.msra.mxu0 %v2663
        %2679 = vmatprep.subr.bf16.mxu0 0
        %2680 = vmatpush1.bf16.msra.mxu0 %v2665
        %2681 = vmatprep.subr.bf16.mxu0 0
        %2682 = vmatpush1.bf16.msra.mxu0 %v2667
        %2683 = vmatprep.subr.bf16.mxu0 0
        %2684 = vmatpush1.bf16.msra.mxu0 0
        %2685 = vmatprep.subr.bf16.mxu0 0
        %2686 = vmatpush1.bf16.msra.mxu0 0
        %2687 = vmatprep.subr.bf16.mxu0 0
        %2688 = vmatpush1.bf16.msra.mxu0 0
        %2689 = vmatprep.subr.bf16.mxu0 0
        %2690 = vmatpush1.bf16.msra.mxu0 0
        %2691 = vmatprep.subr.bf16.mxu0 0
        %2692 = vmatpush1.bf16.msra.mxu0 0
        %2693 = vmatprep.subr.bf16.mxu0 0
        %2694 = vmatpush1.bf16.msra.mxu0 0
        %2695 = vmatprep.subr.bf16.mxu0 0
        %2696 = vmatpush1.bf16.msra.mxu0 0
        %2697 = vmatprep.subr.bf16.mxu0 0
        %2698 = vmatpush1.bf16.msra.mxu0 0
        %2699 = vmatprep.subr.bf16.mxu0 0
        %2700 = vmatpush1.bf16.msra.mxu0 0
        %2701 = vmatprep.subr.bf16.mxu0 0
        %2702 = vmatpush1.bf16.msra.mxu0 0
        %2703 = vmatprep.subr.bf16.mxu0 0
        %2704 = vmatpush1.bf16.msra.mxu0 0
        %2705 = vmatprep.subr.bf16.mxu0 0
        %2706 = vmatpush1.bf16.msra.mxu0 0
        %2707 = vmatprep.mubr.bf16.mxu0 0
        %2708 = vmatmul.mubr.bf16.gmra.mrb[0].mxu0 %v2673
        %v2709 = vpop.f32.mrb[0].mxu0
        %v2710 = vadd.f32 0.0, %v2709
        %v2711 = vpop.f32.mrb[0].mxu0
        %v2712 = vpop.f32.mrb[0].mxu0
        %v2713 = vpop.f32.mrb[0].mxu0
        %2714 = vdwg.mxu0
        %v2715 = vadd.f32 %v2060, %v2710
        %v2716 = vmul.f32 %v2715, %v2715
        %v2717 = vsel %vm439, %v2716, 0.0
        %2718 = vadd.xlane.f32.xlu0 %v2717
        %v2719 = vpop.xlane.xlu0 %2718
        %v2720 = vmul.f32 %v2719, %v443
        %v2721 = vadd.f32 %v2720, 1e-06
        %v2722 = vrsqrt.pop %v2721
        %v2723 = vmul.f32 %v2715, %v2722
        %v2724 = vlaneseq
        %v2725 = vshrl.u32 %v2724, 7
        %v2726 = vsub.s32 1, %v2725
        %v2727 = vrot.slane %v2065, %v2726
        %v2728 = vmul.f32 %v2723, %v2727
        %v2729 = vpack.c.bf16 %v2728, %v2728
        %v2738 = vunpack.c.l.b16 %v2067
        %v2739 = vunpack.c.l.b16 %v2070
        %v2740 = vunpack.c.l.b16 %v2073
        %v2741 = vunpack.c.l.b16 %v2076
        %v2742 = vunpack.c.l.b16 %v2079
        %v2743 = vunpack.c.l.b16 %v2082
        %v2744 = vunpack.c.l.b16 %v2085
        %v2745 = vunpack.c.l.b16 %v2088
        %v2746 = vpack.c.b16 %v2739, %v2738
        %v2747 = vpack.c.b16 %v2741, %v2740
        %v2748 = vpack.c.b16 %v2743, %v2742
        %v2749 = vpack.c.b16 %v2745, %v2744
        %v2755 = vsel %vm439, %v2729, 0
        %2757 = vmatprep.subr.bf16.mxu0 0
        %2758 = vmatpush1.bf16.msra.mxu0 %v2746
        %2759 = vmatprep.subr.bf16.mxu0 0
        %2760 = vmatpush1.bf16.msra.mxu0 %v2747
        %2761 = vmatprep.subr.bf16.mxu0 0
        %2762 = vmatpush1.bf16.msra.mxu0 %v2748
        %2763 = vmatprep.subr.bf16.mxu0 0
        %2764 = vmatpush1.bf16.msra.mxu0 %v2749
        %2765 = vmatprep.subr.bf16.mxu0 0
        %2766 = vmatpush1.bf16.msra.mxu0 0
        %2767 = vmatprep.subr.bf16.mxu0 0
        %2768 = vmatpush1.bf16.msra.mxu0 0
        %2769 = vmatprep.subr.bf16.mxu0 0
        %2770 = vmatpush1.bf16.msra.mxu0 0
        %2771 = vmatprep.subr.bf16.mxu0 0
        %2772 = vmatpush1.bf16.msra.mxu0 0
        %2773 = vmatprep.subr.bf16.mxu0 0
        %2774 = vmatpush1.bf16.msra.mxu0 0
        %2775 = vmatprep.subr.bf16.mxu0 0
        %2776 = vmatpush1.bf16.msra.mxu0 0
        %2777 = vmatprep.subr.bf16.mxu0 0
        %2778 = vmatpush1.bf16.msra.mxu0 0
        %2779 = vmatprep.subr.bf16.mxu0 0
        %2780 = vmatpush1.bf16.msra.mxu0 0
        %2781 = vmatprep.subr.bf16.mxu0 0
        %2782 = vmatpush1.bf16.msra.mxu0 0
        %2783 = vmatprep.subr.bf16.mxu0 0
        %2784 = vmatpush1.bf16.msra.mxu0 0
        %2785 = vmatprep.subr.bf16.mxu0 0
        %2786 = vmatpush1.bf16.msra.mxu0 0
        %2787 = vmatprep.subr.bf16.mxu0 0
        %2788 = vmatpush1.bf16.msra.mxu0 0
        %2789 = vmatprep.mubr.bf16.mxu0 0
        %2790 = vmatmul.mubr.bf16.gmra.mrb[0].mxu0 %v2755
        %v2791 = vpop.f32.mrb[0].mxu0
        %v2792 = vadd.f32 0.0, %v2791
        %v2793 = vpop.f32.mrb[0].mxu0
        %v2794 = vpop.f32.mrb[0].mxu0
        %v2795 = vpop.f32.mrb[0].mxu0
        %2796 = vdwg.mxu0
        %v2797 = vunpack.c.h.b16 %v2067
        %v2798 = vunpack.c.h.b16 %v2070
        %v2799 = vunpack.c.h.b16 %v2073
        %v2800 = vunpack.c.h.b16 %v2076
        %v2801 = vunpack.c.h.b16 %v2079
        %v2802 = vunpack.c.h.b16 %v2082
        %v2803 = vunpack.c.h.b16 %v2085
        %v2804 = vunpack.c.h.b16 %v2088
        %v2805 = vpack.c.b16 %v2798, %v2797
        %v2806 = vpack.c.b16 %v2800, %v2799
        %v2807 = vpack.c.b16 %v2802, %v2801
        %v2808 = vpack.c.b16 %v2804, %v2803
        %2809 = vrot.lane.b32.xlu0 %v2746, 64
        %v2810 = vpop.permute.xlu0 %2809
        %2811 = vrot.lane.b32.xlu0 %v2805, 64
        %v2812 = vpop.permute.xlu0 %2811
        %2813 = vrot.lane.b32.xlu0 %v2747, 64
        %v2814 = vpop.permute.xlu0 %2813
        %2815 = vrot.lane.b32.xlu0 %v2806, 64
        %v2816 = vpop.permute.xlu0 %2815
        %2817 = vrot.lane.b32.xlu0 %v2748, 64
        %v2818 = vpop.permute.xlu0 %2817
        %2819 = vrot.lane.b32.xlu0 %v2807, 64
        %v2820 = vpop.permute.xlu0 %2819
        %2821 = vrot.lane.b32.xlu0 %v2749, 64
        %v2822 = vpop.permute.xlu0 %2821
        %2823 = vrot.lane.b32.xlu0 %v2808, 64
        %v2824 = vpop.permute.xlu0 %2823
        %vm2825 = vcmask 523264
        %v2826 = vsel %vm2825, %v2810, %v2812
        %v2827 = vsel %vm2825, %v2814, %v2816
        %v2828 = vsel %vm2825, %v2818, %v2820
        %v2829 = vsel %vm2825, %v2822, %v2824
        %v2835 = vsel %vm439, %v2059, 0
        %2837 = vmatprep.subr.bf16.mxu0 0
        %2838 = vmatpush1.bf16.msra.mxu0 %v2826
        %2839 = vmatprep.subr.bf16.mxu0 0
        %2840 = vmatpush1.bf16.msra.mxu0 %v2827
        %2841 = vmatprep.subr.bf16.mxu0 0
        %2842 = vmatpush1.bf16.msra.mxu0 %v2828
        %2843 = vmatprep.subr.bf16.mxu0 0
        %2844 = vmatpush1.bf16.msra.mxu0 %v2829
        %2845 = vmatprep.subr.bf16.mxu0 0
        %2846 = vmatpush1.bf16.msra.mxu0 0
        %2847 = vmatprep.subr.bf16.mxu0 0
        %2848 = vmatpush1.bf16.msra.mxu0 0
        %2849 = vmatprep.subr.bf16.mxu0 0
        %2850 = vmatpush1.bf16.msra.mxu0 0
        %2851 = vmatprep.subr.bf16.mxu0 0
        %2852 = vmatpush1.bf16.msra.mxu0 0
        %2853 = vmatprep.subr.bf16.mxu0 0
        %2854 = vmatpush1.bf16.msra.mxu0 0
        %2855 = vmatprep.subr.bf16.mxu0 0
        %2856 = vmatpush1.bf16.msra.mxu0 0
        %2857 = vmatprep.subr.bf16.mxu0 0
        %2858 = vmatpush1.bf16.msra.mxu0 0
        %2859 = vmatprep.subr.bf16.mxu0 0
        %2860 = vmatpush1.bf16.msra.mxu0 0
        %2861 = vmatprep.subr.bf16.mxu0 0
        %2862 = vmatpush1.bf16.msra.mxu0 0
        %2863 = vmatprep.subr.bf16.mxu0 0
        %2864 = vmatpush1.bf16.msra.mxu0 0
        %2865 = vmatprep.subr.bf16.mxu0 0
        %2866 = vmatpush1.bf16.msra.mxu0 0
        %2867 = vmatprep.subr.bf16.mxu0 0
        %2868 = vmatpush1.bf16.msra.mxu0 0
        %2869 = vmatprep.mubr.bf16.mxu0 0
        %2870 = vmatmul.mubr.bf16.gmra.mrb[0].mxu0 %v2835
        %v2871 = vpop.f32.mrb[0].mxu0
        %v2872 = vadd.f32 0.0, %v2871
        %v2873 = vpop.f32.mrb[0].mxu0
        %v2874 = vpop.f32.mrb[0].mxu0
        %v2875 = vpop.f32.mrb[0].mxu0
        %2876 = vdwg.mxu0
        %v2877 = vpack.c.bf16 %v2792, %v2792
        %v2878 = vpack.c.bf16 %v2872, %v2872
        %v2880 = vsel %vm543, %v2877, 0
        %v2883 = vsel %vm543, %v2878, 0
        %2885 = vmatprep.subr.bf16.mxu0 0
        %2886 = vmatpush1.bf16.xpose.msra.mxu0 %v2883
        %2887 = vmatprep.subr.bf16.mxu0 0
        %2888 = vmatpush1.bf16.xpose.msra.mxu0 0
        %2889 = vmatprep.subr.bf16.mxu0 0
        %2890 = vmatpush1.bf16.xpose.msra.mxu0 0
        %2891 = vmatprep.subr.bf16.mxu0 0
        %2892 = vmatpush1.bf16.xpose.msra.mxu0 0
        %2893 = vmatprep.subr.bf16.mxu0 0
        %2894 = vmatpush1.bf16.xpose.msra.mxu0 0
        %2895 = vmatprep.subr.bf16.mxu0 0
        %2896 = vmatpush1.bf16.xpose.msra.mxu0 0
        %2897 = vmatprep.subr.bf16.mxu0 0
        %2898 = vmatpush1.bf16.xpose.msra.mxu0 0
        %2899 = vmatprep.subr.bf16.mxu0 0
        %2900 = vmatpush1.bf16.xpose.msra.mxu0 0
        %2901 = vmatprep.subr.bf16.mxu0 0
        %2902 = vmatpush1.bf16.xpose.msra.mxu0 0
        %2903 = vmatprep.subr.bf16.mxu0 0
        %2904 = vmatpush1.bf16.xpose.msra.mxu0 0
        %2905 = vmatprep.subr.bf16.mxu0 0
        %2906 = vmatpush1.bf16.xpose.msra.mxu0 0
        %2907 = vmatprep.subr.bf16.mxu0 0
        %2908 = vmatpush1.bf16.xpose.msra.mxu0 0
        %2909 = vmatprep.subr.bf16.mxu0 0
        %2910 = vmatpush1.bf16.xpose.msra.mxu0 0
        %2911 = vmatprep.subr.bf16.mxu0 0
        %2912 = vmatpush1.bf16.xpose.msra.mxu0 0
        %2913 = vmatprep.subr.bf16.mxu0 0
        %2914 = vmatpush1.bf16.xpose.msra.mxu0 0
        %2915 = vmatprep.subr.bf16.mxu0 0
        %2916 = vmatpush1.bf16.xpose.msra.mxu0 0
        %2917 = vmatprep.mubr.bf16.mxu0 0
        %2918 = vmatmul.mubr.bf16.gmra.mrb[0].mxu0 %v2880
        %v2919 = vpop.f32.mrb[0].mxu0
        %v2920 = vadd.f32 0.0, %v2919
        %v2921 = vpop.f32.mrb[0].mxu0
        %v2922 = vpop.f32.mrb[0].mxu0
        %v2923 = vpop.f32.mrb[0].mxu0
        %2924 = vdwg.mxu0
        %v2925 = vsel %vm590, %v2920, -inf
        %2926 = vmax.xlane.f32.xlu0 %v2925
        %v2927 = vpop.xlane.xlu0 %2926
        %v2928 = vsub.f32 %v2920, %v2927
        %v2929 = vmul.f32 %v2928, 1.442695
        %v2930 = vpow.pop %v2929
        %v2931 = vsel %vm590, %v2930, 0.0
        %2932 = vadd.xlane.f32.xlu0 %v2931
        %v2933 = vpop.xlane.xlu0 %2932
        %v2934 = vrcp.pop %v2933
        %v2935 = vmul.f32 %v2930, %v2934
        %v2936 = vpack.c.bf16 %v2935, %v2935
        %2938 = vrot.lane.b32.xlu0 %v2878, 64
        %v2939 = vpop.permute.xlu0 %2938
        %v2941 = vsel %vm590, %v2936, 0
        %v2944 = vsel %vm606, %v2939, 0
        %2946 = vmatprep.subr.bf16.mxu0 0
        %2947 = vmatpush1.bf16.msra.mxu0 %v2944
        %2948 = vmatprep.subr.bf16.mxu0 0
        %2949 = vmatpush1.bf16.msra.mxu0 0
        %2950 = vmatprep.subr.bf16.mxu0 0
        %2951 = vmatpush1.bf16.msra.mxu0 0
        %2952 = vmatprep.subr.bf16.mxu0 0
        %2953 = vmatpush1.bf16.msra.mxu0 0
        %2954 = vmatprep.subr.bf16.mxu0 0
        %2955 = vmatpush1.bf16.msra.mxu0 0
        %2956 = vmatprep.subr.bf16.mxu0 0
        %2957 = vmatpush1.bf16.msra.mxu0 0
        %2958 = vmatprep.subr.bf16.mxu0 0
        %2959 = vmatpush1.bf16.msra.mxu0 0
        %2960 = vmatprep.subr.bf16.mxu0 0
        %2961 = vmatpush1.bf16.msra.mxu0 0
        %2962 = vmatprep.subr.bf16.mxu0 0
        %2963 = vmatpush1.bf16.msra.mxu0 0
        %2964 = vmatprep.subr.bf16.mxu0 0
        %2965 = vmatpush1.bf16.msra.mxu0 0
        %2966 = vmatprep.subr.bf16.mxu0 0
        %2967 = vmatpush1.bf16.msra.mxu0 0
        %2968 = vmatprep.subr.bf16.mxu0 0
        %2969 = vmatpush1.bf16.msra.mxu0 0
        %2970 = vmatprep.subr.bf16.mxu0 0
        %2971 = vmatpush1.bf16.msra.mxu0 0
        %2972 = vmatprep.subr.bf16.mxu0 0
        %2973 = vmatpush1.bf16.msra.mxu0 0
        %2974 = vmatprep.subr.bf16.mxu0 0
        %2975 = vmatpush1.bf16.msra.mxu0 0
        %2976 = vmatprep.subr.bf16.mxu0 0
        %2977 = vmatpush1.bf16.msra.mxu0 0
        %2978 = vmatprep.mubr.bf16.mxu0 0
        %2979 = vmatmul.mubr.bf16.gmra.mrb[0].mxu0 %v2941
        %v2980 = vpop.f32.mrb[0].mxu0
        %v2981 = vadd.f32 0.0, %v2980
        %v2982 = vpop.f32.mrb[0].mxu0
        %v2983 = vpop.f32.mrb[0].mxu0
        %v2984 = vpop.f32.mrb[0].mxu0
        %2985 = vdwg.mxu0
        %2987 = vrot.lane.b32.xlu0 %v2877, 112
        %v2988 = vpop.permute.xlu0 %2987
        %2989 = vrot.lane.b32.xlu0 %v2878, 112
        %v2990 = vpop.permute.xlu0 %2989
        %v2992 = vsel %vm543, %v2988, 0
        %v2995 = vsel %vm543, %v2990, 0
        %2997 = vmatprep.subr.bf16.mxu0 0
        %2998 = vmatpush1.bf16.xpose.msra.mxu0 %v2995
        %2999 = vmatprep.subr.bf16.mxu0 0
        %3000 = vmatpush1.bf16.xpose.msra.mxu0 0
        %3001 = vmatprep.subr.bf16.mxu0 0
        %3002 = vmatpush1.bf16.xpose.msra.mxu0 0
        %3003 = vmatprep.subr.bf16.mxu0 0
        %3004 = vmatpush1.bf16.xpose.msra.mxu0 0
        %3005 = vmatprep.subr.bf16.mxu0 0
        %3006 = vmatpush1.bf16.xpose.msra.mxu0 0
        %3007 = vmatprep.subr.bf16.mxu0 0
        %3008 = vmatpush1.bf16.xpose.msra.mxu0 0
        %3009 = vmatprep.subr.bf16.mxu0 0
        %3010 = vmatpush1.bf16.xpose.msra.mxu0 0
        %3011 = vmatprep.subr.bf16.mxu0 0
        %3012 = vmatpush1.bf16.xpose.msra.mxu0 0
        %3013 = vmatprep.subr.bf16.mxu0 0
        %3014 = vmatpush1.bf16.xpose.msra.mxu0 0
        %3015 = vmatprep.subr.bf16.mxu0 0
        %3016 = vmatpush1.bf16.xpose.msra.mxu0 0
        %3017 = vmatprep.subr.bf16.mxu0 0
        %3018 = vmatpush1.bf16.xpose.msra.mxu0 0
        %3019 = vmatprep.subr.bf16.mxu0 0
        %3020 = vmatpush1.bf16.xpose.msra.mxu0 0
        %3021 = vmatprep.subr.bf16.mxu0 0
        %3022 = vmatpush1.bf16.xpose.msra.mxu0 0
        %3023 = vmatprep.subr.bf16.mxu0 0
        %3024 = vmatpush1.bf16.xpose.msra.mxu0 0
        %3025 = vmatprep.subr.bf16.mxu0 0
        %3026 = vmatpush1.bf16.xpose.msra.mxu0 0
        %3027 = vmatprep.subr.bf16.mxu0 0
        %3028 = vmatpush1.bf16.xpose.msra.mxu0 0
        %3029 = vmatprep.mubr.bf16.mxu0 0
        %3030 = vmatmul.mubr.bf16.gmra.mrb[0].mxu0 %v2992
        %v3031 = vpop.f32.mrb[0].mxu0
        %v3032 = vadd.f32 0.0, %v3031
        %v3033 = vpop.f32.mrb[0].mxu0
        %v3034 = vpop.f32.mrb[0].mxu0
        %v3035 = vpop.f32.mrb[0].mxu0
        %3036 = vdwg.mxu0
        %v3037 = vsel %vm590, %v3032, -inf
        %3038 = vmax.xlane.f32.xlu0 %v3037
        %v3039 = vpop.xlane.xlu0 %3038
        %v3040 = vsub.f32 %v3032, %v3039
        %v3041 = vmul.f32 %v3040, 1.442695
        %v3042 = vpow.pop %v3041
        %v3043 = vsel %vm590, %v3042, 0.0
        %3044 = vadd.xlane.f32.xlu0 %v3043
        %v3045 = vpop.xlane.xlu0 %3044
        %v3046 = vrcp.pop %v3045
        %v3047 = vmul.f32 %v3042, %v3046
        %v3048 = vpack.c.bf16 %v3047, %v3047
        %3049 = vrot.lane.b32.xlu0 %v2878, 48
        %v3050 = vpop.permute.xlu0 %3049
        %v3052 = vsel %vm590, %v3048, 0
        %v3055 = vsel %vm606, %v3050, 0
        %3057 = vmatprep.subr.bf16.mxu0 0
        %3058 = vmatpush1.bf16.msra.mxu0 %v3055
        %3059 = vmatprep.subr.bf16.mxu0 0
        %3060 = vmatpush1.bf16.msra.mxu0 0
        %3061 = vmatprep.subr.bf16.mxu0 0
        %3062 = vmatpush1.bf16.msra.mxu0 0
        %3063 = vmatprep.subr.bf16.mxu0 0
        %3064 = vmatpush1.bf16.msra.mxu0 0
        %3065 = vmatprep.subr.bf16.mxu0 0
        %3066 = vmatpush1.bf16.msra.mxu0 0
        %3067 = vmatprep.subr.bf16.mxu0 0
        %3068 = vmatpush1.bf16.msra.mxu0 0
        %3069 = vmatprep.subr.bf16.mxu0 0
        %3070 = vmatpush1.bf16.msra.mxu0 0
        %3071 = vmatprep.subr.bf16.mxu0 0
        %3072 = vmatpush1.bf16.msra.mxu0 0
        %3073 = vmatprep.subr.bf16.mxu0 0
        %3074 = vmatpush1.bf16.msra.mxu0 0
        %3075 = vmatprep.subr.bf16.mxu0 0
        %3076 = vmatpush1.bf16.msra.mxu0 0
        %3077 = vmatprep.subr.bf16.mxu0 0
        %3078 = vmatpush1.bf16.msra.mxu0 0
        %3079 = vmatprep.subr.bf16.mxu0 0
        %3080 = vmatpush1.bf16.msra.mxu0 0
        %3081 = vmatprep.subr.bf16.mxu0 0
        %3082 = vmatpush1.bf16.msra.mxu0 0
        %3083 = vmatprep.subr.bf16.mxu0 0
        %3084 = vmatpush1.bf16.msra.mxu0 0
        %3085 = vmatprep.subr.bf16.mxu0 0
        %3086 = vmatpush1.bf16.msra.mxu0 0
        %3087 = vmatprep.subr.bf16.mxu0 0
        %3088 = vmatpush1.bf16.msra.mxu0 0
        %3089 = vmatprep.mubr.bf16.mxu0 0
        %3090 = vmatmul.mubr.bf16.gmra.mrb[0].mxu0 %v3052
        %v3091 = vpop.f32.mrb[0].mxu0
        %v3092 = vadd.f32 0.0, %v3091
        %v3093 = vpop.f32.mrb[0].mxu0
        %v3094 = vpop.f32.mrb[0].mxu0
        %v3095 = vpop.f32.mrb[0].mxu0
        %3096 = vdwg.mxu0
        %3097 = vrot.lane.b32.xlu0 %v2877, 96
        %v3098 = vpop.permute.xlu0 %3097
        %3099 = vrot.lane.b32.xlu0 %v2878, 96
        %v3100 = vpop.permute.xlu0 %3099
        %v3102 = vsel %vm543, %v3098, 0
        %v3105 = vsel %vm543, %v3100, 0
        %3107 = vmatprep.subr.bf16.mxu0 0
        %3108 = vmatpush1.bf16.xpose.msra.mxu0 %v3105
        %3109 = vmatprep.subr.bf16.mxu0 0
        %3110 = vmatpush1.bf16.xpose.msra.mxu0 0
        %3111 = vmatprep.subr.bf16.mxu0 0
        %3112 = vmatpush1.bf16.xpose.msra.mxu0 0
        %3113 = vmatprep.subr.bf16.mxu0 0
        %3114 = vmatpush1.bf16.xpose.msra.mxu0 0
        %3115 = vmatprep.subr.bf16.mxu0 0
        %3116 = vmatpush1.bf16.xpose.msra.mxu0 0
        %3117 = vmatprep.subr.bf16.mxu0 0
        %3118 = vmatpush1.bf16.xpose.msra.mxu0 0
        %3119 = vmatprep.subr.bf16.mxu0 0
        %3120 = vmatpush1.bf16.xpose.msra.mxu0 0
        %3121 = vmatprep.subr.bf16.mxu0 0
        %3122 = vmatpush1.bf16.xpose.msra.mxu0 0
        %3123 = vmatprep.subr.bf16.mxu0 0
        %3124 = vmatpush1.bf16.xpose.msra.mxu0 0
        %3125 = vmatprep.subr.bf16.mxu0 0
        %3126 = vmatpush1.bf16.xpose.msra.mxu0 0
        %3127 = vmatprep.subr.bf16.mxu0 0
        %3128 = vmatpush1.bf16.xpose.msra.mxu0 0
        %3129 = vmatprep.subr.bf16.mxu0 0
        %3130 = vmatpush1.bf16.xpose.msra.mxu0 0
        %3131 = vmatprep.subr.bf16.mxu0 0
        %3132 = vmatpush1.bf16.xpose.msra.mxu0 0
        %3133 = vmatprep.subr.bf16.mxu0 0
        %3134 = vmatpush1.bf16.xpose.msra.mxu0 0
        %3135 = vmatprep.subr.bf16.mxu0 0
        %3136 = vmatpush1.bf16.xpose.msra.mxu0 0
        %3137 = vmatprep.subr.bf16.mxu0 0
        %3138 = vmatpush1.bf16.xpose.msra.mxu0 0
        %3139 = vmatprep.mubr.bf16.mxu0 0
        %3140 = vmatmul.mubr.bf16.gmra.mrb[0].mxu0 %v3102
        %v3141 = vpop.f32.mrb[0].mxu0
        %v3142 = vadd.f32 0.0, %v3141
        %v3143 = vpop.f32.mrb[0].mxu0
        %v3144 = vpop.f32.mrb[0].mxu0
        %v3145 = vpop.f32.mrb[0].mxu0
        %3146 = vdwg.mxu0
        %v3147 = vsel %vm590, %v3142, -inf
        %3148 = vmax.xlane.f32.xlu0 %v3147
        %v3149 = vpop.xlane.xlu0 %3148
        %v3150 = vsub.f32 %v3142, %v3149
        %v3151 = vmul.f32 %v3150, 1.442695
        %v3152 = vpow.pop %v3151
        %v3153 = vsel %vm590, %v3152, 0.0
        %3154 = vadd.xlane.f32.xlu0 %v3153
        %v3155 = vpop.xlane.xlu0 %3154
        %v3156 = vrcp.pop %v3155
        %v3157 = vmul.f32 %v3152, %v3156
        %v3158 = vpack.c.bf16 %v3157, %v3157
        %3159 = vrot.lane.b32.xlu0 %v2878, 32
        %v3160 = vpop.permute.xlu0 %3159
        %v3162 = vsel %vm590, %v3158, 0
        %v3165 = vsel %vm606, %v3160, 0
        %3167 = vmatprep.subr.bf16.mxu0 0
        %3168 = vmatpush1.bf16.msra.mxu0 %v3165
        %3169 = vmatprep.subr.bf16.mxu0 0
        %3170 = vmatpush1.bf16.msra.mxu0 0
        %3171 = vmatprep.subr.bf16.mxu0 0
        %3172 = vmatpush1.bf16.msra.mxu0 0
        %3173 = vmatprep.subr.bf16.mxu0 0
        %3174 = vmatpush1.bf16.msra.mxu0 0
        %3175 = vmatprep.subr.bf16.mxu0 0
        %3176 = vmatpush1.bf16.msra.mxu0 0
        %3177 = vmatprep.subr.bf16.mxu0 0
        %3178 = vmatpush1.bf16.msra.mxu0 0
        %3179 = vmatprep.subr.bf16.mxu0 0
        %3180 = vmatpush1.bf16.msra.mxu0 0
        %3181 = vmatprep.subr.bf16.mxu0 0
        %3182 = vmatpush1.bf16.msra.mxu0 0
        %3183 = vmatprep.subr.bf16.mxu0 0
        %3184 = vmatpush1.bf16.msra.mxu0 0
        %3185 = vmatprep.subr.bf16.mxu0 0
        %3186 = vmatpush1.bf16.msra.mxu0 0
        %3187 = vmatprep.subr.bf16.mxu0 0
        %3188 = vmatpush1.bf16.msra.mxu0 0
        %3189 = vmatprep.subr.bf16.mxu0 0
        %3190 = vmatpush1.bf16.msra.mxu0 0
        %3191 = vmatprep.subr.bf16.mxu0 0
        %3192 = vmatpush1.bf16.msra.mxu0 0
        %3193 = vmatprep.subr.bf16.mxu0 0
        %3194 = vmatpush1.bf16.msra.mxu0 0
        %3195 = vmatprep.subr.bf16.mxu0 0
        %3196 = vmatpush1.bf16.msra.mxu0 0
        %3197 = vmatprep.subr.bf16.mxu0 0
        %3198 = vmatpush1.bf16.msra.mxu0 0
        %3199 = vmatprep.mubr.bf16.mxu0 0
        %3200 = vmatmul.mubr.bf16.gmra.mrb[0].mxu0 %v3162
        %v3201 = vpop.f32.mrb[0].mxu0
        %v3202 = vadd.f32 0.0, %v3201
        %v3203 = vpop.f32.mrb[0].mxu0
        %v3204 = vpop.f32.mrb[0].mxu0
        %v3205 = vpop.f32.mrb[0].mxu0
        %3206 = vdwg.mxu0
        %3207 = vrot.lane.b32.xlu0 %v2877, 80
        %v3208 = vpop.permute.xlu0 %3207
        %3209 = vrot.lane.b32.xlu0 %v2878, 80
        %v3210 = vpop.permute.xlu0 %3209
        %v3212 = vsel %vm543, %v3208, 0
        %v3215 = vsel %vm543, %v3210, 0
        %3217 = vmatprep.subr.bf16.mxu0 0
        %3218 = vmatpush1.bf16.xpose.msra.mxu0 %v3215
        %3219 = vmatprep.subr.bf16.mxu0 0
        %3220 = vmatpush1.bf16.xpose.msra.mxu0 0
        %3221 = vmatprep.subr.bf16.mxu0 0
        %3222 = vmatpush1.bf16.xpose.msra.mxu0 0
        %3223 = vmatprep.subr.bf16.mxu0 0
        %3224 = vmatpush1.bf16.xpose.msra.mxu0 0
        %3225 = vmatprep.subr.bf16.mxu0 0
        %3226 = vmatpush1.bf16.xpose.msra.mxu0 0
        %3227 = vmatprep.subr.bf16.mxu0 0
        %3228 = vmatpush1.bf16.xpose.msra.mxu0 0
        %3229 = vmatprep.subr.bf16.mxu0 0
        %3230 = vmatpush1.bf16.xpose.msra.mxu0 0
        %3231 = vmatprep.subr.bf16.mxu0 0
        %3232 = vmatpush1.bf16.xpose.msra.mxu0 0
        %3233 = vmatprep.subr.bf16.mxu0 0
        %3234 = vmatpush1.bf16.xpose.msra.mxu0 0
        %3235 = vmatprep.subr.bf16.mxu0 0
        %3236 = vmatpush1.bf16.xpose.msra.mxu0 0
        %3237 = vmatprep.subr.bf16.mxu0 0
        %3238 = vmatpush1.bf16.xpose.msra.mxu0 0
        %3239 = vmatprep.subr.bf16.mxu0 0
        %3240 = vmatpush1.bf16.xpose.msra.mxu0 0
        %3241 = vmatprep.subr.bf16.mxu0 0
        %3242 = vmatpush1.bf16.xpose.msra.mxu0 0
        %3243 = vmatprep.subr.bf16.mxu0 0
        %3244 = vmatpush1.bf16.xpose.msra.mxu0 0
        %3245 = vmatprep.subr.bf16.mxu0 0
        %3246 = vmatpush1.bf16.xpose.msra.mxu0 0
        %3247 = vmatprep.subr.bf16.mxu0 0
        %3248 = vmatpush1.bf16.xpose.msra.mxu0 0
        %3249 = vmatprep.mubr.bf16.mxu0 0
        %3250 = vmatmul.mubr.bf16.gmra.mrb[0].mxu0 %v3212
        %v3251 = vpop.f32.mrb[0].mxu0
        %v3252 = vadd.f32 0.0, %v3251
        %v3253 = vpop.f32.mrb[0].mxu0
        %v3254 = vpop.f32.mrb[0].mxu0
        %v3255 = vpop.f32.mrb[0].mxu0
        %3256 = vdwg.mxu0
        %v3257 = vsel %vm590, %v3252, -inf
        %3258 = vmax.xlane.f32.xlu0 %v3257
        %v3259 = vpop.xlane.xlu0 %3258
        %v3260 = vsub.f32 %v3252, %v3259
        %v3261 = vmul.f32 %v3260, 1.442695
        %v3262 = vpow.pop %v3261
        %v3263 = vsel %vm590, %v3262, 0.0
        %3264 = vadd.xlane.f32.xlu0 %v3263
        %v3265 = vpop.xlane.xlu0 %3264
        %v3266 = vrcp.pop %v3265
        %v3267 = vmul.f32 %v3262, %v3266
        %v3268 = vpack.c.bf16 %v3267, %v3267
        %3269 = vrot.lane.b32.xlu0 %v2878, 16
        %v3270 = vpop.permute.xlu0 %3269
        %v3272 = vsel %vm590, %v3268, 0
        %v3275 = vsel %vm606, %v3270, 0
        %3277 = vmatprep.subr.bf16.mxu0 0
        %3278 = vmatpush1.bf16.msra.mxu0 %v3275
        %3279 = vmatprep.subr.bf16.mxu0 0
        %3280 = vmatpush1.bf16.msra.mxu0 0
        %3281 = vmatprep.subr.bf16.mxu0 0
        %3282 = vmatpush1.bf16.msra.mxu0 0
        %3283 = vmatprep.subr.bf16.mxu0 0
        %3284 = vmatpush1.bf16.msra.mxu0 0
        %3285 = vmatprep.subr.bf16.mxu0 0
        %3286 = vmatpush1.bf16.msra.mxu0 0
        %3287 = vmatprep.subr.bf16.mxu0 0
        %3288 = vmatpush1.bf16.msra.mxu0 0
        %3289 = vmatprep.subr.bf16.mxu0 0
        %3290 = vmatpush1.bf16.msra.mxu0 0
        %3291 = vmatprep.subr.bf16.mxu0 0
        %3292 = vmatpush1.bf16.msra.mxu0 0
        %3293 = vmatprep.subr.bf16.mxu0 0
        %3294 = vmatpush1.bf16.msra.mxu0 0
        %3295 = vmatprep.subr.bf16.mxu0 0
        %3296 = vmatpush1.bf16.msra.mxu0 0
        %3297 = vmatprep.subr.bf16.mxu0 0
        %3298 = vmatpush1.bf16.msra.mxu0 0
        %3299 = vmatprep.subr.bf16.mxu0 0
        %3300 = vmatpush1.bf16.msra.mxu0 0
        %3301 = vmatprep.subr.bf16.mxu0 0
        %3302 = vmatpush1.bf16.msra.mxu0 0
        %3303 = vmatprep.subr.bf16.mxu0 0
        %3304 = vmatpush1.bf16.msra.mxu0 0
        %3305 = vmatprep.subr.bf16.mxu0 0
        %3306 = vmatpush1.bf16.msra.mxu0 0
        %3307 = vmatprep.subr.bf16.mxu0 0
        %3308 = vmatpush1.bf16.msra.mxu0 0
        %3309 = vmatprep.mubr.bf16.mxu0 0
        %3310 = vmatmul.mubr.bf16.gmra.mrb[0].mxu0 %v3272
        %v3311 = vpop.f32.mrb[0].mxu0
        %v3312 = vadd.f32 0.0, %v3311
        %v3313 = vpop.f32.mrb[0].mxu0
        %v3314 = vpop.f32.mrb[0].mxu0
        %v3315 = vpop.f32.mrb[0].mxu0
        %3316 = vdwg.mxu0
        %3318 = vrot.lane.b32.xlu0 %v3092, 16
        %v3319 = vpop.permute.xlu0 %3318
        %3322 = vrot.lane.b32.xlu0 %v3202, 32
        %v3323 = vpop.permute.xlu0 %3322
        %3326 = vrot.lane.b32.xlu0 %v3312, 48
        %v3327 = vpop.permute.xlu0 %3326
        %v3329 = vsel %vm543, %v2981, %v3319
        %v3330 = vsel %vm994, %v3329, %v3323
        %v3331 = vsel %vm996, %v3330, %v3327
        %v3332 = vpack.c.bf16 %v3331, %v3331
        %v3338 = vsel %vm439, %v3332, 0
        %3340 = vmatprep.subr.bf16.mxu0 0
        %3341 = vmatpush1.bf16.msra.mxu0 %v2812
        %3342 = vmatprep.subr.bf16.mxu0 0
        %3343 = vmatpush1.bf16.msra.mxu0 %v2816
        %3344 = vmatprep.subr.bf16.mxu0 0
        %3345 = vmatpush1.bf16.msra.mxu0 %v2820
        %3346 = vmatprep.subr.bf16.mxu0 0
        %3347 = vmatpush1.bf16.msra.mxu0 %v2824
        %3348 = vmatprep.subr.bf16.mxu0 0
        %3349 = vmatpush1.bf16.msra.mxu0 0
        %3350 = vmatprep.subr.bf16.mxu0 0
        %3351 = vmatpush1.bf16.msra.mxu0 0
        %3352 = vmatprep.subr.bf16.mxu0 0
        %3353 = vmatpush1.bf16.msra.mxu0 0
        %3354 = vmatprep.subr.bf16.mxu0 0
        %3355 = vmatpush1.bf16.msra.mxu0 0
        %3356 = vmatprep.subr.bf16.mxu0 0
        %3357 = vmatpush1.bf16.msra.mxu0 0
        %3358 = vmatprep.subr.bf16.mxu0 0
        %3359 = vmatpush1.bf16.msra.mxu0 0
        %3360 = vmatprep.subr.bf16.mxu0 0
        %3361 = vmatpush1.bf16.msra.mxu0 0
        %3362 = vmatprep.subr.bf16.mxu0 0
        %3363 = vmatpush1.bf16.msra.mxu0 0
        %3364 = vmatprep.subr.bf16.mxu0 0
        %3365 = vmatpush1.bf16.msra.mxu0 0
        %3366 = vmatprep.subr.bf16.mxu0 0
        %3367 = vmatpush1.bf16.msra.mxu0 0
        %3368 = vmatprep.subr.bf16.mxu0 0
        %3369 = vmatpush1.bf16.msra.mxu0 0
        %3370 = vmatprep.subr.bf16.mxu0 0
        %3371 = vmatpush1.bf16.msra.mxu0 0
        %3372 = vmatprep.mubr.bf16.mxu0 0
        %3373 = vmatmul.mubr.bf16.gmra.mrb[0].mxu0 %v3338
        %v3374 = vpop.f32.mrb[0].mxu0
        %v3375 = vadd.f32 0.0, %v3374
        %v3376 = vpop.f32.mrb[0].mxu0
        %v3377 = vpop.f32.mrb[0].mxu0
        %v3378 = vpop.f32.mrb[0].mxu0
        %3379 = vdwg.mxu0
        %v3380 = vadd.f32 %v2715, %v3375
        %v3381 = vmul.f32 %v3380, %v3380
        %v3382 = vsel %vm439, %v3381, 0.0
        %3383 = vadd.xlane.f32.xlu0 %v3382
        %v3384 = vpop.xlane.xlu0 %3383
        %v3385 = vmul.f32 %v3384, %v443
        %v3386 = vadd.f32 %v3385, 1e-06
        %v3387 = vrsqrt.pop %v3386
        %v3388 = vmul.f32 %v3380, %v3387
        %v3389 = vlaneseq
        %v3390 = vshrl.u32 %v3389, 7
        %v3391 = vsub.s32 2, %v3390
        %v3392 = vrot.slane %v2065, %v3391
        %v3393 = vmul.f32 %v3388, %v3392
        %v3394 = vpack.c.bf16 %v3393, %v3393
        %v3403 = vunpack.c.l.b16 %v2068
        %v3404 = vunpack.c.l.b16 %v2071
        %v3405 = vunpack.c.l.b16 %v2074
        %v3406 = vunpack.c.l.b16 %v2077
        %v3407 = vunpack.c.l.b16 %v2080
        %v3408 = vunpack.c.l.b16 %v2083
        %v3409 = vunpack.c.l.b16 %v2086
        %v3410 = vunpack.c.l.b16 %v2089
        %v3411 = vpack.c.b16 %v3404, %v3403
        %v3412 = vpack.c.b16 %v3406, %v3405
        %v3413 = vpack.c.b16 %v3408, %v3407
        %v3414 = vpack.c.b16 %v3410, %v3409
        %v3420 = vsel %vm439, %v3394, 0
        %3422 = vmatprep.subr.bf16.mxu0 0
        %3423 = vmatpush1.bf16.msra.mxu0 %v3411
        %3424 = vmatprep.subr.bf16.mxu0 0
        %3425 = vmatpush1.bf16.msra.mxu0 %v3412
        %3426 = vmatprep.subr.bf16.mxu0 0
        %3427 = vmatpush1.bf16.msra.mxu0 %v3413
        %3428 = vmatprep.subr.bf16.mxu0 0
        %3429 = vmatpush1.bf16.msra.mxu0 %v3414
        %3430 = vmatprep.subr.bf16.mxu0 0
        %3431 = vmatpush1.bf16.msra.mxu0 0
        %3432 = vmatprep.subr.bf16.mxu0 0
        %3433 = vmatpush1.bf16.msra.mxu0 0
        %3434 = vmatprep.subr.bf16.mxu0 0
        %3435 = vmatpush1.bf16.msra.mxu0 0
        %3436 = vmatprep.subr.bf16.mxu0 0
        %3437 = vmatpush1.bf16.msra.mxu0 0
        %3438 = vmatprep.subr.bf16.mxu0 0
        %3439 = vmatpush1.bf16.msra.mxu0 0
        %3440 = vmatprep.subr.bf16.mxu0 0
        %3441 = vmatpush1.bf16.msra.mxu0 0
        %3442 = vmatprep.subr.bf16.mxu0 0
        %3443 = vmatpush1.bf16.msra.mxu0 0
        %3444 = vmatprep.subr.bf16.mxu0 0
        %3445 = vmatpush1.bf16.msra.mxu0 0
        %3446 = vmatprep.subr.bf16.mxu0 0
        %3447 = vmatpush1.bf16.msra.mxu0 0
        %3448 = vmatprep.subr.bf16.mxu0 0
        %3449 = vmatpush1.bf16.msra.mxu0 0
        %3450 = vmatprep.subr.bf16.mxu0 0
        %3451 = vmatpush1.bf16.msra.mxu0 0
        %3452 = vmatprep.subr.bf16.mxu0 0
        %3453 = vmatpush1.bf16.msra.mxu0 0
        %3454 = vmatprep.mubr.bf16.mxu0 0
        %3455 = vmatmul.mubr.bf16.gmra.mrb[0].mxu0 %v3420
        %v3456 = vpop.f32.mrb[0].mxu0
        %v3457 = vadd.f32 0.0, %v3456
        %v3458 = vpop.f32.mrb[0].mxu0
        %v3459 = vpop.f32.mrb[0].mxu0
        %v3460 = vpop.f32.mrb[0].mxu0
        %3461 = vdwg.mxu0
        %v3462 = vmax.f32 %v3457, 0.0
        %v3463 = vpack.c.bf16 %v3462, %v3462
        %v3480 = vunpack.c.l.b16 %v2090
        %v3481 = vunpack.c.l.b16 %v2091
        %v3482 = vunpack.c.l.b16 %v2092
        %v3483 = vunpack.c.l.b16 %v2093
        %v3484 = vunpack.c.l.b16 %v2094
        %v3485 = vunpack.c.l.b16 %v2095
        %v3486 = vunpack.c.l.b16 %v2096
        %v3487 = vunpack.c.l.b16 %v2097
        %v3488 = vunpack.c.l.b16 %v2098
        %v3489 = vunpack.c.l.b16 %v2099
        %v3490 = vunpack.c.l.b16 %v2100
        %v3491 = vunpack.c.l.b16 %v2101
        %v3492 = vunpack.c.l.b16 %v2102
        %v3493 = vunpack.c.l.b16 %v2103
        %v3494 = vunpack.c.l.b16 %v2104
        %v3495 = vunpack.c.l.b16 %v2105
        %v3496 = vpack.c.b16 %v3481, %v3480
        %v3497 = vpack.c.b16 %v3483, %v3482
        %v3498 = vpack.c.b16 %v3485, %v3484
        %v3499 = vpack.c.b16 %v3487, %v3486
        %v3500 = vpack.c.b16 %v3489, %v3488
        %v3501 = vpack.c.b16 %v3491, %v3490
        %v3502 = vpack.c.b16 %v3493, %v3492
        %v3503 = vpack.c.b16 %v3495, %v3494
        %3512 = vmatprep.subr.bf16.mxu0 0
        %3513 = vmatpush1.bf16.msra.mxu0 %v3496
        %3514 = vmatprep.subr.bf16.mxu0 0
        %3515 = vmatpush1.bf16.msra.mxu0 %v3497
        %3516 = vmatprep.subr.bf16.mxu0 0
        %3517 = vmatpush1.bf16.msra.mxu0 %v3498
        %3518 = vmatprep.subr.bf16.mxu0 0
        %3519 = vmatpush1.bf16.msra.mxu0 %v3499
        %3520 = vmatprep.subr.bf16.mxu0 0
        %3521 = vmatpush1.bf16.msra.mxu0 %v3500
        %3522 = vmatprep.subr.bf16.mxu0 0
        %3523 = vmatpush1.bf16.msra.mxu0 %v3501
        %3524 = vmatprep.subr.bf16.mxu0 0
        %3525 = vmatpush1.bf16.msra.mxu0 %v3502
        %3526 = vmatprep.subr.bf16.mxu0 0
        %3527 = vmatpush1.bf16.msra.mxu0 %v3503
        %3528 = vmatprep.subr.bf16.mxu0 0
        %3529 = vmatpush1.bf16.msra.mxu0 0
        %3530 = vmatprep.subr.bf16.mxu0 0
        %3531 = vmatpush1.bf16.msra.mxu0 0
        %3532 = vmatprep.subr.bf16.mxu0 0
        %3533 = vmatpush1.bf16.msra.mxu0 0
        %3534 = vmatprep.subr.bf16.mxu0 0
        %3535 = vmatpush1.bf16.msra.mxu0 0
        %3536 = vmatprep.subr.bf16.mxu0 0
        %3537 = vmatpush1.bf16.msra.mxu0 0
        %3538 = vmatprep.subr.bf16.mxu0 0
        %3539 = vmatpush1.bf16.msra.mxu0 0
        %3540 = vmatprep.subr.bf16.mxu0 0
        %3541 = vmatpush1.bf16.msra.mxu0 0
        %3542 = vmatprep.subr.bf16.mxu0 0
        %3543 = vmatpush1.bf16.msra.mxu0 0
        %3544 = vmatprep.mubr.bf16.mxu0 0
        %3545 = vmatmul.mubr.bf16.gmra.mrb[0].mxu0 %v3463
        %v3546 = vpop.f32.mrb[0].mxu0
        %v3547 = vadd.f32 0.0, %v3546
        %v3548 = vpop.f32.mrb[0].mxu0
        %v3549 = vpop.f32.mrb[0].mxu0
        %v3550 = vpop.f32.mrb[0].mxu0
        %3551 = vdwg.mxu0
        %v3552 = vadd.f32 %v3380, %v3547
        %s3553 = scalar_lea.vmem %s7, 4
        %v3554 = vld [vmem:[%s3553] sm:$0x7]
        %s3555 = scalar_lea.vmem %s8, 160
        %v3556 = vld [vmem:[%s3555] sm:$0xff]
        %v3557 = vld [vmem:[%s3555 + $0x8] sm:$0xff]
        %v3558 = vld [vmem:[%s3555 + $0x10] sm:$0xf]
        %v3559 = vld [vmem:[%s3555 + $0x14] sm:$0xff]
        %v3560 = vld [vmem:[%s3555 + $0x1c] sm:$0xff]
        %v3561 = vld [vmem:[%s3555 + $0x24] sm:$0xf]
        %v3562 = vld [vmem:[%s3555 + $0x28] sm:$0xff]
        %v3563 = vld [vmem:[%s3555 + $0x30] sm:$0xff]
        %v3564 = vld [vmem:[%s3555 + $0x38] sm:$0xf]
        %v3565 = vld [vmem:[%s3555 + $0x3c] sm:$0xff]
        %v3566 = vld [vmem:[%s3555 + $0x44] sm:$0xff]
        %v3567 = vld [vmem:[%s3555 + $0x4c] sm:$0xf]
        %v3568 = vld [vmem:[%s3555 + $0x50] sm:$0xff]
        %v3569 = vld [vmem:[%s3555 + $0x58] sm:$0xff]
        %v3570 = vld [vmem:[%s3555 + $0x60] sm:$0xf]
        %v3571 = vld [vmem:[%s3555 + $0x64] sm:$0xff]
        %v3572 = vld [vmem:[%s3555 + $0x6c] sm:$0xff]
        %v3573 = vld [vmem:[%s3555 + $0x74] sm:$0xf]
        %v3574 = vld [vmem:[%s3555 + $0x78] sm:$0xff]
        %v3575 = vld [vmem:[%s3555 + $0x80] sm:$0xff]
        %v3576 = vld [vmem:[%s3555 + $0x88] sm:$0xf]
        %v3577 = vld [vmem:[%s3555 + $0x8c] sm:$0xff]
        %v3578 = vld [vmem:[%s3555 + $0x94] sm:$0xff]
        %v3579 = vld [vmem:[%s3555 + $0x9c] sm:$0xf]
        %s3580 = scalar_lea.vmem %s9, 64
        %v3581 = vld [vmem:[%s3580] sm:$0xf]
        %v3582 = vld [vmem:[%s3580 + $0x4] sm:$0xf]
        %v3583 = vld [vmem:[%s3580 + $0x8] sm:$0xf]
        %v3584 = vld [vmem:[%s3580 + $0xc] sm:$0xf]
        %v3585 = vld [vmem:[%s3580 + $0x10] sm:$0xf]
        %v3586 = vld [vmem:[%s3580 + $0x14] sm:$0xf]
        %v3587 = vld [vmem:[%s3580 + $0x18] sm:$0xf]
        %v3588 = vld [vmem:[%s3580 + $0x1c] sm:$0xf]
        %v3589 = vld [vmem:[%s3580 + $0x20] sm:$0xf]
        %v3590 = vld [vmem:[%s3580 + $0x24] sm:$0xf]
        %v3591 = vld [vmem:[%s3580 + $0x28] sm:$0xf]
        %v3592 = vld [vmem:[%s3580 + $0x2c] sm:$0xf]
        %v3593 = vld [vmem:[%s3580 + $0x30] sm:$0xf]
        %v3594 = vld [vmem:[%s3580 + $0x34] sm:$0xf]
        %v3595 = vld [vmem:[%s3580 + $0x38] sm:$0xf]
        %v3596 = vld [vmem:[%s3580 + $0x3c] sm:$0xf]
        %v3597 = vmul.f32 %v3552, %v3552
        %v3598 = vsel %vm439, %v3597, 0.0
        %3599 = vadd.xlane.f32.xlu0 %v3598
        %v3600 = vpop.xlane.xlu0 %3599
        %v3601 = vmul.f32 %v3600, %v443
        %v3602 = vadd.f32 %v3601, 1e-06
        %v3603 = vrsqrt.pop %v3602
        %v3604 = vmul.f32 %v3552, %v3603
        %v3605 = vlaneseq
        %v3606 = vshrl.u32 %v3605, 7
        %v3607 = vsub.s32 0, %v3606
        %v3608 = vrot.slane %v3554, %v3607
        %v3609 = vmul.f32 %v3604, %v3608
        %v3610 = vpack.c.bf16 %v3609, %v3609
        %v3619 = vunpack.c.l.b16 %v3556
        %v3620 = vunpack.c.h.b16 %v3556
        %v3621 = vunpack.c.l.b16 %v3559
        %v3622 = vunpack.c.h.b16 %v3559
        %v3623 = vunpack.c.l.b16 %v3562
        %v3624 = vunpack.c.h.b16 %v3562
        %v3625 = vunpack.c.l.b16 %v3565
        %v3626 = vunpack.c.h.b16 %v3565
        %v3627 = vunpack.c.l.b16 %v3568
        %v3628 = vunpack.c.h.b16 %v3568
        %v3629 = vunpack.c.l.b16 %v3571
        %v3630 = vunpack.c.h.b16 %v3571
        %v3631 = vunpack.c.l.b16 %v3574
        %v3632 = vunpack.c.h.b16 %v3574
        %v3633 = vunpack.c.l.b16 %v3577
        %v3634 = vunpack.c.h.b16 %v3577
        %v3635 = vpack.c.b16 %v3621, %v3619
        %v3636 = vpack.c.b16 %v3622, %v3620
        %v3637 = vpack.c.b16 %v3625, %v3623
        %v3638 = vpack.c.b16 %v3626, %v3624
        %v3639 = vpack.c.b16 %v3629, %v3627
        %v3640 = vpack.c.b16 %v3630, %v3628
        %v3641 = vpack.c.b16 %v3633, %v3631
        %v3642 = vpack.c.b16 %v3634, %v3632
        %v3652 = vsel %vm439, %v3610, 0
        %3654 = vmatprep.subr.bf16.mxu0 %v3636
        %3655 = vmatpush1.bf16.msra.mxu0 %v3635
        %3656 = vmatprep.subr.bf16.mxu0 %v3638
        %3657 = vmatpush1.bf16.msra.mxu0 %v3637
        %3658 = vmatprep.subr.bf16.mxu0 %v3640
        %3659 = vmatpush1.bf16.msra.mxu0 %v3639
        %3660 = vmatprep.subr.bf16.mxu0 %v3642
        %3661 = vmatpush1.bf16.msra.mxu0 %v3641
        %3662 = vmatprep.subr.bf16.mxu0 0
        %3663 = vmatpush1.bf16.msra.mxu0 0
        %3664 = vmatprep.subr.bf16.mxu0 0
        %3665 = vmatpush1.bf16.msra.mxu0 0
        %3666 = vmatprep.subr.bf16.mxu0 0
        %3667 = vmatpush1.bf16.msra.mxu0 0
        %3668 = vmatprep.subr.bf16.mxu0 0
        %3669 = vmatpush1.bf16.msra.mxu0 0
        %3670 = vmatprep.subr.bf16.mxu0 0
        %3671 = vmatpush1.bf16.msra.mxu0 0
        %3672 = vmatprep.subr.bf16.mxu0 0
        %3673 = vmatpush1.bf16.msra.mxu0 0
        %3674 = vmatprep.subr.bf16.mxu0 0
        %3675 = vmatpush1.bf16.msra.mxu0 0
        %3676 = vmatprep.subr.bf16.mxu0 0
        %3677 = vmatpush1.bf16.msra.mxu0 0
        %3678 = vmatprep.subr.bf16.mxu0 0
        %3679 = vmatpush1.bf16.msra.mxu0 0
        %3680 = vmatprep.subr.bf16.mxu0 0
        %3681 = vmatpush1.bf16.msra.mxu0 0
        %3682 = vmatprep.subr.bf16.mxu0 0
        %3683 = vmatpush1.bf16.msra.mxu0 0
        %3684 = vmatprep.subr.bf16.mxu0 0
        %3685 = vmatpush1.bf16.msra.mxu0 0
        %3686 = vmatprep.mubr.bf16.mxu0 0
        %3687 = vmatmul.mubr.bf16.gmra.mrb[0].mxu0 %v3652
        %v3688 = vpop.f32.mrb[0].mxu0
        %v3689 = vadd.f32 0.0, %v3688
        %v3690 = vpop.f32.mrb[0].mxu0
        %v3691 = vadd.f32 0.0, %v3690
        %v3692 = vpop.f32.mrb[0].mxu0
        %v3693 = vpop.f32.mrb[0].mxu0
        %3694 = vdwg.mxu0
        %v3695 = vpack.c.bf16 %v3689, %v3689
        %v3696 = vpack.c.bf16 %v3691, %v3691
        %3698 = vrot.lane.b32.xlu0 %v3695, 64
        %v3699 = vpop.permute.xlu0 %3698
        %v3701 = vsel %vm543, %v3695, 0
        %v3704 = vsel %vm543, %v3699, 0
        %3706 = vmatprep.subr.bf16.mxu0 0
        %3707 = vmatpush1.bf16.xpose.msra.mxu0 %v3704
        %3708 = vmatprep.subr.bf16.mxu0 0
        %3709 = vmatpush1.bf16.xpose.msra.mxu0 0
        %3710 = vmatprep.subr.bf16.mxu0 0
        %3711 = vmatpush1.bf16.xpose.msra.mxu0 0
        %3712 = vmatprep.subr.bf16.mxu0 0
        %3713 = vmatpush1.bf16.xpose.msra.mxu0 0
        %3714 = vmatprep.subr.bf16.mxu0 0
        %3715 = vmatpush1.bf16.xpose.msra.mxu0 0
        %3716 = vmatprep.subr.bf16.mxu0 0
        %3717 = vmatpush1.bf16.xpose.msra.mxu0 0
        %3718 = vmatprep.subr.bf16.mxu0 0
        %3719 = vmatpush1.bf16.xpose.msra.mxu0 0
        %3720 = vmatprep.subr.bf16.mxu0 0
        %3721 = vmatpush1.bf16.xpose.msra.mxu0 0
        %3722 = vmatprep.subr.bf16.mxu0 0
        %3723 = vmatpush1.bf16.xpose.msra.mxu0 0
        %3724 = vmatprep.subr.bf16.mxu0 0
        %3725 = vmatpush1.bf16.xpose.msra.mxu0 0
        %3726 = vmatprep.subr.bf16.mxu0 0
        %3727 = vmatpush1.bf16.xpose.msra.mxu0 0
        %3728 = vmatprep.subr.bf16.mxu0 0
        %3729 = vmatpush1.bf16.xpose.msra.mxu0 0
        %3730 = vmatprep.subr.bf16.mxu0 0
        %3731 = vmatpush1.bf16.xpose.msra.mxu0 0
        %3732 = vmatprep.subr.bf16.mxu0 0
        %3733 = vmatpush1.bf16.xpose.msra.mxu0 0
        %3734 = vmatprep.subr.bf16.mxu0 0
        %3735 = vmatpush1.bf16.xpose.msra.mxu0 0
        %3736 = vmatprep.subr.bf16.mxu0 0
        %3737 = vmatpush1.bf16.xpose.msra.mxu0 0
        %3738 = vmatprep.mubr.bf16.mxu0 0
        %3739 = vmatmul.mubr.bf16.gmra.mrb[0].mxu0 %v3701
        %v3740 = vpop.f32.mrb[0].mxu0
        %v3741 = vadd.f32 %v2061, %v3740
        %v3742 = vpop.f32.mrb[0].mxu0
        %v3743 = vpop.f32.mrb[0].mxu0
        %v3744 = vpop.f32.mrb[0].mxu0
        %3745 = vdwg.mxu0
        %v3746 = vsel %vm590, %v3741, -inf
        %3747 = vmax.xlane.f32.xlu0 %v3746
        %v3748 = vpop.xlane.xlu0 %3747
        %v3749 = vsub.f32 %v3741, %v3748
        %v3750 = vmul.f32 %v3749, 1.442695
        %v3751 = vpow.pop %v3750
        %v3752 = vsel %vm590, %v3751, 0.0
        %3753 = vadd.xlane.f32.xlu0 %v3752
        %v3754 = vpop.xlane.xlu0 %3753
        %v3755 = vrcp.pop %v3754
        %v3756 = vmul.f32 %v3751, %v3755
        %v3757 = vpack.c.bf16 %v3756, %v3756
        %v3759 = vsel %vm590, %v3757, 0
        %v3762 = vsel %vm606, %v3696, 0
        %3764 = vmatprep.subr.bf16.mxu0 0
        %3765 = vmatpush1.bf16.msra.mxu0 %v3762
        %3766 = vmatprep.subr.bf16.mxu0 0
        %3767 = vmatpush1.bf16.msra.mxu0 0
        %3768 = vmatprep.subr.bf16.mxu0 0
        %3769 = vmatpush1.bf16.msra.mxu0 0
        %3770 = vmatprep.subr.bf16.mxu0 0
        %3771 = vmatpush1.bf16.msra.mxu0 0
        %3772 = vmatprep.subr.bf16.mxu0 0
        %3773 = vmatpush1.bf16.msra.mxu0 0
        %3774 = vmatprep.subr.bf16.mxu0 0
        %3775 = vmatpush1.bf16.msra.mxu0 0
        %3776 = vmatprep.subr.bf16.mxu0 0
        %3777 = vmatpush1.bf16.msra.mxu0 0
        %3778 = vmatprep.subr.bf16.mxu0 0
        %3779 = vmatpush1.bf16.msra.mxu0 0
        %3780 = vmatprep.subr.bf16.mxu0 0
        %3781 = vmatpush1.bf16.msra.mxu0 0
        %3782 = vmatprep.subr.bf16.mxu0 0
        %3783 = vmatpush1.bf16.msra.mxu0 0
        %3784 = vmatprep.subr.bf16.mxu0 0
        %3785 = vmatpush1.bf16.msra.mxu0 0
        %3786 = vmatprep.subr.bf16.mxu0 0
        %3787 = vmatpush1.bf16.msra.mxu0 0
        %3788 = vmatprep.subr.bf16.mxu0 0
        %3789 = vmatpush1.bf16.msra.mxu0 0
        %3790 = vmatprep.subr.bf16.mxu0 0
        %3791 = vmatpush1.bf16.msra.mxu0 0
        %3792 = vmatprep.subr.bf16.mxu0 0
        %3793 = vmatpush1.bf16.msra.mxu0 0
        %3794 = vmatprep.subr.bf16.mxu0 0
        %3795 = vmatpush1.bf16.msra.mxu0 0
        %3796 = vmatprep.mubr.bf16.mxu0 0
        %3797 = vmatmul.mubr.bf16.gmra.mrb[0].mxu0 %v3759
        %v3798 = vpop.f32.mrb[0].mxu0
        %v3799 = vadd.f32 0.0, %v3798
        %v3800 = vpop.f32.mrb[0].mxu0
        %v3801 = vpop.f32.mrb[0].mxu0
        %v3802 = vpop.f32.mrb[0].mxu0
        %3803 = vdwg.mxu0
        %3804 = vrot.lane.b32.xlu0 %v3695, 112
        %v3805 = vpop.permute.xlu0 %3804
        %3806 = vrot.lane.b32.xlu0 %v3695, 48
        %v3807 = vpop.permute.xlu0 %3806
        %v3809 = vsel %vm543, %v3805, 0
        %v3812 = vsel %vm543, %v3807, 0
        %3814 = vmatprep.subr.bf16.mxu0 0
        %3815 = vmatpush1.bf16.xpose.msra.mxu0 %v3812
        %3816 = vmatprep.subr.bf16.mxu0 0
        %3817 = vmatpush1.bf16.xpose.msra.mxu0 0
        %3818 = vmatprep.subr.bf16.mxu0 0
        %3819 = vmatpush1.bf16.xpose.msra.mxu0 0
        %3820 = vmatprep.subr.bf16.mxu0 0
        %3821 = vmatpush1.bf16.xpose.msra.mxu0 0
        %3822 = vmatprep.subr.bf16.mxu0 0
        %3823 = vmatpush1.bf16.xpose.msra.mxu0 0
        %3824 = vmatprep.subr.bf16.mxu0 0
        %3825 = vmatpush1.bf16.xpose.msra.mxu0 0
        %3826 = vmatprep.subr.bf16.mxu0 0
        %3827 = vmatpush1.bf16.xpose.msra.mxu0 0
        %3828 = vmatprep.subr.bf16.mxu0 0
        %3829 = vmatpush1.bf16.xpose.msra.mxu0 0
        %3830 = vmatprep.subr.bf16.mxu0 0
        %3831 = vmatpush1.bf16.xpose.msra.mxu0 0
        %3832 = vmatprep.subr.bf16.mxu0 0
        %3833 = vmatpush1.bf16.xpose.msra.mxu0 0
        %3834 = vmatprep.subr.bf16.mxu0 0
        %3835 = vmatpush1.bf16.xpose.msra.mxu0 0
        %3836 = vmatprep.subr.bf16.mxu0 0
        %3837 = vmatpush1.bf16.xpose.msra.mxu0 0
        %3838 = vmatprep.subr.bf16.mxu0 0
        %3839 = vmatpush1.bf16.xpose.msra.mxu0 0
        %3840 = vmatprep.subr.bf16.mxu0 0
        %3841 = vmatpush1.bf16.xpose.msra.mxu0 0
        %3842 = vmatprep.subr.bf16.mxu0 0
        %3843 = vmatpush1.bf16.xpose.msra.mxu0 0
        %3844 = vmatprep.subr.bf16.mxu0 0
        %3845 = vmatpush1.bf16.xpose.msra.mxu0 0
        %3846 = vmatprep.mubr.bf16.mxu0 0
        %3847 = vmatmul.mubr.bf16.gmra.mrb[0].mxu0 %v3809
        %v3848 = vpop.f32.mrb[0].mxu0
        %v3849 = vadd.f32 %v2062, %v3848
        %v3850 = vpop.f32.mrb[0].mxu0
        %v3851 = vpop.f32.mrb[0].mxu0
        %v3852 = vpop.f32.mrb[0].mxu0
        %3853 = vdwg.mxu0
        %v3854 = vsel %vm590, %v3849, -inf
        %3855 = vmax.xlane.f32.xlu0 %v3854
        %v3856 = vpop.xlane.xlu0 %3855
        %v3857 = vsub.f32 %v3849, %v3856
        %v3858 = vmul.f32 %v3857, 1.442695
        %v3859 = vpow.pop %v3858
        %v3860 = vsel %vm590, %v3859, 0.0
        %3861 = vadd.xlane.f32.xlu0 %v3860
        %v3862 = vpop.xlane.xlu0 %3861
        %v3863 = vrcp.pop %v3862
        %v3864 = vmul.f32 %v3859, %v3863
        %v3865 = vpack.c.bf16 %v3864, %v3864
        %3867 = vrot.lane.b32.xlu0 %v3696, 112
        %v3868 = vpop.permute.xlu0 %3867
        %v3870 = vsel %vm590, %v3865, 0
        %v3873 = vsel %vm606, %v3868, 0
        %3875 = vmatprep.subr.bf16.mxu0 0
        %3876 = vmatpush1.bf16.msra.mxu0 %v3873
        %3877 = vmatprep.subr.bf16.mxu0 0
        %3878 = vmatpush1.bf16.msra.mxu0 0
        %3879 = vmatprep.subr.bf16.mxu0 0
        %3880 = vmatpush1.bf16.msra.mxu0 0
        %3881 = vmatprep.subr.bf16.mxu0 0
        %3882 = vmatpush1.bf16.msra.mxu0 0
        %3883 = vmatprep.subr.bf16.mxu0 0
        %3884 = vmatpush1.bf16.msra.mxu0 0
        %3885 = vmatprep.subr.bf16.mxu0 0
        %3886 = vmatpush1.bf16.msra.mxu0 0
        %3887 = vmatprep.subr.bf16.mxu0 0
        %3888 = vmatpush1.bf16.msra.mxu0 0
        %3889 = vmatprep.subr.bf16.mxu0 0
        %3890 = vmatpush1.bf16.msra.mxu0 0
        %3891 = vmatprep.subr.bf16.mxu0 0
        %3892 = vmatpush1.bf16.msra.mxu0 0
        %3893 = vmatprep.subr.bf16.mxu0 0
        %3894 = vmatpush1.bf16.msra.mxu0 0
        %3895 = vmatprep.subr.bf16.mxu0 0
        %3896 = vmatpush1.bf16.msra.mxu0 0
        %3897 = vmatprep.subr.bf16.mxu0 0
        %3898 = vmatpush1.bf16.msra.mxu0 0
        %3899 = vmatprep.subr.bf16.mxu0 0
        %3900 = vmatpush1.bf16.msra.mxu0 0
        %3901 = vmatprep.subr.bf16.mxu0 0
        %3902 = vmatpush1.bf16.msra.mxu0 0
        %3903 = vmatprep.subr.bf16.mxu0 0
        %3904 = vmatpush1.bf16.msra.mxu0 0
        %3905 = vmatprep.subr.bf16.mxu0 0
        %3906 = vmatpush1.bf16.msra.mxu0 0
        %3907 = vmatprep.mubr.bf16.mxu0 0
        %3908 = vmatmul.mubr.bf16.gmra.mrb[0].mxu0 %v3870
        %v3909 = vpop.f32.mrb[0].mxu0
        %v3910 = vadd.f32 0.0, %v3909
        %v3911 = vpop.f32.mrb[0].mxu0
        %v3912 = vpop.f32.mrb[0].mxu0
        %v3913 = vpop.f32.mrb[0].mxu0
        %3914 = vdwg.mxu0
        %3915 = vrot.lane.b32.xlu0 %v3695, 96
        %v3916 = vpop.permute.xlu0 %3915
        %3917 = vrot.lane.b32.xlu0 %v3695, 32
        %v3918 = vpop.permute.xlu0 %3917
        %v3920 = vsel %vm543, %v3916, 0
        %v3923 = vsel %vm543, %v3918, 0
        %3925 = vmatprep.subr.bf16.mxu0 0
        %3926 = vmatpush1.bf16.xpose.msra.mxu0 %v3923
        %3927 = vmatprep.subr.bf16.mxu0 0
        %3928 = vmatpush1.bf16.xpose.msra.mxu0 0
        %3929 = vmatprep.subr.bf16.mxu0 0
        %3930 = vmatpush1.bf16.xpose.msra.mxu0 0
        %3931 = vmatprep.subr.bf16.mxu0 0
        %3932 = vmatpush1.bf16.xpose.msra.mxu0 0
        %3933 = vmatprep.subr.bf16.mxu0 0
        %3934 = vmatpush1.bf16.xpose.msra.mxu0 0
        %3935 = vmatprep.subr.bf16.mxu0 0
        %3936 = vmatpush1.bf16.xpose.msra.mxu0 0
        %3937 = vmatprep.subr.bf16.mxu0 0
        %3938 = vmatpush1.bf16.xpose.msra.mxu0 0
        %3939 = vmatprep.subr.bf16.mxu0 0
        %3940 = vmatpush1.bf16.xpose.msra.mxu0 0
        %3941 = vmatprep.subr.bf16.mxu0 0
        %3942 = vmatpush1.bf16.xpose.msra.mxu0 0
        %3943 = vmatprep.subr.bf16.mxu0 0
        %3944 = vmatpush1.bf16.xpose.msra.mxu0 0
        %3945 = vmatprep.subr.bf16.mxu0 0
        %3946 = vmatpush1.bf16.xpose.msra.mxu0 0
        %3947 = vmatprep.subr.bf16.mxu0 0
        %3948 = vmatpush1.bf16.xpose.msra.mxu0 0
        %3949 = vmatprep.subr.bf16.mxu0 0
        %3950 = vmatpush1.bf16.xpose.msra.mxu0 0
        %3951 = vmatprep.subr.bf16.mxu0 0
        %3952 = vmatpush1.bf16.xpose.msra.mxu0 0
        %3953 = vmatprep.subr.bf16.mxu0 0
        %3954 = vmatpush1.bf16.xpose.msra.mxu0 0
        %3955 = vmatprep.subr.bf16.mxu0 0
        %3956 = vmatpush1.bf16.xpose.msra.mxu0 0
        %3957 = vmatprep.mubr.bf16.mxu0 0
        %3958 = vmatmul.mubr.bf16.gmra.mrb[0].mxu0 %v3920
        %v3959 = vpop.f32.mrb[0].mxu0
        %v3960 = vadd.f32 %v2063, %v3959
        %v3961 = vpop.f32.mrb[0].mxu0
        %v3962 = vpop.f32.mrb[0].mxu0
        %v3963 = vpop.f32.mrb[0].mxu0
        %3964 = vdwg.mxu0
        %v3965 = vsel %vm590, %v3960, -inf
        %3966 = vmax.xlane.f32.xlu0 %v3965
        %v3967 = vpop.xlane.xlu0 %3966
        %v3968 = vsub.f32 %v3960, %v3967
        %v3969 = vmul.f32 %v3968, 1.442695
        %v3970 = vpow.pop %v3969
        %v3971 = vsel %vm590, %v3970, 0.0
        %3972 = vadd.xlane.f32.xlu0 %v3971
        %v3973 = vpop.xlane.xlu0 %3972
        %v3974 = vrcp.pop %v3973
        %v3975 = vmul.f32 %v3970, %v3974
        %v3976 = vpack.c.bf16 %v3975, %v3975
        %3977 = vrot.lane.b32.xlu0 %v3696, 96
        %v3978 = vpop.permute.xlu0 %3977
        %v3980 = vsel %vm590, %v3976, 0
        %v3983 = vsel %vm606, %v3978, 0
        %3985 = vmatprep.subr.bf16.mxu0 0
        %3986 = vmatpush1.bf16.msra.mxu0 %v3983
        %3987 = vmatprep.subr.bf16.mxu0 0
        %3988 = vmatpush1.bf16.msra.mxu0 0
        %3989 = vmatprep.subr.bf16.mxu0 0
        %3990 = vmatpush1.bf16.msra.mxu0 0
        %3991 = vmatprep.subr.bf16.mxu0 0
        %3992 = vmatpush1.bf16.msra.mxu0 0
        %3993 = vmatprep.subr.bf16.mxu0 0
        %3994 = vmatpush1.bf16.msra.mxu0 0
        %3995 = vmatprep.subr.bf16.mxu0 0
        %3996 = vmatpush1.bf16.msra.mxu0 0
        %3997 = vmatprep.subr.bf16.mxu0 0
        %3998 = vmatpush1.bf16.msra.mxu0 0
        %3999 = vmatprep.subr.bf16.mxu0 0
        %4000 = vmatpush1.bf16.msra.mxu0 0
        %4001 = vmatprep.subr.bf16.mxu0 0
        %4002 = vmatpush1.bf16.msra.mxu0 0
        %4003 = vmatprep.subr.bf16.mxu0 0
        %4004 = vmatpush1.bf16.msra.mxu0 0
        %4005 = vmatprep.subr.bf16.mxu0 0
        %4006 = vmatpush1.bf16.msra.mxu0 0
        %4007 = vmatprep.subr.bf16.mxu0 0
        %4008 = vmatpush1.bf16.msra.mxu0 0
        %4009 = vmatprep.subr.bf16.mxu0 0
        %4010 = vmatpush1.bf16.msra.mxu0 0
        %4011 = vmatprep.subr.bf16.mxu0 0
        %4012 = vmatpush1.bf16.msra.mxu0 0
        %4013 = vmatprep.subr.bf16.mxu0 0
        %4014 = vmatpush1.bf16.msra.mxu0 0
        %4015 = vmatprep.subr.bf16.mxu0 0
        %4016 = vmatpush1.bf16.msra.mxu0 0
        %4017 = vmatprep.mubr.bf16.mxu0 0
        %4018 = vmatmul.mubr.bf16.gmra.mrb[0].mxu0 %v3980
        %v4019 = vpop.f32.mrb[0].mxu0
        %v4020 = vadd.f32 0.0, %v4019
        %v4021 = vpop.f32.mrb[0].mxu0
        %v4022 = vpop.f32.mrb[0].mxu0
        %v4023 = vpop.f32.mrb[0].mxu0
        %4024 = vdwg.mxu0
        %4025 = vrot.lane.b32.xlu0 %v3695, 80
        %v4026 = vpop.permute.xlu0 %4025
        %4027 = vrot.lane.b32.xlu0 %v3695, 16
        %v4028 = vpop.permute.xlu0 %4027
        %v4030 = vsel %vm543, %v4026, 0
        %v4033 = vsel %vm543, %v4028, 0
        %4035 = vmatprep.subr.bf16.mxu0 0
        %4036 = vmatpush1.bf16.xpose.msra.mxu0 %v4033
        %4037 = vmatprep.subr.bf16.mxu0 0
        %4038 = vmatpush1.bf16.xpose.msra.mxu0 0
        %4039 = vmatprep.subr.bf16.mxu0 0
        %4040 = vmatpush1.bf16.xpose.msra.mxu0 0
        %4041 = vmatprep.subr.bf16.mxu0 0
        %4042 = vmatpush1.bf16.xpose.msra.mxu0 0
        %4043 = vmatprep.subr.bf16.mxu0 0
        %4044 = vmatpush1.bf16.xpose.msra.mxu0 0
        %4045 = vmatprep.subr.bf16.mxu0 0
        %4046 = vmatpush1.bf16.xpose.msra.mxu0 0
        %4047 = vmatprep.subr.bf16.mxu0 0
        %4048 = vmatpush1.bf16.xpose.msra.mxu0 0
        %4049 = vmatprep.subr.bf16.mxu0 0
        %4050 = vmatpush1.bf16.xpose.msra.mxu0 0
        %4051 = vmatprep.subr.bf16.mxu0 0
        %4052 = vmatpush1.bf16.xpose.msra.mxu0 0
        %4053 = vmatprep.subr.bf16.mxu0 0
        %4054 = vmatpush1.bf16.xpose.msra.mxu0 0
        %4055 = vmatprep.subr.bf16.mxu0 0
        %4056 = vmatpush1.bf16.xpose.msra.mxu0 0
        %4057 = vmatprep.subr.bf16.mxu0 0
        %4058 = vmatpush1.bf16.xpose.msra.mxu0 0
        %4059 = vmatprep.subr.bf16.mxu0 0
        %4060 = vmatpush1.bf16.xpose.msra.mxu0 0
        %4061 = vmatprep.subr.bf16.mxu0 0
        %4062 = vmatpush1.bf16.xpose.msra.mxu0 0
        %4063 = vmatprep.subr.bf16.mxu0 0
        %4064 = vmatpush1.bf16.xpose.msra.mxu0 0
        %4065 = vmatprep.subr.bf16.mxu0 0
        %4066 = vmatpush1.bf16.xpose.msra.mxu0 0
        %4067 = vmatprep.mubr.bf16.mxu0 0
        %4068 = vmatmul.mubr.bf16.gmra.mrb[0].mxu0 %v4030
        %v4069 = vpop.f32.mrb[0].mxu0
        %v4070 = vadd.f32 %v2064, %v4069
        %v4071 = vpop.f32.mrb[0].mxu0
        %v4072 = vpop.f32.mrb[0].mxu0
        %v4073 = vpop.f32.mrb[0].mxu0
        %4074 = vdwg.mxu0
        %v4075 = vsel %vm590, %v4070, -inf
        %4076 = vmax.xlane.f32.xlu0 %v4075
        %v4077 = vpop.xlane.xlu0 %4076
        %v4078 = vsub.f32 %v4070, %v4077
        %v4079 = vmul.f32 %v4078, 1.442695
        %v4080 = vpow.pop %v4079
        %v4081 = vsel %vm590, %v4080, 0.0
        %4082 = vadd.xlane.f32.xlu0 %v4081
        %v4083 = vpop.xlane.xlu0 %4082
        %v4084 = vrcp.pop %v4083
        %v4085 = vmul.f32 %v4080, %v4084
        %v4086 = vpack.c.bf16 %v4085, %v4085
        %4087 = vrot.lane.b32.xlu0 %v3696, 80
        %v4088 = vpop.permute.xlu0 %4087
        %v4090 = vsel %vm590, %v4086, 0
        %v4093 = vsel %vm606, %v4088, 0
        %4095 = vmatprep.subr.bf16.mxu0 0
        %4096 = vmatpush1.bf16.msra.mxu0 %v4093
        %4097 = vmatprep.subr.bf16.mxu0 0
        %4098 = vmatpush1.bf16.msra.mxu0 0
        %4099 = vmatprep.subr.bf16.mxu0 0
        %4100 = vmatpush1.bf16.msra.mxu0 0
        %4101 = vmatprep.subr.bf16.mxu0 0
        %4102 = vmatpush1.bf16.msra.mxu0 0
        %4103 = vmatprep.subr.bf16.mxu0 0
        %4104 = vmatpush1.bf16.msra.mxu0 0
        %4105 = vmatprep.subr.bf16.mxu0 0
        %4106 = vmatpush1.bf16.msra.mxu0 0
        %4107 = vmatprep.subr.bf16.mxu0 0
        %4108 = vmatpush1.bf16.msra.mxu0 0
        %4109 = vmatprep.subr.bf16.mxu0 0
        %4110 = vmatpush1.bf16.msra.mxu0 0
        %4111 = vmatprep.subr.bf16.mxu0 0
        %4112 = vmatpush1.bf16.msra.mxu0 0
        %4113 = vmatprep.subr.bf16.mxu0 0
        %4114 = vmatpush1.bf16.msra.mxu0 0
        %4115 = vmatprep.subr.bf16.mxu0 0
        %4116 = vmatpush1.bf16.msra.mxu0 0
        %4117 = vmatprep.subr.bf16.mxu0 0
        %4118 = vmatpush1.bf16.msra.mxu0 0
        %4119 = vmatprep.subr.bf16.mxu0 0
        %4120 = vmatpush1.bf16.msra.mxu0 0
        %4121 = vmatprep.subr.bf16.mxu0 0
        %4122 = vmatpush1.bf16.msra.mxu0 0
        %4123 = vmatprep.subr.bf16.mxu0 0
        %4124 = vmatpush1.bf16.msra.mxu0 0
        %4125 = vmatprep.subr.bf16.mxu0 0
        %4126 = vmatpush1.bf16.msra.mxu0 0
        %4127 = vmatprep.mubr.bf16.mxu0 0
        %4128 = vmatmul.mubr.bf16.gmra.mrb[0].mxu0 %v4090
        %v4129 = vpop.f32.mrb[0].mxu0
        %v4130 = vadd.f32 0.0, %v4129
        %v4131 = vpop.f32.mrb[0].mxu0
        %v4132 = vpop.f32.mrb[0].mxu0
        %v4133 = vpop.f32.mrb[0].mxu0
        %4134 = vdwg.mxu0
        %4136 = vrot.lane.b32.xlu0 %v3910, 16
        %v4137 = vpop.permute.xlu0 %4136
        %4140 = vrot.lane.b32.xlu0 %v4020, 32
        %v4141 = vpop.permute.xlu0 %4140
        %4144 = vrot.lane.b32.xlu0 %v4130, 48
        %v4145 = vpop.permute.xlu0 %4144
        %v4147 = vsel %vm543, %v3799, %v4137
        %v4148 = vsel %vm994, %v4147, %v4141
        %v4149 = vsel %vm996, %v4148, %v4145
        %v4150 = vpack.c.bf16 %v4149, %v4149
        %4151 = vrot.lane.b32.xlu0 %v3636, 64
        %v4152 = vpop.permute.xlu0 %4151
        %4153 = vrot.lane.b32.xlu0 %v3638, 64
        %v4154 = vpop.permute.xlu0 %4153
        %4155 = vrot.lane.b32.xlu0 %v3640, 64
        %v4156 = vpop.permute.xlu0 %4155
        %4157 = vrot.lane.b32.xlu0 %v3642, 64
        %v4158 = vpop.permute.xlu0 %4157
        %v4164 = vsel %vm439, %v4150, 0
        %4166 = vmatprep.subr.bf16.mxu0 0
        %4167 = vmatpush1.bf16.msra.mxu0 %v4152
        %4168 = vmatprep.subr.bf16.mxu0 0
        %4169 = vmatpush1.bf16.msra.mxu0 %v4154
        %4170 = vmatprep.subr.bf16.mxu0 0
        %4171 = vmatpush1.bf16.msra.mxu0 %v4156
        %4172 = vmatprep.subr.bf16.mxu0 0
        %4173 = vmatpush1.bf16.msra.mxu0 %v4158
        %4174 = vmatprep.subr.bf16.mxu0 0
        %4175 = vmatpush1.bf16.msra.mxu0 0
        %4176 = vmatprep.subr.bf16.mxu0 0
        %4177 = vmatpush1.bf16.msra.mxu0 0
        %4178 = vmatprep.subr.bf16.mxu0 0
        %4179 = vmatpush1.bf16.msra.mxu0 0
        %4180 = vmatprep.subr.bf16.mxu0 0
        %4181 = vmatpush1.bf16.msra.mxu0 0
        %4182 = vmatprep.subr.bf16.mxu0 0
        %4183 = vmatpush1.bf16.msra.mxu0 0
        %4184 = vmatprep.subr.bf16.mxu0 0
        %4185 = vmatpush1.bf16.msra.mxu0 0
        %4186 = vmatprep.subr.bf16.mxu0 0
        %4187 = vmatpush1.bf16.msra.mxu0 0
        %4188 = vmatprep.subr.bf16.mxu0 0
        %4189 = vmatpush1.bf16.msra.mxu0 0
        %4190 = vmatprep.subr.bf16.mxu0 0
        %4191 = vmatpush1.bf16.msra.mxu0 0
        %4192 = vmatprep.subr.bf16.mxu0 0
        %4193 = vmatpush1.bf16.msra.mxu0 0
        %4194 = vmatprep.subr.bf16.mxu0 0
        %4195 = vmatpush1.bf16.msra.mxu0 0
        %4196 = vmatprep.subr.bf16.mxu0 0
        %4197 = vmatpush1.bf16.msra.mxu0 0
        %4198 = vmatprep.mubr.bf16.mxu0 0
        %4199 = vmatmul.mubr.bf16.gmra.mrb[0].mxu0 %v4164
        %v4200 = vpop.f32.mrb[0].mxu0
        %v4201 = vadd.f32 0.0, %v4200
        %v4202 = vpop.f32.mrb[0].mxu0
        %v4203 = vpop.f32.mrb[0].mxu0
        %v4204 = vpop.f32.mrb[0].mxu0
        %4205 = vdwg.mxu0
        %v4206 = vadd.f32 %v3552, %v4201
        %v4207 = vmul.f32 %v4206, %v4206
        %v4208 = vsel %vm439, %v4207, 0.0
        %4209 = vadd.xlane.f32.xlu0 %v4208
        %v4210 = vpop.xlane.xlu0 %4209
        %v4211 = vmul.f32 %v4210, %v443
        %v4212 = vadd.f32 %v4211, 1e-06
        %v4213 = vrsqrt.pop %v4212
        %v4214 = vmul.f32 %v4206, %v4213
        %v4215 = vlaneseq
        %v4216 = vshrl.u32 %v4215, 7
        %v4217 = vsub.s32 1, %v4216
        %v4218 = vrot.slane %v3554, %v4217
        %v4219 = vmul.f32 %v4214, %v4218
        %v4220 = vpack.c.bf16 %v4219, %v4219
        %v4229 = vunpack.c.l.b16 %v3557
        %v4230 = vunpack.c.l.b16 %v3560
        %v4231 = vunpack.c.l.b16 %v3563
        %v4232 = vunpack.c.l.b16 %v3566
        %v4233 = vunpack.c.l.b16 %v3569
        %v4234 = vunpack.c.l.b16 %v3572
        %v4235 = vunpack.c.l.b16 %v3575
        %v4236 = vunpack.c.l.b16 %v3578
        %v4237 = vpack.c.b16 %v4230, %v4229
        %v4238 = vpack.c.b16 %v4232, %v4231
        %v4239 = vpack.c.b16 %v4234, %v4233
        %v4240 = vpack.c.b16 %v4236, %v4235
        %v4246 = vsel %vm439, %v4220, 0
        %4248 = vmatprep.subr.bf16.mxu0 0
        %4249 = vmatpush1.bf16.msra.mxu0 %v4237
        %4250 = vmatprep.subr.bf16.mxu0 0
        %4251 = vmatpush1.bf16.msra.mxu0 %v4238
        %4252 = vmatprep.subr.bf16.mxu0 0
        %4253 = vmatpush1.bf16.msra.mxu0 %v4239
        %4254 = vmatprep.subr.bf16.mxu0 0
        %4255 = vmatpush1.bf16.msra.mxu0 %v4240
        %4256 = vmatprep.subr.bf16.mxu0 0
        %4257 = vmatpush1.bf16.msra.mxu0 0
        %4258 = vmatprep.subr.bf16.mxu0 0
        %4259 = vmatpush1.bf16.msra.mxu0 0
        %4260 = vmatprep.subr.bf16.mxu0 0
        %4261 = vmatpush1.bf16.msra.mxu0 0
        %4262 = vmatprep.subr.bf16.mxu0 0
        %4263 = vmatpush1.bf16.msra.mxu0 0
        %4264 = vmatprep.subr.bf16.mxu0 0
        %4265 = vmatpush1.bf16.msra.mxu0 0
        %4266 = vmatprep.subr.bf16.mxu0 0
        %4267 = vmatpush1.bf16.msra.mxu0 0
        %4268 = vmatprep.subr.bf16.mxu0 0
        %4269 = vmatpush1.bf16.msra.mxu0 0
        %4270 = vmatprep.subr.bf16.mxu0 0
        %4271 = vmatpush1.bf16.msra.mxu0 0
        %4272 = vmatprep.subr.bf16.mxu0 0
        %4273 = vmatpush1.bf16.msra.mxu0 0
        %4274 = vmatprep.subr.bf16.mxu0 0
        %4275 = vmatpush1.bf16.msra.mxu0 0
        %4276 = vmatprep.subr.bf16.mxu0 0
        %4277 = vmatpush1.bf16.msra.mxu0 0
        %4278 = vmatprep.subr.bf16.mxu0 0
        %4279 = vmatpush1.bf16.msra.mxu0 0
        %4280 = vmatprep.mubr.bf16.mxu0 0
        %4281 = vmatmul.mubr.bf16.gmra.mrb[0].mxu0 %v4246
        %v4282 = vpop.f32.mrb[0].mxu0
        %v4283 = vadd.f32 0.0, %v4282
        %v4284 = vpop.f32.mrb[0].mxu0
        %v4285 = vpop.f32.mrb[0].mxu0
        %v4286 = vpop.f32.mrb[0].mxu0
        %4287 = vdwg.mxu0
        %v4288 = vunpack.c.h.b16 %v3557
        %v4289 = vunpack.c.h.b16 %v3560
        %v4290 = vunpack.c.h.b16 %v3563
        %v4291 = vunpack.c.h.b16 %v3566
        %v4292 = vunpack.c.h.b16 %v3569
        %v4293 = vunpack.c.h.b16 %v3572
        %v4294 = vunpack.c.h.b16 %v3575
        %v4295 = vunpack.c.h.b16 %v3578
        %v4296 = vpack.c.b16 %v4289, %v4288
        %v4297 = vpack.c.b16 %v4291, %v4290
        %v4298 = vpack.c.b16 %v4293, %v4292
        %v4299 = vpack.c.b16 %v4295, %v4294
        %4300 = vrot.lane.b32.xlu0 %v4237, 64
        %v4301 = vpop.permute.xlu0 %4300
        %4302 = vrot.lane.b32.xlu0 %v4296, 64
        %v4303 = vpop.permute.xlu0 %4302
        %4304 = vrot.lane.b32.xlu0 %v4238, 64
        %v4305 = vpop.permute.xlu0 %4304
        %4306 = vrot.lane.b32.xlu0 %v4297, 64
        %v4307 = vpop.permute.xlu0 %4306
        %4308 = vrot.lane.b32.xlu0 %v4239, 64
        %v4309 = vpop.permute.xlu0 %4308
        %4310 = vrot.lane.b32.xlu0 %v4298, 64
        %v4311 = vpop.permute.xlu0 %4310
        %4312 = vrot.lane.b32.xlu0 %v4240, 64
        %v4313 = vpop.permute.xlu0 %4312
        %4314 = vrot.lane.b32.xlu0 %v4299, 64
        %v4315 = vpop.permute.xlu0 %4314
        %v4316 = vsel %vm2825, %v4301, %v4303
        %v4317 = vsel %vm2825, %v4305, %v4307
        %v4318 = vsel %vm2825, %v4309, %v4311
        %v4319 = vsel %vm2825, %v4313, %v4315
        %4324 = vmatprep.subr.bf16.mxu0 0
        %4325 = vmatpush1.bf16.msra.mxu0 %v4316
        %4326 = vmatprep.subr.bf16.mxu0 0
        %4327 = vmatpush1.bf16.msra.mxu0 %v4317
        %4328 = vmatprep.subr.bf16.mxu0 0
        %4329 = vmatpush1.bf16.msra.mxu0 %v4318
        %4330 = vmatprep.subr.bf16.mxu0 0
        %4331 = vmatpush1.bf16.msra.mxu0 %v4319
        %4332 = vmatprep.subr.bf16.mxu0 0
        %4333 = vmatpush1.bf16.msra.mxu0 0
        %4334 = vmatprep.subr.bf16.mxu0 0
        %4335 = vmatpush1.bf16.msra.mxu0 0
        %4336 = vmatprep.subr.bf16.mxu0 0
        %4337 = vmatpush1.bf16.msra.mxu0 0
        %4338 = vmatprep.subr.bf16.mxu0 0
        %4339 = vmatpush1.bf16.msra.mxu0 0
        %4340 = vmatprep.subr.bf16.mxu0 0
        %4341 = vmatpush1.bf16.msra.mxu0 0
        %4342 = vmatprep.subr.bf16.mxu0 0
        %4343 = vmatpush1.bf16.msra.mxu0 0
        %4344 = vmatprep.subr.bf16.mxu0 0
        %4345 = vmatpush1.bf16.msra.mxu0 0
        %4346 = vmatprep.subr.bf16.mxu0 0
        %4347 = vmatpush1.bf16.msra.mxu0 0
        %4348 = vmatprep.subr.bf16.mxu0 0
        %4349 = vmatpush1.bf16.msra.mxu0 0
        %4350 = vmatprep.subr.bf16.mxu0 0
        %4351 = vmatpush1.bf16.msra.mxu0 0
        %4352 = vmatprep.subr.bf16.mxu0 0
        %4353 = vmatpush1.bf16.msra.mxu0 0
        %4354 = vmatprep.subr.bf16.mxu0 0
        %4355 = vmatpush1.bf16.msra.mxu0 0
        %4356 = vmatprep.mubr.bf16.mxu0 0
        %4357 = vmatmul.mubr.bf16.gmra.mrb[0].mxu0 %v2835
        %v4358 = vpop.f32.mrb[0].mxu0
        %v4359 = vadd.f32 0.0, %v4358
        %v4360 = vpop.f32.mrb[0].mxu0
        %v4361 = vpop.f32.mrb[0].mxu0
        %v4362 = vpop.f32.mrb[0].mxu0
        %4363 = vdwg.mxu0
        %v4364 = vpack.c.bf16 %v4283, %v4283
        %v4365 = vpack.c.bf16 %v4359, %v4359
        %v4367 = vsel %vm543, %v4364, 0
        %v4370 = vsel %vm543, %v4365, 0
        %4372 = vmatprep.subr.bf16.mxu0 0
        %4373 = vmatpush1.bf16.xpose.msra.mxu0 %v4370
        %4374 = vmatprep.subr.bf16.mxu0 0
        %4375 = vmatpush1.bf16.xpose.msra.mxu0 0
        %4376 = vmatprep.subr.bf16.mxu0 0
        %4377 = vmatpush1.bf16.xpose.msra.mxu0 0
        %4378 = vmatprep.subr.bf16.mxu0 0
        %4379 = vmatpush1.bf16.xpose.msra.mxu0 0
        %4380 = vmatprep.subr.bf16.mxu0 0
        %4381 = vmatpush1.bf16.xpose.msra.mxu0 0
        %4382 = vmatprep.subr.bf16.mxu0 0
        %4383 = vmatpush1.bf16.xpose.msra.mxu0 0
        %4384 = vmatprep.subr.bf16.mxu0 0
        %4385 = vmatpush1.bf16.xpose.msra.mxu0 0
        %4386 = vmatprep.subr.bf16.mxu0 0
        %4387 = vmatpush1.bf16.xpose.msra.mxu0 0
        %4388 = vmatprep.subr.bf16.mxu0 0
        %4389 = vmatpush1.bf16.xpose.msra.mxu0 0
        %4390 = vmatprep.subr.bf16.mxu0 0
        %4391 = vmatpush1.bf16.xpose.msra.mxu0 0
        %4392 = vmatprep.subr.bf16.mxu0 0
        %4393 = vmatpush1.bf16.xpose.msra.mxu0 0
        %4394 = vmatprep.subr.bf16.mxu0 0
        %4395 = vmatpush1.bf16.xpose.msra.mxu0 0
        %4396 = vmatprep.subr.bf16.mxu0 0
        %4397 = vmatpush1.bf16.xpose.msra.mxu0 0
        %4398 = vmatprep.subr.bf16.mxu0 0
        %4399 = vmatpush1.bf16.xpose.msra.mxu0 0
        %4400 = vmatprep.subr.bf16.mxu0 0
        %4401 = vmatpush1.bf16.xpose.msra.mxu0 0
        %4402 = vmatprep.subr.bf16.mxu0 0
        %4403 = vmatpush1.bf16.xpose.msra.mxu0 0
        %4404 = vmatprep.mubr.bf16.mxu0 0
        %4405 = vmatmul.mubr.bf16.gmra.mrb[0].mxu0 %v4367
        %v4406 = vpop.f32.mrb[0].mxu0
        %v4407 = vadd.f32 0.0, %v4406
        %v4408 = vpop.f32.mrb[0].mxu0
        %v4409 = vpop.f32.mrb[0].mxu0
        %v4410 = vpop.f32.mrb[0].mxu0
        %4411 = vdwg.mxu0
        %v4412 = vsel %vm590, %v4407, -inf
        %4413 = vmax.xlane.f32.xlu0 %v4412
        %v4414 = vpop.xlane.xlu0 %4413
        %v4415 = vsub.f32 %v4407, %v4414
        %v4416 = vmul.f32 %v4415, 1.442695
        %v4417 = vpow.pop %v4416
        %v4418 = vsel %vm590, %v4417, 0.0
        %4419 = vadd.xlane.f32.xlu0 %v4418
        %v4420 = vpop.xlane.xlu0 %4419
        %v4421 = vrcp.pop %v4420
        %v4422 = vmul.f32 %v4417, %v4421
        %v4423 = vpack.c.bf16 %v4422, %v4422
        %4425 = vrot.lane.b32.xlu0 %v4365, 64
        %v4426 = vpop.permute.xlu0 %4425
        %v4428 = vsel %vm590, %v4423, 0
        %v4431 = vsel %vm606, %v4426, 0
        %4433 = vmatprep.subr.bf16.mxu0 0
        %4434 = vmatpush1.bf16.msra.mxu0 %v4431
        %4435 = vmatprep.subr.bf16.mxu0 0
        %4436 = vmatpush1.bf16.msra.mxu0 0
        %4437 = vmatprep.subr.bf16.mxu0 0
        %4438 = vmatpush1.bf16.msra.mxu0 0
        %4439 = vmatprep.subr.bf16.mxu0 0
        %4440 = vmatpush1.bf16.msra.mxu0 0
        %4441 = vmatprep.subr.bf16.mxu0 0
        %4442 = vmatpush1.bf16.msra.mxu0 0
        %4443 = vmatprep.subr.bf16.mxu0 0
        %4444 = vmatpush1.bf16.msra.mxu0 0
        %4445 = vmatprep.subr.bf16.mxu0 0
        %4446 = vmatpush1.bf16.msra.mxu0 0
        %4447 = vmatprep.subr.bf16.mxu0 0
        %4448 = vmatpush1.bf16.msra.mxu0 0
        %4449 = vmatprep.subr.bf16.mxu0 0
        %4450 = vmatpush1.bf16.msra.mxu0 0
        %4451 = vmatprep.subr.bf16.mxu0 0
        %4452 = vmatpush1.bf16.msra.mxu0 0
        %4453 = vmatprep.subr.bf16.mxu0 0
        %4454 = vmatpush1.bf16.msra.mxu0 0
        %4455 = vmatprep.subr.bf16.mxu0 0
        %4456 = vmatpush1.bf16.msra.mxu0 0
        %4457 = vmatprep.subr.bf16.mxu0 0
        %4458 = vmatpush1.bf16.msra.mxu0 0
        %4459 = vmatprep.subr.bf16.mxu0 0
        %4460 = vmatpush1.bf16.msra.mxu0 0
        %4461 = vmatprep.subr.bf16.mxu0 0
        %4462 = vmatpush1.bf16.msra.mxu0 0
        %4463 = vmatprep.subr.bf16.mxu0 0
        %4464 = vmatpush1.bf16.msra.mxu0 0
        %4465 = vmatprep.mubr.bf16.mxu0 0
        %4466 = vmatmul.mubr.bf16.gmra.mrb[0].mxu0 %v4428
        %v4467 = vpop.f32.mrb[0].mxu0
        %v4468 = vadd.f32 0.0, %v4467
        %v4469 = vpop.f32.mrb[0].mxu0
        %v4470 = vpop.f32.mrb[0].mxu0
        %v4471 = vpop.f32.mrb[0].mxu0
        %4472 = vdwg.mxu0
        %4474 = vrot.lane.b32.xlu0 %v4364, 112
        %v4475 = vpop.permute.xlu0 %4474
        %4476 = vrot.lane.b32.xlu0 %v4365, 112
        %v4477 = vpop.permute.xlu0 %4476
        %v4479 = vsel %vm543, %v4475, 0
        %v4482 = vsel %vm543, %v4477, 0
        %4484 = vmatprep.subr.bf16.mxu0 0
        %4485 = vmatpush1.bf16.xpose.msra.mxu0 %v4482
        %4486 = vmatprep.subr.bf16.mxu0 0
        %4487 = vmatpush1.bf16.xpose.msra.mxu0 0
        %4488 = vmatprep.subr.bf16.mxu0 0
        %4489 = vmatpush1.bf16.xpose.msra.mxu0 0
        %4490 = vmatprep.subr.bf16.mxu0 0
        %4491 = vmatpush1.bf16.xpose.msra.mxu0 0
        %4492 = vmatprep.subr.bf16.mxu0 0
        %4493 = vmatpush1.bf16.xpose.msra.mxu0 0
        %4494 = vmatprep.subr.bf16.mxu0 0
        %4495 = vmatpush1.bf16.xpose.msra.mxu0 0
        %4496 = vmatprep.subr.bf16.mxu0 0
        %4497 = vmatpush1.bf16.xpose.msra.mxu0 0
        %4498 = vmatprep.subr.bf16.mxu0 0
        %4499 = vmatpush1.bf16.xpose.msra.mxu0 0
        %4500 = vmatprep.subr.bf16.mxu0 0
        %4501 = vmatpush1.bf16.xpose.msra.mxu0 0
        %4502 = vmatprep.subr.bf16.mxu0 0
        %4503 = vmatpush1.bf16.xpose.msra.mxu0 0
        %4504 = vmatprep.subr.bf16.mxu0 0
        %4505 = vmatpush1.bf16.xpose.msra.mxu0 0
        %4506 = vmatprep.subr.bf16.mxu0 0
        %4507 = vmatpush1.bf16.xpose.msra.mxu0 0
        %4508 = vmatprep.subr.bf16.mxu0 0
        %4509 = vmatpush1.bf16.xpose.msra.mxu0 0
        %4510 = vmatprep.subr.bf16.mxu0 0
        %4511 = vmatpush1.bf16.xpose.msra.mxu0 0
        %4512 = vmatprep.subr.bf16.mxu0 0
        %4513 = vmatpush1.bf16.xpose.msra.mxu0 0
        %4514 = vmatprep.subr.bf16.mxu0 0
        %4515 = vmatpush1.bf16.xpose.msra.mxu0 0
        %4516 = vmatprep.mubr.bf16.mxu0 0
        %4517 = vmatmul.mubr.bf16.gmra.mrb[0].mxu0 %v4479
        %v4518 = vpop.f32.mrb[0].mxu0
        %v4519 = vadd.f32 0.0, %v4518
        %v4520 = vpop.f32.mrb[0].mxu0
        %v4521 = vpop.f32.mrb[0].mxu0
        %v4522 = vpop.f32.mrb[0].mxu0
        %4523 = vdwg.mxu0
        %v4524 = vsel %vm590, %v4519, -inf
        %4525 = vmax.xlane.f32.xlu0 %v4524
        %v4526 = vpop.xlane.xlu0 %4525
        %v4527 = vsub.f32 %v4519, %v4526
        %v4528 = vmul.f32 %v4527, 1.442695
        %v4529 = vpow.pop %v4528
        %v4530 = vsel %vm590, %v4529, 0.0
        %4531 = vadd.xlane.f32.xlu0 %v4530
        %v4532 = vpop.xlane.xlu0 %4531
        %v4533 = vrcp.pop %v4532
        %v4534 = vmul.f32 %v4529, %v4533
        %v4535 = vpack.c.bf16 %v4534, %v4534
        %4536 = vrot.lane.b32.xlu0 %v4365, 48
        %v4537 = vpop.permute.xlu0 %4536
        %v4539 = vsel %vm590, %v4535, 0
        %v4542 = vsel %vm606, %v4537, 0
        %4544 = vmatprep.subr.bf16.mxu0 0
        %4545 = vmatpush1.bf16.msra.mxu0 %v4542
        %4546 = vmatprep.subr.bf16.mxu0 0
        %4547 = vmatpush1.bf16.msra.mxu0 0
        %4548 = vmatprep.subr.bf16.mxu0 0
        %4549 = vmatpush1.bf16.msra.mxu0 0
        %4550 = vmatprep.subr.bf16.mxu0 0
        %4551 = vmatpush1.bf16.msra.mxu0 0
        %4552 = vmatprep.subr.bf16.mxu0 0
        %4553 = vmatpush1.bf16.msra.mxu0 0
        %4554 = vmatprep.subr.bf16.mxu0 0
        %4555 = vmatpush1.bf16.msra.mxu0 0
        %4556 = vmatprep.subr.bf16.mxu0 0
        %4557 = vmatpush1.bf16.msra.mxu0 0
        %4558 = vmatprep.subr.bf16.mxu0 0
        %4559 = vmatpush1.bf16.msra.mxu0 0
        %4560 = vmatprep.subr.bf16.mxu0 0
        %4561 = vmatpush1.bf16.msra.mxu0 0
        %4562 = vmatprep.subr.bf16.mxu0 0
        %4563 = vmatpush1.bf16.msra.mxu0 0
        %4564 = vmatprep.subr.bf16.mxu0 0
        %4565 = vmatpush1.bf16.msra.mxu0 0
        %4566 = vmatprep.subr.bf16.mxu0 0
        %4567 = vmatpush1.bf16.msra.mxu0 0
        %4568 = vmatprep.subr.bf16.mxu0 0
        %4569 = vmatpush1.bf16.msra.mxu0 0
        %4570 = vmatprep.subr.bf16.mxu0 0
        %4571 = vmatpush1.bf16.msra.mxu0 0
        %4572 = vmatprep.subr.bf16.mxu0 0
        %4573 = vmatpush1.bf16.msra.mxu0 0
        %4574 = vmatprep.subr.bf16.mxu0 0
        %4575 = vmatpush1.bf16.msra.mxu0 0
        %4576 = vmatprep.mubr.bf16.mxu0 0
        %4577 = vmatmul.mubr.bf16.gmra.mrb[0].mxu0 %v4539
        %v4578 = vpop.f32.mrb[0].mxu0
        %v4579 = vadd.f32 0.0, %v4578
        %v4580 = vpop.f32.mrb[0].mxu0
        %v4581 = vpop.f32.mrb[0].mxu0
        %v4582 = vpop.f32.mrb[0].mxu0
        %4583 = vdwg.mxu0
        %4584 = vrot.lane.b32.xlu0 %v4364, 96
        %v4585 = vpop.permute.xlu0 %4584
        %4586 = vrot.lane.b32.xlu0 %v4365, 96
        %v4587 = vpop.permute.xlu0 %4586
        %v4589 = vsel %vm543, %v4585, 0
        %v4592 = vsel %vm543, %v4587, 0
        %4594 = vmatprep.subr.bf16.mxu0 0
        %4595 = vmatpush1.bf16.xpose.msra.mxu0 %v4592
        %4596 = vmatprep.subr.bf16.mxu0 0
        %4597 = vmatpush1.bf16.xpose.msra.mxu0 0
        %4598 = vmatprep.subr.bf16.mxu0 0
        %4599 = vmatpush1.bf16.xpose.msra.mxu0 0
        %4600 = vmatprep.subr.bf16.mxu0 0
        %4601 = vmatpush1.bf16.xpose.msra.mxu0 0
        %4602 = vmatprep.subr.bf16.mxu0 0
        %4603 = vmatpush1.bf16.xpose.msra.mxu0 0
        %4604 = vmatprep.subr.bf16.mxu0 0
        %4605 = vmatpush1.bf16.xpose.msra.mxu0 0
        %4606 = vmatprep.subr.bf16.mxu0 0
        %4607 = vmatpush1.bf16.xpose.msra.mxu0 0
        %4608 = vmatprep.subr.bf16.mxu0 0
        %4609 = vmatpush1.bf16.xpose.msra.mxu0 0
        %4610 = vmatprep.subr.bf16.mxu0 0
        %4611 = vmatpush1.bf16.xpose.msra.mxu0 0
        %4612 = vmatprep.subr.bf16.mxu0 0
        %4613 = vmatpush1.bf16.xpose.msra.mxu0 0
        %4614 = vmatprep.subr.bf16.mxu0 0
        %4615 = vmatpush1.bf16.xpose.msra.mxu0 0
        %4616 = vmatprep.subr.bf16.mxu0 0
        %4617 = vmatpush1.bf16.xpose.msra.mxu0 0
        %4618 = vmatprep.subr.bf16.mxu0 0
        %4619 = vmatpush1.bf16.xpose.msra.mxu0 0
        %4620 = vmatprep.subr.bf16.mxu0 0
        %4621 = vmatpush1.bf16.xpose.msra.mxu0 0
        %4622 = vmatprep.subr.bf16.mxu0 0
        %4623 = vmatpush1.bf16.xpose.msra.mxu0 0
        %4624 = vmatprep.subr.bf16.mxu0 0
        %4625 = vmatpush1.bf16.xpose.msra.mxu0 0
        %4626 = vmatprep.mubr.bf16.mxu0 0
        %4627 = vmatmul.mubr.bf16.gmra.mrb[0].mxu0 %v4589
        %v4628 = vpop.f32.mrb[0].mxu0
        %v4629 = vadd.f32 0.0, %v4628
        %v4630 = vpop.f32.mrb[0].mxu0
        %v4631 = vpop.f32.mrb[0].mxu0
        %v4632 = vpop.f32.mrb[0].mxu0
        %4633 = vdwg.mxu0
        %v4634 = vsel %vm590, %v4629, -inf
        %4635 = vmax.xlane.f32.xlu0 %v4634
        %v4636 = vpop.xlane.xlu0 %4635
        %v4637 = vsub.f32 %v4629, %v4636
        %v4638 = vmul.f32 %v4637, 1.442695
        %v4639 = vpow.pop %v4638
        %v4640 = vsel %vm590, %v4639, 0.0
        %4641 = vadd.xlane.f32.xlu0 %v4640
        %v4642 = vpop.xlane.xlu0 %4641
        %v4643 = vrcp.pop %v4642
        %v4644 = vmul.f32 %v4639, %v4643
        %v4645 = vpack.c.bf16 %v4644, %v4644
        %4646 = vrot.lane.b32.xlu0 %v4365, 32
        %v4647 = vpop.permute.xlu0 %4646
        %v4649 = vsel %vm590, %v4645, 0
        %v4652 = vsel %vm606, %v4647, 0
        %4654 = vmatprep.subr.bf16.mxu0 0
        %4655 = vmatpush1.bf16.msra.mxu0 %v4652
        %4656 = vmatprep.subr.bf16.mxu0 0
        %4657 = vmatpush1.bf16.msra.mxu0 0
        %4658 = vmatprep.subr.bf16.mxu0 0
        %4659 = vmatpush1.bf16.msra.mxu0 0
        %4660 = vmatprep.subr.bf16.mxu0 0
        %4661 = vmatpush1.bf16.msra.mxu0 0
        %4662 = vmatprep.subr.bf16.mxu0 0
        %4663 = vmatpush1.bf16.msra.mxu0 0
        %4664 = vmatprep.subr.bf16.mxu0 0
        %4665 = vmatpush1.bf16.msra.mxu0 0
        %4666 = vmatprep.subr.bf16.mxu0 0
        %4667 = vmatpush1.bf16.msra.mxu0 0
        %4668 = vmatprep.subr.bf16.mxu0 0
        %4669 = vmatpush1.bf16.msra.mxu0 0
        %4670 = vmatprep.subr.bf16.mxu0 0
        %4671 = vmatpush1.bf16.msra.mxu0 0
        %4672 = vmatprep.subr.bf16.mxu0 0
        %4673 = vmatpush1.bf16.msra.mxu0 0
        %4674 = vmatprep.subr.bf16.mxu0 0
        %4675 = vmatpush1.bf16.msra.mxu0 0
        %4676 = vmatprep.subr.bf16.mxu0 0
        %4677 = vmatpush1.bf16.msra.mxu0 0
        %4678 = vmatprep.subr.bf16.mxu0 0
        %4679 = vmatpush1.bf16.msra.mxu0 0
        %4680 = vmatprep.subr.bf16.mxu0 0
        %4681 = vmatpush1.bf16.msra.mxu0 0
        %4682 = vmatprep.subr.bf16.mxu0 0
        %4683 = vmatpush1.bf16.msra.mxu0 0
        %4684 = vmatprep.subr.bf16.mxu0 0
        %4685 = vmatpush1.bf16.msra.mxu0 0
        %4686 = vmatprep.mubr.bf16.mxu0 0
        %4687 = vmatmul.mubr.bf16.gmra.mrb[0].mxu0 %v4649
        %v4688 = vpop.f32.mrb[0].mxu0
        %v4689 = vadd.f32 0.0, %v4688
        %v4690 = vpop.f32.mrb[0].mxu0
        %v4691 = vpop.f32.mrb[0].mxu0
        %v4692 = vpop.f32.mrb[0].mxu0
        %4693 = vdwg.mxu0
        %4694 = vrot.lane.b32.xlu0 %v4364, 80
        %v4695 = vpop.permute.xlu0 %4694
        %4696 = vrot.lane.b32.xlu0 %v4365, 80
        %v4697 = vpop.permute.xlu0 %4696
        %v4699 = vsel %vm543, %v4695, 0
        %v4702 = vsel %vm543, %v4697, 0
        %4704 = vmatprep.subr.bf16.mxu0 0
        %4705 = vmatpush1.bf16.xpose.msra.mxu0 %v4702
        %4706 = vmatprep.subr.bf16.mxu0 0
        %4707 = vmatpush1.bf16.xpose.msra.mxu0 0
        %4708 = vmatprep.subr.bf16.mxu0 0
        %4709 = vmatpush1.bf16.xpose.msra.mxu0 0
        %4710 = vmatprep.subr.bf16.mxu0 0
        %4711 = vmatpush1.bf16.xpose.msra.mxu0 0
        %4712 = vmatprep.subr.bf16.mxu0 0
        %4713 = vmatpush1.bf16.xpose.msra.mxu0 0
        %4714 = vmatprep.subr.bf16.mxu0 0
        %4715 = vmatpush1.bf16.xpose.msra.mxu0 0
        %4716 = vmatprep.subr.bf16.mxu0 0
        %4717 = vmatpush1.bf16.xpose.msra.mxu0 0
        %4718 = vmatprep.subr.bf16.mxu0 0
        %4719 = vmatpush1.bf16.xpose.msra.mxu0 0
        %4720 = vmatprep.subr.bf16.mxu0 0
        %4721 = vmatpush1.bf16.xpose.msra.mxu0 0
        %4722 = vmatprep.subr.bf16.mxu0 0
        %4723 = vmatpush1.bf16.xpose.msra.mxu0 0
        %4724 = vmatprep.subr.bf16.mxu0 0
        %4725 = vmatpush1.bf16.xpose.msra.mxu0 0
        %4726 = vmatprep.subr.bf16.mxu0 0
        %4727 = vmatpush1.bf16.xpose.msra.mxu0 0
        %4728 = vmatprep.subr.bf16.mxu0 0
        %4729 = vmatpush1.bf16.xpose.msra.mxu0 0
        %4730 = vmatprep.subr.bf16.mxu0 0
        %4731 = vmatpush1.bf16.xpose.msra.mxu0 0
        %4732 = vmatprep.subr.bf16.mxu0 0
        %4733 = vmatpush1.bf16.xpose.msra.mxu0 0
        %4734 = vmatprep.subr.bf16.mxu0 0
        %4735 = vmatpush1.bf16.xpose.msra.mxu0 0
        %4736 = vmatprep.mubr.bf16.mxu0 0
        %4737 = vmatmul.mubr.bf16.gmra.mrb[0].mxu0 %v4699
        %v4738 = vpop.f32.mrb[0].mxu0
        %v4739 = vadd.f32 0.0, %v4738
        %v4740 = vpop.f32.mrb[0].mxu0
        %v4741 = vpop.f32.mrb[0].mxu0
        %v4742 = vpop.f32.mrb[0].mxu0
        %4743 = vdwg.mxu0
        %v4744 = vsel %vm590, %v4739, -inf
        %4745 = vmax.xlane.f32.xlu0 %v4744
        %v4746 = vpop.xlane.xlu0 %4745
        %v4747 = vsub.f32 %v4739, %v4746
        %v4748 = vmul.f32 %v4747, 1.442695
        %v4749 = vpow.pop %v4748
        %v4750 = vsel %vm590, %v4749, 0.0
        %4751 = vadd.xlane.f32.xlu0 %v4750
        %v4752 = vpop.xlane.xlu0 %4751
        %v4753 = vrcp.pop %v4752
        %v4754 = vmul.f32 %v4749, %v4753
        %v4755 = vpack.c.bf16 %v4754, %v4754
        %4756 = vrot.lane.b32.xlu0 %v4365, 16
        %v4757 = vpop.permute.xlu0 %4756
        %v4759 = vsel %vm590, %v4755, 0
        %v4762 = vsel %vm606, %v4757, 0
        %4764 = vmatprep.subr.bf16.mxu0 0
        %4765 = vmatpush1.bf16.msra.mxu0 %v4762
        %4766 = vmatprep.subr.bf16.mxu0 0
        %4767 = vmatpush1.bf16.msra.mxu0 0
        %4768 = vmatprep.subr.bf16.mxu0 0
        %4769 = vmatpush1.bf16.msra.mxu0 0
        %4770 = vmatprep.subr.bf16.mxu0 0
        %4771 = vmatpush1.bf16.msra.mxu0 0
        %4772 = vmatprep.subr.bf16.mxu0 0
        %4773 = vmatpush1.bf16.msra.mxu0 0
        %4774 = vmatprep.subr.bf16.mxu0 0
        %4775 = vmatpush1.bf16.msra.mxu0 0
        %4776 = vmatprep.subr.bf16.mxu0 0
        %4777 = vmatpush1.bf16.msra.mxu0 0
        %4778 = vmatprep.subr.bf16.mxu0 0
        %4779 = vmatpush1.bf16.msra.mxu0 0
        %4780 = vmatprep.subr.bf16.mxu0 0
        %4781 = vmatpush1.bf16.msra.mxu0 0
        %4782 = vmatprep.subr.bf16.mxu0 0
        %4783 = vmatpush1.bf16.msra.mxu0 0
        %4784 = vmatprep.subr.bf16.mxu0 0
        %4785 = vmatpush1.bf16.msra.mxu0 0
        %4786 = vmatprep.subr.bf16.mxu0 0
        %4787 = vmatpush1.bf16.msra.mxu0 0
        %4788 = vmatprep.subr.bf16.mxu0 0
        %4789 = vmatpush1.bf16.msra.mxu0 0
        %4790 = vmatprep.subr.bf16.mxu0 0
        %4791 = vmatpush1.bf16.msra.mxu0 0
        %4792 = vmatprep.subr.bf16.mxu0 0
        %4793 = vmatpush1.bf16.msra.mxu0 0
        %4794 = vmatprep.subr.bf16.mxu0 0
        %4795 = vmatpush1.bf16.msra.mxu0 0
        %4796 = vmatprep.mubr.bf16.mxu0 0
        %4797 = vmatmul.mubr.bf16.gmra.mrb[0].mxu0 %v4759
        %v4798 = vpop.f32.mrb[0].mxu0
        %v4799 = vadd.f32 0.0, %v4798
        %v4800 = vpop.f32.mrb[0].mxu0
        %v4801 = vpop.f32.mrb[0].mxu0
        %v4802 = vpop.f32.mrb[0].mxu0
        %4803 = vdwg.mxu0
        %4805 = vrot.lane.b32.xlu0 %v4579, 16
        %v4806 = vpop.permute.xlu0 %4805
        %4809 = vrot.lane.b32.xlu0 %v4689, 32
        %v4810 = vpop.permute.xlu0 %4809
        %4813 = vrot.lane.b32.xlu0 %v4799, 48
        %v4814 = vpop.permute.xlu0 %4813
        %v4816 = vsel %vm543, %v4468, %v4806
        %v4817 = vsel %vm994, %v4816, %v4810
        %v4818 = vsel %vm996, %v4817, %v4814
        %v4819 = vpack.c.bf16 %v4818, %v4818
        %v4825 = vsel %vm439, %v4819, 0
        %4827 = vmatprep.subr.bf16.mxu0 0
        %4828 = vmatpush1.bf16.msra.mxu0 %v4303
        %4829 = vmatprep.subr.bf16.mxu0 0
        %4830 = vmatpush1.bf16.msra.mxu0 %v4307
        %4831 = vmatprep.subr.bf16.mxu0 0
        %4832 = vmatpush1.bf16.msra.mxu0 %v4311
        %4833 = vmatprep.subr.bf16.mxu0 0
        %4834 = vmatpush1.bf16.msra.mxu0 %v4315
        %4835 = vmatprep.subr.bf16.mxu0 0
        %4836 = vmatpush1.bf16.msra.mxu0 0
        %4837 = vmatprep.subr.bf16.mxu0 0
        %4838 = vmatpush1.bf16.msra.mxu0 0
        %4839 = vmatprep.subr.bf16.mxu0 0
        %4840 = vmatpush1.bf16.msra.mxu0 0
        %4841 = vmatprep.subr.bf16.mxu0 0
        %4842 = vmatpush1.bf16.msra.mxu0 0
        %4843 = vmatprep.subr.bf16.mxu0 0
        %4844 = vmatpush1.bf16.msra.mxu0 0
        %4845 = vmatprep.subr.bf16.mxu0 0
        %4846 = vmatpush1.bf16.msra.mxu0 0
        %4847 = vmatprep.subr.bf16.mxu0 0
        %4848 = vmatpush1.bf16.msra.mxu0 0
        %4849 = vmatprep.subr.bf16.mxu0 0
        %4850 = vmatpush1.bf16.msra.mxu0 0
        %4851 = vmatprep.subr.bf16.mxu0 0
        %4852 = vmatpush1.bf16.msra.mxu0 0
        %4853 = vmatprep.subr.bf16.mxu0 0
        %4854 = vmatpush1.bf16.msra.mxu0 0
        %4855 = vmatprep.subr.bf16.mxu0 0
        %4856 = vmatpush1.bf16.msra.mxu0 0
        %4857 = vmatprep.subr.bf16.mxu0 0
        %4858 = vmatpush1.bf16.msra.mxu0 0
        %4859 = vmatprep.mubr.bf16.mxu0 0
        %4860 = vmatmul.mubr.bf16.gmra.mrb[0].mxu0 %v4825
        %v4861 = vpop.f32.mrb[0].mxu0
        %v4862 = vadd.f32 0.0, %v4861
        %v4863 = vpop.f32.mrb[0].mxu0
        %v4864 = vpop.f32.mrb[0].mxu0
        %v4865 = vpop.f32.mrb[0].mxu0
        %4866 = vdwg.mxu0
        %v4867 = vadd.f32 %v4206, %v4862
        %v4868 = vmul.f32 %v4867, %v4867
        %v4869 = vsel %vm439, %v4868, 0.0
        %4870 = vadd.xlane.f32.xlu0 %v4869
        %v4871 = vpop.xlane.xlu0 %4870
        %v4872 = vmul.f32 %v4871, %v443
        %v4873 = vadd.f32 %v4872, 1e-06
        %v4874 = vrsqrt.pop %v4873
        %v4875 = vmul.f32 %v4867, %v4874
        %v4876 = vlaneseq
        %v4877 = vshrl.u32 %v4876, 7
        %v4878 = vsub.s32 2, %v4877
        %v4879 = vrot.slane %v3554, %v4878
        %v4880 = vmul.f32 %v4875, %v4879
        %v4881 = vpack.c.bf16 %v4880, %v4880
        %v4890 = vunpack.c.l.b16 %v3558
        %v4891 = vunpack.c.l.b16 %v3561
        %v4892 = vunpack.c.l.b16 %v3564
        %v4893 = vunpack.c.l.b16 %v3567
        %v4894 = vunpack.c.l.b16 %v3570
        %v4895 = vunpack.c.l.b16 %v3573
        %v4896 = vunpack.c.l.b16 %v3576
        %v4897 = vunpack.c.l.b16 %v3579
        %v4898 = vpack.c.b16 %v4891, %v4890
        %v4899 = vpack.c.b16 %v4893, %v4892
        %v4900 = vpack.c.b16 %v4895, %v4894
        %v4901 = vpack.c.b16 %v4897, %v4896
        %v4907 = vsel %vm439, %v4881, 0
        %4909 = vmatprep.subr.bf16.mxu0 0
        %4910 = vmatpush1.bf16.msra.mxu0 %v4898
        %4911 = vmatprep.subr.bf16.mxu0 0
        %4912 = vmatpush1.bf16.msra.mxu0 %v4899
        %4913 = vmatprep.subr.bf16.mxu0 0
        %4914 = vmatpush1.bf16.msra.mxu0 %v4900
        %4915 = vmatprep.subr.bf16.mxu0 0
        %4916 = vmatpush1.bf16.msra.mxu0 %v4901
        %4917 = vmatprep.subr.bf16.mxu0 0
        %4918 = vmatpush1.bf16.msra.mxu0 0
        %4919 = vmatprep.subr.bf16.mxu0 0
        %4920 = vmatpush1.bf16.msra.mxu0 0
        %4921 = vmatprep.subr.bf16.mxu0 0
        %4922 = vmatpush1.bf16.msra.mxu0 0
        %4923 = vmatprep.subr.bf16.mxu0 0
        %4924 = vmatpush1.bf16.msra.mxu0 0
        %4925 = vmatprep.subr.bf16.mxu0 0
        %4926 = vmatpush1.bf16.msra.mxu0 0
        %4927 = vmatprep.subr.bf16.mxu0 0
        %4928 = vmatpush1.bf16.msra.mxu0 0
        %4929 = vmatprep.subr.bf16.mxu0 0
        %4930 = vmatpush1.bf16.msra.mxu0 0
        %4931 = vmatprep.subr.bf16.mxu0 0
        %4932 = vmatpush1.bf16.msra.mxu0 0
        %4933 = vmatprep.subr.bf16.mxu0 0
        %4934 = vmatpush1.bf16.msra.mxu0 0
        %4935 = vmatprep.subr.bf16.mxu0 0
        %4936 = vmatpush1.bf16.msra.mxu0 0
        %4937 = vmatprep.subr.bf16.mxu0 0
        %4938 = vmatpush1.bf16.msra.mxu0 0
        %4939 = vmatprep.subr.bf16.mxu0 0
        %4940 = vmatpush1.bf16.msra.mxu0 0
        %4941 = vmatprep.mubr.bf16.mxu0 0
        %4942 = vmatmul.mubr.bf16.gmra.mrb[0].mxu0 %v4907
        %v4943 = vpop.f32.mrb[0].mxu0
        %v4944 = vadd.f32 0.0, %v4943
        %v4945 = vpop.f32.mrb[0].mxu0
        %v4946 = vpop.f32.mrb[0].mxu0
        %v4947 = vpop.f32.mrb[0].mxu0
        %4948 = vdwg.mxu0
        %v4949 = vmax.f32 %v4944, 0.0
        %v4950 = vpack.c.bf16 %v4949, %v4949
        %v4967 = vunpack.c.l.b16 %v3581
        %v4968 = vunpack.c.l.b16 %v3582
        %v4969 = vunpack.c.l.b16 %v3583
        %v4970 = vunpack.c.l.b16 %v3584
        %v4971 = vunpack.c.l.b16 %v3585
        %v4972 = vunpack.c.l.b16 %v3586
        %v4973 = vunpack.c.l.b16 %v3587
        %v4974 = vunpack.c.l.b16 %v3588
        %v4975 = vunpack.c.l.b16 %v3589
        %v4976 = vunpack.c.l.b16 %v3590
        %v4977 = vunpack.c.l.b16 %v3591
        %v4978 = vunpack.c.l.b16 %v3592
        %v4979 = vunpack.c.l.b16 %v3593
        %v4980 = vunpack.c.l.b16 %v3594
        %v4981 = vunpack.c.l.b16 %v3595
        %v4982 = vunpack.c.l.b16 %v3596
        %v4983 = vpack.c.b16 %v4968, %v4967
        %v4984 = vpack.c.b16 %v4970, %v4969
        %v4985 = vpack.c.b16 %v4972, %v4971
        %v4986 = vpack.c.b16 %v4974, %v4973
        %v4987 = vpack.c.b16 %v4976, %v4975
        %v4988 = vpack.c.b16 %v4978, %v4977
        %v4989 = vpack.c.b16 %v4980, %v4979
        %v4990 = vpack.c.b16 %v4982, %v4981
        %4999 = vmatprep.subr.bf16.mxu0 0
        %5000 = vmatpush1.bf16.msra.mxu0 %v4983
        %5001 = vmatprep.subr.bf16.mxu0 0
        %5002 = vmatpush1.bf16.msra.mxu0 %v4984
        %5003 = vmatprep.subr.bf16.mxu0 0
        %5004 = vmatpush1.bf16.msra.mxu0 %v4985
        %5005 = vmatprep.subr.bf16.mxu0 0
        %5006 = vmatpush1.bf16.msra.mxu0 %v4986
        %5007 = vmatprep.subr.bf16.mxu0 0
        %5008 = vmatpush1.bf16.msra.mxu0 %v4987
        %5009 = vmatprep.subr.bf16.mxu0 0
        %5010 = vmatpush1.bf16.msra.mxu0 %v4988
        %5011 = vmatprep.subr.bf16.mxu0 0
        %5012 = vmatpush1.bf16.msra.mxu0 %v4989
        %5013 = vmatprep.subr.bf16.mxu0 0
        %5014 = vmatpush1.bf16.msra.mxu0 %v4990
        %5015 = vmatprep.subr.bf16.mxu0 0
        %5016 = vmatpush1.bf16.msra.mxu0 0
        %5017 = vmatprep.subr.bf16.mxu0 0
        %5018 = vmatpush1.bf16.msra.mxu0 0
        %5019 = vmatprep.subr.bf16.mxu0 0
        %5020 = vmatpush1.bf16.msra.mxu0 0
        %5021 = vmatprep.subr.bf16.mxu0 0
        %5022 = vmatpush1.bf16.msra.mxu0 0
        %5023 = vmatprep.subr.bf16.mxu0 0
        %5024 = vmatpush1.bf16.msra.mxu0 0
        %5025 = vmatprep.subr.bf16.mxu0 0
        %5026 = vmatpush1.bf16.msra.mxu0 0
        %5027 = vmatprep.subr.bf16.mxu0 0
        %5028 = vmatpush1.bf16.msra.mxu0 0
        %5029 = vmatprep.subr.bf16.mxu0 0
        %5030 = vmatpush1.bf16.msra.mxu0 0
        %5031 = vmatprep.mubr.bf16.mxu0 0
        %5032 = vmatmul.mubr.bf16.gmra.mrb[0].mxu0 %v4950
        %v5033 = vpop.f32.mrb[0].mxu0
        %v5034 = vadd.f32 0.0, %v5033
        %v5035 = vpop.f32.mrb[0].mxu0
        %v5036 = vpop.f32.mrb[0].mxu0
        %v5037 = vpop.f32.mrb[0].mxu0
        %5038 = vdwg.mxu0
        %v5039 = vadd.f32 %v4867, %v5034
        %v5040 = vld [vmem:[%s10 + $0x1] sm:$0x1]
        %v5041 = vmul.f32 %v5039, %v5039
        %v5042 = vsel %vm439, %v5041, 0.0
        %5043 = vadd.xlane.f32.xlu0 %v5042
        %v5044 = vpop.xlane.xlu0 %5043
        %v5045 = vmul.f32 %v5044, %v443
        %v5046 = vadd.f32 %v5045, 1e-06
        %v5047 = vrsqrt.pop %v5046
        %v5048 = vmul.f32 %v5039, %v5047
        %v5049 = vlaneseq
        %v5050 = vshrl.u32 %v5049, 7
        %v5051 = vsub.s32 0, %v5050
        %v5052 = vrot.slane %v5040, %v5051
        %v5053 = vmul.f32 %v5048, %v5052
        %5054 = vst.msk [vmem:[%s390] sm:$0xff] %vm439, %v5053
        %s5055 = sand.u32 %s274, 1
        %s5056 = scalar_lea.sflag [#allocation3], %s5055
        %s5057 = sand.u32 %s274, 1
        %s5058 = smul.addr %s5057, 8
        %s5059 = scalar_lea.vmem [#allocation2], %s5058
        // Predicated region
        $region65: #{t5_forward.1} parent=63 // pred_check
          %p5060 = pneg %p284
        $region66: #{t5_forward.1} parent=63 // pred_check_branch
          %5062 = sbr.rel (%p5060) target = $region68
        $region67: #{t5_forward.1} parent=63 // pred_region
          %s5064 = ssub.s32 128, 128
          %5065 = vsyncadd %s5056, %s5064
          %s5066 = smul.addr %s25, 128
          %s5067 = scalar_lea.hbm %s11, %s5066
          %s5069 = sshll.u32 %s5059, 4
          %s5070 = int_to_ptr.vmem [resolvable:$true] %s5069
          %5072 = dma.vmem_to_hbm [thread:$0]  %s5070, 128, %s5067, %s5056
        $region68: #{t5_forward.1} parent=63 // pred_fallthru
          _
      $region64: #{t5_forward.1} parent=5 // pred_fallthru
        _
      %p5073 = scmp.le.s32.totalorder 2, %s20
      // Predicated region
      $region69: #{t5_forward.1} parent=5 // pred_check
        %p5074 = pneg %p5073
      $region70: #{t5_forward.1} parent=5 // pred_check_branch
        %5076 = sbr.rel (%p5074) target = $region72
      $region71: #{t5_forward.1} parent=5 // pred_region
        %s5077 = ssub.s32 %s20, 2
        // Predicated region
        $region73: #{t5_forward.1} parent=71 // pred_check
          %p5078 = pneg %p290
        $region74: #{t5_forward.1} parent=71 // pred_check_branch
          %5080 = sbr.rel (%p5078) target = $region76
        $region75: #{t5_forward.1} parent=71 // pred_region
          %s5081 = sand.u32 %s275, 1
          %s5082 = scalar_lea.sflag [#allocation3], %s5081
          %s5083 = sand.u32 %s275, 1
          %s5084 = smul.addr %s5083, 8
          %s5085 = scalar_lea.vmem [#allocation2], %s5084
          %5086 = dma.done %s5082, 128
        $region76: #{t5_forward.1} parent=71 // pred_fallthru
          _
      $region72: #{t5_forward.1} parent=5 // pred_fallthru
        _
    $region6: #{t5_forward.1} parent=1 // loop_footer
      %s24 = sadd.s32 1, %s20
    $region7: #{t5_forward.1} parent=1 // loop_footer_branch
      %19 = sbr.rel target = $region3
    $region8: #{t5_forward.1} parent=1 // loop_exit
      _
    %5087 = vsyncpa [#allocation3], 1
    %s5088 = scalar_lea.sflag [#allocation3], 1
    %5089 = vsyncpa %s5088, 1

</llo_original>
